<compile_context>
chip_gen: v6e
topology: v6e:2x2x1
jax: 0.10.0
libtpu: 0.0.40
codegen_flags: <defaults>
</compile_context>

<pallas_src>
import functools

import jax
import jax.numpy as jnp
import numpy as np
from jax import lax
from jax.experimental import pallas as pl
from jax.experimental.pallas import tpu as pltpu

_VMEM_LIMIT_BYTES = 32 * 1024 * 1024  # > v5e's 16 MiB default, safe on v6e/v7x.


def _pick_row_tile(h, target):
    """Largest divisor of h that is <= target (>= 1)."""
    t = max(1, min(h, target))
    while h % t:
        t -= 1
    return t


# --------------------------------------------------------------------------
# In-kernel helpers
# --------------------------------------------------------------------------
def _tap_matmuls(xp_ref, w_refs, row0, k, th, wout):
    """sum_{i,j} xp[row0+i : row0+i+th, j : j+wout, :] @ w[i, j]   (stride 1).

    Each shifted input slab is loaded once and fed to every weight set, so the
    fused conv0/downsample kernel reads its input exactly once. f32 accumulate.
    """
    cin = xp_ref.shape[-1]
    accs = [jnp.zeros((th * wout, w_ref.shape[-1]), jnp.float32) for w_ref in w_refs]
    for i in range(k):
        for j in range(k):
            slab = xp_ref[pl.ds(row0 + i, th), pl.ds(j, wout), :]   # (th, wout, cin)
            a = slab.reshape(th * wout, cin)                        # layout no-op (wout % 8 == 0)
            for idx, w_ref in enumerate(w_refs):
                accs[idx] = accs[idx] + jnp.dot(
                    a, w_ref[i, j], preferred_element_type=jnp.float32)
    return accs


def _conv_relu_kernel(xp_ref, w_ref, b_ref, y_ref, *, k, th, wout):
    row0 = pl.multiple_of(pl.program_id(1) * th, th)
    (acc,) = _tap_matmuls(xp_ref, [w_ref], row0, k, th, wout)
    acc = jnp.maximum(acc + b_ref[...], 0.0)
    y_ref[...] = acc.reshape(y_ref.shape).astype(y_ref.dtype)


def _conv_relu_ds_kernel(xp_ref, w0_ref, b0_ref, wd_ref, bd_ref, y_ref, r_ref,
                         *, k, th, wout):
    # conv0 + ReLU and the downsample conv share all input reads.
    row0 = pl.multiple_of(pl.program_id(1) * th, th)
    acc0, accd = _tap_matmuls(xp_ref, [w0_ref, wd_ref], row0, k, th, wout)
    y_ref[...] = jnp.maximum(acc0 + b0_ref[...], 0.0).reshape(y_ref.shape).astype(y_ref.dtype)
    r_ref[...] = (accd + bd_ref[...]).reshape(r_ref.shape).astype(r_ref.dtype)


def _conv_res_kernel(yp_ref, w_ref, b_ref, r_ref, o_ref, *, k, th, wout):
    # conv1 + bias + residual add, fused epilogue.
    row0 = pl.multiple_of(pl.program_id(1) * th, th)
    (acc,) = _tap_matmuls(yp_ref, [w_ref], row0, k, th, wout)
    cout = o_ref.shape[-1]
    acc = acc + b_ref[...] + r_ref[...].reshape(th * wout, cout).astype(jnp.float32)
    o_ref[...] = acc.reshape(o_ref.shape).astype(o_ref.dtype)


# --------------------------------------------------------------------------
# BlockSpec / pallas_call plumbing
# --------------------------------------------------------------------------
def _resident_input_spec(hp, wp, cin):
    # Full padded image of one batch element; block index is constant along the
    # row-tile axis -> Pallas skips the re-DMA on revisit (fetched once per image).
    return pl.BlockSpec((None, hp, wp, cin), lambda b, t: (b, 0, 0, 0))


def _const_spec(shape):
    nd = len(shape)
    return pl.BlockSpec(shape, lambda b, t: (0,) * nd)


def _row_tile_spec(th, wout, cout):
    return pl.BlockSpec((None, th, wout, cout), lambda b, t: (b, t, 0, 0))


def _compiler_params():
    return pltpu.CompilerParams(
        dimension_semantics=("parallel", "parallel"),
        vmem_limit_bytes=_VMEM_LIMIT_BYTES)


def _cost(n, hout, wout, k, cin, cout, n_convs, extra_bytes=0):
    flops = 2 * n * hout * wout * k * k * cin * cout * n_convs
    bytes_accessed = 4 * (n * (hout + k - 1) * (wout + k - 1) * cin
                          + n_convs * (k * k * cin * cout + cout)
                          + n_convs * n * hout * wout * cout) + extra_bytes
    return pl.CostEstimate(flops=flops, transcendentals=0,
                           bytes_accessed=bytes_accessed)


def _conv0_pallas(x_nhwc, params, k, p, row_tile, has_ds):
    """conv0 + ReLU (and, if present, the fused downsample conv). Stride 1."""
    n, h, w, cin = x_nhwc.shape
    cout = params["w0"].shape[-1]
    xp = jnp.pad(x_nhwc, ((0, 0), (p, p), (p, p), (0, 0)))
    hp, wp = h + 2 * p, w + 2 * p
    hout, wout = hp - k + 1, wp - k + 1
    th = _pick_row_tile(hout, row_tile)
    grid = (n, hout // th)

    b0 = params["b0"].reshape(1, cout)
    out_sds = jax.ShapeDtypeStruct((n, hout, wout, cout), jnp.float32)

    if has_ds:
        bd = params["bd"].reshape(1, cout)
        kernel = functools.partial(_conv_relu_ds_kernel, k=k, th=th, wout=wout)
        y0, r = pl.pallas_call(
            kernel,
            out_shape=(out_sds, out_sds),
            grid=grid,
            in_specs=[
                _resident_input_spec(hp, wp, cin),
                _const_spec((k, k, cin, cout)),
                _const_spec((1, cout)),
                _const_spec((k, k, cin, cout)),
                _const_spec((1, cout)),
            ],
            out_specs=(_row_tile_spec(th, wout, cout),
                       _row_tile_spec(th, wout, cout)),
            compiler_params=_compiler_params(),
            cost_estimate=_cost(n, hout, wout, k, cin, cout, 2),
        )(xp, params["w0"], b0, params["wd"], bd)
        return y0, r

    kernel = functools.partial(_conv_relu_kernel, k=k, th=th, wout=wout)
    y0 = pl.pallas_call(
        kernel,
        out_shape=out_sds,
        grid=grid,
        in_specs=[
            _resident_input_spec(hp, wp, cin),
            _const_spec((k, k, cin, cout)),
            _const_spec((1, cout)),
        ],
        out_specs=_row_tile_spec(th, wout, cout),
        compiler_params=_compiler_params(),
        cost_estimate=_cost(n, hout, wout, k, cin, cout, 1),
    )(xp, params["w0"], b0)
    return y0, None


def _conv1_res_pallas(y0, r, w1, b1, k, p, row_tile):
    """conv1 (stride 1) + bias + residual add; residual aliased onto the output."""
    n, h0, w0_, cout = y0.shape
    yp = jnp.pad(y0, ((0, 0), (p, p), (p, p), (0, 0)))
    hp, wp = h0 + 2 * p, w0_ + 2 * p
    hout, wout = hp - k + 1, wp - k + 1
    assert r.shape == (n, hout, wout, cout), (r.shape, (n, hout, wout, cout))
    th = _pick_row_tile(hout, row_tile)
    grid = (n, hout // th)

    kernel = functools.partial(_conv_res_kernel, k=k, th=th, wout=wout)
    return pl.pallas_call(
        kernel,
        out_shape=jax.ShapeDtypeStruct((n, hout, wout, cout), jnp.float32),
        grid=grid,
        in_specs=[
            _resident_input_spec(hp, wp, cout),
            _const_spec((k, k, cout, cout)),
            _const_spec((1, cout)),
            _row_tile_spec(th, wout, cout),      # residual, tiled like the output
        ],
        out_specs=_row_tile_spec(th, wout, cout),
        input_output_aliases={3: 0},             # residual buffer reused as output
        compiler_params=_compiler_params(),
        cost_estimate=_cost(n, hout, wout, k, cout, cout, 1,
                            extra_bytes=4 * n * hout * wout * cout),
    )(yp, w1, b1.reshape(1, cout), r)


# --------------------------------------------------------------------------
# ResBlock forward (NCHW in / NCHW out, matching the PyTorch module)
# --------------------------------------------------------------------------
def res_block_forward(x_nchw, params, k_size, s, p, row_tile=8):
    if s != 1:
        # TODO(synk): strided (s > 1) conv0/downsample path not implemented in the Pallas kernels.
        raise NotImplementedError("Pallas ResBlock kernels currently require s == 1.")
    in_dim = x_nchw.shape[1]
    out_dim = params["w0"].shape[-1]
    # TODO(synk): accept NHWC directly to drop the two boundary transposes.
    x = jnp.transpose(x_nchw, (0, 2, 3, 1))              # NCHW -> NHWC
    has_ds = (in_dim != out_dim) or (s != 1)

    y0, r = _conv0_pallas(x, params, k_size, p, row_tile, has_ds)
    if not has_ds:
        r = x                                            # identity residual

    out = _conv1_res_pallas(y0, r, params["w1"], params["b1"], k_size, p, row_tile)
    return jnp.transpose(out, (0, 3, 1, 2))              # NHWC -> NCHW


# --------------------------------------------------------------------------
# Deterministic parameter init (weights stored HWIO: (KH, KW, Cin, Cout))
# --------------------------------------------------------------------------
def init_params(key, in_dim, out_dim, k_size, s):
    keys = jax.random.split(key, 6)

    def winit(k, cin, cout):
        scale = 1.0 / np.sqrt(cin * k_size * k_size)
        return jax.random.uniform(k, (k_size, k_size, cin, cout),
                                  jnp.float32, -scale, scale)

    params = {
        "w0": winit(keys[0], in_dim, out_dim),
        "b0": jax.random.uniform(keys[1], (out_dim,), jnp.float32, -0.1, 0.1),
        "w1": winit(keys[2], out_dim, out_dim),
        "b1": jax.random.uniform(keys[3], (out_dim,), jnp.float32, -0.1, 0.1),
    }
    if in_dim != out_dim or s != 1:
        params["wd"] = winit(keys[4], in_dim, out_dim)
        params["bd"] = jax.random.uniform(keys[5], (out_dim,), jnp.float32, -0.1, 0.1)
    return params


# --------------------------------------------------------------------------
# Pure-JAX reference (lax conv) for correctness checking
# --------------------------------------------------------------------------
def _ref_conv(x_nhwc, w_hwio, b, stride, pad):
    y = lax.conv_general_dilated(
        x_nhwc, w_hwio, window_strides=(stride, stride),
        padding=[(pad, pad), (pad, pad)],
        dimension_numbers=("NHWC", "HWIO", "NHWC"))
    return y + b.reshape(1, 1, 1, -1)


def res_block_reference(x_nchw, params, k_size, s, p):
    in_dim = x_nchw.shape[1]
    out_dim = params["w0"].shape[-1]
    x = jnp.transpose(x_nchw, (0, 2, 3, 1))
    y = jnp.maximum(_ref_conv(x, params["w0"], params["b0"], s, p), 0.0)
    y = _ref_conv(y, params["w1"], params["b1"], 1, p)
    if in_dim != out_dim or s != 1:
        r = _ref_conv(x, params["wd"], params["bd"], s, p)
    else:
        r = x
    return jnp.transpose(y + r, (0, 3, 1, 2))


# --------------------------------------------------------------------------
if __name__ == "__main__":
    # ResBlock(in_dim=4, out_dim=8, k_size=3, s=1, p=1) -> downsample branch active
    in_dim, out_dim, k_size, s, p = 4, 8, 3, 1, 1
    key = jax.random.PRNGKey(0)
    k_x, k_p = jax.random.split(key)

    x = jax.random.normal(k_x, (2, in_dim, 16, 16), jnp.float32)  # NCHW, like PyTorch
    params = init_params(k_p, in_dim, out_dim, k_size, s)

    fwd = jax.jit(functools.partial(res_block_forward, k_size=k_size, s=s, p=p))
    out = jax.block_until_ready(fwd(x, params))

    ref = jax.block_until_ready(res_block_reference(x, params, k_size, s, p))
    assert out.shape == (2, out_dim, 16, 16), out.shape
    np.testing.assert_allclose(np.asarray(out), np.asarray(ref), atol=1e-4, rtol=1e-4)

    print("KERNEL_OK")
</pallas_src>

<mosaic_0001>
module attributes {stable_mosaic.version = 11 : i64} {
  func.func @_conv_relu_ds_kernel(%arg0: i32, %arg1: i32, %arg2: memref<1x18x18x4xf32, #tpu.memory_space<vmem>>, %arg3: memref<3x3x4x8xf32, #tpu.memory_space<vmem>>, %arg4: memref<1x8xf32, #tpu.memory_space<vmem>>, %arg5: memref<3x3x4x8xf32, #tpu.memory_space<vmem>>, %arg6: memref<1x8xf32, #tpu.memory_space<vmem>>, %arg7: memref<1x8x16x8xf32, #tpu.memory_space<vmem>>, %arg8: memref<1x8x16x8xf32, #tpu.memory_space<vmem>>) attributes {dimension_semantics = [#tpu.dimension_semantics<parallel>, #tpu.dimension_semantics<parallel>], iteration_bounds = array<i64: 2, 2>, scalar_prefetch = 0 : i64, scratch_operands = 0 : i64, tpu.core_type = #tpu.core_type<tc>, window_params = [{transform_indices = @transform_0, window_bounds = array<i64: 1, 18, 18, 4>}, {pipeline_mode = #tpu.pipeline_mode<synchronous>, transform_indices = @transform_1, window_bounds = array<i64: 3, 3, 4, 8>}, {pipeline_mode = #tpu.pipeline_mode<synchronous>, transform_indices = @transform_2, window_bounds = array<i64: 1, 8>}, {pipeline_mode = #tpu.pipeline_mode<synchronous>, transform_indices = @transform_3, window_bounds = array<i64: 3, 3, 4, 8>}, {pipeline_mode = #tpu.pipeline_mode<synchronous>, transform_indices = @transform_4, window_bounds = array<i64: 1, 8>}, {transform_indices = @transform_5, window_bounds = array<i64: 1, 8, 16, 8>}, {transform_indices = @transform_6, window_bounds = array<i64: 1, 8, 16, 8>}]} {
    %c8_i32 = arith.constant 8 : i32
    %0 = arith.muli %arg1, %c8_i32 : i32
    %1 = tpu.assume_multiple %0, 8 : i32
    %cst = arith.constant 0.000000e+00 : f32
    %2 = vector.broadcast %cst : f32 to vector<128x8xf32>
    %cst_0 = arith.constant 0.000000e+00 : f32
    %3 = vector.broadcast %cst_0 : f32 to vector<128x8xf32>
    %c0_i32 = arith.constant 0 : i32
    %4 = arith.addi %1, %c0_i32 : i32
    %c0 = arith.constant 0 : index
    %5 = arith.index_cast %4 : i32 to index
    %c0_1 = arith.constant 0 : index
    %c0_2 = arith.constant 0 : index
    %6 = vector.load %arg2[%c0, %5, %c0_1, %c0_2] : memref<1x18x18x4xf32, #tpu.memory_space<vmem>>, vector<1x8x16x4xf32>
    %7 = vector.shape_cast %6 : vector<1x8x16x4xf32> to vector<8x16x4xf32>
    %8 = vector.shape_cast %7 : vector<8x16x4xf32> to vector<128x4xf32>
    %c0_3 = arith.constant 0 : index
    %c0_4 = arith.constant 0 : index
    %c0_5 = arith.constant 0 : index
    %c0_6 = arith.constant 0 : index
    %9 = vector.load %arg3[%c0_3, %c0_4, %c0_5, %c0_6] : memref<3x3x4x8xf32, #tpu.memory_space<vmem>>, vector<1x1x4x8xf32>
    %10 = vector.shape_cast %9 : vector<1x1x4x8xf32> to vector<4x8xf32>
    %cst_7 = arith.constant dense<0.000000e+00> : vector<128x8xf32>
    %11 = tpu.matmul %8, %10, %cst_7 {dimension_numbers = #tpu.dot_dimension_numbers<[1], [0], [0], [1], [0, 0, 1, 1], [], []>} : vector<128x4xf32>, vector<4x8xf32>, vector<128x8xf32> -> vector<128x8xf32>
    %12 = arith.addf %2, %11 : vector<128x8xf32>
    %c0_8 = arith.constant 0 : index
    %c0_9 = arith.constant 0 : index
    %c0_10 = arith.constant 0 : index
    %c0_11 = arith.constant 0 : index
    %13 = vector.load %arg5[%c0_8, %c0_9, %c0_10, %c0_11] : memref<3x3x4x8xf32, #tpu.memory_space<vmem>>, vector<1x1x4x8xf32>
    %14 = vector.shape_cast %13 : vector<1x1x4x8xf32> to vector<4x8xf32>
    %cst_12 = arith.constant dense<0.000000e+00> : vector<128x8xf32>
    %15 = tpu.matmul %8, %14, %cst_12 {dimension_numbers = #tpu.dot_dimension_numbers<[1], [0], [0], [1], [0, 0, 1, 1], [], []>} : vector<128x4xf32>, vector<4x8xf32>, vector<128x8xf32> -> vector<128x8xf32>
    %16 = arith.addf %3, %15 : vector<128x8xf32>
    %c0_i32_13 = arith.constant 0 : i32
    %17 = arith.addi %1, %c0_i32_13 : i32
    %c0_14 = arith.constant 0 : index
    %18 = arith.index_cast %17 : i32 to index
    %c1 = arith.constant 1 : index
    %c0_15 = arith.constant 0 : index
    %19 = vector.load %arg2[%c0_14, %18, %c1, %c0_15] : memref<1x18x18x4xf32, #tpu.memory_space<vmem>>, vector<1x8x16x4xf32>
    %20 = vector.shape_cast %19 : vector<1x8x16x4xf32> to vector<8x16x4xf32>
    %21 = vector.shape_cast %20 : vector<8x16x4xf32> to vector<128x4xf32>
    %c0_16 = arith.constant 0 : index
    %c1_17 = arith.constant 1 : index
    %c0_18 = arith.constant 0 : index
    %c0_19 = arith.constant 0 : index
    %22 = vector.load %arg3[%c0_16, %c1_17, %c0_18, %c0_19] : memref<3x3x4x8xf32, #tpu.memory_space<vmem>>, vector<1x1x4x8xf32>
    %23 = vector.shape_cast %22 : vector<1x1x4x8xf32> to vector<4x8xf32>
    %cst_20 = arith.constant dense<0.000000e+00> : vector<128x8xf32>
    %24 = tpu.matmul %21, %23, %cst_20 {dimension_numbers = #tpu.dot_dimension_numbers<[1], [0], [0], [1], [0, 0, 1, 1], [], []>} : vector<128x4xf32>, vector<4x8xf32>, vector<128x8xf32> -> vector<128x8xf32>
    %25 = arith.addf %12, %24 : vector<128x8xf32>
    %c0_21 = arith.constant 0 : index
    %c1_22 = arith.constant 1 : index
    %c0_23 = arith.constant 0 : index
    %c0_24 = arith.constant 0 : index
    %26 = vector.load %arg5[%c0_21, %c1_22, %c0_23, %c0_24] : memref<3x3x4x8xf32, #tpu.memory_space<vmem>>, vector<1x1x4x8xf32>
    %27 = vector.shape_cast %26 : vector<1x1x4x8xf32> to vector<4x8xf32>
    %cst_25 = arith.constant dense<0.000000e+00> : vector<128x8xf32>
    %28 = tpu.matmul %21, %27, %cst_25 {dimension_numbers = #tpu.dot_dimension_numbers<[1], [0], [0], [1], [0, 0, 1, 1], [], []>} : vector<128x4xf32>, vector<4x8xf32>, vector<128x8xf32> -> vector<128x8xf32>
    %29 = arith.addf %16, %28 : vector<128x8xf32>
    %c0_i32_26 = arith.constant 0 : i32
    %30 = arith.addi %1, %c0_i32_26 : i32
    %c0_27 = arith.constant 0 : index
    %31 = arith.index_cast %30 : i32 to index
    %c2 = arith.constant 2 : index
    %c0_28 = arith.constant 0 : index
    %32 = vector.load %arg2[%c0_27, %31, %c2, %c0_28] : memref<1x18x18x4xf32, #tpu.memory_space<vmem>>, vector<1x8x16x4xf32>
    %33 = vector.shape_cast %32 : vector<1x8x16x4xf32> to vector<8x16x4xf32>
    %34 = vector.shape_cast %33 : vector<8x16x4xf32> to vector<128x4xf32>
    %c0_29 = arith.constant 0 : index
    %c2_30 = arith.constant 2 : index
    %c0_31 = arith.constant 0 : index
    %c0_32 = arith.constant 0 : index
    %35 = vector.load %arg3[%c0_29, %c2_30, %c0_31, %c0_32] : memref<3x3x4x8xf32, #tpu.memory_space<vmem>>, vector<1x1x4x8xf32>
    %36 = vector.shape_cast %35 : vector<1x1x4x8xf32> to vector<4x8xf32>
    %cst_33 = arith.constant dense<0.000000e+00> : vector<128x8xf32>
    %37 = tpu.matmul %34, %36, %cst_33 {dimension_numbers = #tpu.dot_dimension_numbers<[1], [0], [0], [1], [0, 0, 1, 1], [], []>} : vector<128x4xf32>, vector<4x8xf32>, vector<128x8xf32> -> vector<128x8xf32>
    %38 = arith.addf %25, %37 : vector<128x8xf32>
    %c0_34 = arith.constant 0 : index
    %c2_35 = arith.constant 2 : index
    %c0_36 = arith.constant 0 : index
    %c0_37 = arith.constant 0 : index
    %39 = vector.load %arg5[%c0_34, %c2_35, %c0_36, %c0_37] : memref<3x3x4x8xf32, #tpu.memory_space<vmem>>, vector<1x1x4x8xf32>
    %40 = vector.shape_cast %39 : vector<1x1x4x8xf32> to vector<4x8xf32>
    %cst_38 = arith.constant dense<0.000000e+00> : vector<128x8xf32>
    %41 = tpu.matmul %34, %40, %cst_38 {dimension_numbers = #tpu.dot_dimension_numbers<[1], [0], [0], [1], [0, 0, 1, 1], [], []>} : vector<128x4xf32>, vector<4x8xf32>, vector<128x8xf32> -> vector<128x8xf32>
    %42 = arith.addf %29, %41 : vector<128x8xf32>
    %c1_i32 = arith.constant 1 : i32
    %43 = arith.addi %1, %c1_i32 : i32
    %c0_39 = arith.constant 0 : index
    %44 = arith.index_cast %43 : i32 to index
    %c0_40 = arith.constant 0 : index
    %c0_41 = arith.constant 0 : index
    %45 = vector.load %arg2[%c0_39, %44, %c0_40, %c0_41] : memref<1x18x18x4xf32, #tpu.memory_space<vmem>>, vector<1x8x16x4xf32>
    %46 = vector.shape_cast %45 : vector<1x8x16x4xf32> to vector<8x16x4xf32>
    %47 = vector.shape_cast %46 : vector<8x16x4xf32> to vector<128x4xf32>
    %c1_42 = arith.constant 1 : index
    %c0_43 = arith.constant 0 : index
    %c0_44 = arith.constant 0 : index
    %c0_45 = arith.constant 0 : index
    %48 = vector.load %arg3[%c1_42, %c0_43, %c0_44, %c0_45] : memref<3x3x4x8xf32, #tpu.memory_space<vmem>>, vector<1x1x4x8xf32>
    %49 = vector.shape_cast %48 : vector<1x1x4x8xf32> to vector<4x8xf32>
    %cst_46 = arith.constant dense<0.000000e+00> : vector<128x8xf32>
    %50 = tpu.matmul %47, %49, %cst_46 {dimension_numbers = #tpu.dot_dimension_numbers<[1], [0], [0], [1], [0, 0, 1, 1], [], []>} : vector<128x4xf32>, vector<4x8xf32>, vector<128x8xf32> -> vector<128x8xf32>
    %51 = arith.addf %38, %50 : vector<128x8xf32>
    %c1_47 = arith.constant 1 : index
    %c0_48 = arith.constant 0 : index
    %c0_49 = arith.constant 0 : index
    %c0_50 = arith.constant 0 : index
    %52 = vector.load %arg5[%c1_47, %c0_48, %c0_49, %c0_50] : memref<3x3x4x8xf32, #tpu.memory_space<vmem>>, vector<1x1x4x8xf32>
    %53 = vector.shape_cast %52 : vector<1x1x4x8xf32> to vector<4x8xf32>
    %cst_51 = arith.constant dense<0.000000e+00> : vector<128x8xf32>
    %54 = tpu.matmul %47, %53, %cst_51 {dimension_numbers = #tpu.dot_dimension_numbers<[1], [0], [0], [1], [0, 0, 1, 1], [], []>} : vector<128x4xf32>, vector<4x8xf32>, vector<128x8xf32> -> vector<128x8xf32>
    %55 = arith.addf %42, %54 : vector<128x8xf32>
    %c1_i32_52 = arith.constant 1 : i32
    %56 = arith.addi %1, %c1_i32_52 : i32
    %c0_53 = arith.constant 0 : index
    %57 = arith.index_cast %56 : i32 to index
    %c1_54 = arith.constant 1 : index
    %c0_55 = arith.constant 0 : index
    %58 = vector.load %arg2[%c0_53, %57, %c1_54, %c0_55] : memref<1x18x18x4xf32, #tpu.memory_space<vmem>>, vector<1x8x16x4xf32>
    %59 = vector.shape_cast %58 : vector<1x8x16x4xf32> to vector<8x16x4xf32>
    %60 = vector.shape_cast %59 : vector<8x16x4xf32> to vector<128x4xf32>
    %c1_56 = arith.constant 1 : index
    %c1_57 = arith.constant 1 : index
    %c0_58 = arith.constant 0 : index
    %c0_59 = arith.constant 0 : index
    %61 = vector.load %arg3[%c1_56, %c1_57, %c0_58, %c0_59] : memref<3x3x4x8xf32, #tpu.memory_space<vmem>>, vector<1x1x4x8xf32>
    %62 = vector.shape_cast %61 : vector<1x1x4x8xf32> to vector<4x8xf32>
    %cst_60 = arith.constant dense<0.000000e+00> : vector<128x8xf32>
    %63 = tpu.matmul %60, %62, %cst_60 {dimension_numbers = #tpu.dot_dimension_numbers<[1], [0], [0], [1], [0, 0, 1, 1], [], []>} : vector<128x4xf32>, vector<4x8xf32>, vector<128x8xf32> -> vector<128x8xf32>
    %64 = arith.addf %51, %63 : vector<128x8xf32>
    %c1_61 = arith.constant 1 : index
    %c1_62 = arith.constant 1 : index
    %c0_63 = arith.constant 0 : index
    %c0_64 = arith.constant 0 : index
    %65 = vector.load %arg5[%c1_61, %c1_62, %c0_63, %c0_64] : memref<3x3x4x8xf32, #tpu.memory_space<vmem>>, vector<1x1x4x8xf32>
    %66 = vector.shape_cast %65 : vector<1x1x4x8xf32> to vector<4x8xf32>
    %cst_65 = arith.constant dense<0.000000e+00> : vector<128x8xf32>
    %67 = tpu.matmul %60, %66, %cst_65 {dimension_numbers = #tpu.dot_dimension_numbers<[1], [0], [0], [1], [0, 0, 1, 1], [], []>} : vector<128x4xf32>, vector<4x8xf32>, vector<128x8xf32> -> vector<128x8xf32>
    %68 = arith.addf %55, %67 : vector<128x8xf32>
    %c1_i32_66 = arith.constant 1 : i32
    %69 = arith.addi %1, %c1_i32_66 : i32
    %c0_67 = arith.constant 0 : index
    %70 = arith.index_cast %69 : i32 to index
    %c2_68 = arith.constant 2 : index
    %c0_69 = arith.constant 0 : index
    %71 = vector.load %arg2[%c0_67, %70, %c2_68, %c0_69] : memref<1x18x18x4xf32, #tpu.memory_space<vmem>>, vector<1x8x16x4xf32>
    %72 = vector.shape_cast %71 : vector<1x8x16x4xf32> to vector<8x16x4xf32>
    %73 = vector.shape_cast %72 : vector<8x16x4xf32> to vector<128x4xf32>
    %c1_70 = arith.constant 1 : index
    %c2_71 = arith.constant 2 : index
    %c0_72 = arith.constant 0 : index
    %c0_73 = arith.constant 0 : index
    %74 = vector.load %arg3[%c1_70, %c2_71, %c0_72, %c0_73] : memref<3x3x4x8xf32, #tpu.memory_space<vmem>>, vector<1x1x4x8xf32>
    %75 = vector.shape_cast %74 : vector<1x1x4x8xf32> to vector<4x8xf32>
    %cst_74 = arith.constant dense<0.000000e+00> : vector<128x8xf32>
    %76 = tpu.matmul %73, %75, %cst_74 {dimension_numbers = #tpu.dot_dimension_numbers<[1], [0], [0], [1], [0, 0, 1, 1], [], []>} : vector<128x4xf32>, vector<4x8xf32>, vector<128x8xf32> -> vector<128x8xf32>
    %77 = arith.addf %64, %76 : vector<128x8xf32>
    %c1_75 = arith.constant 1 : index
    %c2_76 = arith.constant 2 : index
    %c0_77 = arith.constant 0 : index
    %c0_78 = arith.constant 0 : index
    %78 = vector.load %arg5[%c1_75, %c2_76, %c0_77, %c0_78] : memref<3x3x4x8xf32, #tpu.memory_space<vmem>>, vector<1x1x4x8xf32>
    %79 = vector.shape_cast %78 : vector<1x1x4x8xf32> to vector<4x8xf32>
    %cst_79 = arith.constant dense<0.000000e+00> : vector<128x8xf32>
    %80 = tpu.matmul %73, %79, %cst_79 {dimension_numbers = #tpu.dot_dimension_numbers<[1], [0], [0], [1], [0, 0, 1, 1], [], []>} : vector<128x4xf32>, vector<4x8xf32>, vector<128x8xf32> -> vector<128x8xf32>
    %81 = arith.addf %68, %80 : vector<128x8xf32>
    %c2_i32 = arith.constant 2 : i32
    %82 = arith.addi %1, %c2_i32 : i32
    %c0_80 = arith.constant 0 : index
    %83 = arith.index_cast %82 : i32 to index
    %c0_81 = arith.constant 0 : index
    %c0_82 = arith.constant 0 : index
    %84 = vector.load %arg2[%c0_80, %83, %c0_81, %c0_82] : memref<1x18x18x4xf32, #tpu.memory_space<vmem>>, vector<1x8x16x4xf32>
    %85 = vector.shape_cast %84 : vector<1x8x16x4xf32> to vector<8x16x4xf32>
    %86 = vector.shape_cast %85 : vector<8x16x4xf32> to vector<128x4xf32>
    %c2_83 = arith.constant 2 : index
    %c0_84 = arith.constant 0 : index
    %c0_85 = arith.constant 0 : index
    %c0_86 = arith.constant 0 : index
    %87 = vector.load %arg3[%c2_83, %c0_84, %c0_85, %c0_86] : memref<3x3x4x8xf32, #tpu.memory_space<vmem>>, vector<1x1x4x8xf32>
    %88 = vector.shape_cast %87 : vector<1x1x4x8xf32> to vector<4x8xf32>
    %cst_87 = arith.constant dense<0.000000e+00> : vector<128x8xf32>
    %89 = tpu.matmul %86, %88, %cst_87 {dimension_numbers = #tpu.dot_dimension_numbers<[1], [0], [0], [1], [0, 0, 1, 1], [], []>} : vector<128x4xf32>, vector<4x8xf32>, vector<128x8xf32> -> vector<128x8xf32>
    %90 = arith.addf %77, %89 : vector<128x8xf32>
    %c2_88 = arith.constant 2 : index
    %c0_89 = arith.constant 0 : index
    %c0_90 = arith.constant 0 : index
    %c0_91 = arith.constant 0 : index
    %91 = vector.load %arg5[%c2_88, %c0_89, %c0_90, %c0_91] : memref<3x3x4x8xf32, #tpu.memory_space<vmem>>, vector<1x1x4x8xf32>
    %92 = vector.shape_cast %91 : vector<1x1x4x8xf32> to vector<4x8xf32>
    %cst_92 = arith.constant dense<0.000000e+00> : vector<128x8xf32>
    %93 = tpu.matmul %86, %92, %cst_92 {dimension_numbers = #tpu.dot_dimension_numbers<[1], [0], [0], [1], [0, 0, 1, 1], [], []>} : vector<128x4xf32>, vector<4x8xf32>, vector<128x8xf32> -> vector<128x8xf32>
    %94 = arith.addf %81, %93 : vector<128x8xf32>
    %c2_i32_93 = arith.constant 2 : i32
    %95 = arith.addi %1, %c2_i32_93 : i32
    %c0_94 = arith.constant 0 : index
    %96 = arith.index_cast %95 : i32 to index
    %c1_95 = arith.constant 1 : index
    %c0_96 = arith.constant 0 : index
    %97 = vector.load %arg2[%c0_94, %96, %c1_95, %c0_96] : memref<1x18x18x4xf32, #tpu.memory_space<vmem>>, vector<1x8x16x4xf32>
    %98 = vector.shape_cast %97 : vector<1x8x16x4xf32> to vector<8x16x4xf32>
    %99 = vector.shape_cast %98 : vector<8x16x4xf32> to vector<128x4xf32>
    %c2_97 = arith.constant 2 : index
    %c1_98 = arith.constant 1 : index
    %c0_99 = arith.constant 0 : index
    %c0_100 = arith.constant 0 : index
    %100 = vector.load %arg3[%c2_97, %c1_98, %c0_99, %c0_100] : memref<3x3x4x8xf32, #tpu.memory_space<vmem>>, vector<1x1x4x8xf32>
    %101 = vector.shape_cast %100 : vector<1x1x4x8xf32> to vector<4x8xf32>
    %cst_101 = arith.constant dense<0.000000e+00> : vector<128x8xf32>
    %102 = tpu.matmul %99, %101, %cst_101 {dimension_numbers = #tpu.dot_dimension_numbers<[1], [0], [0], [1], [0, 0, 1, 1], [], []>} : vector<128x4xf32>, vector<4x8xf32>, vector<128x8xf32> -> vector<128x8xf32>
    %103 = arith.addf %90, %102 : vector<128x8xf32>
    %c2_102 = arith.constant 2 : index
    %c1_103 = arith.constant 1 : index
    %c0_104 = arith.constant 0 : index
    %c0_105 = arith.constant 0 : index
    %104 = vector.load %arg5[%c2_102, %c1_103, %c0_104, %c0_105] : memref<3x3x4x8xf32, #tpu.memory_space<vmem>>, vector<1x1x4x8xf32>
    %105 = vector.shape_cast %104 : vector<1x1x4x8xf32> to vector<4x8xf32>
    %cst_106 = arith.constant dense<0.000000e+00> : vector<128x8xf32>
    %106 = tpu.matmul %99, %105, %cst_106 {dimension_numbers = #tpu.dot_dimension_numbers<[1], [0], [0], [1], [0, 0, 1, 1], [], []>} : vector<128x4xf32>, vector<4x8xf32>, vector<128x8xf32> -> vector<128x8xf32>
    %107 = arith.addf %94, %106 : vector<128x8xf32>
    %c2_i32_107 = arith.constant 2 : i32
    %108 = arith.addi %1, %c2_i32_107 : i32
    %c0_108 = arith.constant 0 : index
    %109 = arith.index_cast %108 : i32 to index
    %c2_109 = arith.constant 2 : index
    %c0_110 = arith.constant 0 : index
    %110 = vector.load %arg2[%c0_108, %109, %c2_109, %c0_110] : memref<1x18x18x4xf32, #tpu.memory_space<vmem>>, vector<1x8x16x4xf32>
    %111 = vector.shape_cast %110 : vector<1x8x16x4xf32> to vector<8x16x4xf32>
    %112 = vector.shape_cast %111 : vector<8x16x4xf32> to vector<128x4xf32>
    %c2_111 = arith.constant 2 : index
    %c2_112 = arith.constant 2 : index
    %c0_113 = arith.constant 0 : index
    %c0_114 = arith.constant 0 : index
    %113 = vector.load %arg3[%c2_111, %c2_112, %c0_113, %c0_114] : memref<3x3x4x8xf32, #tpu.memory_space<vmem>>, vector<1x1x4x8xf32>
    %114 = vector.shape_cast %113 : vector<1x1x4x8xf32> to vector<4x8xf32>
    %cst_115 = arith.constant dense<0.000000e+00> : vector<128x8xf32>
    %115 = tpu.matmul %112, %114, %cst_115 {dimension_numbers = #tpu.dot_dimension_numbers<[1], [0], [0], [1], [0, 0, 1, 1], [], []>} : vector<128x4xf32>, vector<4x8xf32>, vector<128x8xf32> -> vector<128x8xf32>
    %116 = arith.addf %103, %115 : vector<128x8xf32>
    %c2_116 = arith.constant 2 : index
    %c2_117 = arith.constant 2 : index
    %c0_118 = arith.constant 0 : index
    %c0_119 = arith.constant 0 : index
    %117 = vector.load %arg5[%c2_116, %c2_117, %c0_118, %c0_119] : memref<3x3x4x8xf32, #tpu.memory_space<vmem>>, vector<1x1x4x8xf32>
    %118 = vector.shape_cast %117 : vector<1x1x4x8xf32> to vector<4x8xf32>
    %cst_120 = arith.constant dense<0.000000e+00> : vector<128x8xf32>
    %119 = tpu.matmul %112, %118, %cst_120 {dimension_numbers = #tpu.dot_dimension_numbers<[1], [0], [0], [1], [0, 0, 1, 1], [], []>} : vector<128x4xf32>, vector<4x8xf32>, vector<128x8xf32> -> vector<128x8xf32>
    %120 = arith.addf %107, %119 : vector<128x8xf32>
    %c0_121 = arith.constant 0 : index
    %c0_122 = arith.constant 0 : index
    %121 = vector.load %arg4[%c0_121, %c0_122] : memref<1x8xf32, #tpu.memory_space<vmem>>, vector<1x8xf32>
    %122 = vector.broadcast %121 : vector<1x8xf32> to vector<128x8xf32>
    %123 = arith.addf %116, %122 : vector<128x8xf32>
    %cst_123 = arith.constant 0.000000e+00 : f32
    %124 = vector.broadcast %cst_123 : f32 to vector<128x8xf32>
    %125 = arith.maximumf %123, %124 : vector<128x8xf32>
    %126 = vector.shape_cast %125 : vector<128x8xf32> to vector<8x16x8xf32>
    %c0_124 = arith.constant 0 : index
    %c0_125 = arith.constant 0 : index
    %c0_126 = arith.constant 0 : index
    %c0_127 = arith.constant 0 : index
    %127 = vector.load %arg7[%c0_124, %c0_125, %c0_126, %c0_127] : memref<1x8x16x8xf32, #tpu.memory_space<vmem>>, vector<1x8x16x8xf32>
    %128 = vector.shape_cast %127 : vector<1x8x16x8xf32> to vector<8x16x8xf32>
    %129 = vector.shape_cast %126 : vector<8x16x8xf32> to vector<1x8x16x8xf32>
    tpu.vector_store %arg7[%c0_124, %c0_125, %c0_126, %c0_127], %129 {strides = array<i32>} : memref<1x8x16x8xf32, #tpu.memory_space<vmem>>, vector<1x8x16x8xf32>,
    %c0_128 = arith.constant 0 : index
    %c0_129 = arith.constant 0 : index
    %130 = vector.load %arg6[%c0_128, %c0_129] : memref<1x8xf32, #tpu.memory_space<vmem>>, vector<1x8xf32>
    %131 = vector.broadcast %130 : vector<1x8xf32> to vector<128x8xf32>
    %132 = arith.addf %120, %131 : vector<128x8xf32>
    %133 = vector.shape_cast %132 : vector<128x8xf32> to vector<8x16x8xf32>
    %c0_130 = arith.constant 0 : index
    %c0_131 = arith.constant 0 : index
    %c0_132 = arith.constant 0 : index
    %c0_133 = arith.constant 0 : index
    %134 = vector.load %arg8[%c0_130, %c0_131, %c0_132, %c0_133] : memref<1x8x16x8xf32, #tpu.memory_space<vmem>>, vector<1x8x16x8xf32>
    %135 = vector.shape_cast %134 : vector<1x8x16x8xf32> to vector<8x16x8xf32>
    %136 = vector.shape_cast %133 : vector<8x16x8xf32> to vector<1x8x16x8xf32>
    tpu.vector_store %arg8[%c0_130, %c0_131, %c0_132, %c0_133], %136 {strides = array<i32>} : memref<1x8x16x8xf32, #tpu.memory_space<vmem>>, vector<1x8x16x8xf32>,
    return
  }
  func.func @transform_0(%arg0: i32, %arg1: i32) -> (i32, i32, i32, i32) {
    %c0_i32 = arith.constant 0 : i32
    %c0_i32_0 = arith.constant 0 : i32
    %c0_i32_1 = arith.constant 0 : i32
    %c0_i32_2 = arith.constant 0 : i32
    return %arg0, %c0_i32, %c0_i32_0, %c0_i32_1 : i32, i32, i32, i32
  }
  func.func @transform_1(%arg0: i32, %arg1: i32) -> (i32, i32, i32, i32) {
    %c0_i32 = arith.constant 0 : i32
    %c0_i32_0 = arith.constant 0 : i32
    %c0_i32_1 = arith.constant 0 : i32
    %c0_i32_2 = arith.constant 0 : i32
    %c0_i32_3 = arith.constant 0 : i32
    return %c0_i32, %c0_i32_0, %c0_i32_1, %c0_i32_2 : i32, i32, i32, i32
  }
  func.func @transform_2(%arg0: i32, %arg1: i32) -> (i32, i32) {
    %c0_i32 = arith.constant 0 : i32
    %c0_i32_0 = arith.constant 0 : i32
    %c0_i32_1 = arith.constant 0 : i32
    return %c0_i32, %c0_i32_0 : i32, i32
  }
  func.func @transform_3(%arg0: i32, %arg1: i32) -> (i32, i32, i32, i32) {
    %c0_i32 = arith.constant 0 : i32
    %c0_i32_0 = arith.constant 0 : i32
    %c0_i32_1 = arith.constant 0 : i32
    %c0_i32_2 = arith.constant 0 : i32
    %c0_i32_3 = arith.constant 0 : i32
    return %c0_i32, %c0_i32_0, %c0_i32_1, %c0_i32_2 : i32, i32, i32, i32
  }
  func.func @transform_4(%arg0: i32, %arg1: i32) -> (i32, i32) {
    %c0_i32 = arith.constant 0 : i32
    %c0_i32_0 = arith.constant 0 : i32
    %c0_i32_1 = arith.constant 0 : i32
    return %c0_i32, %c0_i32_0 : i32, i32
  }
  func.func @transform_5(%arg0: i32, %arg1: i32) -> (i32, i32, i32, i32) {
    %c0_i32 = arith.constant 0 : i32
    %c0_i32_0 = arith.constant 0 : i32
    %c0_i32_1 = arith.constant 0 : i32
    return %arg0, %arg1, %c0_i32, %c0_i32_0 : i32, i32, i32, i32
  }
  func.func @transform_6(%arg0: i32, %arg1: i32) -> (i32, i32, i32, i32) {
    %c0_i32 = arith.constant 0 : i32
    %c0_i32_0 = arith.constant 0 : i32
    %c0_i32_1 = arith.constant 0 : i32
    return %arg0, %arg1, %c0_i32, %c0_i32_0 : i32, i32, i32, i32
  }
}

module attributes {stable_mosaic.version = 11 : i64} {
  func.func @_conv_res_kernel(%arg0: i32, %arg1: i32, %arg2: memref<1x18x18x8xf32, #tpu.memory_space<vmem>>, %arg3: memref<3x3x8x8xf32, #tpu.memory_space<vmem>>, %arg4: memref<1x8xf32, #tpu.memory_space<vmem>>, %arg5: memref<1x8x16x8xf32, #tpu.memory_space<vmem>>, %arg6: memref<1x8x16x8xf32, #tpu.memory_space<vmem>>) attributes {dimension_semantics = [#tpu.dimension_semantics<parallel>, #tpu.dimension_semantics<parallel>], iteration_bounds = array<i64: 2, 2>, scalar_prefetch = 0 : i64, scratch_operands = 0 : i64, tpu.core_type = #tpu.core_type<tc>, window_params = [{transform_indices = @transform_0, window_bounds = array<i64: 1, 18, 18, 8>}, {pipeline_mode = #tpu.pipeline_mode<synchronous>, transform_indices = @transform_1, window_bounds = array<i64: 3, 3, 8, 8>}, {pipeline_mode = #tpu.pipeline_mode<synchronous>, transform_indices = @transform_2, window_bounds = array<i64: 1, 8>}, {transform_indices = @transform_3, window_bounds = array<i64: 1, 8, 16, 8>}, {transform_indices = @transform_4, window_bounds = array<i64: 1, 8, 16, 8>}]} {
    %c8_i32 = arith.constant 8 : i32
    %0 = arith.muli %arg1, %c8_i32 : i32
    %1 = tpu.assume_multiple %0, 8 : i32
    %cst = arith.constant 0.000000e+00 : f32
    %2 = vector.broadcast %cst : f32 to vector<128x8xf32>
    %c0_i32 = arith.constant 0 : i32
    %3 = arith.addi %1, %c0_i32 : i32
    %c0 = arith.constant 0 : index
    %4 = arith.index_cast %3 : i32 to index
    %c0_0 = arith.constant 0 : index
    %c0_1 = arith.constant 0 : index
    %5 = vector.load %arg2[%c0, %4, %c0_0, %c0_1] : memref<1x18x18x8xf32, #tpu.memory_space<vmem>>, vector<1x8x16x8xf32>
    %6 = vector.shape_cast %5 : vector<1x8x16x8xf32> to vector<8x16x8xf32>
    %7 = vector.shape_cast %6 : vector<8x16x8xf32> to vector<128x8xf32>
    %c0_2 = arith.constant 0 : index
    %c0_3 = arith.constant 0 : index
    %c0_4 = arith.constant 0 : index
    %c0_5 = arith.constant 0 : index
    %8 = vector.load %arg3[%c0_2, %c0_3, %c0_4, %c0_5] : memref<3x3x8x8xf32, #tpu.memory_space<vmem>>, vector<1x1x8x8xf32>
    %9 = vector.shape_cast %8 : vector<1x1x8x8xf32> to vector<8x8xf32>
    %cst_6 = arith.constant dense<0.000000e+00> : vector<128x8xf32>
    %10 = tpu.matmul %7, %9, %cst_6 {dimension_numbers = #tpu.dot_dimension_numbers<[1], [0], [0], [1], [0, 0, 1, 1], [], []>} : vector<128x8xf32>, vector<8x8xf32>, vector<128x8xf32> -> vector<128x8xf32>
    %11 = arith.addf %2, %10 : vector<128x8xf32>
    %c0_i32_7 = arith.constant 0 : i32
    %12 = arith.addi %1, %c0_i32_7 : i32
    %c0_8 = arith.constant 0 : index
    %13 = arith.index_cast %12 : i32 to index
    %c1 = arith.constant 1 : index
    %c0_9 = arith.constant 0 : index
    %14 = vector.load %arg2[%c0_8, %13, %c1, %c0_9] : memref<1x18x18x8xf32, #tpu.memory_space<vmem>>, vector<1x8x16x8xf32>
    %15 = vector.shape_cast %14 : vector<1x8x16x8xf32> to vector<8x16x8xf32>
    %16 = vector.shape_cast %15 : vector<8x16x8xf32> to vector<128x8xf32>
    %c0_10 = arith.constant 0 : index
    %c1_11 = arith.constant 1 : index
    %c0_12 = arith.constant 0 : index
    %c0_13 = arith.constant 0 : index
    %17 = vector.load %arg3[%c0_10, %c1_11, %c0_12, %c0_13] : memref<3x3x8x8xf32, #tpu.memory_space<vmem>>, vector<1x1x8x8xf32>
    %18 = vector.shape_cast %17 : vector<1x1x8x8xf32> to vector<8x8xf32>
    %cst_14 = arith.constant dense<0.000000e+00> : vector<128x8xf32>
    %19 = tpu.matmul %16, %18, %cst_14 {dimension_numbers = #tpu.dot_dimension_numbers<[1], [0], [0], [1], [0, 0, 1, 1], [], []>} : vector<128x8xf32>, vector<8x8xf32>, vector<128x8xf32> -> vector<128x8xf32>
    %20 = arith.addf %11, %19 : vector<128x8xf32>
    %c0_i32_15 = arith.constant 0 : i32
    %21 = arith.addi %1, %c0_i32_15 : i32
    %c0_16 = arith.constant 0 : index
    %22 = arith.index_cast %21 : i32 to index
    %c2 = arith.constant 2 : index
    %c0_17 = arith.constant 0 : index
    %23 = vector.load %arg2[%c0_16, %22, %c2, %c0_17] : memref<1x18x18x8xf32, #tpu.memory_space<vmem>>, vector<1x8x16x8xf32>
    %24 = vector.shape_cast %23 : vector<1x8x16x8xf32> to vector<8x16x8xf32>
    %25 = vector.shape_cast %24 : vector<8x16x8xf32> to vector<128x8xf32>
    %c0_18 = arith.constant 0 : index
    %c2_19 = arith.constant 2 : index
    %c0_20 = arith.constant 0 : index
    %c0_21 = arith.constant 0 : index
    %26 = vector.load %arg3[%c0_18, %c2_19, %c0_20, %c0_21] : memref<3x3x8x8xf32, #tpu.memory_space<vmem>>, vector<1x1x8x8xf32>
    %27 = vector.shape_cast %26 : vector<1x1x8x8xf32> to vector<8x8xf32>
    %cst_22 = arith.constant dense<0.000000e+00> : vector<128x8xf32>
    %28 = tpu.matmul %25, %27, %cst_22 {dimension_numbers = #tpu.dot_dimension_numbers<[1], [0], [0], [1], [0, 0, 1, 1], [], []>} : vector<128x8xf32>, vector<8x8xf32>, vector<128x8xf32> -> vector<128x8xf32>
    %29 = arith.addf %20, %28 : vector<128x8xf32>
    %c1_i32 = arith.constant 1 : i32
    %30 = arith.addi %1, %c1_i32 : i32
    %c0_23 = arith.constant 0 : index
    %31 = arith.index_cast %30 : i32 to index
    %c0_24 = arith.constant 0 : index
    %c0_25 = arith.constant 0 : index
    %32 = vector.load %arg2[%c0_23, %31, %c0_24, %c0_25] : memref<1x18x18x8xf32, #tpu.memory_space<vmem>>, vector<1x8x16x8xf32>
    %33 = vector.shape_cast %32 : vector<1x8x16x8xf32> to vector<8x16x8xf32>
    %34 = vector.shape_cast %33 : vector<8x16x8xf32> to vector<128x8xf32>
    %c1_26 = arith.constant 1 : index
    %c0_27 = arith.constant 0 : index
    %c0_28 = arith.constant 0 : index
    %c0_29 = arith.constant 0 : index
    %35 = vector.load %arg3[%c1_26, %c0_27, %c0_28, %c0_29] : memref<3x3x8x8xf32, #tpu.memory_space<vmem>>, vector<1x1x8x8xf32>
    %36 = vector.shape_cast %35 : vector<1x1x8x8xf32> to vector<8x8xf32>
    %cst_30 = arith.constant dense<0.000000e+00> : vector<128x8xf32>
    %37 = tpu.matmul %34, %36, %cst_30 {dimension_numbers = #tpu.dot_dimension_numbers<[1], [0], [0], [1], [0, 0, 1, 1], [], []>} : vector<128x8xf32>, vector<8x8xf32>, vector<128x8xf32> -> vector<128x8xf32>
    %38 = arith.addf %29, %37 : vector<128x8xf32>
    %c1_i32_31 = arith.constant 1 : i32
    %39 = arith.addi %1, %c1_i32_31 : i32
    %c0_32 = arith.constant 0 : index
    %40 = arith.index_cast %39 : i32 to index
    %c1_33 = arith.constant 1 : index
    %c0_34 = arith.constant 0 : index
    %41 = vector.load %arg2[%c0_32, %40, %c1_33, %c0_34] : memref<1x18x18x8xf32, #tpu.memory_space<vmem>>, vector<1x8x16x8xf32>
    %42 = vector.shape_cast %41 : vector<1x8x16x8xf32> to vector<8x16x8xf32>
    %43 = vector.shape_cast %42 : vector<8x16x8xf32> to vector<128x8xf32>
    %c1_35 = arith.constant 1 : index
    %c1_36 = arith.constant 1 : index
    %c0_37 = arith.constant 0 : index
    %c0_38 = arith.constant 0 : index
    %44 = vector.load %arg3[%c1_35, %c1_36, %c0_37, %c0_38] : memref<3x3x8x8xf32, #tpu.memory_space<vmem>>, vector<1x1x8x8xf32>
    %45 = vector.shape_cast %44 : vector<1x1x8x8xf32> to vector<8x8xf32>
    %cst_39 = arith.constant dense<0.000000e+00> : vector<128x8xf32>
    %46 = tpu.matmul %43, %45, %cst_39 {dimension_numbers = #tpu.dot_dimension_numbers<[1], [0], [0], [1], [0, 0, 1, 1], [], []>} : vector<128x8xf32>, vector<8x8xf32>, vector<128x8xf32> -> vector<128x8xf32>
    %47 = arith.addf %38, %46 : vector<128x8xf32>
    %c1_i32_40 = arith.constant 1 : i32
    %48 = arith.addi %1, %c1_i32_40 : i32
    %c0_41 = arith.constant 0 : index
    %49 = arith.index_cast %48 : i32 to index
    %c2_42 = arith.constant 2 : index
    %c0_43 = arith.constant 0 : index
    %50 = vector.load %arg2[%c0_41, %49, %c2_42, %c0_43] : memref<1x18x18x8xf32, #tpu.memory_space<vmem>>, vector<1x8x16x8xf32>
    %51 = vector.shape_cast %50 : vector<1x8x16x8xf32> to vector<8x16x8xf32>
    %52 = vector.shape_cast %51 : vector<8x16x8xf32> to vector<128x8xf32>
    %c1_44 = arith.constant 1 : index
    %c2_45 = arith.constant 2 : index
    %c0_46 = arith.constant 0 : index
    %c0_47 = arith.constant 0 : index
    %53 = vector.load %arg3[%c1_44, %c2_45, %c0_46, %c0_47] : memref<3x3x8x8xf32, #tpu.memory_space<vmem>>, vector<1x1x8x8xf32>
    %54 = vector.shape_cast %53 : vector<1x1x8x8xf32> to vector<8x8xf32>
    %cst_48 = arith.constant dense<0.000000e+00> : vector<128x8xf32>
    %55 = tpu.matmul %52, %54, %cst_48 {dimension_numbers = #tpu.dot_dimension_numbers<[1], [0], [0], [1], [0, 0, 1, 1], [], []>} : vector<128x8xf32>, vector<8x8xf32>, vector<128x8xf32> -> vector<128x8xf32>
    %56 = arith.addf %47, %55 : vector<128x8xf32>
    %c2_i32 = arith.constant 2 : i32
    %57 = arith.addi %1, %c2_i32 : i32
    %c0_49 = arith.constant 0 : index
    %58 = arith.index_cast %57 : i32 to index
    %c0_50 = arith.constant 0 : index
    %c0_51 = arith.constant 0 : index
    %59 = vector.load %arg2[%c0_49, %58, %c0_50, %c0_51] : memref<1x18x18x8xf32, #tpu.memory_space<vmem>>, vector<1x8x16x8xf32>
    %60 = vector.shape_cast %59 : vector<1x8x16x8xf32> to vector<8x16x8xf32>
    %61 = vector.shape_cast %60 : vector<8x16x8xf32> to vector<128x8xf32>
    %c2_52 = arith.constant 2 : index
    %c0_53 = arith.constant 0 : index
    %c0_54 = arith.constant 0 : index
    %c0_55 = arith.constant 0 : index
    %62 = vector.load %arg3[%c2_52, %c0_53, %c0_54, %c0_55] : memref<3x3x8x8xf32, #tpu.memory_space<vmem>>, vector<1x1x8x8xf32>
    %63 = vector.shape_cast %62 : vector<1x1x8x8xf32> to vector<8x8xf32>
    %cst_56 = arith.constant dense<0.000000e+00> : vector<128x8xf32>
    %64 = tpu.matmul %61, %63, %cst_56 {dimension_numbers = #tpu.dot_dimension_numbers<[1], [0], [0], [1], [0, 0, 1, 1], [], []>} : vector<128x8xf32>, vector<8x8xf32>, vector<128x8xf32> -> vector<128x8xf32>
    %65 = arith.addf %56, %64 : vector<128x8xf32>
    %c2_i32_57 = arith.constant 2 : i32
    %66 = arith.addi %1, %c2_i32_57 : i32
    %c0_58 = arith.constant 0 : index
    %67 = arith.index_cast %66 : i32 to index
    %c1_59 = arith.constant 1 : index
    %c0_60 = arith.constant 0 : index
    %68 = vector.load %arg2[%c0_58, %67, %c1_59, %c0_60] : memref<1x18x18x8xf32, #tpu.memory_space<vmem>>, vector<1x8x16x8xf32>
    %69 = vector.shape_cast %68 : vector<1x8x16x8xf32> to vector<8x16x8xf32>
    %70 = vector.shape_cast %69 : vector<8x16x8xf32> to vector<128x8xf32>
    %c2_61 = arith.constant 2 : index
    %c1_62 = arith.constant 1 : index
    %c0_63 = arith.constant 0 : index
    %c0_64 = arith.constant 0 : index
    %71 = vector.load %arg3[%c2_61, %c1_62, %c0_63, %c0_64] : memref<3x3x8x8xf32, #tpu.memory_space<vmem>>, vector<1x1x8x8xf32>
    %72 = vector.shape_cast %71 : vector<1x1x8x8xf32> to vector<8x8xf32>
    %cst_65 = arith.constant dense<0.000000e+00> : vector<128x8xf32>
    %73 = tpu.matmul %70, %72, %cst_65 {dimension_numbers = #tpu.dot_dimension_numbers<[1], [0], [0], [1], [0, 0, 1, 1], [], []>} : vector<128x8xf32>, vector<8x8xf32>, vector<128x8xf32> -> vector<128x8xf32>
    %74 = arith.addf %65, %73 : vector<128x8xf32>
    %c2_i32_66 = arith.constant 2 : i32
    %75 = arith.addi %1, %c2_i32_66 : i32
    %c0_67 = arith.constant 0 : index
    %76 = arith.index_cast %75 : i32 to index
    %c2_68 = arith.constant 2 : index
    %c0_69 = arith.constant 0 : index
    %77 = vector.load %arg2[%c0_67, %76, %c2_68, %c0_69] : memref<1x18x18x8xf32, #tpu.memory_space<vmem>>, vector<1x8x16x8xf32>
    %78 = vector.shape_cast %77 : vector<1x8x16x8xf32> to vector<8x16x8xf32>
    %79 = vector.shape_cast %78 : vector<8x16x8xf32> to vector<128x8xf32>
    %c2_70 = arith.constant 2 : index
    %c2_71 = arith.constant 2 : index
    %c0_72 = arith.constant 0 : index
    %c0_73 = arith.constant 0 : index
    %80 = vector.load %arg3[%c2_70, %c2_71, %c0_72, %c0_73] : memref<3x3x8x8xf32, #tpu.memory_space<vmem>>, vector<1x1x8x8xf32>
    %81 = vector.shape_cast %80 : vector<1x1x8x8xf32> to vector<8x8xf32>
    %cst_74 = arith.constant dense<0.000000e+00> : vector<128x8xf32>
    %82 = tpu.matmul %79, %81, %cst_74 {dimension_numbers = #tpu.dot_dimension_numbers<[1], [0], [0], [1], [0, 0, 1, 1], [], []>} : vector<128x8xf32>, vector<8x8xf32>, vector<128x8xf32> -> vector<128x8xf32>
    %83 = arith.addf %74, %82 : vector<128x8xf32>
    %c0_75 = arith.constant 0 : index
    %c0_76 = arith.constant 0 : index
    %84 = vector.load %arg4[%c0_75, %c0_76] : memref<1x8xf32, #tpu.memory_space<vmem>>, vector<1x8xf32>
    %85 = vector.broadcast %84 : vector<1x8xf32> to vector<128x8xf32>
    %86 = arith.addf %83, %85 : vector<128x8xf32>
    %c0_77 = arith.constant 0 : index
    %c0_78 = arith.constant 0 : index
    %c0_79 = arith.constant 0 : index
    %c0_80 = arith.constant 0 : index
    %87 = vector.load %arg5[%c0_77, %c0_78, %c0_79, %c0_80] : memref<1x8x16x8xf32, #tpu.memory_space<vmem>>, vector<1x8x16x8xf32>
    %88 = vector.shape_cast %87 : vector<1x8x16x8xf32> to vector<8x16x8xf32>
    %89 = vector.shape_cast %88 : vector<8x16x8xf32> to vector<128x8xf32>
    %90 = arith.addf %86, %89 : vector<128x8xf32>
    %91 = vector.shape_cast %90 : vector<128x8xf32> to vector<8x16x8xf32>
    %c0_81 = arith.constant 0 : index
    %c0_82 = arith.constant 0 : index
    %c0_83 = arith.constant 0 : index
    %c0_84 = arith.constant 0 : index
    %92 = vector.load %arg6[%c0_81, %c0_82, %c0_83, %c0_84] : memref<1x8x16x8xf32, #tpu.memory_space<vmem>>, vector<1x8x16x8xf32>
    %93 = vector.shape_cast %92 : vector<1x8x16x8xf32> to vector<8x16x8xf32>
    %94 = vector.shape_cast %91 : vector<8x16x8xf32> to vector<1x8x16x8xf32>
    tpu.vector_store %arg6[%c0_81, %c0_82, %c0_83, %c0_84], %94 {strides = array<i32>} : memref<1x8x16x8xf32, #tpu.memory_space<vmem>>, vector<1x8x16x8xf32>,
    return
  }
  func.func @transform_0(%arg0: i32, %arg1: i32) -> (i32, i32, i32, i32) {
    %c0_i32 = arith.constant 0 : i32
    %c0_i32_0 = arith.constant 0 : i32
    %c0_i32_1 = arith.constant 0 : i32
    %c0_i32_2 = arith.constant 0 : i32
    return %arg0, %c0_i32, %c0_i32_0, %c0_i32_1 : i32, i32, i32, i32
  }
  func.func @transform_1(%arg0: i32, %arg1: i32) -> (i32, i32, i32, i32) {
    %c0_i32 = arith.constant 0 : i32
    %c0_i32_0 = arith.constant 0 : i32
    %c0_i32_1 = arith.constant 0 : i32
    %c0_i32_2 = arith.constant 0 : i32
    %c0_i32_3 = arith.constant 0 : i32
    return %c0_i32, %c0_i32_0, %c0_i32_1, %c0_i32_2 : i32, i32, i32, i32
  }
  func.func @transform_2(%arg0: i32, %arg1: i32) -> (i32, i32) {
    %c0_i32 = arith.constant 0 : i32
    %c0_i32_0 = arith.constant 0 : i32
    %c0_i32_1 = arith.constant 0 : i32
    return %c0_i32, %c0_i32_0 : i32, i32
  }
  func.func @transform_3(%arg0: i32, %arg1: i32) -> (i32, i32, i32, i32) {
    %c0_i32 = arith.constant 0 : i32
    %c0_i32_0 = arith.constant 0 : i32
    %c0_i32_1 = arith.constant 0 : i32
    return %arg0, %arg1, %c0_i32, %c0_i32_0 : i32, i32, i32, i32
  }
  func.func @transform_4(%arg0: i32, %arg1: i32) -> (i32, i32, i32, i32) {
    %c0_i32 = arith.constant 0 : i32
    %c0_i32_0 = arith.constant 0 : i32
    %c0_i32_1 = arith.constant 0 : i32
    return %arg0, %arg1, %c0_i32, %c0_i32_0 : i32, i32, i32, i32
  }
}

</mosaic_0001>

<llo_original>
// kernel: res_block_forward.3
$region0: #{res_block_forward.3}
  #allocation0 [shape = 'u32[]', space=smem, size = 0x4, offset = 0x4, fixed_abs, tag = 'smem constant byte address 0x4 - core index']
  #allocation1 [shape = 'u32[144,128]{1,0:T(1,128)}', space=vmem, size = 0x12000, scoped, tag = 'internal scratch']
  %s0 = inlined_call_operand.vmem [shape: f32[2,18,18,8], index: 0, kind: input, shape index: {}]
  %s1 = inlined_call_operand.vmem [shape: f32[3,3,8,8], index: 1, kind: input, shape index: {}]
  %s2 = inlined_call_operand.vmem [shape: f32[1,8], index: 2, kind: input, shape index: {}]
  %s3 = inlined_call_operand.vmem [shape: f32[2,16,16,8], index: 3, kind: input, shape index: {}, may-alias: {3,4}]
  %s4 = inlined_call_operand.vmem [shape: f32[2,16,16,8], index: 4, kind: output, shape index: {}, may-alias: {3,4}]
  %s5 = sld [smem:[#allocation0]]
  $region49: #{res_block_forward.3} parent=0
    _
  %s7 = ssub.s32 1, %s5
  %s8 = scalar_select 0, %s7, %s5
  loop: start=0, step=1, limit=6
  $region2: #{res_block_forward.3} parent=0 // loop_pre_header
    _
  $region3: #{res_block_forward.3} parent=0 // loop_header
    %s10 = sphi 0, %s14
    %p11 = scmp.ge.s32.totalorder %s10, 6
    %s17 = sphi 0, %s29
    %s18 = sphi 0, %s25
    %s19 = sphi 0, %s17
    %s20 = sphi 0, %s18
    %s21 = sphi 0, %s19
    %s22 = sphi 0, %s20
    %s32 = sphi 0, %s34
    %s35 = sphi 0, %s32
    %s36 = sphi 0, %s35
    %s52 = sphi 0, %s36
    %s56 = sphi 0, %s56
    %s58 = sphi 0, %s56
    %s59 = sphi 0, %s58
    %s73 = sphi 0, %s59
    %s77 = sphi 0, %s77
    %s79 = sphi 0, %s77
    %s80 = sphi 0, %s79
    %s94 = sphi 0, %s80
    %s102 = sphi 0, %s104
    %s105 = sphi 0, %s102
    %s106 = sphi 0, %s105
    %s122 = sphi 0, %s106
    %s130 = sphi 0, %s132
    %s133 = sphi 0, %s130
    %s134 = sphi 0, %s133
    %s150 = sphi 0, %s134
  $region4: #{res_block_forward.3} parent=0 // loop_header_branch
    %13 = sbr.rel (%p11) target = $region8
  $region5: #{res_block_forward.3} parent=0 // loop_body
    %s15 = ssub.s32 %s10, 1
    %s16 = ssub.s32 %s10, 2
    %s23 = sadd.s32 1, %s18
    %p24 = scmp.ge.s32.totalorder %s23, 2
    %s25 = scalar_select %p24, 0, %s23
    %s26 = sadd.s32 1, %s17
    %s27 = scalar_select %p24, %s26, %s17
    %p28 = scmp.ge.s32.totalorder %s27, 2
    %s29 = scalar_select %p28, 0, %s27
    %s30 = ssub.s32 %s17, %s29
    %p31 = scmp.eq.s32.totalorder %s30, 0
    %s33 = sadd.s32 %s32, 1
    %s34 = scalar_select %p31, %s32, %s33
    %p37 = pneg %p31
    %p38 = scmp.eq.s32.totalorder %s10, 3
    %p39 = por %p37, %p38
    %p40 = scmp.ne.s32.totalorder %s32, %s35
    %p41 = scmp.eq.s32.totalorder %s10, 0
    %p42 = por %p40, %p41
    %p43 = scmp.ne.s32.totalorder %s32, %s35
    %p44 = scmp.eq.s32.totalorder %s15, 3
    %p45 = por %p43, %p44
    %p46 = scmp.ne.s32.totalorder %s35, %s36
    %p47 = scmp.eq.s32.totalorder %s15, 0
    %p48 = por %p46, %p47
    %p49 = scmp.ne.s32.totalorder %s35, %s36
    %p50 = scmp.eq.s32.totalorder %s16, 3
    %p51 = por %p49, %p50
    %p53 = scmp.ne.s32.totalorder %s36, %s52
    %p54 = scmp.eq.s32.totalorder %s16, 0
    %p55 = por %p53, %p54
    %s57 = sadd.s32 %s56, 1
    %p60 = scmp.eq.s32.totalorder %s10, 3
    %p61 = scmp.ne.s32.totalorder %s56, %s58
    %p62 = scmp.eq.s32.totalorder %s10, 0
    %p63 = por %p61, %p62
    %p64 = scmp.ne.s32.totalorder %s56, %s58
    %p65 = scmp.eq.s32.totalorder %s15, 3
    %p66 = por %p64, %p65
    %p67 = scmp.ne.s32.totalorder %s58, %s59
    %p68 = scmp.eq.s32.totalorder %s15, 0
    %p69 = por %p67, %p68
    %p70 = scmp.ne.s32.totalorder %s58, %s59
    %p71 = scmp.eq.s32.totalorder %s16, 3
    %p72 = por %p70, %p71
    %p74 = scmp.ne.s32.totalorder %s59, %s73
    %p75 = scmp.eq.s32.totalorder %s16, 0
    %p76 = por %p74, %p75
    %s78 = sadd.s32 %s77, 1
    %p81 = scmp.eq.s32.totalorder %s10, 3
    %p82 = scmp.ne.s32.totalorder %s77, %s79
    %p83 = scmp.eq.s32.totalorder %s10, 0
    %p84 = por %p82, %p83
    %p85 = scmp.ne.s32.totalorder %s77, %s79
    %p86 = scmp.eq.s32.totalorder %s15, 3
    %p87 = por %p85, %p86
    %p88 = scmp.ne.s32.totalorder %s79, %s80
    %p89 = scmp.eq.s32.totalorder %s15, 0
    %p90 = por %p88, %p89
    %p91 = scmp.ne.s32.totalorder %s79, %s80
    %p92 = scmp.eq.s32.totalorder %s16, 3
    %p93 = por %p91, %p92
    %p95 = scmp.ne.s32.totalorder %s80, %s94
    %p96 = scmp.eq.s32.totalorder %s16, 0
    %p97 = por %p95, %p96
    %s98 = ssub.s32 %s17, %s29
    %s99 = ssub.s32 %s18, %s25
    %s100 = sor.u32 %s98, %s99
    %p101 = scmp.eq.s32.totalorder %s100, 0
    %s103 = sadd.s32 %s102, 1
    %s104 = scalar_select %p101, %s102, %s103
    %p107 = pneg %p101
    %p108 = scmp.eq.s32.totalorder %s10, 3
    %p109 = por %p107, %p108
    %p110 = scmp.ne.s32.totalorder %s102, %s105
    %p111 = scmp.eq.s32.totalorder %s10, 0
    %p112 = por %p110, %p111
    %p113 = scmp.ne.s32.totalorder %s102, %s105
    %p114 = scmp.eq.s32.totalorder %s15, 3
    %p115 = por %p113, %p114
    %p116 = scmp.ne.s32.totalorder %s105, %s106
    %p117 = scmp.eq.s32.totalorder %s15, 0
    %p118 = por %p116, %p117
    %p119 = scmp.ne.s32.totalorder %s105, %s106
    %p120 = scmp.eq.s32.totalorder %s16, 3
    %p121 = por %p119, %p120
    %p123 = scmp.ne.s32.totalorder %s106, %s122
    %p124 = scmp.eq.s32.totalorder %s16, 0
    %p125 = por %p123, %p124
    %s126 = ssub.s32 %s17, %s29
    %s127 = ssub.s32 %s18, %s25
    %s128 = sor.u32 %s126, %s127
    %p129 = scmp.eq.s32.totalorder %s128, 0
    %s131 = sadd.s32 %s130, 1
    %s132 = scalar_select %p129, %s130, %s131
    %p135 = pneg %p129
    %p136 = scmp.eq.s32.totalorder %s10, 3
    %p137 = por %p135, %p136
    %p138 = scmp.ne.s32.totalorder %s130, %s133
    %p139 = scmp.eq.s32.totalorder %s10, 0
    %p140 = por %p138, %p139
    %p141 = scmp.ne.s32.totalorder %s130, %s133
    %p142 = scmp.eq.s32.totalorder %s15, 3
    %p143 = por %p141, %p142
    %p144 = scmp.ne.s32.totalorder %s133, %s134
    %p145 = scmp.eq.s32.totalorder %s15, 0
    %p146 = por %p144, %p145
    %p147 = scmp.ne.s32.totalorder %s133, %s134
    %p148 = scmp.eq.s32.totalorder %s16, 3
    %p149 = por %p147, %p148
    %p151 = scmp.ne.s32.totalorder %s134, %s150
    %p152 = scmp.eq.s32.totalorder %s16, 0
    %p153 = por %p151, %p152
    %p154 = scmp.le.s32.totalorder 1, %s10
    %p155 = scmp.lt.s32.totalorder %s10, 5
    %p156 = pnand %p154, %p155
    %p157 = pneg %p156
    // Predicated region
    $region9: #{res_block_forward.3} parent=5 // pred_check
      _
    $region10: #{res_block_forward.3} parent=5 // pred_check_branch
      %159 = sbr.rel (%p156) target = $region12
    $region11: #{res_block_forward.3} parent=5 // pred_region
      %s160 = ssub.s32 %s10, 1
      // Predicated region
      $region13: #{res_block_forward.3} parent=11 // pred_check
        %p161 = pneg %p69
      $region14: #{res_block_forward.3} parent=11 // pred_check_branch
        %163 = sbr.rel (%p161) target = $region16
      $region15: #{res_block_forward.3} parent=11 // pred_region
        _
      $region16: #{res_block_forward.3} parent=11 // pred_fallthru
        _
      // Predicated region
      $region17: #{res_block_forward.3} parent=11 // pred_check
        %p164 = pneg %p90
      $region18: #{res_block_forward.3} parent=11 // pred_check_branch
        %166 = sbr.rel (%p164) target = $region20
      $region19: #{res_block_forward.3} parent=11 // pred_region
        _
      $region20: #{res_block_forward.3} parent=11 // pred_fallthru
        _
    $region12: #{res_block_forward.3} parent=5 // pred_fallthru
      _
    %p167 = scmp.lt.s32.totalorder %s10, 4
    // Predicated region
    $region21: #{res_block_forward.3} parent=5 // pred_check
      %p168 = pneg %p167
    $region22: #{res_block_forward.3} parent=5 // pred_check_branch
      %170 = sbr.rel (%p168) target = $region24
    $region23: #{res_block_forward.3} parent=5 // pred_region
      // Predicated region
      $region25: #{res_block_forward.3} parent=23 // pred_check
        %p171 = pneg %p42
      $region26: #{res_block_forward.3} parent=23 // pred_check_branch
        %173 = sbr.rel (%p171) target = $region28
      $region27: #{res_block_forward.3} parent=23 // pred_region
        %p174 = scmp.lt.s32.totalorder %s17, 1
        %s175 = scalar_select %p174, %s17, 1
        %s176 = smul.addr %s175, 54
        %s177 = smul.addr %s176, 8
        %s178 = scalar_lea.vmem %s0, %s177
      $region28: #{res_block_forward.3} parent=23 // pred_fallthru
        _
      // Predicated region
      $region29: #{res_block_forward.3} parent=23 // pred_check
        %p179 = pneg %p112
      $region30: #{res_block_forward.3} parent=23 // pred_check_branch
        %181 = sbr.rel (%p179) target = $region32
      $region31: #{res_block_forward.3} parent=23 // pred_region
        %s182 = smul.u32 8, %s18
        %p183 = scmp.lt.s32.totalorder %s17, 1
        %s184 = scalar_select %p183, %s17, 1
        %p185 = scmp.lt.s32.totalorder %s182, 15
        %s186 = scalar_select %p185, %s182, 15
        %s187 = smul.addr %s186, 2
        %s188 = smul.addr %s184, 32
        %s189 = sadd.s32 %s187, %s188
        %s190 = smul.addr %s189, 8
        %s191 = scalar_lea.vmem %s3, %s190
        %s192 = smul.u32 8, %s18
      $region32: #{res_block_forward.3} parent=23 // pred_fallthru
        _
    $region24: #{res_block_forward.3} parent=5 // pred_fallthru
      _
    %p193 = scmp.le.s32.totalorder 1, %s10
    %p194 = scmp.lt.s32.totalorder %s10, 5
    %p195 = pnand %p193, %p194
    %p196 = pneg %p195
    // Predicated region
    $region33: #{res_block_forward.3} parent=5 // pred_check
      _
    $region34: #{res_block_forward.3} parent=5 // pred_check_branch
      %198 = sbr.rel (%p195) target = $region36
    $region35: #{res_block_forward.3} parent=5 // pred_region
      %s199 = ssub.s32 %s10, 1
      %p200 = scmp.lt.s32.totalorder %s19, 1
      %s201 = scalar_select %p200, %s19, 1
      %s202 = smul.addr %s201, 54
      %s203 = smul.addr %s202, 8
      %s204 = scalar_lea.vmem %s0, %s203
      %p205 = pneg %p48
      %p206 = pneg %p45
      %p207 = pneg %p69
      %p208 = pneg %p66
      %p209 = pneg %p90
      %p210 = pneg %p87
      %s211 = smul.u32 8, %s20
      %p212 = scmp.lt.s32.totalorder %s19, 1
      %s213 = scalar_select %p212, %s19, 1
      %p214 = scmp.lt.s32.totalorder %s211, 15
      %s215 = scalar_select %p214, %s211, 15
      %s216 = smul.addr %s215, 2
      %s217 = smul.addr %s213, 32
      %s218 = sadd.s32 %s216, %s217
      %s219 = smul.addr %s218, 8
      %s220 = scalar_lea.vmem %s3, %s219
      %p221 = pneg %p118
      %p222 = pneg %p115
      %p223 = pneg %p146
      %p224 = pneg %p143
      %s225 = smul.u32 8, %s20
      %p226 = scmp.lt.s32.totalorder %s19, 1
      %s227 = scalar_select %p226, %s19, 1
      %p228 = scmp.lt.s32.totalorder %s225, 15
      %s229 = scalar_select %p228, %s225, 15
      %s230 = smul.addr %s229, 2
      %s231 = smul.addr %s227, 32
      %s232 = sadd.s32 %s230, %s231
      %s233 = smul.addr %s232, 8
      %s234 = scalar_lea.vmem %s4, %s233
      %p235 = scmp.lt.s32.totalorder %s19, 1
      %s236 = scalar_select %p235, %s19, 1
      %s237 = smul.addr %s236, 54
      %s238 = smul.addr %s237, 8
      %s239 = scalar_lea.vmem %s0, %s238
      %s240 = smul.u32 8, %s20
      %p241 = scmp.lt.s32.totalorder %s19, 1
      %s242 = scalar_select %p241, %s19, 1
      %p243 = scmp.lt.s32.totalorder %s240, 15
      %s244 = scalar_select %p243, %s240, 15
      %s245 = smul.addr %s244, 2
      %s246 = smul.addr %s242, 32
      %s247 = sadd.s32 %s245, %s246
      %s248 = smul.addr %s247, 8
      %s249 = scalar_lea.vmem %s3, %s248
      %s250 = smul.u32 8, %s20
      %s251 = smul.u32 8, %s20
      %p252 = scmp.lt.s32.totalorder %s19, 1
      %s253 = scalar_select %p252, %s19, 1
      %p254 = scmp.lt.s32.totalorder %s251, 15
      %s255 = scalar_select %p254, %s251, 15
      %s256 = smul.addr %s255, 2
      %s257 = smul.addr %s253, 32
      %s258 = sadd.s32 %s256, %s257
      %s259 = smul.addr %s258, 8
      %s260 = scalar_lea.vmem %s4, %s259
      %s261 = smul.u32 8, %s20
      %s262 = smul.u32 %s20, 8
      %s263 = smul.u32 %s262, 24
      %s264 = scalar_lea.vmem %s239, %s263
      %v265 = vld [vmem:[%s264] sm:$0xff]
      %v266 = vld [vmem:[%s264 + $0x8] sm:$0xff]
      %v267 = vld [vmem:[%s264 + $0x18] sm:$0xff]
      %v268 = vld [vmem:[%s264 + $0x20] sm:$0xff]
      %v269 = vld [vmem:[%s264 + $0x30] sm:$0xff]
      %v270 = vld [vmem:[%s264 + $0x38] sm:$0xff]
      %v271 = vld [vmem:[%s264 + $0x48] sm:$0xff]
      %v272 = vld [vmem:[%s264 + $0x50] sm:$0xff]
      %v273 = vld [vmem:[%s264 + $0x60] sm:$0xff]
      %v274 = vld [vmem:[%s264 + $0x68] sm:$0xff]
      %v275 = vld [vmem:[%s264 + $0x78] sm:$0xff]
      %v276 = vld [vmem:[%s264 + $0x80] sm:$0xff]
      %v277 = vld [vmem:[%s264 + $0x90] sm:$0xff]
      %v278 = vld [vmem:[%s264 + $0x98] sm:$0xff]
      %v279 = vld [vmem:[%s264 + $0xa8] sm:$0xff]
      %v280 = vld [vmem:[%s264 + $0xb0] sm:$0xff]
      %v281 = vld [vmem:[%s1] sm:$0xff]
      %v282 = vld [vmem:[%s264 + $0x1] sm:$0xff]
      %v283 = vld [vmem:[%s264 + $0x9] sm:$0xff]
      %v284 = vld [vmem:[%s264 + $0x19] sm:$0xff]
      %v285 = vld [vmem:[%s264 + $0x21] sm:$0xff]
      %v286 = vld [vmem:[%s264 + $0x31] sm:$0xff]
      %v287 = vld [vmem:[%s264 + $0x39] sm:$0xff]
      %v288 = vld [vmem:[%s264 + $0x49] sm:$0xff]
      %v289 = vld [vmem:[%s264 + $0x51] sm:$0xff]
      %v290 = vld [vmem:[%s264 + $0x61] sm:$0xff]
      %v291 = vld [vmem:[%s264 + $0x69] sm:$0xff]
      %v292 = vld [vmem:[%s264 + $0x79] sm:$0xff]
      %v293 = vld [vmem:[%s264 + $0x81] sm:$0xff]
      %v294 = vld [vmem:[%s264 + $0x91] sm:$0xff]
      %v295 = vld [vmem:[%s264 + $0x99] sm:$0xff]
      %v296 = vld [vmem:[%s264 + $0xa9] sm:$0xff]
      %v297 = vld [vmem:[%s264 + $0xb1] sm:$0xff]
      %s298 = scalar_lea.vmem %s1, 8
      %v299 = vld [vmem:[%s298] sm:$0xff]
      %vm300 = vcmask 64512
      %v302 = vsel %vm300, %v282, 0
      %v305 = vsel %vm300, %v283, 0
      %v308 = vsel %vm300, %v284, 0
      %v311 = vsel %vm300, %v285, 0
      %v314 = vsel %vm300, %v286, 0
      %v317 = vsel %vm300, %v287, 0
      %v320 = vsel %vm300, %v288, 0
      %v323 = vsel %vm300, %v289, 0
      %v326 = vsel %vm300, %v290, 0
      %v329 = vsel %vm300, %v291, 0
      %v332 = vsel %vm300, %v292, 0
      %v335 = vsel %vm300, %v293, 0
      %v338 = vsel %vm300, %v294, 0
      %v341 = vsel %vm300, %v295, 0
      %v344 = vsel %vm300, %v296, 0
      %v347 = vsel %vm300, %v297, 0
      %349 = vmatprep.subr.mxu0 0.0
      %350 = vmatpush1.msra.mxu0 0.0
      %351 = vmatprep.subr.mxu0 0.0
      %352 = vmatpush1.msra.mxu0 0.0
      %353 = vmatprep.subr.mxu0 0.0
      %354 = vmatpush1.msra.mxu0 0.0
      %355 = vmatprep.subr.mxu0 0.0
      %356 = vmatpush1.msra.mxu0 0.0
      %357 = vmatprep.subr.mxu0 0.0
      %358 = vmatpush1.msra.mxu0 0.0
      %359 = vmatprep.subr.mxu0 0.0
      %360 = vmatpush1.msra.mxu0 0.0
      %361 = vmatprep.subr.mxu0 0.0
      %362 = vmatpush1.msra.mxu0 0.0
      %363 = vmatprep.subr.mxu0 0.0
      %364 = vmatpush1.msra.mxu0 0.0
      %365 = vmatprep.subr.mxu0 0.0
      %366 = vmatpush1.msra.mxu0 0.0
      %367 = vmatprep.subr.mxu0 0.0
      %368 = vmatpush1.msra.mxu0 0.0
      %369 = vmatprep.subr.mxu0 0.0
      %370 = vmatpush1.msra.mxu0 0.0
      %371 = vmatprep.subr.mxu0 0.0
      %372 = vmatpush1.msra.mxu0 0.0
      %373 = vmatprep.subr.mxu0 0.0
      %374 = vmatpush1.msra.mxu0 0.0
      %375 = vmatprep.subr.mxu0 0.0
      %376 = vmatpush1.msra.mxu0 0.0
      %377 = vmatprep.subr.mxu0 0.0
      %378 = vmatpush1.msra.mxu0 0.0
      %379 = vmatprep.subr.mxu0 0.0
      %380 = vmatpush1.msra.mxu0 %v299
      %381 = vmatprep.subr.mxu0 0.0
      %382 = vmatpush2.msra.mxu0 0.0
      %383 = vmatprep.subr.mxu0 0.0
      %384 = vmatpush2.msra.mxu0 0.0
      %385 = vmatprep.subr.mxu0 0.0
      %386 = vmatpush2.msra.mxu0 0.0
      %387 = vmatprep.subr.mxu0 0.0
      %388 = vmatpush2.msra.mxu0 0.0
      %389 = vmatprep.subr.mxu0 0.0
      %390 = vmatpush2.msra.mxu0 0.0
      %391 = vmatprep.subr.mxu0 0.0
      %392 = vmatpush2.msra.mxu0 0.0
      %393 = vmatprep.subr.mxu0 0.0
      %394 = vmatpush2.msra.mxu0 0.0
      %395 = vmatprep.subr.mxu0 0.0
      %396 = vmatpush2.msra.mxu0 0.0
      %397 = vmatprep.subr.mxu0 0.0
      %398 = vmatpush2.msra.mxu0 0.0
      %399 = vmatprep.subr.mxu0 0.0
      %400 = vmatpush2.msra.mxu0 0.0
      %401 = vmatprep.subr.mxu0 0.0
      %402 = vmatpush2.msra.mxu0 0.0
      %403 = vmatprep.subr.mxu0 0.0
      %404 = vmatpush2.msra.mxu0 0.0
      %405 = vmatprep.subr.mxu0 0.0
      %406 = vmatpush2.msra.mxu0 0.0
      %407 = vmatprep.subr.mxu0 0.0
      %408 = vmatpush2.msra.mxu0 0.0
      %409 = vmatprep.subr.mxu0 0.0
      %410 = vmatpush2.msra.mxu0 0.0
      %411 = vmatprep.subr.mxu0 0.0
      %412 = vmatpush2.msra.mxu0 0.0
      %413 = vmatprep.mubr.f32.mxu0 0.0
      %414 = vmatmul.mubr.f32.gmra.mxu0 %v302
      %v415 = vpop.f32.mrf.mxu0
      %v416 = vadd.f32 0.0, %v415
      %v417 = vpop.f32.mrf.mxu0
      %418 = vmatprep.mubr.f32.mxu0 0.0
      %419 = vmatmul.mubr.f32.gmra.mxu0 %v305
      %v420 = vpop.f32.mrf.mxu0
      %v421 = vadd.f32 0.0, %v420
      %v422 = vpop.f32.mrf.mxu0
      %423 = vmatprep.mubr.f32.mxu0 0.0
      %424 = vmatmul.mubr.f32.gmra.mxu0 %v308
      %v425 = vpop.f32.mrf.mxu0
      %v426 = vadd.f32 0.0, %v425
      %v427 = vpop.f32.mrf.mxu0
      %428 = vmatprep.mubr.f32.mxu0 0.0
      %429 = vmatmul.mubr.f32.gmra.mxu0 %v311
      %v430 = vpop.f32.mrf.mxu0
      %v431 = vadd.f32 0.0, %v430
      %v432 = vpop.f32.mrf.mxu0
      %433 = vmatprep.mubr.f32.mxu0 0.0
      %434 = vmatmul.mubr.f32.gmra.mxu0 %v314
      %v435 = vpop.f32.mrf.mxu0
      %v436 = vadd.f32 0.0, %v435
      %v437 = vpop.f32.mrf.mxu0
      %438 = vmatprep.mubr.f32.mxu0 0.0
      %439 = vmatmul.mubr.f32.gmra.mxu0 %v317
      %v440 = vpop.f32.mrf.mxu0
      %v441 = vadd.f32 0.0, %v440
      %v442 = vpop.f32.mrf.mxu0
      %443 = vmatprep.mubr.f32.mxu0 0.0
      %444 = vmatmul.mubr.f32.gmra.mxu0 %v320
      %v445 = vpop.f32.mrf.mxu0
      %v446 = vadd.f32 0.0, %v445
      %v447 = vpop.f32.mrf.mxu0
      %448 = vmatprep.mubr.f32.mxu0 0.0
      %449 = vmatmul.mubr.f32.gmra.mxu0 %v323
      %v450 = vpop.f32.mrf.mxu0
      %v451 = vadd.f32 0.0, %v450
      %v452 = vpop.f32.mrf.mxu0
      %453 = vmatprep.mubr.f32.mxu0 0.0
      %454 = vmatmul.mubr.f32.gmra.mxu0 %v326
      %v455 = vpop.f32.mrf.mxu0
      %v456 = vadd.f32 0.0, %v455
      %v457 = vpop.f32.mrf.mxu0
      %458 = vmatprep.mubr.f32.mxu0 0.0
      %459 = vmatmul.mubr.f32.gmra.mxu0 %v329
      %v460 = vpop.f32.mrf.mxu0
      %v461 = vadd.f32 0.0, %v460
      %v462 = vpop.f32.mrf.mxu0
      %463 = vmatprep.mubr.f32.mxu0 0.0
      %464 = vmatmul.mubr.f32.gmra.mxu0 %v332
      %v465 = vpop.f32.mrf.mxu0
      %v466 = vadd.f32 0.0, %v465
      %v467 = vpop.f32.mrf.mxu0
      %468 = vmatprep.mubr.f32.mxu0 0.0
      %469 = vmatmul.mubr.f32.gmra.mxu0 %v335
      %v470 = vpop.f32.mrf.mxu0
      %v471 = vadd.f32 0.0, %v470
      %v472 = vpop.f32.mrf.mxu0
      %473 = vmatprep.mubr.f32.mxu0 0.0
      %474 = vmatmul.mubr.f32.gmra.mxu0 %v338
      %v475 = vpop.f32.mrf.mxu0
      %v476 = vadd.f32 0.0, %v475
      %v477 = vpop.f32.mrf.mxu0
      %478 = vmatprep.mubr.f32.mxu0 0.0
      %479 = vmatmul.mubr.f32.gmra.mxu0 %v341
      %v480 = vpop.f32.mrf.mxu0
      %v481 = vadd.f32 0.0, %v480
      %v482 = vpop.f32.mrf.mxu0
      %483 = vmatprep.mubr.f32.mxu0 0.0
      %484 = vmatmul.mubr.f32.gmra.mxu0 %v344
      %v485 = vpop.f32.mrf.mxu0
      %v486 = vadd.f32 0.0, %v485
      %v487 = vpop.f32.mrf.mxu0
      %488 = vmatprep.mubr.f32.mxu0 0.0
      %489 = vmatmul.mubr.f32.gmra.mxu0 %v347
      %v490 = vpop.f32.mrf.mxu0
      %v491 = vadd.f32 0.0, %v490
      %v492 = vpop.f32.mrf.mxu0
      %493 = vdwg.mxu0
      %v495 = vsel %vm300, %v265, 0
      %v498 = vsel %vm300, %v266, 0
      %v501 = vsel %vm300, %v267, 0
      %v504 = vsel %vm300, %v268, 0
      %v507 = vsel %vm300, %v269, 0
      %v510 = vsel %vm300, %v270, 0
      %v513 = vsel %vm300, %v271, 0
      %v516 = vsel %vm300, %v272, 0
      %v519 = vsel %vm300, %v273, 0
      %v522 = vsel %vm300, %v274, 0
      %v525 = vsel %vm300, %v275, 0
      %v528 = vsel %vm300, %v276, 0
      %v531 = vsel %vm300, %v277, 0
      %v534 = vsel %vm300, %v278, 0
      %v537 = vsel %vm300, %v279, 0
      %v540 = vsel %vm300, %v280, 0
      %542 = vmatprep.subr.mxu0 0.0
      %543 = vmatpush1.msra.mxu0 0.0
      %544 = vmatprep.subr.mxu0 0.0
      %545 = vmatpush1.msra.mxu0 0.0
      %546 = vmatprep.subr.mxu0 0.0
      %547 = vmatpush1.msra.mxu0 0.0
      %548 = vmatprep.subr.mxu0 0.0
      %549 = vmatpush1.msra.mxu0 0.0
      %550 = vmatprep.subr.mxu0 0.0
      %551 = vmatpush1.msra.mxu0 0.0
      %552 = vmatprep.subr.mxu0 0.0
      %553 = vmatpush1.msra.mxu0 0.0
      %554 = vmatprep.subr.mxu0 0.0
      %555 = vmatpush1.msra.mxu0 0.0
      %556 = vmatprep.subr.mxu0 0.0
      %557 = vmatpush1.msra.mxu0 0.0
      %558 = vmatprep.subr.mxu0 0.0
      %559 = vmatpush1.msra.mxu0 0.0
      %560 = vmatprep.subr.mxu0 0.0
      %561 = vmatpush1.msra.mxu0 0.0
      %562 = vmatprep.subr.mxu0 0.0
      %563 = vmatpush1.msra.mxu0 0.0
      %564 = vmatprep.subr.mxu0 0.0
      %565 = vmatpush1.msra.mxu0 0.0
      %566 = vmatprep.subr.mxu0 0.0
      %567 = vmatpush1.msra.mxu0 0.0
      %568 = vmatprep.subr.mxu0 0.0
      %569 = vmatpush1.msra.mxu0 0.0
      %570 = vmatprep.subr.mxu0 0.0
      %571 = vmatpush1.msra.mxu0 0.0
      %572 = vmatprep.subr.mxu0 0.0
      %573 = vmatpush1.msra.mxu0 %v281
      %574 = vmatprep.subr.mxu0 0.0
      %575 = vmatpush2.msra.mxu0 0.0
      %576 = vmatprep.subr.mxu0 0.0
      %577 = vmatpush2.msra.mxu0 0.0
      %578 = vmatprep.subr.mxu0 0.0
      %579 = vmatpush2.msra.mxu0 0.0
      %580 = vmatprep.subr.mxu0 0.0
      %581 = vmatpush2.msra.mxu0 0.0
      %582 = vmatprep.subr.mxu0 0.0
      %583 = vmatpush2.msra.mxu0 0.0
      %584 = vmatprep.subr.mxu0 0.0
      %585 = vmatpush2.msra.mxu0 0.0
      %586 = vmatprep.subr.mxu0 0.0
      %587 = vmatpush2.msra.mxu0 0.0
      %588 = vmatprep.subr.mxu0 0.0
      %589 = vmatpush2.msra.mxu0 0.0
      %590 = vmatprep.subr.mxu0 0.0
      %591 = vmatpush2.msra.mxu0 0.0
      %592 = vmatprep.subr.mxu0 0.0
      %593 = vmatpush2.msra.mxu0 0.0
      %594 = vmatprep.subr.mxu0 0.0
      %595 = vmatpush2.msra.mxu0 0.0
      %596 = vmatprep.subr.mxu0 0.0
      %597 = vmatpush2.msra.mxu0 0.0
      %598 = vmatprep.subr.mxu0 0.0
      %599 = vmatpush2.msra.mxu0 0.0
      %600 = vmatprep.subr.mxu0 0.0
      %601 = vmatpush2.msra.mxu0 0.0
      %602 = vmatprep.subr.mxu0 0.0
      %603 = vmatpush2.msra.mxu0 0.0
      %604 = vmatprep.subr.mxu0 0.0
      %605 = vmatpush2.msra.mxu0 0.0
      %606 = vmatprep.mubr.f32.mxu0 0.0
      %607 = vmatmul.mubr.f32.gmra.mxu0 %v495
      %v608 = vpop.f32.mrf.mxu0
      %v609 = vadd.f32 %v416, %v608
      %v610 = vpop.f32.mrf.mxu0
      %611 = vmatprep.mubr.f32.mxu0 0.0
      %612 = vmatmul.mubr.f32.gmra.mxu0 %v498
      %v613 = vpop.f32.mrf.mxu0
      %v614 = vadd.f32 %v421, %v613
      %v615 = vpop.f32.mrf.mxu0
      %616 = vmatprep.mubr.f32.mxu0 0.0
      %617 = vmatmul.mubr.f32.gmra.mxu0 %v501
      %v618 = vpop.f32.mrf.mxu0
      %v619 = vadd.f32 %v426, %v618
      %v620 = vpop.f32.mrf.mxu0
      %621 = vmatprep.mubr.f32.mxu0 0.0
      %622 = vmatmul.mubr.f32.gmra.mxu0 %v504
      %v623 = vpop.f32.mrf.mxu0
      %v624 = vadd.f32 %v431, %v623
      %v625 = vpop.f32.mrf.mxu0
      %626 = vmatprep.mubr.f32.mxu0 0.0
      %627 = vmatmul.mubr.f32.gmra.mxu0 %v507
      %v628 = vpop.f32.mrf.mxu0
      %v629 = vadd.f32 %v436, %v628
      %v630 = vpop.f32.mrf.mxu0
      %631 = vmatprep.mubr.f32.mxu0 0.0
      %632 = vmatmul.mubr.f32.gmra.mxu0 %v510
      %v633 = vpop.f32.mrf.mxu0
      %v634 = vadd.f32 %v441, %v633
      %v635 = vpop.f32.mrf.mxu0
      %636 = vmatprep.mubr.f32.mxu0 0.0
      %637 = vmatmul.mubr.f32.gmra.mxu0 %v513
      %v638 = vpop.f32.mrf.mxu0
      %v639 = vadd.f32 %v446, %v638
      %v640 = vpop.f32.mrf.mxu0
      %641 = vmatprep.mubr.f32.mxu0 0.0
      %642 = vmatmul.mubr.f32.gmra.mxu0 %v516
      %v643 = vpop.f32.mrf.mxu0
      %v644 = vadd.f32 %v451, %v643
      %v645 = vpop.f32.mrf.mxu0
      %646 = vmatprep.mubr.f32.mxu0 0.0
      %647 = vmatmul.mubr.f32.gmra.mxu0 %v519
      %v648 = vpop.f32.mrf.mxu0
      %v649 = vadd.f32 %v456, %v648
      %v650 = vpop.f32.mrf.mxu0
      %651 = vmatprep.mubr.f32.mxu0 0.0
      %652 = vmatmul.mubr.f32.gmra.mxu0 %v522
      %v653 = vpop.f32.mrf.mxu0
      %v654 = vadd.f32 %v461, %v653
      %v655 = vpop.f32.mrf.mxu0
      %656 = vmatprep.mubr.f32.mxu0 0.0
      %657 = vmatmul.mubr.f32.gmra.mxu0 %v525
      %v658 = vpop.f32.mrf.mxu0
      %v659 = vadd.f32 %v466, %v658
      %v660 = vpop.f32.mrf.mxu0
      %661 = vmatprep.mubr.f32.mxu0 0.0
      %662 = vmatmul.mubr.f32.gmra.mxu0 %v528
      %v663 = vpop.f32.mrf.mxu0
      %v664 = vadd.f32 %v471, %v663
      %v665 = vpop.f32.mrf.mxu0
      %666 = vmatprep.mubr.f32.mxu0 0.0
      %667 = vmatmul.mubr.f32.gmra.mxu0 %v531
      %v668 = vpop.f32.mrf.mxu0
      %v669 = vadd.f32 %v476, %v668
      %v670 = vpop.f32.mrf.mxu0
      %671 = vmatprep.mubr.f32.mxu0 0.0
      %672 = vmatmul.mubr.f32.gmra.mxu0 %v534
      %v673 = vpop.f32.mrf.mxu0
      %v674 = vadd.f32 %v481, %v673
      %v675 = vpop.f32.mrf.mxu0
      %676 = vmatprep.mubr.f32.mxu0 0.0
      %677 = vmatmul.mubr.f32.gmra.mxu0 %v537
      %v678 = vpop.f32.mrf.mxu0
      %v679 = vadd.f32 %v486, %v678
      %v680 = vpop.f32.mrf.mxu0
      %681 = vmatprep.mubr.f32.mxu0 0.0
      %682 = vmatmul.mubr.f32.gmra.mxu0 %v540
      %v683 = vpop.f32.mrf.mxu0
      %v684 = vadd.f32 %v491, %v683
      %v685 = vpop.f32.mrf.mxu0
      %686 = vdwg.mxu0
      %v687 = vld [vmem:[%s264 + $0x2] sm:$0xff]
      %v688 = vld [vmem:[%s264 + $0xa] sm:$0xff]
      %v689 = vld [vmem:[%s264 + $0x1a] sm:$0xff]
      %v690 = vld [vmem:[%s264 + $0x22] sm:$0xff]
      %v691 = vld [vmem:[%s264 + $0x32] sm:$0xff]
      %v692 = vld [vmem:[%s264 + $0x3a] sm:$0xff]
      %v693 = vld [vmem:[%s264 + $0x4a] sm:$0xff]
      %v694 = vld [vmem:[%s264 + $0x52] sm:$0xff]
      %v695 = vld [vmem:[%s264 + $0x62] sm:$0xff]
      %v696 = vld [vmem:[%s264 + $0x6a] sm:$0xff]
      %v697 = vld [vmem:[%s264 + $0x7a] sm:$0xff]
      %v698 = vld [vmem:[%s264 + $0x82] sm:$0xff]
      %v699 = vld [vmem:[%s264 + $0x92] sm:$0xff]
      %v700 = vld [vmem:[%s264 + $0x9a] sm:$0xff]
      %v701 = vld [vmem:[%s264 + $0xaa] sm:$0xff]
      %v702 = vld [vmem:[%s264 + $0xb2] sm:$0xff]
      %s703 = scalar_lea.vmem %s1, 16
      %v704 = vld [vmem:[%s703] sm:$0xff]
      %v706 = vsel %vm300, %v687, 0
      %v709 = vsel %vm300, %v688, 0
      %v712 = vsel %vm300, %v689, 0
      %v715 = vsel %vm300, %v690, 0
      %v718 = vsel %vm300, %v691, 0
      %v721 = vsel %vm300, %v692, 0
      %v724 = vsel %vm300, %v693, 0
      %v727 = vsel %vm300, %v694, 0
      %v730 = vsel %vm300, %v695, 0
      %v733 = vsel %vm300, %v696, 0
      %v736 = vsel %vm300, %v697, 0
      %v739 = vsel %vm300, %v698, 0
      %v742 = vsel %vm300, %v699, 0
      %v745 = vsel %vm300, %v700, 0
      %v748 = vsel %vm300, %v701, 0
      %v751 = vsel %vm300, %v702, 0
      %753 = vmatprep.subr.mxu0 0.0
      %754 = vmatpush1.msra.mxu0 0.0
      %755 = vmatprep.subr.mxu0 0.0
      %756 = vmatpush1.msra.mxu0 0.0
      %757 = vmatprep.subr.mxu0 0.0
      %758 = vmatpush1.msra.mxu0 0.0
      %759 = vmatprep.subr.mxu0 0.0
      %760 = vmatpush1.msra.mxu0 0.0
      %761 = vmatprep.subr.mxu0 0.0
      %762 = vmatpush1.msra.mxu0 0.0
      %763 = vmatprep.subr.mxu0 0.0
      %764 = vmatpush1.msra.mxu0 0.0
      %765 = vmatprep.subr.mxu0 0.0
      %766 = vmatpush1.msra.mxu0 0.0
      %767 = vmatprep.subr.mxu0 0.0
      %768 = vmatpush1.msra.mxu0 0.0
      %769 = vmatprep.subr.mxu0 0.0
      %770 = vmatpush1.msra.mxu0 0.0
      %771 = vmatprep.subr.mxu0 0.0
      %772 = vmatpush1.msra.mxu0 0.0
      %773 = vmatprep.subr.mxu0 0.0
      %774 = vmatpush1.msra.mxu0 0.0
      %775 = vmatprep.subr.mxu0 0.0
      %776 = vmatpush1.msra.mxu0 0.0
      %777 = vmatprep.subr.mxu0 0.0
      %778 = vmatpush1.msra.mxu0 0.0
      %779 = vmatprep.subr.mxu0 0.0
      %780 = vmatpush1.msra.mxu0 0.0
      %781 = vmatprep.subr.mxu0 0.0
      %782 = vmatpush1.msra.mxu0 0.0
      %783 = vmatprep.subr.mxu0 0.0
      %784 = vmatpush1.msra.mxu0 %v704
      %785 = vmatprep.subr.mxu0 0.0
      %786 = vmatpush2.msra.mxu0 0.0
      %787 = vmatprep.subr.mxu0 0.0
      %788 = vmatpush2.msra.mxu0 0.0
      %789 = vmatprep.subr.mxu0 0.0
      %790 = vmatpush2.msra.mxu0 0.0
      %791 = vmatprep.subr.mxu0 0.0
      %792 = vmatpush2.msra.mxu0 0.0
      %793 = vmatprep.subr.mxu0 0.0
      %794 = vmatpush2.msra.mxu0 0.0
      %795 = vmatprep.subr.mxu0 0.0
      %796 = vmatpush2.msra.mxu0 0.0
      %797 = vmatprep.subr.mxu0 0.0
      %798 = vmatpush2.msra.mxu0 0.0
      %799 = vmatprep.subr.mxu0 0.0
      %800 = vmatpush2.msra.mxu0 0.0
      %801 = vmatprep.subr.mxu0 0.0
      %802 = vmatpush2.msra.mxu0 0.0
      %803 = vmatprep.subr.mxu0 0.0
      %804 = vmatpush2.msra.mxu0 0.0
      %805 = vmatprep.subr.mxu0 0.0
      %806 = vmatpush2.msra.mxu0 0.0
      %807 = vmatprep.subr.mxu0 0.0
      %808 = vmatpush2.msra.mxu0 0.0
      %809 = vmatprep.subr.mxu0 0.0
      %810 = vmatpush2.msra.mxu0 0.0
      %811 = vmatprep.subr.mxu0 0.0
      %812 = vmatpush2.msra.mxu0 0.0
      %813 = vmatprep.subr.mxu0 0.0
      %814 = vmatpush2.msra.mxu0 0.0
      %815 = vmatprep.subr.mxu0 0.0
      %816 = vmatpush2.msra.mxu0 0.0
      %817 = vmatprep.mubr.f32.mxu0 0.0
      %818 = vmatmul.mubr.f32.gmra.mxu0 %v706
      %v819 = vpop.f32.mrf.mxu0
      %v820 = vadd.f32 0.0, %v819
      %v821 = vpop.f32.mrf.mxu0
      %822 = vmatprep.mubr.f32.mxu0 0.0
      %823 = vmatmul.mubr.f32.gmra.mxu0 %v709
      %v824 = vpop.f32.mrf.mxu0
      %v825 = vadd.f32 0.0, %v824
      %v826 = vpop.f32.mrf.mxu0
      %827 = vmatprep.mubr.f32.mxu0 0.0
      %828 = vmatmul.mubr.f32.gmra.mxu0 %v712
      %v829 = vpop.f32.mrf.mxu0
      %v830 = vadd.f32 0.0, %v829
      %v831 = vpop.f32.mrf.mxu0
      %832 = vmatprep.mubr.f32.mxu0 0.0
      %833 = vmatmul.mubr.f32.gmra.mxu0 %v715
      %v834 = vpop.f32.mrf.mxu0
      %v835 = vadd.f32 0.0, %v834
      %v836 = vpop.f32.mrf.mxu0
      %837 = vmatprep.mubr.f32.mxu0 0.0
      %838 = vmatmul.mubr.f32.gmra.mxu0 %v718
      %v839 = vpop.f32.mrf.mxu0
      %v840 = vadd.f32 0.0, %v839
      %v841 = vpop.f32.mrf.mxu0
      %842 = vmatprep.mubr.f32.mxu0 0.0
      %843 = vmatmul.mubr.f32.gmra.mxu0 %v721
      %v844 = vpop.f32.mrf.mxu0
      %v845 = vadd.f32 0.0, %v844
      %v846 = vpop.f32.mrf.mxu0
      %847 = vmatprep.mubr.f32.mxu0 0.0
      %848 = vmatmul.mubr.f32.gmra.mxu0 %v724
      %v849 = vpop.f32.mrf.mxu0
      %v850 = vadd.f32 0.0, %v849
      %v851 = vpop.f32.mrf.mxu0
      %852 = vmatprep.mubr.f32.mxu0 0.0
      %853 = vmatmul.mubr.f32.gmra.mxu0 %v727
      %v854 = vpop.f32.mrf.mxu0
      %v855 = vadd.f32 0.0, %v854
      %v856 = vpop.f32.mrf.mxu0
      %857 = vmatprep.mubr.f32.mxu0 0.0
      %858 = vmatmul.mubr.f32.gmra.mxu0 %v730
      %v859 = vpop.f32.mrf.mxu0
      %v860 = vadd.f32 0.0, %v859
      %v861 = vpop.f32.mrf.mxu0
      %862 = vmatprep.mubr.f32.mxu0 0.0
      %863 = vmatmul.mubr.f32.gmra.mxu0 %v733
      %v864 = vpop.f32.mrf.mxu0
      %v865 = vadd.f32 0.0, %v864
      %v866 = vpop.f32.mrf.mxu0
      %867 = vmatprep.mubr.f32.mxu0 0.0
      %868 = vmatmul.mubr.f32.gmra.mxu0 %v736
      %v869 = vpop.f32.mrf.mxu0
      %v870 = vadd.f32 0.0, %v869
      %v871 = vpop.f32.mrf.mxu0
      %872 = vmatprep.mubr.f32.mxu0 0.0
      %873 = vmatmul.mubr.f32.gmra.mxu0 %v739
      %v874 = vpop.f32.mrf.mxu0
      %v875 = vadd.f32 0.0, %v874
      %v876 = vpop.f32.mrf.mxu0
      %877 = vmatprep.mubr.f32.mxu0 0.0
      %878 = vmatmul.mubr.f32.gmra.mxu0 %v742
      %v879 = vpop.f32.mrf.mxu0
      %v880 = vadd.f32 0.0, %v879
      %v881 = vpop.f32.mrf.mxu0
      %882 = vmatprep.mubr.f32.mxu0 0.0
      %883 = vmatmul.mubr.f32.gmra.mxu0 %v745
      %v884 = vpop.f32.mrf.mxu0
      %v885 = vadd.f32 0.0, %v884
      %v886 = vpop.f32.mrf.mxu0
      %887 = vmatprep.mubr.f32.mxu0 0.0
      %888 = vmatmul.mubr.f32.gmra.mxu0 %v748
      %v889 = vpop.f32.mrf.mxu0
      %v890 = vadd.f32 0.0, %v889
      %v891 = vpop.f32.mrf.mxu0
      %892 = vmatprep.mubr.f32.mxu0 0.0
      %893 = vmatmul.mubr.f32.gmra.mxu0 %v751
      %v894 = vpop.f32.mrf.mxu0
      %v895 = vadd.f32 0.0, %v894
      %v896 = vpop.f32.mrf.mxu0
      %897 = vdwg.mxu0
      %v898 = vadd.f32 %v609, %v820
      %v899 = vadd.f32 %v614, %v825
      %v900 = vadd.f32 %v619, %v830
      %v901 = vadd.f32 %v624, %v835
      %v902 = vadd.f32 %v629, %v840
      %v903 = vadd.f32 %v634, %v845
      %v904 = vadd.f32 %v639, %v850
      %v905 = vadd.f32 %v644, %v855
      %v906 = vadd.f32 %v649, %v860
      %v907 = vadd.f32 %v654, %v865
      %v908 = vadd.f32 %v659, %v870
      %v909 = vadd.f32 %v664, %v875
      %v910 = vadd.f32 %v669, %v880
      %v911 = vadd.f32 %v674, %v885
      %v912 = vadd.f32 %v679, %v890
      %v913 = vadd.f32 %v684, %v895
      %s914 = sadd.s32 %s262, 1
      %s915 = smul.u32 %s914, 24
      %s916 = scalar_lea.vmem %s239, %s915
      %v917 = vld [vmem:[%s916] sm:$0xff]
      %v918 = vld [vmem:[%s916 + $0x8] sm:$0xff]
      %v919 = vld [vmem:[%s916 + $0x18] sm:$0xff]
      %v920 = vld [vmem:[%s916 + $0x20] sm:$0xff]
      %v921 = vld [vmem:[%s916 + $0x30] sm:$0xff]
      %v922 = vld [vmem:[%s916 + $0x38] sm:$0xff]
      %v923 = vld [vmem:[%s916 + $0x48] sm:$0xff]
      %v924 = vld [vmem:[%s916 + $0x50] sm:$0xff]
      %v925 = vld [vmem:[%s916 + $0x60] sm:$0xff]
      %v926 = vld [vmem:[%s916 + $0x68] sm:$0xff]
      %v927 = vld [vmem:[%s916 + $0x78] sm:$0xff]
      %v928 = vld [vmem:[%s916 + $0x80] sm:$0xff]
      %v929 = vld [vmem:[%s916 + $0x90] sm:$0xff]
      %v930 = vld [vmem:[%s916 + $0x98] sm:$0xff]
      %v931 = vld [vmem:[%s916 + $0xa8] sm:$0xff]
      %v932 = vld [vmem:[%s916 + $0xb0] sm:$0xff]
      %s933 = scalar_lea.vmem %s1, 24
      %v934 = vld [vmem:[%s933] sm:$0xff]
      %v936 = vsel %vm300, %v917, 0
      %v939 = vsel %vm300, %v918, 0
      %v942 = vsel %vm300, %v919, 0
      %v945 = vsel %vm300, %v920, 0
      %v948 = vsel %vm300, %v921, 0
      %v951 = vsel %vm300, %v922, 0
      %v954 = vsel %vm300, %v923, 0
      %v957 = vsel %vm300, %v924, 0
      %v960 = vsel %vm300, %v925, 0
      %v963 = vsel %vm300, %v926, 0
      %v966 = vsel %vm300, %v927, 0
      %v969 = vsel %vm300, %v928, 0
      %v972 = vsel %vm300, %v929, 0
      %v975 = vsel %vm300, %v930, 0
      %v978 = vsel %vm300, %v931, 0
      %v981 = vsel %vm300, %v932, 0
      %983 = vmatprep.subr.mxu0 0.0
      %984 = vmatpush1.msra.mxu0 0.0
      %985 = vmatprep.subr.mxu0 0.0
      %986 = vmatpush1.msra.mxu0 0.0
      %987 = vmatprep.subr.mxu0 0.0
      %988 = vmatpush1.msra.mxu0 0.0
      %989 = vmatprep.subr.mxu0 0.0
      %990 = vmatpush1.msra.mxu0 0.0
      %991 = vmatprep.subr.mxu0 0.0
      %992 = vmatpush1.msra.mxu0 0.0
      %993 = vmatprep.subr.mxu0 0.0
      %994 = vmatpush1.msra.mxu0 0.0
      %995 = vmatprep.subr.mxu0 0.0
      %996 = vmatpush1.msra.mxu0 0.0
      %997 = vmatprep.subr.mxu0 0.0
      %998 = vmatpush1.msra.mxu0 0.0
      %999 = vmatprep.subr.mxu0 0.0
      %1000 = vmatpush1.msra.mxu0 0.0
      %1001 = vmatprep.subr.mxu0 0.0
      %1002 = vmatpush1.msra.mxu0 0.0
      %1003 = vmatprep.subr.mxu0 0.0
      %1004 = vmatpush1.msra.mxu0 0.0
      %1005 = vmatprep.subr.mxu0 0.0
      %1006 = vmatpush1.msra.mxu0 0.0
      %1007 = vmatprep.subr.mxu0 0.0
      %1008 = vmatpush1.msra.mxu0 0.0
      %1009 = vmatprep.subr.mxu0 0.0
      %1010 = vmatpush1.msra.mxu0 0.0
      %1011 = vmatprep.subr.mxu0 0.0
      %1012 = vmatpush1.msra.mxu0 0.0
      %1013 = vmatprep.subr.mxu0 0.0
      %1014 = vmatpush1.msra.mxu0 %v934
      %1015 = vmatprep.subr.mxu0 0.0
      %1016 = vmatpush2.msra.mxu0 0.0
      %1017 = vmatprep.subr.mxu0 0.0
      %1018 = vmatpush2.msra.mxu0 0.0
      %1019 = vmatprep.subr.mxu0 0.0
      %1020 = vmatpush2.msra.mxu0 0.0
      %1021 = vmatprep.subr.mxu0 0.0
      %1022 = vmatpush2.msra.mxu0 0.0
      %1023 = vmatprep.subr.mxu0 0.0
      %1024 = vmatpush2.msra.mxu0 0.0
      %1025 = vmatprep.subr.mxu0 0.0
      %1026 = vmatpush2.msra.mxu0 0.0
      %1027 = vmatprep.subr.mxu0 0.0
      %1028 = vmatpush2.msra.mxu0 0.0
      %1029 = vmatprep.subr.mxu0 0.0
      %1030 = vmatpush2.msra.mxu0 0.0
      %1031 = vmatprep.subr.mxu0 0.0
      %1032 = vmatpush2.msra.mxu0 0.0
      %1033 = vmatprep.subr.mxu0 0.0
      %1034 = vmatpush2.msra.mxu0 0.0
      %1035 = vmatprep.subr.mxu0 0.0
      %1036 = vmatpush2.msra.mxu0 0.0
      %1037 = vmatprep.subr.mxu0 0.0
      %1038 = vmatpush2.msra.mxu0 0.0
      %1039 = vmatprep.subr.mxu0 0.0
      %1040 = vmatpush2.msra.mxu0 0.0
      %1041 = vmatprep.subr.mxu0 0.0
      %1042 = vmatpush2.msra.mxu0 0.0
      %1043 = vmatprep.subr.mxu0 0.0
      %1044 = vmatpush2.msra.mxu0 0.0
      %1045 = vmatprep.subr.mxu0 0.0
      %1046 = vmatpush2.msra.mxu0 0.0
      %1047 = vmatprep.mubr.f32.mxu0 0.0
      %1048 = vmatmul.mubr.f32.gmra.mxu0 %v936
      %v1049 = vpop.f32.mrf.mxu0
      %v1050 = vadd.f32 0.0, %v1049
      %v1051 = vpop.f32.mrf.mxu0
      %1052 = vmatprep.mubr.f32.mxu0 0.0
      %1053 = vmatmul.mubr.f32.gmra.mxu0 %v939
      %v1054 = vpop.f32.mrf.mxu0
      %v1055 = vadd.f32 0.0, %v1054
      %v1056 = vpop.f32.mrf.mxu0
      %1057 = vmatprep.mubr.f32.mxu0 0.0
      %1058 = vmatmul.mubr.f32.gmra.mxu0 %v942
      %v1059 = vpop.f32.mrf.mxu0
      %v1060 = vadd.f32 0.0, %v1059
      %v1061 = vpop.f32.mrf.mxu0
      %1062 = vmatprep.mubr.f32.mxu0 0.0
      %1063 = vmatmul.mubr.f32.gmra.mxu0 %v945
      %v1064 = vpop.f32.mrf.mxu0
      %v1065 = vadd.f32 0.0, %v1064
      %v1066 = vpop.f32.mrf.mxu0
      %1067 = vmatprep.mubr.f32.mxu0 0.0
      %1068 = vmatmul.mubr.f32.gmra.mxu0 %v948
      %v1069 = vpop.f32.mrf.mxu0
      %v1070 = vadd.f32 0.0, %v1069
      %v1071 = vpop.f32.mrf.mxu0
      %1072 = vmatprep.mubr.f32.mxu0 0.0
      %1073 = vmatmul.mubr.f32.gmra.mxu0 %v951
      %v1074 = vpop.f32.mrf.mxu0
      %v1075 = vadd.f32 0.0, %v1074
      %v1076 = vpop.f32.mrf.mxu0
      %1077 = vmatprep.mubr.f32.mxu0 0.0
      %1078 = vmatmul.mubr.f32.gmra.mxu0 %v954
      %v1079 = vpop.f32.mrf.mxu0
      %v1080 = vadd.f32 0.0, %v1079
      %v1081 = vpop.f32.mrf.mxu0
      %1082 = vmatprep.mubr.f32.mxu0 0.0
      %1083 = vmatmul.mubr.f32.gmra.mxu0 %v957
      %v1084 = vpop.f32.mrf.mxu0
      %v1085 = vadd.f32 0.0, %v1084
      %v1086 = vpop.f32.mrf.mxu0
      %1087 = vmatprep.mubr.f32.mxu0 0.0
      %1088 = vmatmul.mubr.f32.gmra.mxu0 %v960
      %v1089 = vpop.f32.mrf.mxu0
      %v1090 = vadd.f32 0.0, %v1089
      %v1091 = vpop.f32.mrf.mxu0
      %1092 = vmatprep.mubr.f32.mxu0 0.0
      %1093 = vmatmul.mubr.f32.gmra.mxu0 %v963
      %v1094 = vpop.f32.mrf.mxu0
      %v1095 = vadd.f32 0.0, %v1094
      %v1096 = vpop.f32.mrf.mxu0
      %1097 = vmatprep.mubr.f32.mxu0 0.0
      %1098 = vmatmul.mubr.f32.gmra.mxu0 %v966
      %v1099 = vpop.f32.mrf.mxu0
      %v1100 = vadd.f32 0.0, %v1099
      %v1101 = vpop.f32.mrf.mxu0
      %1102 = vmatprep.mubr.f32.mxu0 0.0
      %1103 = vmatmul.mubr.f32.gmra.mxu0 %v969
      %v1104 = vpop.f32.mrf.mxu0
      %v1105 = vadd.f32 0.0, %v1104
      %v1106 = vpop.f32.mrf.mxu0
      %1107 = vmatprep.mubr.f32.mxu0 0.0
      %1108 = vmatmul.mubr.f32.gmra.mxu0 %v972
      %v1109 = vpop.f32.mrf.mxu0
      %v1110 = vadd.f32 0.0, %v1109
      %v1111 = vpop.f32.mrf.mxu0
      %1112 = vmatprep.mubr.f32.mxu0 0.0
      %1113 = vmatmul.mubr.f32.gmra.mxu0 %v975
      %v1114 = vpop.f32.mrf.mxu0
      %v1115 = vadd.f32 0.0, %v1114
      %v1116 = vpop.f32.mrf.mxu0
      %1117 = vmatprep.mubr.f32.mxu0 0.0
      %1118 = vmatmul.mubr.f32.gmra.mxu0 %v978
      %v1119 = vpop.f32.mrf.mxu0
      %v1120 = vadd.f32 0.0, %v1119
      %v1121 = vpop.f32.mrf.mxu0
      %1122 = vmatprep.mubr.f32.mxu0 0.0
      %1123 = vmatmul.mubr.f32.gmra.mxu0 %v981
      %v1124 = vpop.f32.mrf.mxu0
      %v1125 = vadd.f32 0.0, %v1124
      %v1126 = vpop.f32.mrf.mxu0
      %1127 = vdwg.mxu0
      %v1128 = vadd.f32 %v898, %v1050
      %v1129 = vadd.f32 %v899, %v1055
      %v1130 = vadd.f32 %v900, %v1060
      %v1131 = vadd.f32 %v901, %v1065
      %v1132 = vadd.f32 %v902, %v1070
      %v1133 = vadd.f32 %v903, %v1075
      %v1134 = vadd.f32 %v904, %v1080
      %v1135 = vadd.f32 %v905, %v1085
      %v1136 = vadd.f32 %v906, %v1090
      %v1137 = vadd.f32 %v907, %v1095
      %v1138 = vadd.f32 %v908, %v1100
      %v1139 = vadd.f32 %v909, %v1105
      %v1140 = vadd.f32 %v910, %v1110
      %v1141 = vadd.f32 %v911, %v1115
      %v1142 = vadd.f32 %v912, %v1120
      %v1143 = vadd.f32 %v913, %v1125
      %v1144 = vld [vmem:[%s916 + $0x1] sm:$0xff]
      %v1145 = vld [vmem:[%s916 + $0x9] sm:$0xff]
      %v1146 = vld [vmem:[%s916 + $0x19] sm:$0xff]
      %v1147 = vld [vmem:[%s916 + $0x21] sm:$0xff]
      %v1148 = vld [vmem:[%s916 + $0x31] sm:$0xff]
      %v1149 = vld [vmem:[%s916 + $0x39] sm:$0xff]
      %v1150 = vld [vmem:[%s916 + $0x49] sm:$0xff]
      %v1151 = vld [vmem:[%s916 + $0x51] sm:$0xff]
      %v1152 = vld [vmem:[%s916 + $0x61] sm:$0xff]
      %v1153 = vld [vmem:[%s916 + $0x69] sm:$0xff]
      %v1154 = vld [vmem:[%s916 + $0x79] sm:$0xff]
      %v1155 = vld [vmem:[%s916 + $0x81] sm:$0xff]
      %v1156 = vld [vmem:[%s916 + $0x91] sm:$0xff]
      %v1157 = vld [vmem:[%s916 + $0x99] sm:$0xff]
      %v1158 = vld [vmem:[%s916 + $0xa9] sm:$0xff]
      %v1159 = vld [vmem:[%s916 + $0xb1] sm:$0xff]
      %s1160 = scalar_lea.vmem %s1, 32
      %v1161 = vld [vmem:[%s1160] sm:$0xff]
      %v1163 = vsel %vm300, %v1144, 0
      %v1166 = vsel %vm300, %v1145, 0
      %v1169 = vsel %vm300, %v1146, 0
      %v1172 = vsel %vm300, %v1147, 0
      %v1175 = vsel %vm300, %v1148, 0
      %v1178 = vsel %vm300, %v1149, 0
      %v1181 = vsel %vm300, %v1150, 0
      %v1184 = vsel %vm300, %v1151, 0
      %v1187 = vsel %vm300, %v1152, 0
      %v1190 = vsel %vm300, %v1153, 0
      %v1193 = vsel %vm300, %v1154, 0
      %v1196 = vsel %vm300, %v1155, 0
      %v1199 = vsel %vm300, %v1156, 0
      %v1202 = vsel %vm300, %v1157, 0
      %v1205 = vsel %vm300, %v1158, 0
      %v1208 = vsel %vm300, %v1159, 0
      %1210 = vmatprep.subr.mxu0 0.0
      %1211 = vmatpush1.msra.mxu0 0.0
      %1212 = vmatprep.subr.mxu0 0.0
      %1213 = vmatpush1.msra.mxu0 0.0
      %1214 = vmatprep.subr.mxu0 0.0
      %1215 = vmatpush1.msra.mxu0 0.0
      %1216 = vmatprep.subr.mxu0 0.0
      %1217 = vmatpush1.msra.mxu0 0.0
      %1218 = vmatprep.subr.mxu0 0.0
      %1219 = vmatpush1.msra.mxu0 0.0
      %1220 = vmatprep.subr.mxu0 0.0
      %1221 = vmatpush1.msra.mxu0 0.0
      %1222 = vmatprep.subr.mxu0 0.0
      %1223 = vmatpush1.msra.mxu0 0.0
      %1224 = vmatprep.subr.mxu0 0.0
      %1225 = vmatpush1.msra.mxu0 0.0
      %1226 = vmatprep.subr.mxu0 0.0
      %1227 = vmatpush1.msra.mxu0 0.0
      %1228 = vmatprep.subr.mxu0 0.0
      %1229 = vmatpush1.msra.mxu0 0.0
      %1230 = vmatprep.subr.mxu0 0.0
      %1231 = vmatpush1.msra.mxu0 0.0
      %1232 = vmatprep.subr.mxu0 0.0
      %1233 = vmatpush1.msra.mxu0 0.0
      %1234 = vmatprep.subr.mxu0 0.0
      %1235 = vmatpush1.msra.mxu0 0.0
      %1236 = vmatprep.subr.mxu0 0.0
      %1237 = vmatpush1.msra.mxu0 0.0
      %1238 = vmatprep.subr.mxu0 0.0
      %1239 = vmatpush1.msra.mxu0 0.0
      %1240 = vmatprep.subr.mxu0 0.0
      %1241 = vmatpush1.msra.mxu0 %v1161
      %1242 = vmatprep.subr.mxu0 0.0
      %1243 = vmatpush2.msra.mxu0 0.0
      %1244 = vmatprep.subr.mxu0 0.0
      %1245 = vmatpush2.msra.mxu0 0.0
      %1246 = vmatprep.subr.mxu0 0.0
      %1247 = vmatpush2.msra.mxu0 0.0
      %1248 = vmatprep.subr.mxu0 0.0
      %1249 = vmatpush2.msra.mxu0 0.0
      %1250 = vmatprep.subr.mxu0 0.0
      %1251 = vmatpush2.msra.mxu0 0.0
      %1252 = vmatprep.subr.mxu0 0.0
      %1253 = vmatpush2.msra.mxu0 0.0
      %1254 = vmatprep.subr.mxu0 0.0
      %1255 = vmatpush2.msra.mxu0 0.0
      %1256 = vmatprep.subr.mxu0 0.0
      %1257 = vmatpush2.msra.mxu0 0.0
      %1258 = vmatprep.subr.mxu0 0.0
      %1259 = vmatpush2.msra.mxu0 0.0
      %1260 = vmatprep.subr.mxu0 0.0
      %1261 = vmatpush2.msra.mxu0 0.0
      %1262 = vmatprep.subr.mxu0 0.0
      %1263 = vmatpush2.msra.mxu0 0.0
      %1264 = vmatprep.subr.mxu0 0.0
      %1265 = vmatpush2.msra.mxu0 0.0
      %1266 = vmatprep.subr.mxu0 0.0
      %1267 = vmatpush2.msra.mxu0 0.0
      %1268 = vmatprep.subr.mxu0 0.0
      %1269 = vmatpush2.msra.mxu0 0.0
      %1270 = vmatprep.subr.mxu0 0.0
      %1271 = vmatpush2.msra.mxu0 0.0
      %1272 = vmatprep.subr.mxu0 0.0
      %1273 = vmatpush2.msra.mxu0 0.0
      %1274 = vmatprep.mubr.f32.mxu0 0.0
      %1275 = vmatmul.mubr.f32.gmra.mxu0 %v1163
      %v1276 = vpop.f32.mrf.mxu0
      %v1277 = vadd.f32 0.0, %v1276
      %v1278 = vpop.f32.mrf.mxu0
      %1279 = vmatprep.mubr.f32.mxu0 0.0
      %1280 = vmatmul.mubr.f32.gmra.mxu0 %v1166
      %v1281 = vpop.f32.mrf.mxu0
      %v1282 = vadd.f32 0.0, %v1281
      %v1283 = vpop.f32.mrf.mxu0
      %1284 = vmatprep.mubr.f32.mxu0 0.0
      %1285 = vmatmul.mubr.f32.gmra.mxu0 %v1169
      %v1286 = vpop.f32.mrf.mxu0
      %v1287 = vadd.f32 0.0, %v1286
      %v1288 = vpop.f32.mrf.mxu0
      %1289 = vmatprep.mubr.f32.mxu0 0.0
      %1290 = vmatmul.mubr.f32.gmra.mxu0 %v1172
      %v1291 = vpop.f32.mrf.mxu0
      %v1292 = vadd.f32 0.0, %v1291
      %v1293 = vpop.f32.mrf.mxu0
      %1294 = vmatprep.mubr.f32.mxu0 0.0
      %1295 = vmatmul.mubr.f32.gmra.mxu0 %v1175
      %v1296 = vpop.f32.mrf.mxu0
      %v1297 = vadd.f32 0.0, %v1296
      %v1298 = vpop.f32.mrf.mxu0
      %1299 = vmatprep.mubr.f32.mxu0 0.0
      %1300 = vmatmul.mubr.f32.gmra.mxu0 %v1178
      %v1301 = vpop.f32.mrf.mxu0
      %v1302 = vadd.f32 0.0, %v1301
      %v1303 = vpop.f32.mrf.mxu0
      %1304 = vmatprep.mubr.f32.mxu0 0.0
      %1305 = vmatmul.mubr.f32.gmra.mxu0 %v1181
      %v1306 = vpop.f32.mrf.mxu0
      %v1307 = vadd.f32 0.0, %v1306
      %v1308 = vpop.f32.mrf.mxu0
      %1309 = vmatprep.mubr.f32.mxu0 0.0
      %1310 = vmatmul.mubr.f32.gmra.mxu0 %v1184
      %v1311 = vpop.f32.mrf.mxu0
      %v1312 = vadd.f32 0.0, %v1311
      %v1313 = vpop.f32.mrf.mxu0
      %1314 = vmatprep.mubr.f32.mxu0 0.0
      %1315 = vmatmul.mubr.f32.gmra.mxu0 %v1187
      %v1316 = vpop.f32.mrf.mxu0
      %v1317 = vadd.f32 0.0, %v1316
      %v1318 = vpop.f32.mrf.mxu0
      %1319 = vmatprep.mubr.f32.mxu0 0.0
      %1320 = vmatmul.mubr.f32.gmra.mxu0 %v1190
      %v1321 = vpop.f32.mrf.mxu0
      %v1322 = vadd.f32 0.0, %v1321
      %v1323 = vpop.f32.mrf.mxu0
      %1324 = vmatprep.mubr.f32.mxu0 0.0
      %1325 = vmatmul.mubr.f32.gmra.mxu0 %v1193
      %v1326 = vpop.f32.mrf.mxu0
      %v1327 = vadd.f32 0.0, %v1326
      %v1328 = vpop.f32.mrf.mxu0
      %1329 = vmatprep.mubr.f32.mxu0 0.0
      %1330 = vmatmul.mubr.f32.gmra.mxu0 %v1196
      %v1331 = vpop.f32.mrf.mxu0
      %v1332 = vadd.f32 0.0, %v1331
      %v1333 = vpop.f32.mrf.mxu0
      %1334 = vmatprep.mubr.f32.mxu0 0.0
      %1335 = vmatmul.mubr.f32.gmra.mxu0 %v1199
      %v1336 = vpop.f32.mrf.mxu0
      %v1337 = vadd.f32 0.0, %v1336
      %v1338 = vpop.f32.mrf.mxu0
      %1339 = vmatprep.mubr.f32.mxu0 0.0
      %1340 = vmatmul.mubr.f32.gmra.mxu0 %v1202
      %v1341 = vpop.f32.mrf.mxu0
      %v1342 = vadd.f32 0.0, %v1341
      %v1343 = vpop.f32.mrf.mxu0
      %1344 = vmatprep.mubr.f32.mxu0 0.0
      %1345 = vmatmul.mubr.f32.gmra.mxu0 %v1205
      %v1346 = vpop.f32.mrf.mxu0
      %v1347 = vadd.f32 0.0, %v1346
      %v1348 = vpop.f32.mrf.mxu0
      %1349 = vmatprep.mubr.f32.mxu0 0.0
      %1350 = vmatmul.mubr.f32.gmra.mxu0 %v1208
      %v1351 = vpop.f32.mrf.mxu0
      %v1352 = vadd.f32 0.0, %v1351
      %v1353 = vpop.f32.mrf.mxu0
      %1354 = vdwg.mxu0
      %v1355 = vadd.f32 %v1128, %v1277
      %v1356 = vadd.f32 %v1129, %v1282
      %v1357 = vadd.f32 %v1130, %v1287
      %v1358 = vadd.f32 %v1131, %v1292
      %v1359 = vadd.f32 %v1132, %v1297
      %v1360 = vadd.f32 %v1133, %v1302
      %v1361 = vadd.f32 %v1134, %v1307
      %v1362 = vadd.f32 %v1135, %v1312
      %v1363 = vadd.f32 %v1136, %v1317
      %v1364 = vadd.f32 %v1137, %v1322
      %v1365 = vadd.f32 %v1138, %v1327
      %v1366 = vadd.f32 %v1139, %v1332
      %v1367 = vadd.f32 %v1140, %v1337
      %v1368 = vadd.f32 %v1141, %v1342
      %v1369 = vadd.f32 %v1142, %v1347
      %v1370 = vadd.f32 %v1143, %v1352
      %v1371 = vld [vmem:[%s916 + $0x2] sm:$0xff]
      %v1372 = vld [vmem:[%s916 + $0xa] sm:$0xff]
      %v1373 = vld [vmem:[%s916 + $0x1a] sm:$0xff]
      %v1374 = vld [vmem:[%s916 + $0x22] sm:$0xff]
      %v1375 = vld [vmem:[%s916 + $0x32] sm:$0xff]
      %v1376 = vld [vmem:[%s916 + $0x3a] sm:$0xff]
      %v1377 = vld [vmem:[%s916 + $0x4a] sm:$0xff]
      %v1378 = vld [vmem:[%s916 + $0x52] sm:$0xff]
      %v1379 = vld [vmem:[%s916 + $0x62] sm:$0xff]
      %v1380 = vld [vmem:[%s916 + $0x6a] sm:$0xff]
      %v1381 = vld [vmem:[%s916 + $0x7a] sm:$0xff]
      %v1382 = vld [vmem:[%s916 + $0x82] sm:$0xff]
      %v1383 = vld [vmem:[%s916 + $0x92] sm:$0xff]
      %v1384 = vld [vmem:[%s916 + $0x9a] sm:$0xff]
      %v1385 = vld [vmem:[%s916 + $0xaa] sm:$0xff]
      %v1386 = vld [vmem:[%s916 + $0xb2] sm:$0xff]
      %s1387 = scalar_lea.vmem %s1, 40
      %v1388 = vld [vmem:[%s1387] sm:$0xff]
      %v1390 = vsel %vm300, %v1371, 0
      %v1393 = vsel %vm300, %v1372, 0
      %v1396 = vsel %vm300, %v1373, 0
      %v1399 = vsel %vm300, %v1374, 0
      %v1402 = vsel %vm300, %v1375, 0
      %v1405 = vsel %vm300, %v1376, 0
      %v1408 = vsel %vm300, %v1377, 0
      %v1411 = vsel %vm300, %v1378, 0
      %v1414 = vsel %vm300, %v1379, 0
      %v1417 = vsel %vm300, %v1380, 0
      %v1420 = vsel %vm300, %v1381, 0
      %v1423 = vsel %vm300, %v1382, 0
      %v1426 = vsel %vm300, %v1383, 0
      %v1429 = vsel %vm300, %v1384, 0
      %v1432 = vsel %vm300, %v1385, 0
      %v1435 = vsel %vm300, %v1386, 0
      %1437 = vmatprep.subr.mxu0 0.0
      %1438 = vmatpush1.msra.mxu0 0.0
      %1439 = vmatprep.subr.mxu0 0.0
      %1440 = vmatpush1.msra.mxu0 0.0
      %1441 = vmatprep.subr.mxu0 0.0
      %1442 = vmatpush1.msra.mxu0 0.0
      %1443 = vmatprep.subr.mxu0 0.0
      %1444 = vmatpush1.msra.mxu0 0.0
      %1445 = vmatprep.subr.mxu0 0.0
      %1446 = vmatpush1.msra.mxu0 0.0
      %1447 = vmatprep.subr.mxu0 0.0
      %1448 = vmatpush1.msra.mxu0 0.0
      %1449 = vmatprep.subr.mxu0 0.0
      %1450 = vmatpush1.msra.mxu0 0.0
      %1451 = vmatprep.subr.mxu0 0.0
      %1452 = vmatpush1.msra.mxu0 0.0
      %1453 = vmatprep.subr.mxu0 0.0
      %1454 = vmatpush1.msra.mxu0 0.0
      %1455 = vmatprep.subr.mxu0 0.0
      %1456 = vmatpush1.msra.mxu0 0.0
      %1457 = vmatprep.subr.mxu0 0.0
      %1458 = vmatpush1.msra.mxu0 0.0
      %1459 = vmatprep.subr.mxu0 0.0
      %1460 = vmatpush1.msra.mxu0 0.0
      %1461 = vmatprep.subr.mxu0 0.0
      %1462 = vmatpush1.msra.mxu0 0.0
      %1463 = vmatprep.subr.mxu0 0.0
      %1464 = vmatpush1.msra.mxu0 0.0
      %1465 = vmatprep.subr.mxu0 0.0
      %1466 = vmatpush1.msra.mxu0 0.0
      %1467 = vmatprep.subr.mxu0 0.0
      %1468 = vmatpush1.msra.mxu0 %v1388
      %1469 = vmatprep.subr.mxu0 0.0
      %1470 = vmatpush2.msra.mxu0 0.0
      %1471 = vmatprep.subr.mxu0 0.0
      %1472 = vmatpush2.msra.mxu0 0.0
      %1473 = vmatprep.subr.mxu0 0.0
      %1474 = vmatpush2.msra.mxu0 0.0
      %1475 = vmatprep.subr.mxu0 0.0
      %1476 = vmatpush2.msra.mxu0 0.0
      %1477 = vmatprep.subr.mxu0 0.0
      %1478 = vmatpush2.msra.mxu0 0.0
      %1479 = vmatprep.subr.mxu0 0.0
      %1480 = vmatpush2.msra.mxu0 0.0
      %1481 = vmatprep.subr.mxu0 0.0
      %1482 = vmatpush2.msra.mxu0 0.0
      %1483 = vmatprep.subr.mxu0 0.0
      %1484 = vmatpush2.msra.mxu0 0.0
      %1485 = vmatprep.subr.mxu0 0.0
      %1486 = vmatpush2.msra.mxu0 0.0
      %1487 = vmatprep.subr.mxu0 0.0
      %1488 = vmatpush2.msra.mxu0 0.0
      %1489 = vmatprep.subr.mxu0 0.0
      %1490 = vmatpush2.msra.mxu0 0.0
      %1491 = vmatprep.subr.mxu0 0.0
      %1492 = vmatpush2.msra.mxu0 0.0
      %1493 = vmatprep.subr.mxu0 0.0
      %1494 = vmatpush2.msra.mxu0 0.0
      %1495 = vmatprep.subr.mxu0 0.0
      %1496 = vmatpush2.msra.mxu0 0.0
      %1497 = vmatprep.subr.mxu0 0.0
      %1498 = vmatpush2.msra.mxu0 0.0
      %1499 = vmatprep.subr.mxu0 0.0
      %1500 = vmatpush2.msra.mxu0 0.0
      %1501 = vmatprep.mubr.f32.mxu0 0.0
      %1502 = vmatmul.mubr.f32.gmra.mxu0 %v1390
      %v1503 = vpop.f32.mrf.mxu0
      %v1504 = vadd.f32 0.0, %v1503
      %v1505 = vpop.f32.mrf.mxu0
      %1506 = vmatprep.mubr.f32.mxu0 0.0
      %1507 = vmatmul.mubr.f32.gmra.mxu0 %v1393
      %v1508 = vpop.f32.mrf.mxu0
      %v1509 = vadd.f32 0.0, %v1508
      %v1510 = vpop.f32.mrf.mxu0
      %1511 = vmatprep.mubr.f32.mxu0 0.0
      %1512 = vmatmul.mubr.f32.gmra.mxu0 %v1396
      %v1513 = vpop.f32.mrf.mxu0
      %v1514 = vadd.f32 0.0, %v1513
      %v1515 = vpop.f32.mrf.mxu0
      %1516 = vmatprep.mubr.f32.mxu0 0.0
      %1517 = vmatmul.mubr.f32.gmra.mxu0 %v1399
      %v1518 = vpop.f32.mrf.mxu0
      %v1519 = vadd.f32 0.0, %v1518
      %v1520 = vpop.f32.mrf.mxu0
      %1521 = vmatprep.mubr.f32.mxu0 0.0
      %1522 = vmatmul.mubr.f32.gmra.mxu0 %v1402
      %v1523 = vpop.f32.mrf.mxu0
      %v1524 = vadd.f32 0.0, %v1523
      %v1525 = vpop.f32.mrf.mxu0
      %1526 = vmatprep.mubr.f32.mxu0 0.0
      %1527 = vmatmul.mubr.f32.gmra.mxu0 %v1405
      %v1528 = vpop.f32.mrf.mxu0
      %v1529 = vadd.f32 0.0, %v1528
      %v1530 = vpop.f32.mrf.mxu0
      %1531 = vmatprep.mubr.f32.mxu0 0.0
      %1532 = vmatmul.mubr.f32.gmra.mxu0 %v1408
      %v1533 = vpop.f32.mrf.mxu0
      %v1534 = vadd.f32 0.0, %v1533
      %v1535 = vpop.f32.mrf.mxu0
      %1536 = vmatprep.mubr.f32.mxu0 0.0
      %1537 = vmatmul.mubr.f32.gmra.mxu0 %v1411
      %v1538 = vpop.f32.mrf.mxu0
      %v1539 = vadd.f32 0.0, %v1538
      %v1540 = vpop.f32.mrf.mxu0
      %1541 = vmatprep.mubr.f32.mxu0 0.0
      %1542 = vmatmul.mubr.f32.gmra.mxu0 %v1414
      %v1543 = vpop.f32.mrf.mxu0
      %v1544 = vadd.f32 0.0, %v1543
      %v1545 = vpop.f32.mrf.mxu0
      %1546 = vmatprep.mubr.f32.mxu0 0.0
      %1547 = vmatmul.mubr.f32.gmra.mxu0 %v1417
      %v1548 = vpop.f32.mrf.mxu0
      %v1549 = vadd.f32 0.0, %v1548
      %v1550 = vpop.f32.mrf.mxu0
      %1551 = vmatprep.mubr.f32.mxu0 0.0
      %1552 = vmatmul.mubr.f32.gmra.mxu0 %v1420
      %v1553 = vpop.f32.mrf.mxu0
      %v1554 = vadd.f32 0.0, %v1553
      %v1555 = vpop.f32.mrf.mxu0
      %1556 = vmatprep.mubr.f32.mxu0 0.0
      %1557 = vmatmul.mubr.f32.gmra.mxu0 %v1423
      %v1558 = vpop.f32.mrf.mxu0
      %v1559 = vadd.f32 0.0, %v1558
      %v1560 = vpop.f32.mrf.mxu0
      %1561 = vmatprep.mubr.f32.mxu0 0.0
      %1562 = vmatmul.mubr.f32.gmra.mxu0 %v1426
      %v1563 = vpop.f32.mrf.mxu0
      %v1564 = vadd.f32 0.0, %v1563
      %v1565 = vpop.f32.mrf.mxu0
      %1566 = vmatprep.mubr.f32.mxu0 0.0
      %1567 = vmatmul.mubr.f32.gmra.mxu0 %v1429
      %v1568 = vpop.f32.mrf.mxu0
      %v1569 = vadd.f32 0.0, %v1568
      %v1570 = vpop.f32.mrf.mxu0
      %1571 = vmatprep.mubr.f32.mxu0 0.0
      %1572 = vmatmul.mubr.f32.gmra.mxu0 %v1432
      %v1573 = vpop.f32.mrf.mxu0
      %v1574 = vadd.f32 0.0, %v1573
      %v1575 = vpop.f32.mrf.mxu0
      %1576 = vmatprep.mubr.f32.mxu0 0.0
      %1577 = vmatmul.mubr.f32.gmra.mxu0 %v1435
      %v1578 = vpop.f32.mrf.mxu0
      %v1579 = vadd.f32 0.0, %v1578
      %v1580 = vpop.f32.mrf.mxu0
      %1581 = vdwg.mxu0
      %v1582 = vadd.f32 %v1355, %v1504
      %v1583 = vadd.f32 %v1356, %v1509
      %v1584 = vadd.f32 %v1357, %v1514
      %v1585 = vadd.f32 %v1358, %v1519
      %v1586 = vadd.f32 %v1359, %v1524
      %v1587 = vadd.f32 %v1360, %v1529
      %v1588 = vadd.f32 %v1361, %v1534
      %v1589 = vadd.f32 %v1362, %v1539
      %v1590 = vadd.f32 %v1363, %v1544
      %v1591 = vadd.f32 %v1364, %v1549
      %v1592 = vadd.f32 %v1365, %v1554
      %v1593 = vadd.f32 %v1366, %v1559
      %v1594 = vadd.f32 %v1367, %v1564
      %v1595 = vadd.f32 %v1368, %v1569
      %v1596 = vadd.f32 %v1369, %v1574
      %v1597 = vadd.f32 %v1370, %v1579
      %s1598 = sadd.s32 %s262, 2
      %s1599 = smul.u32 %s1598, 24
      %s1600 = scalar_lea.vmem %s239, %s1599
      %v1601 = vld [vmem:[%s1600] sm:$0xff]
      %v1602 = vld [vmem:[%s1600 + $0x8] sm:$0xff]
      %v1603 = vld [vmem:[%s1600 + $0x18] sm:$0xff]
      %v1604 = vld [vmem:[%s1600 + $0x20] sm:$0xff]
      %v1605 = vld [vmem:[%s1600 + $0x30] sm:$0xff]
      %v1606 = vld [vmem:[%s1600 + $0x38] sm:$0xff]
      %v1607 = vld [vmem:[%s1600 + $0x48] sm:$0xff]
      %v1608 = vld [vmem:[%s1600 + $0x50] sm:$0xff]
      %v1609 = vld [vmem:[%s1600 + $0x60] sm:$0xff]
      %v1610 = vld [vmem:[%s1600 + $0x68] sm:$0xff]
      %v1611 = vld [vmem:[%s1600 + $0x78] sm:$0xff]
      %v1612 = vld [vmem:[%s1600 + $0x80] sm:$0xff]
      %v1613 = vld [vmem:[%s1600 + $0x90] sm:$0xff]
      %v1614 = vld [vmem:[%s1600 + $0x98] sm:$0xff]
      %v1615 = vld [vmem:[%s1600 + $0xa8] sm:$0xff]
      %v1616 = vld [vmem:[%s1600 + $0xb0] sm:$0xff]
      %s1617 = scalar_lea.vmem %s1, 48
      %v1618 = vld [vmem:[%s1617] sm:$0xff]
      %v1620 = vsel %vm300, %v1601, 0
      %v1623 = vsel %vm300, %v1602, 0
      %v1626 = vsel %vm300, %v1603, 0
      %v1629 = vsel %vm300, %v1604, 0
      %v1632 = vsel %vm300, %v1605, 0
      %v1635 = vsel %vm300, %v1606, 0
      %v1638 = vsel %vm300, %v1607, 0
      %v1641 = vsel %vm300, %v1608, 0
      %v1644 = vsel %vm300, %v1609, 0
      %v1647 = vsel %vm300, %v1610, 0
      %v1650 = vsel %vm300, %v1611, 0
      %v1653 = vsel %vm300, %v1612, 0
      %v1656 = vsel %vm300, %v1613, 0
      %v1659 = vsel %vm300, %v1614, 0
      %v1662 = vsel %vm300, %v1615, 0
      %v1665 = vsel %vm300, %v1616, 0
      %1667 = vmatprep.subr.mxu0 0.0
      %1668 = vmatpush1.msra.mxu0 0.0
      %1669 = vmatprep.subr.mxu0 0.0
      %1670 = vmatpush1.msra.mxu0 0.0
      %1671 = vmatprep.subr.mxu0 0.0
      %1672 = vmatpush1.msra.mxu0 0.0
      %1673 = vmatprep.subr.mxu0 0.0
      %1674 = vmatpush1.msra.mxu0 0.0
      %1675 = vmatprep.subr.mxu0 0.0
      %1676 = vmatpush1.msra.mxu0 0.0
      %1677 = vmatprep.subr.mxu0 0.0
      %1678 = vmatpush1.msra.mxu0 0.0
      %1679 = vmatprep.subr.mxu0 0.0
      %1680 = vmatpush1.msra.mxu0 0.0
      %1681 = vmatprep.subr.mxu0 0.0
      %1682 = vmatpush1.msra.mxu0 0.0
      %1683 = vmatprep.subr.mxu0 0.0
      %1684 = vmatpush1.msra.mxu0 0.0
      %1685 = vmatprep.subr.mxu0 0.0
      %1686 = vmatpush1.msra.mxu0 0.0
      %1687 = vmatprep.subr.mxu0 0.0
      %1688 = vmatpush1.msra.mxu0 0.0
      %1689 = vmatprep.subr.mxu0 0.0
      %1690 = vmatpush1.msra.mxu0 0.0
      %1691 = vmatprep.subr.mxu0 0.0
      %1692 = vmatpush1.msra.mxu0 0.0
      %1693 = vmatprep.subr.mxu0 0.0
      %1694 = vmatpush1.msra.mxu0 0.0
      %1695 = vmatprep.subr.mxu0 0.0
      %1696 = vmatpush1.msra.mxu0 0.0
      %1697 = vmatprep.subr.mxu0 0.0
      %1698 = vmatpush1.msra.mxu0 %v1618
      %1699 = vmatprep.subr.mxu0 0.0
      %1700 = vmatpush2.msra.mxu0 0.0
      %1701 = vmatprep.subr.mxu0 0.0
      %1702 = vmatpush2.msra.mxu0 0.0
      %1703 = vmatprep.subr.mxu0 0.0
      %1704 = vmatpush2.msra.mxu0 0.0
      %1705 = vmatprep.subr.mxu0 0.0
      %1706 = vmatpush2.msra.mxu0 0.0
      %1707 = vmatprep.subr.mxu0 0.0
      %1708 = vmatpush2.msra.mxu0 0.0
      %1709 = vmatprep.subr.mxu0 0.0
      %1710 = vmatpush2.msra.mxu0 0.0
      %1711 = vmatprep.subr.mxu0 0.0
      %1712 = vmatpush2.msra.mxu0 0.0
      %1713 = vmatprep.subr.mxu0 0.0
      %1714 = vmatpush2.msra.mxu0 0.0
      %1715 = vmatprep.subr.mxu0 0.0
      %1716 = vmatpush2.msra.mxu0 0.0
      %1717 = vmatprep.subr.mxu0 0.0
      %1718 = vmatpush2.msra.mxu0 0.0
      %1719 = vmatprep.subr.mxu0 0.0
      %1720 = vmatpush2.msra.mxu0 0.0
      %1721 = vmatprep.subr.mxu0 0.0
      %1722 = vmatpush2.msra.mxu0 0.0
      %1723 = vmatprep.subr.mxu0 0.0
      %1724 = vmatpush2.msra.mxu0 0.0
      %1725 = vmatprep.subr.mxu0 0.0
      %1726 = vmatpush2.msra.mxu0 0.0
      %1727 = vmatprep.subr.mxu0 0.0
      %1728 = vmatpush2.msra.mxu0 0.0
      %1729 = vmatprep.subr.mxu0 0.0
      %1730 = vmatpush2.msra.mxu0 0.0
      %1731 = vmatprep.mubr.f32.mxu0 0.0
      %1732 = vmatmul.mubr.f32.gmra.mxu0 %v1620
      %v1733 = vpop.f32.mrf.mxu0
      %v1734 = vadd.f32 0.0, %v1733
      %v1735 = vpop.f32.mrf.mxu0
      %1736 = vmatprep.mubr.f32.mxu0 0.0
      %1737 = vmatmul.mubr.f32.gmra.mxu0 %v1623
      %v1738 = vpop.f32.mrf.mxu0
      %v1739 = vadd.f32 0.0, %v1738
      %v1740 = vpop.f32.mrf.mxu0
      %1741 = vmatprep.mubr.f32.mxu0 0.0
      %1742 = vmatmul.mubr.f32.gmra.mxu0 %v1626
      %v1743 = vpop.f32.mrf.mxu0
      %v1744 = vadd.f32 0.0, %v1743
      %v1745 = vpop.f32.mrf.mxu0
      %1746 = vmatprep.mubr.f32.mxu0 0.0
      %1747 = vmatmul.mubr.f32.gmra.mxu0 %v1629
      %v1748 = vpop.f32.mrf.mxu0
      %v1749 = vadd.f32 0.0, %v1748
      %v1750 = vpop.f32.mrf.mxu0
      %1751 = vmatprep.mubr.f32.mxu0 0.0
      %1752 = vmatmul.mubr.f32.gmra.mxu0 %v1632
      %v1753 = vpop.f32.mrf.mxu0
      %v1754 = vadd.f32 0.0, %v1753
      %v1755 = vpop.f32.mrf.mxu0
      %1756 = vmatprep.mubr.f32.mxu0 0.0
      %1757 = vmatmul.mubr.f32.gmra.mxu0 %v1635
      %v1758 = vpop.f32.mrf.mxu0
      %v1759 = vadd.f32 0.0, %v1758
      %v1760 = vpop.f32.mrf.mxu0
      %1761 = vmatprep.mubr.f32.mxu0 0.0
      %1762 = vmatmul.mubr.f32.gmra.mxu0 %v1638
      %v1763 = vpop.f32.mrf.mxu0
      %v1764 = vadd.f32 0.0, %v1763
      %v1765 = vpop.f32.mrf.mxu0
      %1766 = vmatprep.mubr.f32.mxu0 0.0
      %1767 = vmatmul.mubr.f32.gmra.mxu0 %v1641
      %v1768 = vpop.f32.mrf.mxu0
      %v1769 = vadd.f32 0.0, %v1768
      %v1770 = vpop.f32.mrf.mxu0
      %1771 = vmatprep.mubr.f32.mxu0 0.0
      %1772 = vmatmul.mubr.f32.gmra.mxu0 %v1644
      %v1773 = vpop.f32.mrf.mxu0
      %v1774 = vadd.f32 0.0, %v1773
      %v1775 = vpop.f32.mrf.mxu0
      %1776 = vmatprep.mubr.f32.mxu0 0.0
      %1777 = vmatmul.mubr.f32.gmra.mxu0 %v1647
      %v1778 = vpop.f32.mrf.mxu0
      %v1779 = vadd.f32 0.0, %v1778
      %v1780 = vpop.f32.mrf.mxu0
      %1781 = vmatprep.mubr.f32.mxu0 0.0
      %1782 = vmatmul.mubr.f32.gmra.mxu0 %v1650
      %v1783 = vpop.f32.mrf.mxu0
      %v1784 = vadd.f32 0.0, %v1783
      %v1785 = vpop.f32.mrf.mxu0
      %1786 = vmatprep.mubr.f32.mxu0 0.0
      %1787 = vmatmul.mubr.f32.gmra.mxu0 %v1653
      %v1788 = vpop.f32.mrf.mxu0
      %v1789 = vadd.f32 0.0, %v1788
      %v1790 = vpop.f32.mrf.mxu0
      %1791 = vmatprep.mubr.f32.mxu0 0.0
      %1792 = vmatmul.mubr.f32.gmra.mxu0 %v1656
      %v1793 = vpop.f32.mrf.mxu0
      %v1794 = vadd.f32 0.0, %v1793
      %v1795 = vpop.f32.mrf.mxu0
      %1796 = vmatprep.mubr.f32.mxu0 0.0
      %1797 = vmatmul.mubr.f32.gmra.mxu0 %v1659
      %v1798 = vpop.f32.mrf.mxu0
      %v1799 = vadd.f32 0.0, %v1798
      %v1800 = vpop.f32.mrf.mxu0
      %1801 = vmatprep.mubr.f32.mxu0 0.0
      %1802 = vmatmul.mubr.f32.gmra.mxu0 %v1662
      %v1803 = vpop.f32.mrf.mxu0
      %v1804 = vadd.f32 0.0, %v1803
      %v1805 = vpop.f32.mrf.mxu0
      %1806 = vmatprep.mubr.f32.mxu0 0.0
      %1807 = vmatmul.mubr.f32.gmra.mxu0 %v1665
      %v1808 = vpop.f32.mrf.mxu0
      %v1809 = vadd.f32 0.0, %v1808
      %v1810 = vpop.f32.mrf.mxu0
      %1811 = vdwg.mxu0
      %v1812 = vadd.f32 %v1582, %v1734
      %v1813 = vadd.f32 %v1583, %v1739
      %v1814 = vadd.f32 %v1584, %v1744
      %v1815 = vadd.f32 %v1585, %v1749
      %v1816 = vadd.f32 %v1586, %v1754
      %v1817 = vadd.f32 %v1587, %v1759
      %v1818 = vadd.f32 %v1588, %v1764
      %v1819 = vadd.f32 %v1589, %v1769
      %v1820 = vadd.f32 %v1590, %v1774
      %v1821 = vadd.f32 %v1591, %v1779
      %v1822 = vadd.f32 %v1592, %v1784
      %v1823 = vadd.f32 %v1593, %v1789
      %v1824 = vadd.f32 %v1594, %v1794
      %v1825 = vadd.f32 %v1595, %v1799
      %v1826 = vadd.f32 %v1596, %v1804
      %v1827 = vadd.f32 %v1597, %v1809
      %v1828 = vld [vmem:[%s1600 + $0x1] sm:$0xff]
      %v1829 = vld [vmem:[%s1600 + $0x9] sm:$0xff]
      %v1830 = vld [vmem:[%s1600 + $0x19] sm:$0xff]
      %v1831 = vld [vmem:[%s1600 + $0x21] sm:$0xff]
      %v1832 = vld [vmem:[%s1600 + $0x31] sm:$0xff]
      %v1833 = vld [vmem:[%s1600 + $0x39] sm:$0xff]
      %v1834 = vld [vmem:[%s1600 + $0x49] sm:$0xff]
      %v1835 = vld [vmem:[%s1600 + $0x51] sm:$0xff]
      %v1836 = vld [vmem:[%s1600 + $0x61] sm:$0xff]
      %v1837 = vld [vmem:[%s1600 + $0x69] sm:$0xff]
      %v1838 = vld [vmem:[%s1600 + $0x79] sm:$0xff]
      %v1839 = vld [vmem:[%s1600 + $0x81] sm:$0xff]
      %v1840 = vld [vmem:[%s1600 + $0x91] sm:$0xff]
      %v1841 = vld [vmem:[%s1600 + $0x99] sm:$0xff]
      %v1842 = vld [vmem:[%s1600 + $0xa9] sm:$0xff]
      %v1843 = vld [vmem:[%s1600 + $0xb1] sm:$0xff]
      %s1844 = scalar_lea.vmem %s1, 56
      %v1845 = vld [vmem:[%s1844] sm:$0xff]
      %v1847 = vsel %vm300, %v1828, 0
      %v1850 = vsel %vm300, %v1829, 0
      %v1853 = vsel %vm300, %v1830, 0
      %v1856 = vsel %vm300, %v1831, 0
      %v1859 = vsel %vm300, %v1832, 0
      %v1862 = vsel %vm300, %v1833, 0
      %v1865 = vsel %vm300, %v1834, 0
      %v1868 = vsel %vm300, %v1835, 0
      %v1871 = vsel %vm300, %v1836, 0
      %v1874 = vsel %vm300, %v1837, 0
      %v1877 = vsel %vm300, %v1838, 0
      %v1880 = vsel %vm300, %v1839, 0
      %v1883 = vsel %vm300, %v1840, 0
      %v1886 = vsel %vm300, %v1841, 0
      %v1889 = vsel %vm300, %v1842, 0
      %v1892 = vsel %vm300, %v1843, 0
      %1894 = vmatprep.subr.mxu0 0.0
      %1895 = vmatpush1.msra.mxu0 0.0
      %1896 = vmatprep.subr.mxu0 0.0
      %1897 = vmatpush1.msra.mxu0 0.0
      %1898 = vmatprep.subr.mxu0 0.0
      %1899 = vmatpush1.msra.mxu0 0.0
      %1900 = vmatprep.subr.mxu0 0.0
      %1901 = vmatpush1.msra.mxu0 0.0
      %1902 = vmatprep.subr.mxu0 0.0
      %1903 = vmatpush1.msra.mxu0 0.0
      %1904 = vmatprep.subr.mxu0 0.0
      %1905 = vmatpush1.msra.mxu0 0.0
      %1906 = vmatprep.subr.mxu0 0.0
      %1907 = vmatpush1.msra.mxu0 0.0
      %1908 = vmatprep.subr.mxu0 0.0
      %1909 = vmatpush1.msra.mxu0 0.0
      %1910 = vmatprep.subr.mxu0 0.0
      %1911 = vmatpush1.msra.mxu0 0.0
      %1912 = vmatprep.subr.mxu0 0.0
      %1913 = vmatpush1.msra.mxu0 0.0
      %1914 = vmatprep.subr.mxu0 0.0
      %1915 = vmatpush1.msra.mxu0 0.0
      %1916 = vmatprep.subr.mxu0 0.0
      %1917 = vmatpush1.msra.mxu0 0.0
      %1918 = vmatprep.subr.mxu0 0.0
      %1919 = vmatpush1.msra.mxu0 0.0
      %1920 = vmatprep.subr.mxu0 0.0
      %1921 = vmatpush1.msra.mxu0 0.0
      %1922 = vmatprep.subr.mxu0 0.0
      %1923 = vmatpush1.msra.mxu0 0.0
      %1924 = vmatprep.subr.mxu0 0.0
      %1925 = vmatpush1.msra.mxu0 %v1845
      %1926 = vmatprep.subr.mxu0 0.0
      %1927 = vmatpush2.msra.mxu0 0.0
      %1928 = vmatprep.subr.mxu0 0.0
      %1929 = vmatpush2.msra.mxu0 0.0
      %1930 = vmatprep.subr.mxu0 0.0
      %1931 = vmatpush2.msra.mxu0 0.0
      %1932 = vmatprep.subr.mxu0 0.0
      %1933 = vmatpush2.msra.mxu0 0.0
      %1934 = vmatprep.subr.mxu0 0.0
      %1935 = vmatpush2.msra.mxu0 0.0
      %1936 = vmatprep.subr.mxu0 0.0
      %1937 = vmatpush2.msra.mxu0 0.0
      %1938 = vmatprep.subr.mxu0 0.0
      %1939 = vmatpush2.msra.mxu0 0.0
      %1940 = vmatprep.subr.mxu0 0.0
      %1941 = vmatpush2.msra.mxu0 0.0
      %1942 = vmatprep.subr.mxu0 0.0
      %1943 = vmatpush2.msra.mxu0 0.0
      %1944 = vmatprep.subr.mxu0 0.0
      %1945 = vmatpush2.msra.mxu0 0.0
      %1946 = vmatprep.subr.mxu0 0.0
      %1947 = vmatpush2.msra.mxu0 0.0
      %1948 = vmatprep.subr.mxu0 0.0
      %1949 = vmatpush2.msra.mxu0 0.0
      %1950 = vmatprep.subr.mxu0 0.0
      %1951 = vmatpush2.msra.mxu0 0.0
      %1952 = vmatprep.subr.mxu0 0.0
      %1953 = vmatpush2.msra.mxu0 0.0
      %1954 = vmatprep.subr.mxu0 0.0
      %1955 = vmatpush2.msra.mxu0 0.0
      %1956 = vmatprep.subr.mxu0 0.0
      %1957 = vmatpush2.msra.mxu0 0.0
      %1958 = vmatprep.mubr.f32.mxu0 0.0
      %1959 = vmatmul.mubr.f32.gmra.mxu0 %v1847
      %v1960 = vpop.f32.mrf.mxu0
      %v1961 = vadd.f32 0.0, %v1960
      %v1962 = vpop.f32.mrf.mxu0
      %1963 = vmatprep.mubr.f32.mxu0 0.0
      %1964 = vmatmul.mubr.f32.gmra.mxu0 %v1850
      %v1965 = vpop.f32.mrf.mxu0
      %v1966 = vadd.f32 0.0, %v1965
      %v1967 = vpop.f32.mrf.mxu0
      %1968 = vmatprep.mubr.f32.mxu0 0.0
      %1969 = vmatmul.mubr.f32.gmra.mxu0 %v1853
      %v1970 = vpop.f32.mrf.mxu0
      %v1971 = vadd.f32 0.0, %v1970
      %v1972 = vpop.f32.mrf.mxu0
      %1973 = vmatprep.mubr.f32.mxu0 0.0
      %1974 = vmatmul.mubr.f32.gmra.mxu0 %v1856
      %v1975 = vpop.f32.mrf.mxu0
      %v1976 = vadd.f32 0.0, %v1975
      %v1977 = vpop.f32.mrf.mxu0
      %1978 = vmatprep.mubr.f32.mxu0 0.0
      %1979 = vmatmul.mubr.f32.gmra.mxu0 %v1859
      %v1980 = vpop.f32.mrf.mxu0
      %v1981 = vadd.f32 0.0, %v1980
      %v1982 = vpop.f32.mrf.mxu0
      %1983 = vmatprep.mubr.f32.mxu0 0.0
      %1984 = vmatmul.mubr.f32.gmra.mxu0 %v1862
      %v1985 = vpop.f32.mrf.mxu0
      %v1986 = vadd.f32 0.0, %v1985
      %v1987 = vpop.f32.mrf.mxu0
      %1988 = vmatprep.mubr.f32.mxu0 0.0
      %1989 = vmatmul.mubr.f32.gmra.mxu0 %v1865
      %v1990 = vpop.f32.mrf.mxu0
      %v1991 = vadd.f32 0.0, %v1990
      %v1992 = vpop.f32.mrf.mxu0
      %1993 = vmatprep.mubr.f32.mxu0 0.0
      %1994 = vmatmul.mubr.f32.gmra.mxu0 %v1868
      %v1995 = vpop.f32.mrf.mxu0
      %v1996 = vadd.f32 0.0, %v1995
      %v1997 = vpop.f32.mrf.mxu0
      %1998 = vmatprep.mubr.f32.mxu0 0.0
      %1999 = vmatmul.mubr.f32.gmra.mxu0 %v1871
      %v2000 = vpop.f32.mrf.mxu0
      %v2001 = vadd.f32 0.0, %v2000
      %v2002 = vpop.f32.mrf.mxu0
      %2003 = vmatprep.mubr.f32.mxu0 0.0
      %2004 = vmatmul.mubr.f32.gmra.mxu0 %v1874
      %v2005 = vpop.f32.mrf.mxu0
      %v2006 = vadd.f32 0.0, %v2005
      %v2007 = vpop.f32.mrf.mxu0
      %2008 = vmatprep.mubr.f32.mxu0 0.0
      %2009 = vmatmul.mubr.f32.gmra.mxu0 %v1877
      %v2010 = vpop.f32.mrf.mxu0
      %v2011 = vadd.f32 0.0, %v2010
      %v2012 = vpop.f32.mrf.mxu0
      %2013 = vmatprep.mubr.f32.mxu0 0.0
      %2014 = vmatmul.mubr.f32.gmra.mxu0 %v1880
      %v2015 = vpop.f32.mrf.mxu0
      %v2016 = vadd.f32 0.0, %v2015
      %v2017 = vpop.f32.mrf.mxu0
      %2018 = vmatprep.mubr.f32.mxu0 0.0
      %2019 = vmatmul.mubr.f32.gmra.mxu0 %v1883
      %v2020 = vpop.f32.mrf.mxu0
      %v2021 = vadd.f32 0.0, %v2020
      %v2022 = vpop.f32.mrf.mxu0
      %2023 = vmatprep.mubr.f32.mxu0 0.0
      %2024 = vmatmul.mubr.f32.gmra.mxu0 %v1886
      %v2025 = vpop.f32.mrf.mxu0
      %v2026 = vadd.f32 0.0, %v2025
      %v2027 = vpop.f32.mrf.mxu0
      %2028 = vmatprep.mubr.f32.mxu0 0.0
      %2029 = vmatmul.mubr.f32.gmra.mxu0 %v1889
      %v2030 = vpop.f32.mrf.mxu0
      %v2031 = vadd.f32 0.0, %v2030
      %v2032 = vpop.f32.mrf.mxu0
      %2033 = vmatprep.mubr.f32.mxu0 0.0
      %2034 = vmatmul.mubr.f32.gmra.mxu0 %v1892
      %v2035 = vpop.f32.mrf.mxu0
      %v2036 = vadd.f32 0.0, %v2035
      %v2037 = vpop.f32.mrf.mxu0
      %2038 = vdwg.mxu0
      %v2039 = vadd.f32 %v1812, %v1961
      %v2040 = vadd.f32 %v1813, %v1966
      %v2041 = vadd.f32 %v1814, %v1971
      %v2042 = vadd.f32 %v1815, %v1976
      %v2043 = vadd.f32 %v1816, %v1981
      %v2044 = vadd.f32 %v1817, %v1986
      %v2045 = vadd.f32 %v1818, %v1991
      %v2046 = vadd.f32 %v1819, %v1996
      %v2047 = vadd.f32 %v1820, %v2001
      %v2048 = vadd.f32 %v1821, %v2006
      %v2049 = vadd.f32 %v1822, %v2011
      %v2050 = vadd.f32 %v1823, %v2016
      %v2051 = vadd.f32 %v1824, %v2021
      %v2052 = vadd.f32 %v1825, %v2026
      %v2053 = vadd.f32 %v1826, %v2031
      %v2054 = vadd.f32 %v1827, %v2036
      %v2055 = vld [vmem:[%s1600 + $0x2] sm:$0xff]
      %v2056 = vld [vmem:[%s1600 + $0xa] sm:$0xff]
      %v2057 = vld [vmem:[%s1600 + $0x1a] sm:$0xff]
      %v2058 = vld [vmem:[%s1600 + $0x22] sm:$0xff]
      %v2059 = vld [vmem:[%s1600 + $0x32] sm:$0xff]
      %v2060 = vld [vmem:[%s1600 + $0x3a] sm:$0xff]
      %v2061 = vld [vmem:[%s1600 + $0x4a] sm:$0xff]
      %v2062 = vld [vmem:[%s1600 + $0x52] sm:$0xff]
      %v2063 = vld [vmem:[%s1600 + $0x62] sm:$0xff]
      %v2064 = vld [vmem:[%s1600 + $0x6a] sm:$0xff]
      %v2065 = vld [vmem:[%s1600 + $0x7a] sm:$0xff]
      %v2066 = vld [vmem:[%s1600 + $0x82] sm:$0xff]
      %v2067 = vld [vmem:[%s1600 + $0x92] sm:$0xff]
      %v2068 = vld [vmem:[%s1600 + $0x9a] sm:$0xff]
      %v2069 = vld [vmem:[%s1600 + $0xaa] sm:$0xff]
      %v2070 = vld [vmem:[%s1600 + $0xb2] sm:$0xff]
      %s2071 = scalar_lea.vmem %s1, 64
      %v2072 = vld [vmem:[%s2071] sm:$0xff]
      %v2074 = vsel %vm300, %v2055, 0
      %v2077 = vsel %vm300, %v2056, 0
      %v2080 = vsel %vm300, %v2057, 0
      %v2083 = vsel %vm300, %v2058, 0
      %v2086 = vsel %vm300, %v2059, 0
      %v2089 = vsel %vm300, %v2060, 0
      %v2092 = vsel %vm300, %v2061, 0
      %v2095 = vsel %vm300, %v2062, 0
      %v2098 = vsel %vm300, %v2063, 0
      %v2101 = vsel %vm300, %v2064, 0
      %v2104 = vsel %vm300, %v2065, 0
      %v2107 = vsel %vm300, %v2066, 0
      %v2110 = vsel %vm300, %v2067, 0
      %v2113 = vsel %vm300, %v2068, 0
      %v2116 = vsel %vm300, %v2069, 0
      %v2119 = vsel %vm300, %v2070, 0
      %2121 = vmatprep.subr.mxu0 0.0
      %2122 = vmatpush1.msra.mxu0 0.0
      %2123 = vmatprep.subr.mxu0 0.0
      %2124 = vmatpush1.msra.mxu0 0.0
      %2125 = vmatprep.subr.mxu0 0.0
      %2126 = vmatpush1.msra.mxu0 0.0
      %2127 = vmatprep.subr.mxu0 0.0
      %2128 = vmatpush1.msra.mxu0 0.0
      %2129 = vmatprep.subr.mxu0 0.0
      %2130 = vmatpush1.msra.mxu0 0.0
      %2131 = vmatprep.subr.mxu0 0.0
      %2132 = vmatpush1.msra.mxu0 0.0
      %2133 = vmatprep.subr.mxu0 0.0
      %2134 = vmatpush1.msra.mxu0 0.0
      %2135 = vmatprep.subr.mxu0 0.0
      %2136 = vmatpush1.msra.mxu0 0.0
      %2137 = vmatprep.subr.mxu0 0.0
      %2138 = vmatpush1.msra.mxu0 0.0
      %2139 = vmatprep.subr.mxu0 0.0
      %2140 = vmatpush1.msra.mxu0 0.0
      %2141 = vmatprep.subr.mxu0 0.0
      %2142 = vmatpush1.msra.mxu0 0.0
      %2143 = vmatprep.subr.mxu0 0.0
      %2144 = vmatpush1.msra.mxu0 0.0
      %2145 = vmatprep.subr.mxu0 0.0
      %2146 = vmatpush1.msra.mxu0 0.0
      %2147 = vmatprep.subr.mxu0 0.0
      %2148 = vmatpush1.msra.mxu0 0.0
      %2149 = vmatprep.subr.mxu0 0.0
      %2150 = vmatpush1.msra.mxu0 0.0
      %2151 = vmatprep.subr.mxu0 0.0
      %2152 = vmatpush1.msra.mxu0 %v2072
      %2153 = vmatprep.subr.mxu0 0.0
      %2154 = vmatpush2.msra.mxu0 0.0
      %2155 = vmatprep.subr.mxu0 0.0
      %2156 = vmatpush2.msra.mxu0 0.0
      %2157 = vmatprep.subr.mxu0 0.0
      %2158 = vmatpush2.msra.mxu0 0.0
      %2159 = vmatprep.subr.mxu0 0.0
      %2160 = vmatpush2.msra.mxu0 0.0
      %2161 = vmatprep.subr.mxu0 0.0
      %2162 = vmatpush2.msra.mxu0 0.0
      %2163 = vmatprep.subr.mxu0 0.0
      %2164 = vmatpush2.msra.mxu0 0.0
      %2165 = vmatprep.subr.mxu0 0.0
      %2166 = vmatpush2.msra.mxu0 0.0
      %2167 = vmatprep.subr.mxu0 0.0
      %2168 = vmatpush2.msra.mxu0 0.0
      %2169 = vmatprep.subr.mxu0 0.0
      %2170 = vmatpush2.msra.mxu0 0.0
      %2171 = vmatprep.subr.mxu0 0.0
      %2172 = vmatpush2.msra.mxu0 0.0
      %2173 = vmatprep.subr.mxu0 0.0
      %2174 = vmatpush2.msra.mxu0 0.0
      %2175 = vmatprep.subr.mxu0 0.0
      %2176 = vmatpush2.msra.mxu0 0.0
      %2177 = vmatprep.subr.mxu0 0.0
      %2178 = vmatpush2.msra.mxu0 0.0
      %2179 = vmatprep.subr.mxu0 0.0
      %2180 = vmatpush2.msra.mxu0 0.0
      %2181 = vmatprep.subr.mxu0 0.0
      %2182 = vmatpush2.msra.mxu0 0.0
      %2183 = vmatprep.subr.mxu0 0.0
      %2184 = vmatpush2.msra.mxu0 0.0
      %2185 = vmatprep.mubr.f32.mxu0 0.0
      %2186 = vmatmul.mubr.f32.gmra.mxu0 %v2074
      %v2187 = vpop.f32.mrf.mxu0
      %v2188 = vadd.f32 0.0, %v2187
      %v2189 = vpop.f32.mrf.mxu0
      %2190 = vmatprep.mubr.f32.mxu0 0.0
      %2191 = vmatmul.mubr.f32.gmra.mxu0 %v2077
      %v2192 = vpop.f32.mrf.mxu0
      %v2193 = vadd.f32 0.0, %v2192
      %v2194 = vpop.f32.mrf.mxu0
      %2195 = vmatprep.mubr.f32.mxu0 0.0
      %2196 = vmatmul.mubr.f32.gmra.mxu0 %v2080
      %v2197 = vpop.f32.mrf.mxu0
      %v2198 = vadd.f32 0.0, %v2197
      %v2199 = vpop.f32.mrf.mxu0
      %2200 = vmatprep.mubr.f32.mxu0 0.0
      %2201 = vmatmul.mubr.f32.gmra.mxu0 %v2083
      %v2202 = vpop.f32.mrf.mxu0
      %v2203 = vadd.f32 0.0, %v2202
      %v2204 = vpop.f32.mrf.mxu0
      %2205 = vmatprep.mubr.f32.mxu0 0.0
      %2206 = vmatmul.mubr.f32.gmra.mxu0 %v2086
      %v2207 = vpop.f32.mrf.mxu0
      %v2208 = vadd.f32 0.0, %v2207
      %v2209 = vpop.f32.mrf.mxu0
      %2210 = vmatprep.mubr.f32.mxu0 0.0
      %2211 = vmatmul.mubr.f32.gmra.mxu0 %v2089
      %v2212 = vpop.f32.mrf.mxu0
      %v2213 = vadd.f32 0.0, %v2212
      %v2214 = vpop.f32.mrf.mxu0
      %2215 = vmatprep.mubr.f32.mxu0 0.0
      %2216 = vmatmul.mubr.f32.gmra.mxu0 %v2092
      %v2217 = vpop.f32.mrf.mxu0
      %v2218 = vadd.f32 0.0, %v2217
      %v2219 = vpop.f32.mrf.mxu0
      %2220 = vmatprep.mubr.f32.mxu0 0.0
      %2221 = vmatmul.mubr.f32.gmra.mxu0 %v2095
      %v2222 = vpop.f32.mrf.mxu0
      %v2223 = vadd.f32 0.0, %v2222
      %v2224 = vpop.f32.mrf.mxu0
      %2225 = vmatprep.mubr.f32.mxu0 0.0
      %2226 = vmatmul.mubr.f32.gmra.mxu0 %v2098
      %v2227 = vpop.f32.mrf.mxu0
      %v2228 = vadd.f32 0.0, %v2227
      %v2229 = vpop.f32.mrf.mxu0
      %2230 = vmatprep.mubr.f32.mxu0 0.0
      %2231 = vmatmul.mubr.f32.gmra.mxu0 %v2101
      %v2232 = vpop.f32.mrf.mxu0
      %v2233 = vadd.f32 0.0, %v2232
      %v2234 = vpop.f32.mrf.mxu0
      %2235 = vmatprep.mubr.f32.mxu0 0.0
      %2236 = vmatmul.mubr.f32.gmra.mxu0 %v2104
      %v2237 = vpop.f32.mrf.mxu0
      %v2238 = vadd.f32 0.0, %v2237
      %v2239 = vpop.f32.mrf.mxu0
      %2240 = vmatprep.mubr.f32.mxu0 0.0
      %2241 = vmatmul.mubr.f32.gmra.mxu0 %v2107
      %v2242 = vpop.f32.mrf.mxu0
      %v2243 = vadd.f32 0.0, %v2242
      %v2244 = vpop.f32.mrf.mxu0
      %2245 = vmatprep.mubr.f32.mxu0 0.0
      %2246 = vmatmul.mubr.f32.gmra.mxu0 %v2110
      %v2247 = vpop.f32.mrf.mxu0
      %v2248 = vadd.f32 0.0, %v2247
      %v2249 = vpop.f32.mrf.mxu0
      %2250 = vmatprep.mubr.f32.mxu0 0.0
      %2251 = vmatmul.mubr.f32.gmra.mxu0 %v2113
      %v2252 = vpop.f32.mrf.mxu0
      %v2253 = vadd.f32 0.0, %v2252
      %v2254 = vpop.f32.mrf.mxu0
      %2255 = vmatprep.mubr.f32.mxu0 0.0
      %2256 = vmatmul.mubr.f32.gmra.mxu0 %v2116
      %v2257 = vpop.f32.mrf.mxu0
      %v2258 = vadd.f32 0.0, %v2257
      %v2259 = vpop.f32.mrf.mxu0
      %2260 = vmatprep.mubr.f32.mxu0 0.0
      %2261 = vmatmul.mubr.f32.gmra.mxu0 %v2119
      %v2262 = vpop.f32.mrf.mxu0
      %v2263 = vadd.f32 0.0, %v2262
      %v2264 = vpop.f32.mrf.mxu0
      %2265 = vdwg.mxu0
      %v2266 = vadd.f32 %v2039, %v2188
      %v2267 = vadd.f32 %v2040, %v2193
      %v2268 = vadd.f32 %v2041, %v2198
      %v2269 = vadd.f32 %v2042, %v2203
      %v2270 = vadd.f32 %v2043, %v2208
      %v2271 = vadd.f32 %v2044, %v2213
      %v2272 = vadd.f32 %v2045, %v2218
      %v2273 = vadd.f32 %v2046, %v2223
      %v2274 = vadd.f32 %v2047, %v2228
      %v2275 = vadd.f32 %v2048, %v2233
      %v2276 = vadd.f32 %v2049, %v2238
      %v2277 = vadd.f32 %v2050, %v2243
      %v2278 = vadd.f32 %v2051, %v2248
      %v2279 = vadd.f32 %v2052, %v2253
      %v2280 = vadd.f32 %v2053, %v2258
      %v2281 = vadd.f32 %v2054, %v2263
      %v2282 = vld [vmem:[%s2] sm:$0x1]
      %v2284 = vlaneseq
      %v2285 = vshrl.u32 %v2284, 7
      %v2286 = vsub.s32 0, %v2285
      %v2287 = vrot.slane %v2282, %v2286
      %v2289 = vadd.f32 %v2266, %v2287
      %v2290 = vadd.f32 %v2267, %v2287
      %v2291 = vadd.f32 %v2268, %v2287
      %v2292 = vadd.f32 %v2269, %v2287
      %v2293 = vadd.f32 %v2270, %v2287
      %v2294 = vadd.f32 %v2271, %v2287
      %v2295 = vadd.f32 %v2272, %v2287
      %v2296 = vadd.f32 %v2273, %v2287
      %v2297 = vadd.f32 %v2274, %v2287
      %v2298 = vadd.f32 %v2275, %v2287
      %v2299 = vadd.f32 %v2276, %v2287
      %v2300 = vadd.f32 %v2277, %v2287
      %v2301 = vadd.f32 %v2278, %v2287
      %v2302 = vadd.f32 %v2279, %v2287
      %v2303 = vadd.f32 %v2280, %v2287
      %v2304 = vadd.f32 %v2281, %v2287
      %v2305 = vld [vmem:[%s249] sm:$0xff]
      %v2306 = vld [vmem:[%s249 + $0x8] sm:$0xff]
      %v2307 = vld [vmem:[%s249 + $0x10] sm:$0xff]
      %v2308 = vld [vmem:[%s249 + $0x18] sm:$0xff]
      %v2309 = vld [vmem:[%s249 + $0x20] sm:$0xff]
      %v2310 = vld [vmem:[%s249 + $0x28] sm:$0xff]
      %v2311 = vld [vmem:[%s249 + $0x30] sm:$0xff]
      %v2312 = vld [vmem:[%s249 + $0x38] sm:$0xff]
      %v2313 = vld [vmem:[%s249 + $0x40] sm:$0xff]
      %v2314 = vld [vmem:[%s249 + $0x48] sm:$0xff]
      %v2315 = vld [vmem:[%s249 + $0x50] sm:$0xff]
      %v2316 = vld [vmem:[%s249 + $0x58] sm:$0xff]
      %v2317 = vld [vmem:[%s249 + $0x60] sm:$0xff]
      %v2318 = vld [vmem:[%s249 + $0x68] sm:$0xff]
      %v2319 = vld [vmem:[%s249 + $0x70] sm:$0xff]
      %v2320 = vld [vmem:[%s249 + $0x78] sm:$0xff]
      %v2321 = vadd.f32 %v2289, %v2305
      %v2322 = vadd.f32 %v2290, %v2306
      %v2323 = vadd.f32 %v2291, %v2307
      %v2324 = vadd.f32 %v2292, %v2308
      %v2325 = vadd.f32 %v2293, %v2309
      %v2326 = vadd.f32 %v2294, %v2310
      %v2327 = vadd.f32 %v2295, %v2311
      %v2328 = vadd.f32 %v2296, %v2312
      %v2329 = vadd.f32 %v2297, %v2313
      %v2330 = vadd.f32 %v2298, %v2314
      %v2331 = vadd.f32 %v2299, %v2315
      %v2332 = vadd.f32 %v2300, %v2316
      %v2333 = vadd.f32 %v2301, %v2317
      %v2334 = vadd.f32 %v2302, %v2318
      %v2335 = vadd.f32 %v2303, %v2319
      %v2336 = vadd.f32 %v2304, %v2320
      %2337 = vst.msk [vmem:[%s260] sm:$0xff] %vm300, %v2321
      %2338 = vst.msk [vmem:[%s260 + $0x8] sm:$0xff] %vm300, %v2322
      %2339 = vst.msk [vmem:[%s260 + $0x10] sm:$0xff] %vm300, %v2323
      %2340 = vst.msk [vmem:[%s260 + $0x18] sm:$0xff] %vm300, %v2324
      %2341 = vst.msk [vmem:[%s260 + $0x20] sm:$0xff] %vm300, %v2325
      %2342 = vst.msk [vmem:[%s260 + $0x28] sm:$0xff] %vm300, %v2326
      %2343 = vst.msk [vmem:[%s260 + $0x30] sm:$0xff] %vm300, %v2327
      %2344 = vst.msk [vmem:[%s260 + $0x38] sm:$0xff] %vm300, %v2328
      %2345 = vst.msk [vmem:[%s260 + $0x40] sm:$0xff] %vm300, %v2329
      %2346 = vst.msk [vmem:[%s260 + $0x48] sm:$0xff] %vm300, %v2330
      %2347 = vst.msk [vmem:[%s260 + $0x50] sm:$0xff] %vm300, %v2331
      %2348 = vst.msk [vmem:[%s260 + $0x58] sm:$0xff] %vm300, %v2332
      %2349 = vst.msk [vmem:[%s260 + $0x60] sm:$0xff] %vm300, %v2333
      %2350 = vst.msk [vmem:[%s260 + $0x68] sm:$0xff] %vm300, %v2334
      %2351 = vst.msk [vmem:[%s260 + $0x70] sm:$0xff] %vm300, %v2335
      %2352 = vst.msk [vmem:[%s260 + $0x78] sm:$0xff] %vm300, %v2336
      %s2353 = smul.u32 8, %s20
      %p2354 = scmp.lt.s32.totalorder %s19, 1
      %s2355 = scalar_select %p2354, %s19, 1
      %p2356 = scmp.lt.s32.totalorder %s2353, 15
      %s2357 = scalar_select %p2356, %s2353, 15
      %s2358 = smul.addr %s2357, 2
      %s2359 = smul.addr %s2355, 32
      %s2360 = sadd.s32 %s2358, %s2359
      %s2361 = smul.addr %s2360, 8
      %s2362 = scalar_lea.vmem %s4, %s2361
      // Predicated region
      $region37: #{res_block_forward.3} parent=35 // pred_check
        %p2363 = pneg %p143
      $region38: #{res_block_forward.3} parent=35 // pred_check_branch
        %2365 = sbr.rel (%p2363) target = $region40
      $region39: #{res_block_forward.3} parent=35 // pred_region
        %s2366 = smul.u32 8, %s20
      $region40: #{res_block_forward.3} parent=35 // pred_fallthru
        _
    $region36: #{res_block_forward.3} parent=5 // pred_fallthru
      _
    %p2367 = scmp.le.s32.totalorder 2, %s10
    // Predicated region
    $region41: #{res_block_forward.3} parent=5 // pred_check
      %p2368 = pneg %p2367
    $region42: #{res_block_forward.3} parent=5 // pred_check_branch
      %2370 = sbr.rel (%p2368) target = $region44
    $region43: #{res_block_forward.3} parent=5 // pred_region
      %s2371 = ssub.s32 %s10, 2
      // Predicated region
      $region45: #{res_block_forward.3} parent=43 // pred_check
        %p2372 = pneg %p149
      $region46: #{res_block_forward.3} parent=43 // pred_check_branch
        %2374 = sbr.rel (%p2372) target = $region48
      $region47: #{res_block_forward.3} parent=43 // pred_region
        %s2375 = smul.u32 8, %s22
        %p2376 = scmp.lt.s32.totalorder %s21, 1
        %s2377 = scalar_select %p2376, %s21, 1
        %p2378 = scmp.lt.s32.totalorder %s2375, 15
        %s2379 = scalar_select %p2378, %s2375, 15
        %s2380 = smul.addr %s2379, 2
        %s2381 = smul.addr %s2377, 32
        %s2382 = sadd.s32 %s2380, %s2381
        %s2383 = smul.addr %s2382, 8
        %s2384 = scalar_lea.vmem %s4, %s2383
      $region48: #{res_block_forward.3} parent=43 // pred_fallthru
        _
    $region44: #{res_block_forward.3} parent=5 // pred_fallthru
      _
  $region6: #{res_block_forward.3} parent=0 // loop_footer
    %s14 = sadd.s32 1, %s10
  $region7: #{res_block_forward.3} parent=0 // loop_footer_branch
    %9 = sbr.rel target = $region3
  $region8: #{res_block_forward.3} parent=0 // loop_exit
    _

// kernel: res_block_forward.2
$region0: #{res_block_forward.2}
  #allocation0 [shape = 'u32[]', space=smem, size = 0x4, offset = 0x4, fixed_abs, tag = 'smem constant byte address 0x4 - core index']
  #allocation1 [shape = 'u32[144,128]{1,0:T(1,128)}', space=vmem, size = 0x12000, scoped, tag = 'internal scratch']
  %s0 = inlined_call_operand.vmem [shape: f32[2,18,18,4], index: 0, kind: input, shape index: {}]
  %s1 = inlined_call_operand.vmem [shape: f32[3,3,4,8], index: 1, kind: input, shape index: {}]
  %s2 = inlined_call_operand.vmem [shape: f32[1,8], index: 2, kind: input, shape index: {}]
  %s3 = inlined_call_operand.vmem [shape: f32[3,3,4,8], index: 3, kind: input, shape index: {}]
  %s4 = inlined_call_operand.vmem [shape: f32[1,8], index: 4, kind: input, shape index: {}]
  %s5 = inlined_call_operand.vmem [shape: f32[2,16,16,8], index: 5, kind: output, shape index: {0}]
  %s6 = inlined_call_operand.vmem [shape: f32[2,16,16,8], index: 6, kind: output, shape index: {1}]
  %7 = xla_tuple %s5, %s6
  %s8 = sld [smem:[#allocation0]]
  $region61: #{res_block_forward.2} parent=0
    _
  %s10 = ssub.s32 1, %s8
  %s11 = scalar_select 0, %s10, %s8
  loop: start=0, step=1, limit=6
  $region2: #{res_block_forward.2} parent=0 // loop_pre_header
    _
  $region3: #{res_block_forward.2} parent=0 // loop_header
    %s13 = sphi 0, %s17
    %p14 = scmp.ge.s32.totalorder %s13, 6
    %s20 = sphi 0, %s32
    %s21 = sphi 0, %s28
    %s22 = sphi 0, %s20
    %s23 = sphi 0, %s21
    %s24 = sphi 0, %s22
    %s25 = sphi 0, %s23
    %s35 = sphi 0, %s37
    %s38 = sphi 0, %s35
    %s39 = sphi 0, %s38
    %s55 = sphi 0, %s39
    %s59 = sphi 0, %s59
    %s61 = sphi 0, %s59
    %s62 = sphi 0, %s61
    %s76 = sphi 0, %s62
    %s80 = sphi 0, %s80
    %s82 = sphi 0, %s80
    %s83 = sphi 0, %s82
    %s97 = sphi 0, %s83
    %s101 = sphi 0, %s101
    %s103 = sphi 0, %s101
    %s104 = sphi 0, %s103
    %s118 = sphi 0, %s104
    %s122 = sphi 0, %s122
    %s124 = sphi 0, %s122
    %s125 = sphi 0, %s124
    %s139 = sphi 0, %s125
    %s147 = sphi 0, %s149
    %s150 = sphi 0, %s147
    %s151 = sphi 0, %s150
    %s167 = sphi 0, %s151
    %s175 = sphi 0, %s177
    %s178 = sphi 0, %s175
    %s179 = sphi 0, %s178
    %s195 = sphi 0, %s179
  $region4: #{res_block_forward.2} parent=0 // loop_header_branch
    %16 = sbr.rel (%p14) target = $region8
  $region5: #{res_block_forward.2} parent=0 // loop_body
    %s18 = ssub.s32 %s13, 1
    %s19 = ssub.s32 %s13, 2
    %s26 = sadd.s32 1, %s21
    %p27 = scmp.ge.s32.totalorder %s26, 2
    %s28 = scalar_select %p27, 0, %s26
    %s29 = sadd.s32 1, %s20
    %s30 = scalar_select %p27, %s29, %s20
    %p31 = scmp.ge.s32.totalorder %s30, 2
    %s32 = scalar_select %p31, 0, %s30
    %s33 = ssub.s32 %s20, %s32
    %p34 = scmp.eq.s32.totalorder %s33, 0
    %s36 = sadd.s32 %s35, 1
    %s37 = scalar_select %p34, %s35, %s36
    %p40 = pneg %p34
    %p41 = scmp.eq.s32.totalorder %s13, 3
    %p42 = por %p40, %p41
    %p43 = scmp.ne.s32.totalorder %s35, %s38
    %p44 = scmp.eq.s32.totalorder %s13, 0
    %p45 = por %p43, %p44
    %p46 = scmp.ne.s32.totalorder %s35, %s38
    %p47 = scmp.eq.s32.totalorder %s18, 3
    %p48 = por %p46, %p47
    %p49 = scmp.ne.s32.totalorder %s38, %s39
    %p50 = scmp.eq.s32.totalorder %s18, 0
    %p51 = por %p49, %p50
    %p52 = scmp.ne.s32.totalorder %s38, %s39
    %p53 = scmp.eq.s32.totalorder %s19, 3
    %p54 = por %p52, %p53
    %p56 = scmp.ne.s32.totalorder %s39, %s55
    %p57 = scmp.eq.s32.totalorder %s19, 0
    %p58 = por %p56, %p57
    %s60 = sadd.s32 %s59, 1
    %p63 = scmp.eq.s32.totalorder %s13, 3
    %p64 = scmp.ne.s32.totalorder %s59, %s61
    %p65 = scmp.eq.s32.totalorder %s13, 0
    %p66 = por %p64, %p65
    %p67 = scmp.ne.s32.totalorder %s59, %s61
    %p68 = scmp.eq.s32.totalorder %s18, 3
    %p69 = por %p67, %p68
    %p70 = scmp.ne.s32.totalorder %s61, %s62
    %p71 = scmp.eq.s32.totalorder %s18, 0
    %p72 = por %p70, %p71
    %p73 = scmp.ne.s32.totalorder %s61, %s62
    %p74 = scmp.eq.s32.totalorder %s19, 3
    %p75 = por %p73, %p74
    %p77 = scmp.ne.s32.totalorder %s62, %s76
    %p78 = scmp.eq.s32.totalorder %s19, 0
    %p79 = por %p77, %p78
    %s81 = sadd.s32 %s80, 1
    %p84 = scmp.eq.s32.totalorder %s13, 3
    %p85 = scmp.ne.s32.totalorder %s80, %s82
    %p86 = scmp.eq.s32.totalorder %s13, 0
    %p87 = por %p85, %p86
    %p88 = scmp.ne.s32.totalorder %s80, %s82
    %p89 = scmp.eq.s32.totalorder %s18, 3
    %p90 = por %p88, %p89
    %p91 = scmp.ne.s32.totalorder %s82, %s83
    %p92 = scmp.eq.s32.totalorder %s18, 0
    %p93 = por %p91, %p92
    %p94 = scmp.ne.s32.totalorder %s82, %s83
    %p95 = scmp.eq.s32.totalorder %s19, 3
    %p96 = por %p94, %p95
    %p98 = scmp.ne.s32.totalorder %s83, %s97
    %p99 = scmp.eq.s32.totalorder %s19, 0
    %p100 = por %p98, %p99
    %s102 = sadd.s32 %s101, 1
    %p105 = scmp.eq.s32.totalorder %s13, 3
    %p106 = scmp.ne.s32.totalorder %s101, %s103
    %p107 = scmp.eq.s32.totalorder %s13, 0
    %p108 = por %p106, %p107
    %p109 = scmp.ne.s32.totalorder %s101, %s103
    %p110 = scmp.eq.s32.totalorder %s18, 3
    %p111 = por %p109, %p110
    %p112 = scmp.ne.s32.totalorder %s103, %s104
    %p113 = scmp.eq.s32.totalorder %s18, 0
    %p114 = por %p112, %p113
    %p115 = scmp.ne.s32.totalorder %s103, %s104
    %p116 = scmp.eq.s32.totalorder %s19, 3
    %p117 = por %p115, %p116
    %p119 = scmp.ne.s32.totalorder %s104, %s118
    %p120 = scmp.eq.s32.totalorder %s19, 0
    %p121 = por %p119, %p120
    %s123 = sadd.s32 %s122, 1
    %p126 = scmp.eq.s32.totalorder %s13, 3
    %p127 = scmp.ne.s32.totalorder %s122, %s124
    %p128 = scmp.eq.s32.totalorder %s13, 0
    %p129 = por %p127, %p128
    %p130 = scmp.ne.s32.totalorder %s122, %s124
    %p131 = scmp.eq.s32.totalorder %s18, 3
    %p132 = por %p130, %p131
    %p133 = scmp.ne.s32.totalorder %s124, %s125
    %p134 = scmp.eq.s32.totalorder %s18, 0
    %p135 = por %p133, %p134
    %p136 = scmp.ne.s32.totalorder %s124, %s125
    %p137 = scmp.eq.s32.totalorder %s19, 3
    %p138 = por %p136, %p137
    %p140 = scmp.ne.s32.totalorder %s125, %s139
    %p141 = scmp.eq.s32.totalorder %s19, 0
    %p142 = por %p140, %p141
    %s143 = ssub.s32 %s20, %s32
    %s144 = ssub.s32 %s21, %s28
    %s145 = sor.u32 %s143, %s144
    %p146 = scmp.eq.s32.totalorder %s145, 0
    %s148 = sadd.s32 %s147, 1
    %s149 = scalar_select %p146, %s147, %s148
    %p152 = pneg %p146
    %p153 = scmp.eq.s32.totalorder %s13, 3
    %p154 = por %p152, %p153
    %p155 = scmp.ne.s32.totalorder %s147, %s150
    %p156 = scmp.eq.s32.totalorder %s13, 0
    %p157 = por %p155, %p156
    %p158 = scmp.ne.s32.totalorder %s147, %s150
    %p159 = scmp.eq.s32.totalorder %s18, 3
    %p160 = por %p158, %p159
    %p161 = scmp.ne.s32.totalorder %s150, %s151
    %p162 = scmp.eq.s32.totalorder %s18, 0
    %p163 = por %p161, %p162
    %p164 = scmp.ne.s32.totalorder %s150, %s151
    %p165 = scmp.eq.s32.totalorder %s19, 3
    %p166 = por %p164, %p165
    %p168 = scmp.ne.s32.totalorder %s151, %s167
    %p169 = scmp.eq.s32.totalorder %s19, 0
    %p170 = por %p168, %p169
    %s171 = ssub.s32 %s20, %s32
    %s172 = ssub.s32 %s21, %s28
    %s173 = sor.u32 %s171, %s172
    %p174 = scmp.eq.s32.totalorder %s173, 0
    %s176 = sadd.s32 %s175, 1
    %s177 = scalar_select %p174, %s175, %s176
    %p180 = pneg %p174
    %p181 = scmp.eq.s32.totalorder %s13, 3
    %p182 = por %p180, %p181
    %p183 = scmp.ne.s32.totalorder %s175, %s178
    %p184 = scmp.eq.s32.totalorder %s13, 0
    %p185 = por %p183, %p184
    %p186 = scmp.ne.s32.totalorder %s175, %s178
    %p187 = scmp.eq.s32.totalorder %s18, 3
    %p188 = por %p186, %p187
    %p189 = scmp.ne.s32.totalorder %s178, %s179
    %p190 = scmp.eq.s32.totalorder %s18, 0
    %p191 = por %p189, %p190
    %p192 = scmp.ne.s32.totalorder %s178, %s179
    %p193 = scmp.eq.s32.totalorder %s19, 3
    %p194 = por %p192, %p193
    %p196 = scmp.ne.s32.totalorder %s179, %s195
    %p197 = scmp.eq.s32.totalorder %s19, 0
    %p198 = por %p196, %p197
    %p199 = scmp.le.s32.totalorder 1, %s13
    %p200 = scmp.lt.s32.totalorder %s13, 5
    %p201 = pnand %p199, %p200
    %p202 = pneg %p201
    // Predicated region
    $region9: #{res_block_forward.2} parent=5 // pred_check
      _
    $region10: #{res_block_forward.2} parent=5 // pred_check_branch
      %204 = sbr.rel (%p201) target = $region12
    $region11: #{res_block_forward.2} parent=5 // pred_region
      %s205 = ssub.s32 %s13, 1
      // Predicated region
      $region13: #{res_block_forward.2} parent=11 // pred_check
        %p206 = pneg %p72
      $region14: #{res_block_forward.2} parent=11 // pred_check_branch
        %208 = sbr.rel (%p206) target = $region16
      $region15: #{res_block_forward.2} parent=11 // pred_region
        _
      $region16: #{res_block_forward.2} parent=11 // pred_fallthru
        _
      // Predicated region
      $region17: #{res_block_forward.2} parent=11 // pred_check
        %p209 = pneg %p93
      $region18: #{res_block_forward.2} parent=11 // pred_check_branch
        %211 = sbr.rel (%p209) target = $region20
      $region19: #{res_block_forward.2} parent=11 // pred_region
        _
      $region20: #{res_block_forward.2} parent=11 // pred_fallthru
        _
      // Predicated region
      $region21: #{res_block_forward.2} parent=11 // pred_check
        %p212 = pneg %p114
      $region22: #{res_block_forward.2} parent=11 // pred_check_branch
        %214 = sbr.rel (%p212) target = $region24
      $region23: #{res_block_forward.2} parent=11 // pred_region
        _
      $region24: #{res_block_forward.2} parent=11 // pred_fallthru
        _
      // Predicated region
      $region25: #{res_block_forward.2} parent=11 // pred_check
        %p215 = pneg %p135
      $region26: #{res_block_forward.2} parent=11 // pred_check_branch
        %217 = sbr.rel (%p215) target = $region28
      $region27: #{res_block_forward.2} parent=11 // pred_region
        _
      $region28: #{res_block_forward.2} parent=11 // pred_fallthru
        _
    $region12: #{res_block_forward.2} parent=5 // pred_fallthru
      _
    %p218 = scmp.lt.s32.totalorder %s13, 4
    // Predicated region
    $region29: #{res_block_forward.2} parent=5 // pred_check
      %p219 = pneg %p218
    $region30: #{res_block_forward.2} parent=5 // pred_check_branch
      %221 = sbr.rel (%p219) target = $region32
    $region31: #{res_block_forward.2} parent=5 // pred_region
      // Predicated region
      $region33: #{res_block_forward.2} parent=31 // pred_check
        %p222 = pneg %p45
      $region34: #{res_block_forward.2} parent=31 // pred_check_branch
        %224 = sbr.rel (%p222) target = $region36
      $region35: #{res_block_forward.2} parent=31 // pred_region
        %p225 = scmp.lt.s32.totalorder %s20, 1
        %s226 = scalar_select %p225, %s20, 1
        %s227 = smul.addr %s226, 54
        %s228 = smul.addr %s227, 8
        %s229 = scalar_lea.vmem %s0, %s228
      $region36: #{res_block_forward.2} parent=31 // pred_fallthru
        _
    $region32: #{res_block_forward.2} parent=5 // pred_fallthru
      _
    %p230 = scmp.le.s32.totalorder 1, %s13
    %p231 = scmp.lt.s32.totalorder %s13, 5
    %p232 = pnand %p230, %p231
    %p233 = pneg %p232
    // Predicated region
    $region37: #{res_block_forward.2} parent=5 // pred_check
      _
    $region38: #{res_block_forward.2} parent=5 // pred_check_branch
      %235 = sbr.rel (%p232) target = $region40
    $region39: #{res_block_forward.2} parent=5 // pred_region
      %s236 = ssub.s32 %s13, 1
      %p237 = scmp.lt.s32.totalorder %s22, 1
      %s238 = scalar_select %p237, %s22, 1
      %s239 = smul.addr %s238, 54
      %s240 = smul.addr %s239, 8
      %s241 = scalar_lea.vmem %s0, %s240
      %p242 = pneg %p51
      %p243 = pneg %p48
      %p244 = pneg %p72
      %p245 = pneg %p69
      %p246 = pneg %p93
      %p247 = pneg %p90
      %p248 = pneg %p114
      %p249 = pneg %p111
      %p250 = pneg %p135
      %p251 = pneg %p132
      %p252 = pneg %p163
      %p253 = pneg %p160
      %s254 = smul.u32 8, %s23
      %p255 = scmp.lt.s32.totalorder %s22, 1
      %s256 = scalar_select %p255, %s22, 1
      %p257 = scmp.lt.s32.totalorder %s254, 15
      %s258 = scalar_select %p257, %s254, 15
      %s259 = smul.addr %s258, 2
      %s260 = smul.addr %s256, 32
      %s261 = sadd.s32 %s259, %s260
      %s262 = smul.addr %s261, 8
      %s263 = scalar_lea.vmem %s5, %s262
      %p264 = pneg %p191
      %p265 = pneg %p188
      %s266 = smul.u32 8, %s23
      %p267 = scmp.lt.s32.totalorder %s22, 1
      %s268 = scalar_select %p267, %s22, 1
      %p269 = scmp.lt.s32.totalorder %s266, 15
      %s270 = scalar_select %p269, %s266, 15
      %s271 = smul.addr %s270, 2
      %s272 = smul.addr %s268, 32
      %s273 = sadd.s32 %s271, %s272
      %s274 = smul.addr %s273, 8
      %s275 = scalar_lea.vmem %s6, %s274
      %p276 = scmp.lt.s32.totalorder %s22, 1
      %s277 = scalar_select %p276, %s22, 1
      %s278 = smul.addr %s277, 54
      %s279 = smul.addr %s278, 8
      %s280 = scalar_lea.vmem %s0, %s279
      %s281 = smul.u32 8, %s23
      %p282 = scmp.lt.s32.totalorder %s22, 1
      %s283 = scalar_select %p282, %s22, 1
      %p284 = scmp.lt.s32.totalorder %s281, 15
      %s285 = scalar_select %p284, %s281, 15
      %s286 = smul.addr %s285, 2
      %s287 = smul.addr %s283, 32
      %s288 = sadd.s32 %s286, %s287
      %s289 = smul.addr %s288, 8
      %s290 = scalar_lea.vmem %s5, %s289
      %s291 = smul.u32 8, %s23
      %s292 = smul.u32 8, %s23
      %p293 = scmp.lt.s32.totalorder %s22, 1
      %s294 = scalar_select %p293, %s22, 1
      %p295 = scmp.lt.s32.totalorder %s292, 15
      %s296 = scalar_select %p295, %s292, 15
      %s297 = smul.addr %s296, 2
      %s298 = smul.addr %s294, 32
      %s299 = sadd.s32 %s297, %s298
      %s300 = smul.addr %s299, 8
      %s301 = scalar_lea.vmem %s6, %s300
      %s302 = smul.u32 8, %s23
      %s303 = smul.u32 %s23, 8
      %s304 = smul.u32 %s303, 24
      %s305 = scalar_lea.vmem %s280, %s304
      %v306 = vld [vmem:[%s305] sm:$0xff]
      %v307 = vld [vmem:[%s305 + $0x8] sm:$0xff]
      %v308 = vld [vmem:[%s305 + $0x18] sm:$0xff]
      %v309 = vld [vmem:[%s305 + $0x20] sm:$0xff]
      %v310 = vld [vmem:[%s305 + $0x30] sm:$0xff]
      %v311 = vld [vmem:[%s305 + $0x38] sm:$0xff]
      %v312 = vld [vmem:[%s305 + $0x48] sm:$0xff]
      %v313 = vld [vmem:[%s305 + $0x50] sm:$0xff]
      %v314 = vld [vmem:[%s305 + $0x60] sm:$0xff]
      %v315 = vld [vmem:[%s305 + $0x68] sm:$0xff]
      %v316 = vld [vmem:[%s305 + $0x78] sm:$0xff]
      %v317 = vld [vmem:[%s305 + $0x80] sm:$0xff]
      %v318 = vld [vmem:[%s305 + $0x90] sm:$0xff]
      %v319 = vld [vmem:[%s305 + $0x98] sm:$0xff]
      %v320 = vld [vmem:[%s305 + $0xa8] sm:$0xff]
      %v321 = vld [vmem:[%s305 + $0xb0] sm:$0xff]
      %v322 = vld [vmem:[%s1] sm:$0xf]
      %v323 = vld [vmem:[%s3] sm:$0xf]
      %v324 = vld [vmem:[%s305 + $0x1] sm:$0xff]
      %v325 = vld [vmem:[%s305 + $0x9] sm:$0xff]
      %v326 = vld [vmem:[%s305 + $0x19] sm:$0xff]
      %v327 = vld [vmem:[%s305 + $0x21] sm:$0xff]
      %v328 = vld [vmem:[%s305 + $0x31] sm:$0xff]
      %v329 = vld [vmem:[%s305 + $0x39] sm:$0xff]
      %v330 = vld [vmem:[%s305 + $0x49] sm:$0xff]
      %v331 = vld [vmem:[%s305 + $0x51] sm:$0xff]
      %v332 = vld [vmem:[%s305 + $0x61] sm:$0xff]
      %v333 = vld [vmem:[%s305 + $0x69] sm:$0xff]
      %v334 = vld [vmem:[%s305 + $0x79] sm:$0xff]
      %v335 = vld [vmem:[%s305 + $0x81] sm:$0xff]
      %v336 = vld [vmem:[%s305 + $0x91] sm:$0xff]
      %v337 = vld [vmem:[%s305 + $0x99] sm:$0xff]
      %v338 = vld [vmem:[%s305 + $0xa9] sm:$0xff]
      %v339 = vld [vmem:[%s305 + $0xb1] sm:$0xff]
      %s340 = scalar_lea.vmem %s1, 4
      %v341 = vld [vmem:[%s340] sm:$0xf]
      %vm342 = vcmask 31744
      %v344 = vsel %vm342, %v324, 0
      %v347 = vsel %vm342, %v325, 0
      %v350 = vsel %vm342, %v326, 0
      %v353 = vsel %vm342, %v327, 0
      %v356 = vsel %vm342, %v328, 0
      %v359 = vsel %vm342, %v329, 0
      %v362 = vsel %vm342, %v330, 0
      %v365 = vsel %vm342, %v331, 0
      %v368 = vsel %vm342, %v332, 0
      %v371 = vsel %vm342, %v333, 0
      %v374 = vsel %vm342, %v334, 0
      %v377 = vsel %vm342, %v335, 0
      %v380 = vsel %vm342, %v336, 0
      %v383 = vsel %vm342, %v337, 0
      %v386 = vsel %vm342, %v338, 0
      %v389 = vsel %vm342, %v339, 0
      %vm391 = vcmask 1043456
      %v393 = vsel %vm391, %v341, 0
      %395 = vmatprep.subr.mxu0 0.0
      %396 = vmatpush1.msra.mxu0 0.0
      %397 = vmatprep.subr.mxu0 0.0
      %398 = vmatpush1.msra.mxu0 0.0
      %399 = vmatprep.subr.mxu0 0.0
      %400 = vmatpush1.msra.mxu0 0.0
      %401 = vmatprep.subr.mxu0 0.0
      %402 = vmatpush1.msra.mxu0 0.0
      %403 = vmatprep.subr.mxu0 0.0
      %404 = vmatpush1.msra.mxu0 0.0
      %405 = vmatprep.subr.mxu0 0.0
      %406 = vmatpush1.msra.mxu0 0.0
      %407 = vmatprep.subr.mxu0 0.0
      %408 = vmatpush1.msra.mxu0 0.0
      %409 = vmatprep.subr.mxu0 0.0
      %410 = vmatpush1.msra.mxu0 0.0
      %411 = vmatprep.subr.mxu0 0.0
      %412 = vmatpush1.msra.mxu0 0.0
      %413 = vmatprep.subr.mxu0 0.0
      %414 = vmatpush1.msra.mxu0 0.0
      %415 = vmatprep.subr.mxu0 0.0
      %416 = vmatpush1.msra.mxu0 0.0
      %417 = vmatprep.subr.mxu0 0.0
      %418 = vmatpush1.msra.mxu0 0.0
      %419 = vmatprep.subr.mxu0 0.0
      %420 = vmatpush1.msra.mxu0 0.0
      %421 = vmatprep.subr.mxu0 0.0
      %422 = vmatpush1.msra.mxu0 0.0
      %423 = vmatprep.subr.mxu0 0.0
      %424 = vmatpush1.msra.mxu0 0.0
      %425 = vmatprep.subr.mxu0 0.0
      %426 = vmatpush1.msra.mxu0 %v393
      %427 = vmatprep.subr.mxu0 0.0
      %428 = vmatpush2.msra.mxu0 0.0
      %429 = vmatprep.subr.mxu0 0.0
      %430 = vmatpush2.msra.mxu0 0.0
      %431 = vmatprep.subr.mxu0 0.0
      %432 = vmatpush2.msra.mxu0 0.0
      %433 = vmatprep.subr.mxu0 0.0
      %434 = vmatpush2.msra.mxu0 0.0
      %435 = vmatprep.subr.mxu0 0.0
      %436 = vmatpush2.msra.mxu0 0.0
      %437 = vmatprep.subr.mxu0 0.0
      %438 = vmatpush2.msra.mxu0 0.0
      %439 = vmatprep.subr.mxu0 0.0
      %440 = vmatpush2.msra.mxu0 0.0
      %441 = vmatprep.subr.mxu0 0.0
      %442 = vmatpush2.msra.mxu0 0.0
      %443 = vmatprep.subr.mxu0 0.0
      %444 = vmatpush2.msra.mxu0 0.0
      %445 = vmatprep.subr.mxu0 0.0
      %446 = vmatpush2.msra.mxu0 0.0
      %447 = vmatprep.subr.mxu0 0.0
      %448 = vmatpush2.msra.mxu0 0.0
      %449 = vmatprep.subr.mxu0 0.0
      %450 = vmatpush2.msra.mxu0 0.0
      %451 = vmatprep.subr.mxu0 0.0
      %452 = vmatpush2.msra.mxu0 0.0
      %453 = vmatprep.subr.mxu0 0.0
      %454 = vmatpush2.msra.mxu0 0.0
      %455 = vmatprep.subr.mxu0 0.0
      %456 = vmatpush2.msra.mxu0 0.0
      %457 = vmatprep.subr.mxu0 0.0
      %458 = vmatpush2.msra.mxu0 0.0
      %459 = vmatprep.mubr.f32.mxu0 0.0
      %460 = vmatmul.mubr.f32.gmra.mxu0 %v344
      %v461 = vpop.f32.mrf.mxu0
      %v462 = vadd.f32 0.0, %v461
      %v463 = vpop.f32.mrf.mxu0
      %464 = vmatprep.mubr.f32.mxu0 0.0
      %465 = vmatmul.mubr.f32.gmra.mxu0 %v347
      %v466 = vpop.f32.mrf.mxu0
      %v467 = vadd.f32 0.0, %v466
      %v468 = vpop.f32.mrf.mxu0
      %469 = vmatprep.mubr.f32.mxu0 0.0
      %470 = vmatmul.mubr.f32.gmra.mxu0 %v350
      %v471 = vpop.f32.mrf.mxu0
      %v472 = vadd.f32 0.0, %v471
      %v473 = vpop.f32.mrf.mxu0
      %474 = vmatprep.mubr.f32.mxu0 0.0
      %475 = vmatmul.mubr.f32.gmra.mxu0 %v353
      %v476 = vpop.f32.mrf.mxu0
      %v477 = vadd.f32 0.0, %v476
      %v478 = vpop.f32.mrf.mxu0
      %479 = vmatprep.mubr.f32.mxu0 0.0
      %480 = vmatmul.mubr.f32.gmra.mxu0 %v356
      %v481 = vpop.f32.mrf.mxu0
      %v482 = vadd.f32 0.0, %v481
      %v483 = vpop.f32.mrf.mxu0
      %484 = vmatprep.mubr.f32.mxu0 0.0
      %485 = vmatmul.mubr.f32.gmra.mxu0 %v359
      %v486 = vpop.f32.mrf.mxu0
      %v487 = vadd.f32 0.0, %v486
      %v488 = vpop.f32.mrf.mxu0
      %489 = vmatprep.mubr.f32.mxu0 0.0
      %490 = vmatmul.mubr.f32.gmra.mxu0 %v362
      %v491 = vpop.f32.mrf.mxu0
      %v492 = vadd.f32 0.0, %v491
      %v493 = vpop.f32.mrf.mxu0
      %494 = vmatprep.mubr.f32.mxu0 0.0
      %495 = vmatmul.mubr.f32.gmra.mxu0 %v365
      %v496 = vpop.f32.mrf.mxu0
      %v497 = vadd.f32 0.0, %v496
      %v498 = vpop.f32.mrf.mxu0
      %499 = vmatprep.mubr.f32.mxu0 0.0
      %500 = vmatmul.mubr.f32.gmra.mxu0 %v368
      %v501 = vpop.f32.mrf.mxu0
      %v502 = vadd.f32 0.0, %v501
      %v503 = vpop.f32.mrf.mxu0
      %504 = vmatprep.mubr.f32.mxu0 0.0
      %505 = vmatmul.mubr.f32.gmra.mxu0 %v371
      %v506 = vpop.f32.mrf.mxu0
      %v507 = vadd.f32 0.0, %v506
      %v508 = vpop.f32.mrf.mxu0
      %509 = vmatprep.mubr.f32.mxu0 0.0
      %510 = vmatmul.mubr.f32.gmra.mxu0 %v374
      %v511 = vpop.f32.mrf.mxu0
      %v512 = vadd.f32 0.0, %v511
      %v513 = vpop.f32.mrf.mxu0
      %514 = vmatprep.mubr.f32.mxu0 0.0
      %515 = vmatmul.mubr.f32.gmra.mxu0 %v377
      %v516 = vpop.f32.mrf.mxu0
      %v517 = vadd.f32 0.0, %v516
      %v518 = vpop.f32.mrf.mxu0
      %519 = vmatprep.mubr.f32.mxu0 0.0
      %520 = vmatmul.mubr.f32.gmra.mxu0 %v380
      %v521 = vpop.f32.mrf.mxu0
      %v522 = vadd.f32 0.0, %v521
      %v523 = vpop.f32.mrf.mxu0
      %524 = vmatprep.mubr.f32.mxu0 0.0
      %525 = vmatmul.mubr.f32.gmra.mxu0 %v383
      %v526 = vpop.f32.mrf.mxu0
      %v527 = vadd.f32 0.0, %v526
      %v528 = vpop.f32.mrf.mxu0
      %529 = vmatprep.mubr.f32.mxu0 0.0
      %530 = vmatmul.mubr.f32.gmra.mxu0 %v386
      %v531 = vpop.f32.mrf.mxu0
      %v532 = vadd.f32 0.0, %v531
      %v533 = vpop.f32.mrf.mxu0
      %534 = vmatprep.mubr.f32.mxu0 0.0
      %535 = vmatmul.mubr.f32.gmra.mxu0 %v389
      %v536 = vpop.f32.mrf.mxu0
      %v537 = vadd.f32 0.0, %v536
      %v538 = vpop.f32.mrf.mxu0
      %539 = vdwg.mxu0
      %v541 = vsel %vm342, %v306, 0
      %v544 = vsel %vm342, %v307, 0
      %v547 = vsel %vm342, %v308, 0
      %v550 = vsel %vm342, %v309, 0
      %v553 = vsel %vm342, %v310, 0
      %v556 = vsel %vm342, %v311, 0
      %v559 = vsel %vm342, %v312, 0
      %v562 = vsel %vm342, %v313, 0
      %v565 = vsel %vm342, %v314, 0
      %v568 = vsel %vm342, %v315, 0
      %v571 = vsel %vm342, %v316, 0
      %v574 = vsel %vm342, %v317, 0
      %v577 = vsel %vm342, %v318, 0
      %v580 = vsel %vm342, %v319, 0
      %v583 = vsel %vm342, %v320, 0
      %v586 = vsel %vm342, %v321, 0
      %v589 = vsel %vm391, %v322, 0
      %591 = vmatprep.subr.mxu0 0.0
      %592 = vmatpush1.msra.mxu0 0.0
      %593 = vmatprep.subr.mxu0 0.0
      %594 = vmatpush1.msra.mxu0 0.0
      %595 = vmatprep.subr.mxu0 0.0
      %596 = vmatpush1.msra.mxu0 0.0
      %597 = vmatprep.subr.mxu0 0.0
      %598 = vmatpush1.msra.mxu0 0.0
      %599 = vmatprep.subr.mxu0 0.0
      %600 = vmatpush1.msra.mxu0 0.0
      %601 = vmatprep.subr.mxu0 0.0
      %602 = vmatpush1.msra.mxu0 0.0
      %603 = vmatprep.subr.mxu0 0.0
      %604 = vmatpush1.msra.mxu0 0.0
      %605 = vmatprep.subr.mxu0 0.0
      %606 = vmatpush1.msra.mxu0 0.0
      %607 = vmatprep.subr.mxu0 0.0
      %608 = vmatpush1.msra.mxu0 0.0
      %609 = vmatprep.subr.mxu0 0.0
      %610 = vmatpush1.msra.mxu0 0.0
      %611 = vmatprep.subr.mxu0 0.0
      %612 = vmatpush1.msra.mxu0 0.0
      %613 = vmatprep.subr.mxu0 0.0
      %614 = vmatpush1.msra.mxu0 0.0
      %615 = vmatprep.subr.mxu0 0.0
      %616 = vmatpush1.msra.mxu0 0.0
      %617 = vmatprep.subr.mxu0 0.0
      %618 = vmatpush1.msra.mxu0 0.0
      %619 = vmatprep.subr.mxu0 0.0
      %620 = vmatpush1.msra.mxu0 0.0
      %621 = vmatprep.subr.mxu0 0.0
      %622 = vmatpush1.msra.mxu0 %v589
      %623 = vmatprep.subr.mxu0 0.0
      %624 = vmatpush2.msra.mxu0 0.0
      %625 = vmatprep.subr.mxu0 0.0
      %626 = vmatpush2.msra.mxu0 0.0
      %627 = vmatprep.subr.mxu0 0.0
      %628 = vmatpush2.msra.mxu0 0.0
      %629 = vmatprep.subr.mxu0 0.0
      %630 = vmatpush2.msra.mxu0 0.0
      %631 = vmatprep.subr.mxu0 0.0
      %632 = vmatpush2.msra.mxu0 0.0
      %633 = vmatprep.subr.mxu0 0.0
      %634 = vmatpush2.msra.mxu0 0.0
      %635 = vmatprep.subr.mxu0 0.0
      %636 = vmatpush2.msra.mxu0 0.0
      %637 = vmatprep.subr.mxu0 0.0
      %638 = vmatpush2.msra.mxu0 0.0
      %639 = vmatprep.subr.mxu0 0.0
      %640 = vmatpush2.msra.mxu0 0.0
      %641 = vmatprep.subr.mxu0 0.0
      %642 = vmatpush2.msra.mxu0 0.0
      %643 = vmatprep.subr.mxu0 0.0
      %644 = vmatpush2.msra.mxu0 0.0
      %645 = vmatprep.subr.mxu0 0.0
      %646 = vmatpush2.msra.mxu0 0.0
      %647 = vmatprep.subr.mxu0 0.0
      %648 = vmatpush2.msra.mxu0 0.0
      %649 = vmatprep.subr.mxu0 0.0
      %650 = vmatpush2.msra.mxu0 0.0
      %651 = vmatprep.subr.mxu0 0.0
      %652 = vmatpush2.msra.mxu0 0.0
      %653 = vmatprep.subr.mxu0 0.0
      %654 = vmatpush2.msra.mxu0 0.0
      %655 = vmatprep.mubr.f32.mxu0 0.0
      %656 = vmatmul.mubr.f32.gmra.mxu0 %v541
      %v657 = vpop.f32.mrf.mxu0
      %v658 = vadd.f32 %v462, %v657
      %v659 = vpop.f32.mrf.mxu0
      %660 = vmatprep.mubr.f32.mxu0 0.0
      %661 = vmatmul.mubr.f32.gmra.mxu0 %v544
      %v662 = vpop.f32.mrf.mxu0
      %v663 = vadd.f32 %v467, %v662
      %v664 = vpop.f32.mrf.mxu0
      %665 = vmatprep.mubr.f32.mxu0 0.0
      %666 = vmatmul.mubr.f32.gmra.mxu0 %v547
      %v667 = vpop.f32.mrf.mxu0
      %v668 = vadd.f32 %v472, %v667
      %v669 = vpop.f32.mrf.mxu0
      %670 = vmatprep.mubr.f32.mxu0 0.0
      %671 = vmatmul.mubr.f32.gmra.mxu0 %v550
      %v672 = vpop.f32.mrf.mxu0
      %v673 = vadd.f32 %v477, %v672
      %v674 = vpop.f32.mrf.mxu0
      %675 = vmatprep.mubr.f32.mxu0 0.0
      %676 = vmatmul.mubr.f32.gmra.mxu0 %v553
      %v677 = vpop.f32.mrf.mxu0
      %v678 = vadd.f32 %v482, %v677
      %v679 = vpop.f32.mrf.mxu0
      %680 = vmatprep.mubr.f32.mxu0 0.0
      %681 = vmatmul.mubr.f32.gmra.mxu0 %v556
      %v682 = vpop.f32.mrf.mxu0
      %v683 = vadd.f32 %v487, %v682
      %v684 = vpop.f32.mrf.mxu0
      %685 = vmatprep.mubr.f32.mxu0 0.0
      %686 = vmatmul.mubr.f32.gmra.mxu0 %v559
      %v687 = vpop.f32.mrf.mxu0
      %v688 = vadd.f32 %v492, %v687
      %v689 = vpop.f32.mrf.mxu0
      %690 = vmatprep.mubr.f32.mxu0 0.0
      %691 = vmatmul.mubr.f32.gmra.mxu0 %v562
      %v692 = vpop.f32.mrf.mxu0
      %v693 = vadd.f32 %v497, %v692
      %v694 = vpop.f32.mrf.mxu0
      %695 = vmatprep.mubr.f32.mxu0 0.0
      %696 = vmatmul.mubr.f32.gmra.mxu0 %v565
      %v697 = vpop.f32.mrf.mxu0
      %v698 = vadd.f32 %v502, %v697
      %v699 = vpop.f32.mrf.mxu0
      %700 = vmatprep.mubr.f32.mxu0 0.0
      %701 = vmatmul.mubr.f32.gmra.mxu0 %v568
      %v702 = vpop.f32.mrf.mxu0
      %v703 = vadd.f32 %v507, %v702
      %v704 = vpop.f32.mrf.mxu0
      %705 = vmatprep.mubr.f32.mxu0 0.0
      %706 = vmatmul.mubr.f32.gmra.mxu0 %v571
      %v707 = vpop.f32.mrf.mxu0
      %v708 = vadd.f32 %v512, %v707
      %v709 = vpop.f32.mrf.mxu0
      %710 = vmatprep.mubr.f32.mxu0 0.0
      %711 = vmatmul.mubr.f32.gmra.mxu0 %v574
      %v712 = vpop.f32.mrf.mxu0
      %v713 = vadd.f32 %v517, %v712
      %v714 = vpop.f32.mrf.mxu0
      %715 = vmatprep.mubr.f32.mxu0 0.0
      %716 = vmatmul.mubr.f32.gmra.mxu0 %v577
      %v717 = vpop.f32.mrf.mxu0
      %v718 = vadd.f32 %v522, %v717
      %v719 = vpop.f32.mrf.mxu0
      %720 = vmatprep.mubr.f32.mxu0 0.0
      %721 = vmatmul.mubr.f32.gmra.mxu0 %v580
      %v722 = vpop.f32.mrf.mxu0
      %v723 = vadd.f32 %v527, %v722
      %v724 = vpop.f32.mrf.mxu0
      %725 = vmatprep.mubr.f32.mxu0 0.0
      %726 = vmatmul.mubr.f32.gmra.mxu0 %v583
      %v727 = vpop.f32.mrf.mxu0
      %v728 = vadd.f32 %v532, %v727
      %v729 = vpop.f32.mrf.mxu0
      %730 = vmatprep.mubr.f32.mxu0 0.0
      %731 = vmatmul.mubr.f32.gmra.mxu0 %v586
      %v732 = vpop.f32.mrf.mxu0
      %v733 = vadd.f32 %v537, %v732
      %v734 = vpop.f32.mrf.mxu0
      %735 = vdwg.mxu0
      %s736 = scalar_lea.vmem %s3, 4
      %v737 = vld [vmem:[%s736] sm:$0xf]
      %v739 = vsel %vm391, %v737, 0
      %741 = vmatprep.subr.mxu0 0.0
      %742 = vmatpush1.msra.mxu0 0.0
      %743 = vmatprep.subr.mxu0 0.0
      %744 = vmatpush1.msra.mxu0 0.0
      %745 = vmatprep.subr.mxu0 0.0
      %746 = vmatpush1.msra.mxu0 0.0
      %747 = vmatprep.subr.mxu0 0.0
      %748 = vmatpush1.msra.mxu0 0.0
      %749 = vmatprep.subr.mxu0 0.0
      %750 = vmatpush1.msra.mxu0 0.0
      %751 = vmatprep.subr.mxu0 0.0
      %752 = vmatpush1.msra.mxu0 0.0
      %753 = vmatprep.subr.mxu0 0.0
      %754 = vmatpush1.msra.mxu0 0.0
      %755 = vmatprep.subr.mxu0 0.0
      %756 = vmatpush1.msra.mxu0 0.0
      %757 = vmatprep.subr.mxu0 0.0
      %758 = vmatpush1.msra.mxu0 0.0
      %759 = vmatprep.subr.mxu0 0.0
      %760 = vmatpush1.msra.mxu0 0.0
      %761 = vmatprep.subr.mxu0 0.0
      %762 = vmatpush1.msra.mxu0 0.0
      %763 = vmatprep.subr.mxu0 0.0
      %764 = vmatpush1.msra.mxu0 0.0
      %765 = vmatprep.subr.mxu0 0.0
      %766 = vmatpush1.msra.mxu0 0.0
      %767 = vmatprep.subr.mxu0 0.0
      %768 = vmatpush1.msra.mxu0 0.0
      %769 = vmatprep.subr.mxu0 0.0
      %770 = vmatpush1.msra.mxu0 0.0
      %771 = vmatprep.subr.mxu0 0.0
      %772 = vmatpush1.msra.mxu0 %v739
      %773 = vmatprep.subr.mxu0 0.0
      %774 = vmatpush2.msra.mxu0 0.0
      %775 = vmatprep.subr.mxu0 0.0
      %776 = vmatpush2.msra.mxu0 0.0
      %777 = vmatprep.subr.mxu0 0.0
      %778 = vmatpush2.msra.mxu0 0.0
      %779 = vmatprep.subr.mxu0 0.0
      %780 = vmatpush2.msra.mxu0 0.0
      %781 = vmatprep.subr.mxu0 0.0
      %782 = vmatpush2.msra.mxu0 0.0
      %783 = vmatprep.subr.mxu0 0.0
      %784 = vmatpush2.msra.mxu0 0.0
      %785 = vmatprep.subr.mxu0 0.0
      %786 = vmatpush2.msra.mxu0 0.0
      %787 = vmatprep.subr.mxu0 0.0
      %788 = vmatpush2.msra.mxu0 0.0
      %789 = vmatprep.subr.mxu0 0.0
      %790 = vmatpush2.msra.mxu0 0.0
      %791 = vmatprep.subr.mxu0 0.0
      %792 = vmatpush2.msra.mxu0 0.0
      %793 = vmatprep.subr.mxu0 0.0
      %794 = vmatpush2.msra.mxu0 0.0
      %795 = vmatprep.subr.mxu0 0.0
      %796 = vmatpush2.msra.mxu0 0.0
      %797 = vmatprep.subr.mxu0 0.0
      %798 = vmatpush2.msra.mxu0 0.0
      %799 = vmatprep.subr.mxu0 0.0
      %800 = vmatpush2.msra.mxu0 0.0
      %801 = vmatprep.subr.mxu0 0.0
      %802 = vmatpush2.msra.mxu0 0.0
      %803 = vmatprep.subr.mxu0 0.0
      %804 = vmatpush2.msra.mxu0 0.0
      %805 = vmatprep.mubr.f32.mxu0 0.0
      %806 = vmatmul.mubr.f32.gmra.mxu0 %v344
      %v807 = vpop.f32.mrf.mxu0
      %v808 = vadd.f32 0.0, %v807
      %v809 = vpop.f32.mrf.mxu0
      %810 = vmatprep.mubr.f32.mxu0 0.0
      %811 = vmatmul.mubr.f32.gmra.mxu0 %v347
      %v812 = vpop.f32.mrf.mxu0
      %v813 = vadd.f32 0.0, %v812
      %v814 = vpop.f32.mrf.mxu0
      %815 = vmatprep.mubr.f32.mxu0 0.0
      %816 = vmatmul.mubr.f32.gmra.mxu0 %v350
      %v817 = vpop.f32.mrf.mxu0
      %v818 = vadd.f32 0.0, %v817
      %v819 = vpop.f32.mrf.mxu0
      %820 = vmatprep.mubr.f32.mxu0 0.0
      %821 = vmatmul.mubr.f32.gmra.mxu0 %v353
      %v822 = vpop.f32.mrf.mxu0
      %v823 = vadd.f32 0.0, %v822
      %v824 = vpop.f32.mrf.mxu0
      %825 = vmatprep.mubr.f32.mxu0 0.0
      %826 = vmatmul.mubr.f32.gmra.mxu0 %v356
      %v827 = vpop.f32.mrf.mxu0
      %v828 = vadd.f32 0.0, %v827
      %v829 = vpop.f32.mrf.mxu0
      %830 = vmatprep.mubr.f32.mxu0 0.0
      %831 = vmatmul.mubr.f32.gmra.mxu0 %v359
      %v832 = vpop.f32.mrf.mxu0
      %v833 = vadd.f32 0.0, %v832
      %v834 = vpop.f32.mrf.mxu0
      %835 = vmatprep.mubr.f32.mxu0 0.0
      %836 = vmatmul.mubr.f32.gmra.mxu0 %v362
      %v837 = vpop.f32.mrf.mxu0
      %v838 = vadd.f32 0.0, %v837
      %v839 = vpop.f32.mrf.mxu0
      %840 = vmatprep.mubr.f32.mxu0 0.0
      %841 = vmatmul.mubr.f32.gmra.mxu0 %v365
      %v842 = vpop.f32.mrf.mxu0
      %v843 = vadd.f32 0.0, %v842
      %v844 = vpop.f32.mrf.mxu0
      %845 = vmatprep.mubr.f32.mxu0 0.0
      %846 = vmatmul.mubr.f32.gmra.mxu0 %v368
      %v847 = vpop.f32.mrf.mxu0
      %v848 = vadd.f32 0.0, %v847
      %v849 = vpop.f32.mrf.mxu0
      %850 = vmatprep.mubr.f32.mxu0 0.0
      %851 = vmatmul.mubr.f32.gmra.mxu0 %v371
      %v852 = vpop.f32.mrf.mxu0
      %v853 = vadd.f32 0.0, %v852
      %v854 = vpop.f32.mrf.mxu0
      %855 = vmatprep.mubr.f32.mxu0 0.0
      %856 = vmatmul.mubr.f32.gmra.mxu0 %v374
      %v857 = vpop.f32.mrf.mxu0
      %v858 = vadd.f32 0.0, %v857
      %v859 = vpop.f32.mrf.mxu0
      %860 = vmatprep.mubr.f32.mxu0 0.0
      %861 = vmatmul.mubr.f32.gmra.mxu0 %v377
      %v862 = vpop.f32.mrf.mxu0
      %v863 = vadd.f32 0.0, %v862
      %v864 = vpop.f32.mrf.mxu0
      %865 = vmatprep.mubr.f32.mxu0 0.0
      %866 = vmatmul.mubr.f32.gmra.mxu0 %v380
      %v867 = vpop.f32.mrf.mxu0
      %v868 = vadd.f32 0.0, %v867
      %v869 = vpop.f32.mrf.mxu0
      %870 = vmatprep.mubr.f32.mxu0 0.0
      %871 = vmatmul.mubr.f32.gmra.mxu0 %v383
      %v872 = vpop.f32.mrf.mxu0
      %v873 = vadd.f32 0.0, %v872
      %v874 = vpop.f32.mrf.mxu0
      %875 = vmatprep.mubr.f32.mxu0 0.0
      %876 = vmatmul.mubr.f32.gmra.mxu0 %v386
      %v877 = vpop.f32.mrf.mxu0
      %v878 = vadd.f32 0.0, %v877
      %v879 = vpop.f32.mrf.mxu0
      %880 = vmatprep.mubr.f32.mxu0 0.0
      %881 = vmatmul.mubr.f32.gmra.mxu0 %v389
      %v882 = vpop.f32.mrf.mxu0
      %v883 = vadd.f32 0.0, %v882
      %v884 = vpop.f32.mrf.mxu0
      %885 = vdwg.mxu0
      %v887 = vsel %vm391, %v323, 0
      %889 = vmatprep.subr.mxu0 0.0
      %890 = vmatpush1.msra.mxu0 0.0
      %891 = vmatprep.subr.mxu0 0.0
      %892 = vmatpush1.msra.mxu0 0.0
      %893 = vmatprep.subr.mxu0 0.0
      %894 = vmatpush1.msra.mxu0 0.0
      %895 = vmatprep.subr.mxu0 0.0
      %896 = vmatpush1.msra.mxu0 0.0
      %897 = vmatprep.subr.mxu0 0.0
      %898 = vmatpush1.msra.mxu0 0.0
      %899 = vmatprep.subr.mxu0 0.0
      %900 = vmatpush1.msra.mxu0 0.0
      %901 = vmatprep.subr.mxu0 0.0
      %902 = vmatpush1.msra.mxu0 0.0
      %903 = vmatprep.subr.mxu0 0.0
      %904 = vmatpush1.msra.mxu0 0.0
      %905 = vmatprep.subr.mxu0 0.0
      %906 = vmatpush1.msra.mxu0 0.0
      %907 = vmatprep.subr.mxu0 0.0
      %908 = vmatpush1.msra.mxu0 0.0
      %909 = vmatprep.subr.mxu0 0.0
      %910 = vmatpush1.msra.mxu0 0.0
      %911 = vmatprep.subr.mxu0 0.0
      %912 = vmatpush1.msra.mxu0 0.0
      %913 = vmatprep.subr.mxu0 0.0
      %914 = vmatpush1.msra.mxu0 0.0
      %915 = vmatprep.subr.mxu0 0.0
      %916 = vmatpush1.msra.mxu0 0.0
      %917 = vmatprep.subr.mxu0 0.0
      %918 = vmatpush1.msra.mxu0 0.0
      %919 = vmatprep.subr.mxu0 0.0
      %920 = vmatpush1.msra.mxu0 %v887
      %921 = vmatprep.subr.mxu0 0.0
      %922 = vmatpush2.msra.mxu0 0.0
      %923 = vmatprep.subr.mxu0 0.0
      %924 = vmatpush2.msra.mxu0 0.0
      %925 = vmatprep.subr.mxu0 0.0
      %926 = vmatpush2.msra.mxu0 0.0
      %927 = vmatprep.subr.mxu0 0.0
      %928 = vmatpush2.msra.mxu0 0.0
      %929 = vmatprep.subr.mxu0 0.0
      %930 = vmatpush2.msra.mxu0 0.0
      %931 = vmatprep.subr.mxu0 0.0
      %932 = vmatpush2.msra.mxu0 0.0
      %933 = vmatprep.subr.mxu0 0.0
      %934 = vmatpush2.msra.mxu0 0.0
      %935 = vmatprep.subr.mxu0 0.0
      %936 = vmatpush2.msra.mxu0 0.0
      %937 = vmatprep.subr.mxu0 0.0
      %938 = vmatpush2.msra.mxu0 0.0
      %939 = vmatprep.subr.mxu0 0.0
      %940 = vmatpush2.msra.mxu0 0.0
      %941 = vmatprep.subr.mxu0 0.0
      %942 = vmatpush2.msra.mxu0 0.0
      %943 = vmatprep.subr.mxu0 0.0
      %944 = vmatpush2.msra.mxu0 0.0
      %945 = vmatprep.subr.mxu0 0.0
      %946 = vmatpush2.msra.mxu0 0.0
      %947 = vmatprep.subr.mxu0 0.0
      %948 = vmatpush2.msra.mxu0 0.0
      %949 = vmatprep.subr.mxu0 0.0
      %950 = vmatpush2.msra.mxu0 0.0
      %951 = vmatprep.subr.mxu0 0.0
      %952 = vmatpush2.msra.mxu0 0.0
      %953 = vmatprep.mubr.f32.mxu0 0.0
      %954 = vmatmul.mubr.f32.gmra.mxu0 %v541
      %v955 = vpop.f32.mrf.mxu0
      %v956 = vadd.f32 %v808, %v955
      %v957 = vpop.f32.mrf.mxu0
      %958 = vmatprep.mubr.f32.mxu0 0.0
      %959 = vmatmul.mubr.f32.gmra.mxu0 %v544
      %v960 = vpop.f32.mrf.mxu0
      %v961 = vadd.f32 %v813, %v960
      %v962 = vpop.f32.mrf.mxu0
      %963 = vmatprep.mubr.f32.mxu0 0.0
      %964 = vmatmul.mubr.f32.gmra.mxu0 %v547
      %v965 = vpop.f32.mrf.mxu0
      %v966 = vadd.f32 %v818, %v965
      %v967 = vpop.f32.mrf.mxu0
      %968 = vmatprep.mubr.f32.mxu0 0.0
      %969 = vmatmul.mubr.f32.gmra.mxu0 %v550
      %v970 = vpop.f32.mrf.mxu0
      %v971 = vadd.f32 %v823, %v970
      %v972 = vpop.f32.mrf.mxu0
      %973 = vmatprep.mubr.f32.mxu0 0.0
      %974 = vmatmul.mubr.f32.gmra.mxu0 %v553
      %v975 = vpop.f32.mrf.mxu0
      %v976 = vadd.f32 %v828, %v975
      %v977 = vpop.f32.mrf.mxu0
      %978 = vmatprep.mubr.f32.mxu0 0.0
      %979 = vmatmul.mubr.f32.gmra.mxu0 %v556
      %v980 = vpop.f32.mrf.mxu0
      %v981 = vadd.f32 %v833, %v980
      %v982 = vpop.f32.mrf.mxu0
      %983 = vmatprep.mubr.f32.mxu0 0.0
      %984 = vmatmul.mubr.f32.gmra.mxu0 %v559
      %v985 = vpop.f32.mrf.mxu0
      %v986 = vadd.f32 %v838, %v985
      %v987 = vpop.f32.mrf.mxu0
      %988 = vmatprep.mubr.f32.mxu0 0.0
      %989 = vmatmul.mubr.f32.gmra.mxu0 %v562
      %v990 = vpop.f32.mrf.mxu0
      %v991 = vadd.f32 %v843, %v990
      %v992 = vpop.f32.mrf.mxu0
      %993 = vmatprep.mubr.f32.mxu0 0.0
      %994 = vmatmul.mubr.f32.gmra.mxu0 %v565
      %v995 = vpop.f32.mrf.mxu0
      %v996 = vadd.f32 %v848, %v995
      %v997 = vpop.f32.mrf.mxu0
      %998 = vmatprep.mubr.f32.mxu0 0.0
      %999 = vmatmul.mubr.f32.gmra.mxu0 %v568
      %v1000 = vpop.f32.mrf.mxu0
      %v1001 = vadd.f32 %v853, %v1000
      %v1002 = vpop.f32.mrf.mxu0
      %1003 = vmatprep.mubr.f32.mxu0 0.0
      %1004 = vmatmul.mubr.f32.gmra.mxu0 %v571
      %v1005 = vpop.f32.mrf.mxu0
      %v1006 = vadd.f32 %v858, %v1005
      %v1007 = vpop.f32.mrf.mxu0
      %1008 = vmatprep.mubr.f32.mxu0 0.0
      %1009 = vmatmul.mubr.f32.gmra.mxu0 %v574
      %v1010 = vpop.f32.mrf.mxu0
      %v1011 = vadd.f32 %v863, %v1010
      %v1012 = vpop.f32.mrf.mxu0
      %1013 = vmatprep.mubr.f32.mxu0 0.0
      %1014 = vmatmul.mubr.f32.gmra.mxu0 %v577
      %v1015 = vpop.f32.mrf.mxu0
      %v1016 = vadd.f32 %v868, %v1015
      %v1017 = vpop.f32.mrf.mxu0
      %1018 = vmatprep.mubr.f32.mxu0 0.0
      %1019 = vmatmul.mubr.f32.gmra.mxu0 %v580
      %v1020 = vpop.f32.mrf.mxu0
      %v1021 = vadd.f32 %v873, %v1020
      %v1022 = vpop.f32.mrf.mxu0
      %1023 = vmatprep.mubr.f32.mxu0 0.0
      %1024 = vmatmul.mubr.f32.gmra.mxu0 %v583
      %v1025 = vpop.f32.mrf.mxu0
      %v1026 = vadd.f32 %v878, %v1025
      %v1027 = vpop.f32.mrf.mxu0
      %1028 = vmatprep.mubr.f32.mxu0 0.0
      %1029 = vmatmul.mubr.f32.gmra.mxu0 %v586
      %v1030 = vpop.f32.mrf.mxu0
      %v1031 = vadd.f32 %v883, %v1030
      %v1032 = vpop.f32.mrf.mxu0
      %1033 = vdwg.mxu0
      %v1034 = vld [vmem:[%s305 + $0x2] sm:$0xff]
      %v1035 = vld [vmem:[%s305 + $0xa] sm:$0xff]
      %v1036 = vld [vmem:[%s305 + $0x1a] sm:$0xff]
      %v1037 = vld [vmem:[%s305 + $0x22] sm:$0xff]
      %v1038 = vld [vmem:[%s305 + $0x32] sm:$0xff]
      %v1039 = vld [vmem:[%s305 + $0x3a] sm:$0xff]
      %v1040 = vld [vmem:[%s305 + $0x4a] sm:$0xff]
      %v1041 = vld [vmem:[%s305 + $0x52] sm:$0xff]
      %v1042 = vld [vmem:[%s305 + $0x62] sm:$0xff]
      %v1043 = vld [vmem:[%s305 + $0x6a] sm:$0xff]
      %v1044 = vld [vmem:[%s305 + $0x7a] sm:$0xff]
      %v1045 = vld [vmem:[%s305 + $0x82] sm:$0xff]
      %v1046 = vld [vmem:[%s305 + $0x92] sm:$0xff]
      %v1047 = vld [vmem:[%s305 + $0x9a] sm:$0xff]
      %v1048 = vld [vmem:[%s305 + $0xaa] sm:$0xff]
      %v1049 = vld [vmem:[%s305 + $0xb2] sm:$0xff]
      %s1050 = scalar_lea.vmem %s1, 8
      %v1051 = vld [vmem:[%s1050] sm:$0xf]
      %v1053 = vsel %vm342, %v1034, 0
      %v1056 = vsel %vm342, %v1035, 0
      %v1059 = vsel %vm342, %v1036, 0
      %v1062 = vsel %vm342, %v1037, 0
      %v1065 = vsel %vm342, %v1038, 0
      %v1068 = vsel %vm342, %v1039, 0
      %v1071 = vsel %vm342, %v1040, 0
      %v1074 = vsel %vm342, %v1041, 0
      %v1077 = vsel %vm342, %v1042, 0
      %v1080 = vsel %vm342, %v1043, 0
      %v1083 = vsel %vm342, %v1044, 0
      %v1086 = vsel %vm342, %v1045, 0
      %v1089 = vsel %vm342, %v1046, 0
      %v1092 = vsel %vm342, %v1047, 0
      %v1095 = vsel %vm342, %v1048, 0
      %v1098 = vsel %vm342, %v1049, 0
      %v1101 = vsel %vm391, %v1051, 0
      %1103 = vmatprep.subr.mxu0 0.0
      %1104 = vmatpush1.msra.mxu0 0.0
      %1105 = vmatprep.subr.mxu0 0.0
      %1106 = vmatpush1.msra.mxu0 0.0
      %1107 = vmatprep.subr.mxu0 0.0
      %1108 = vmatpush1.msra.mxu0 0.0
      %1109 = vmatprep.subr.mxu0 0.0
      %1110 = vmatpush1.msra.mxu0 0.0
      %1111 = vmatprep.subr.mxu0 0.0
      %1112 = vmatpush1.msra.mxu0 0.0
      %1113 = vmatprep.subr.mxu0 0.0
      %1114 = vmatpush1.msra.mxu0 0.0
      %1115 = vmatprep.subr.mxu0 0.0
      %1116 = vmatpush1.msra.mxu0 0.0
      %1117 = vmatprep.subr.mxu0 0.0
      %1118 = vmatpush1.msra.mxu0 0.0
      %1119 = vmatprep.subr.mxu0 0.0
      %1120 = vmatpush1.msra.mxu0 0.0
      %1121 = vmatprep.subr.mxu0 0.0
      %1122 = vmatpush1.msra.mxu0 0.0
      %1123 = vmatprep.subr.mxu0 0.0
      %1124 = vmatpush1.msra.mxu0 0.0
      %1125 = vmatprep.subr.mxu0 0.0
      %1126 = vmatpush1.msra.mxu0 0.0
      %1127 = vmatprep.subr.mxu0 0.0
      %1128 = vmatpush1.msra.mxu0 0.0
      %1129 = vmatprep.subr.mxu0 0.0
      %1130 = vmatpush1.msra.mxu0 0.0
      %1131 = vmatprep.subr.mxu0 0.0
      %1132 = vmatpush1.msra.mxu0 0.0
      %1133 = vmatprep.subr.mxu0 0.0
      %1134 = vmatpush1.msra.mxu0 %v1101
      %1135 = vmatprep.subr.mxu0 0.0
      %1136 = vmatpush2.msra.mxu0 0.0
      %1137 = vmatprep.subr.mxu0 0.0
      %1138 = vmatpush2.msra.mxu0 0.0
      %1139 = vmatprep.subr.mxu0 0.0
      %1140 = vmatpush2.msra.mxu0 0.0
      %1141 = vmatprep.subr.mxu0 0.0
      %1142 = vmatpush2.msra.mxu0 0.0
      %1143 = vmatprep.subr.mxu0 0.0
      %1144 = vmatpush2.msra.mxu0 0.0
      %1145 = vmatprep.subr.mxu0 0.0
      %1146 = vmatpush2.msra.mxu0 0.0
      %1147 = vmatprep.subr.mxu0 0.0
      %1148 = vmatpush2.msra.mxu0 0.0
      %1149 = vmatprep.subr.mxu0 0.0
      %1150 = vmatpush2.msra.mxu0 0.0
      %1151 = vmatprep.subr.mxu0 0.0
      %1152 = vmatpush2.msra.mxu0 0.0
      %1153 = vmatprep.subr.mxu0 0.0
      %1154 = vmatpush2.msra.mxu0 0.0
      %1155 = vmatprep.subr.mxu0 0.0
      %1156 = vmatpush2.msra.mxu0 0.0
      %1157 = vmatprep.subr.mxu0 0.0
      %1158 = vmatpush2.msra.mxu0 0.0
      %1159 = vmatprep.subr.mxu0 0.0
      %1160 = vmatpush2.msra.mxu0 0.0
      %1161 = vmatprep.subr.mxu0 0.0
      %1162 = vmatpush2.msra.mxu0 0.0
      %1163 = vmatprep.subr.mxu0 0.0
      %1164 = vmatpush2.msra.mxu0 0.0
      %1165 = vmatprep.subr.mxu0 0.0
      %1166 = vmatpush2.msra.mxu0 0.0
      %1167 = vmatprep.mubr.f32.mxu0 0.0
      %1168 = vmatmul.mubr.f32.gmra.mxu0 %v1053
      %v1169 = vpop.f32.mrf.mxu0
      %v1170 = vadd.f32 0.0, %v1169
      %v1171 = vpop.f32.mrf.mxu0
      %1172 = vmatprep.mubr.f32.mxu0 0.0
      %1173 = vmatmul.mubr.f32.gmra.mxu0 %v1056
      %v1174 = vpop.f32.mrf.mxu0
      %v1175 = vadd.f32 0.0, %v1174
      %v1176 = vpop.f32.mrf.mxu0
      %1177 = vmatprep.mubr.f32.mxu0 0.0
      %1178 = vmatmul.mubr.f32.gmra.mxu0 %v1059
      %v1179 = vpop.f32.mrf.mxu0
      %v1180 = vadd.f32 0.0, %v1179
      %v1181 = vpop.f32.mrf.mxu0
      %1182 = vmatprep.mubr.f32.mxu0 0.0
      %1183 = vmatmul.mubr.f32.gmra.mxu0 %v1062
      %v1184 = vpop.f32.mrf.mxu0
      %v1185 = vadd.f32 0.0, %v1184
      %v1186 = vpop.f32.mrf.mxu0
      %1187 = vmatprep.mubr.f32.mxu0 0.0
      %1188 = vmatmul.mubr.f32.gmra.mxu0 %v1065
      %v1189 = vpop.f32.mrf.mxu0
      %v1190 = vadd.f32 0.0, %v1189
      %v1191 = vpop.f32.mrf.mxu0
      %1192 = vmatprep.mubr.f32.mxu0 0.0
      %1193 = vmatmul.mubr.f32.gmra.mxu0 %v1068
      %v1194 = vpop.f32.mrf.mxu0
      %v1195 = vadd.f32 0.0, %v1194
      %v1196 = vpop.f32.mrf.mxu0
      %1197 = vmatprep.mubr.f32.mxu0 0.0
      %1198 = vmatmul.mubr.f32.gmra.mxu0 %v1071
      %v1199 = vpop.f32.mrf.mxu0
      %v1200 = vadd.f32 0.0, %v1199
      %v1201 = vpop.f32.mrf.mxu0
      %1202 = vmatprep.mubr.f32.mxu0 0.0
      %1203 = vmatmul.mubr.f32.gmra.mxu0 %v1074
      %v1204 = vpop.f32.mrf.mxu0
      %v1205 = vadd.f32 0.0, %v1204
      %v1206 = vpop.f32.mrf.mxu0
      %1207 = vmatprep.mubr.f32.mxu0 0.0
      %1208 = vmatmul.mubr.f32.gmra.mxu0 %v1077
      %v1209 = vpop.f32.mrf.mxu0
      %v1210 = vadd.f32 0.0, %v1209
      %v1211 = vpop.f32.mrf.mxu0
      %1212 = vmatprep.mubr.f32.mxu0 0.0
      %1213 = vmatmul.mubr.f32.gmra.mxu0 %v1080
      %v1214 = vpop.f32.mrf.mxu0
      %v1215 = vadd.f32 0.0, %v1214
      %v1216 = vpop.f32.mrf.mxu0
      %1217 = vmatprep.mubr.f32.mxu0 0.0
      %1218 = vmatmul.mubr.f32.gmra.mxu0 %v1083
      %v1219 = vpop.f32.mrf.mxu0
      %v1220 = vadd.f32 0.0, %v1219
      %v1221 = vpop.f32.mrf.mxu0
      %1222 = vmatprep.mubr.f32.mxu0 0.0
      %1223 = vmatmul.mubr.f32.gmra.mxu0 %v1086
      %v1224 = vpop.f32.mrf.mxu0
      %v1225 = vadd.f32 0.0, %v1224
      %v1226 = vpop.f32.mrf.mxu0
      %1227 = vmatprep.mubr.f32.mxu0 0.0
      %1228 = vmatmul.mubr.f32.gmra.mxu0 %v1089
      %v1229 = vpop.f32.mrf.mxu0
      %v1230 = vadd.f32 0.0, %v1229
      %v1231 = vpop.f32.mrf.mxu0
      %1232 = vmatprep.mubr.f32.mxu0 0.0
      %1233 = vmatmul.mubr.f32.gmra.mxu0 %v1092
      %v1234 = vpop.f32.mrf.mxu0
      %v1235 = vadd.f32 0.0, %v1234
      %v1236 = vpop.f32.mrf.mxu0
      %1237 = vmatprep.mubr.f32.mxu0 0.0
      %1238 = vmatmul.mubr.f32.gmra.mxu0 %v1095
      %v1239 = vpop.f32.mrf.mxu0
      %v1240 = vadd.f32 0.0, %v1239
      %v1241 = vpop.f32.mrf.mxu0
      %1242 = vmatprep.mubr.f32.mxu0 0.0
      %1243 = vmatmul.mubr.f32.gmra.mxu0 %v1098
      %v1244 = vpop.f32.mrf.mxu0
      %v1245 = vadd.f32 0.0, %v1244
      %v1246 = vpop.f32.mrf.mxu0
      %1247 = vdwg.mxu0
      %v1248 = vadd.f32 %v658, %v1170
      %v1249 = vadd.f32 %v663, %v1175
      %v1250 = vadd.f32 %v668, %v1180
      %v1251 = vadd.f32 %v673, %v1185
      %v1252 = vadd.f32 %v678, %v1190
      %v1253 = vadd.f32 %v683, %v1195
      %v1254 = vadd.f32 %v688, %v1200
      %v1255 = vadd.f32 %v693, %v1205
      %v1256 = vadd.f32 %v698, %v1210
      %v1257 = vadd.f32 %v703, %v1215
      %v1258 = vadd.f32 %v708, %v1220
      %v1259 = vadd.f32 %v713, %v1225
      %v1260 = vadd.f32 %v718, %v1230
      %v1261 = vadd.f32 %v723, %v1235
      %v1262 = vadd.f32 %v728, %v1240
      %v1263 = vadd.f32 %v733, %v1245
      %s1264 = scalar_lea.vmem %s3, 8
      %v1265 = vld [vmem:[%s1264] sm:$0xf]
      %v1267 = vsel %vm391, %v1265, 0
      %1269 = vmatprep.subr.mxu0 0.0
      %1270 = vmatpush1.msra.mxu0 0.0
      %1271 = vmatprep.subr.mxu0 0.0
      %1272 = vmatpush1.msra.mxu0 0.0
      %1273 = vmatprep.subr.mxu0 0.0
      %1274 = vmatpush1.msra.mxu0 0.0
      %1275 = vmatprep.subr.mxu0 0.0
      %1276 = vmatpush1.msra.mxu0 0.0
      %1277 = vmatprep.subr.mxu0 0.0
      %1278 = vmatpush1.msra.mxu0 0.0
      %1279 = vmatprep.subr.mxu0 0.0
      %1280 = vmatpush1.msra.mxu0 0.0
      %1281 = vmatprep.subr.mxu0 0.0
      %1282 = vmatpush1.msra.mxu0 0.0
      %1283 = vmatprep.subr.mxu0 0.0
      %1284 = vmatpush1.msra.mxu0 0.0
      %1285 = vmatprep.subr.mxu0 0.0
      %1286 = vmatpush1.msra.mxu0 0.0
      %1287 = vmatprep.subr.mxu0 0.0
      %1288 = vmatpush1.msra.mxu0 0.0
      %1289 = vmatprep.subr.mxu0 0.0
      %1290 = vmatpush1.msra.mxu0 0.0
      %1291 = vmatprep.subr.mxu0 0.0
      %1292 = vmatpush1.msra.mxu0 0.0
      %1293 = vmatprep.subr.mxu0 0.0
      %1294 = vmatpush1.msra.mxu0 0.0
      %1295 = vmatprep.subr.mxu0 0.0
      %1296 = vmatpush1.msra.mxu0 0.0
      %1297 = vmatprep.subr.mxu0 0.0
      %1298 = vmatpush1.msra.mxu0 0.0
      %1299 = vmatprep.subr.mxu0 0.0
      %1300 = vmatpush1.msra.mxu0 %v1267
      %1301 = vmatprep.subr.mxu0 0.0
      %1302 = vmatpush2.msra.mxu0 0.0
      %1303 = vmatprep.subr.mxu0 0.0
      %1304 = vmatpush2.msra.mxu0 0.0
      %1305 = vmatprep.subr.mxu0 0.0
      %1306 = vmatpush2.msra.mxu0 0.0
      %1307 = vmatprep.subr.mxu0 0.0
      %1308 = vmatpush2.msra.mxu0 0.0
      %1309 = vmatprep.subr.mxu0 0.0
      %1310 = vmatpush2.msra.mxu0 0.0
      %1311 = vmatprep.subr.mxu0 0.0
      %1312 = vmatpush2.msra.mxu0 0.0
      %1313 = vmatprep.subr.mxu0 0.0
      %1314 = vmatpush2.msra.mxu0 0.0
      %1315 = vmatprep.subr.mxu0 0.0
      %1316 = vmatpush2.msra.mxu0 0.0
      %1317 = vmatprep.subr.mxu0 0.0
      %1318 = vmatpush2.msra.mxu0 0.0
      %1319 = vmatprep.subr.mxu0 0.0
      %1320 = vmatpush2.msra.mxu0 0.0
      %1321 = vmatprep.subr.mxu0 0.0
      %1322 = vmatpush2.msra.mxu0 0.0
      %1323 = vmatprep.subr.mxu0 0.0
      %1324 = vmatpush2.msra.mxu0 0.0
      %1325 = vmatprep.subr.mxu0 0.0
      %1326 = vmatpush2.msra.mxu0 0.0
      %1327 = vmatprep.subr.mxu0 0.0
      %1328 = vmatpush2.msra.mxu0 0.0
      %1329 = vmatprep.subr.mxu0 0.0
      %1330 = vmatpush2.msra.mxu0 0.0
      %1331 = vmatprep.subr.mxu0 0.0
      %1332 = vmatpush2.msra.mxu0 0.0
      %1333 = vmatprep.mubr.f32.mxu0 0.0
      %1334 = vmatmul.mubr.f32.gmra.mxu0 %v1053
      %v1335 = vpop.f32.mrf.mxu0
      %v1336 = vadd.f32 0.0, %v1335
      %v1337 = vpop.f32.mrf.mxu0
      %1338 = vmatprep.mubr.f32.mxu0 0.0
      %1339 = vmatmul.mubr.f32.gmra.mxu0 %v1056
      %v1340 = vpop.f32.mrf.mxu0
      %v1341 = vadd.f32 0.0, %v1340
      %v1342 = vpop.f32.mrf.mxu0
      %1343 = vmatprep.mubr.f32.mxu0 0.0
      %1344 = vmatmul.mubr.f32.gmra.mxu0 %v1059
      %v1345 = vpop.f32.mrf.mxu0
      %v1346 = vadd.f32 0.0, %v1345
      %v1347 = vpop.f32.mrf.mxu0
      %1348 = vmatprep.mubr.f32.mxu0 0.0
      %1349 = vmatmul.mubr.f32.gmra.mxu0 %v1062
      %v1350 = vpop.f32.mrf.mxu0
      %v1351 = vadd.f32 0.0, %v1350
      %v1352 = vpop.f32.mrf.mxu0
      %1353 = vmatprep.mubr.f32.mxu0 0.0
      %1354 = vmatmul.mubr.f32.gmra.mxu0 %v1065
      %v1355 = vpop.f32.mrf.mxu0
      %v1356 = vadd.f32 0.0, %v1355
      %v1357 = vpop.f32.mrf.mxu0
      %1358 = vmatprep.mubr.f32.mxu0 0.0
      %1359 = vmatmul.mubr.f32.gmra.mxu0 %v1068
      %v1360 = vpop.f32.mrf.mxu0
      %v1361 = vadd.f32 0.0, %v1360
      %v1362 = vpop.f32.mrf.mxu0
      %1363 = vmatprep.mubr.f32.mxu0 0.0
      %1364 = vmatmul.mubr.f32.gmra.mxu0 %v1071
      %v1365 = vpop.f32.mrf.mxu0
      %v1366 = vadd.f32 0.0, %v1365
      %v1367 = vpop.f32.mrf.mxu0
      %1368 = vmatprep.mubr.f32.mxu0 0.0
      %1369 = vmatmul.mubr.f32.gmra.mxu0 %v1074
      %v1370 = vpop.f32.mrf.mxu0
      %v1371 = vadd.f32 0.0, %v1370
      %v1372 = vpop.f32.mrf.mxu0
      %1373 = vmatprep.mubr.f32.mxu0 0.0
      %1374 = vmatmul.mubr.f32.gmra.mxu0 %v1077
      %v1375 = vpop.f32.mrf.mxu0
      %v1376 = vadd.f32 0.0, %v1375
      %v1377 = vpop.f32.mrf.mxu0
      %1378 = vmatprep.mubr.f32.mxu0 0.0
      %1379 = vmatmul.mubr.f32.gmra.mxu0 %v1080
      %v1380 = vpop.f32.mrf.mxu0
      %v1381 = vadd.f32 0.0, %v1380
      %v1382 = vpop.f32.mrf.mxu0
      %1383 = vmatprep.mubr.f32.mxu0 0.0
      %1384 = vmatmul.mubr.f32.gmra.mxu0 %v1083
      %v1385 = vpop.f32.mrf.mxu0
      %v1386 = vadd.f32 0.0, %v1385
      %v1387 = vpop.f32.mrf.mxu0
      %1388 = vmatprep.mubr.f32.mxu0 0.0
      %1389 = vmatmul.mubr.f32.gmra.mxu0 %v1086
      %v1390 = vpop.f32.mrf.mxu0
      %v1391 = vadd.f32 0.0, %v1390
      %v1392 = vpop.f32.mrf.mxu0
      %1393 = vmatprep.mubr.f32.mxu0 0.0
      %1394 = vmatmul.mubr.f32.gmra.mxu0 %v1089
      %v1395 = vpop.f32.mrf.mxu0
      %v1396 = vadd.f32 0.0, %v1395
      %v1397 = vpop.f32.mrf.mxu0
      %1398 = vmatprep.mubr.f32.mxu0 0.0
      %1399 = vmatmul.mubr.f32.gmra.mxu0 %v1092
      %v1400 = vpop.f32.mrf.mxu0
      %v1401 = vadd.f32 0.0, %v1400
      %v1402 = vpop.f32.mrf.mxu0
      %1403 = vmatprep.mubr.f32.mxu0 0.0
      %1404 = vmatmul.mubr.f32.gmra.mxu0 %v1095
      %v1405 = vpop.f32.mrf.mxu0
      %v1406 = vadd.f32 0.0, %v1405
      %v1407 = vpop.f32.mrf.mxu0
      %1408 = vmatprep.mubr.f32.mxu0 0.0
      %1409 = vmatmul.mubr.f32.gmra.mxu0 %v1098
      %v1410 = vpop.f32.mrf.mxu0
      %v1411 = vadd.f32 0.0, %v1410
      %v1412 = vpop.f32.mrf.mxu0
      %1413 = vdwg.mxu0
      %v1414 = vadd.f32 %v956, %v1336
      %v1415 = vadd.f32 %v961, %v1341
      %v1416 = vadd.f32 %v966, %v1346
      %v1417 = vadd.f32 %v971, %v1351
      %v1418 = vadd.f32 %v976, %v1356
      %v1419 = vadd.f32 %v981, %v1361
      %v1420 = vadd.f32 %v986, %v1366
      %v1421 = vadd.f32 %v991, %v1371
      %v1422 = vadd.f32 %v996, %v1376
      %v1423 = vadd.f32 %v1001, %v1381
      %v1424 = vadd.f32 %v1006, %v1386
      %v1425 = vadd.f32 %v1011, %v1391
      %v1426 = vadd.f32 %v1016, %v1396
      %v1427 = vadd.f32 %v1021, %v1401
      %v1428 = vadd.f32 %v1026, %v1406
      %v1429 = vadd.f32 %v1031, %v1411
      %s1430 = sadd.s32 %s303, 1
      %s1431 = smul.u32 %s1430, 24
      %s1432 = scalar_lea.vmem %s280, %s1431
      %v1433 = vld [vmem:[%s1432] sm:$0xff]
      %v1434 = vld [vmem:[%s1432 + $0x8] sm:$0xff]
      %v1435 = vld [vmem:[%s1432 + $0x18] sm:$0xff]
      %v1436 = vld [vmem:[%s1432 + $0x20] sm:$0xff]
      %v1437 = vld [vmem:[%s1432 + $0x30] sm:$0xff]
      %v1438 = vld [vmem:[%s1432 + $0x38] sm:$0xff]
      %v1439 = vld [vmem:[%s1432 + $0x48] sm:$0xff]
      %v1440 = vld [vmem:[%s1432 + $0x50] sm:$0xff]
      %v1441 = vld [vmem:[%s1432 + $0x60] sm:$0xff]
      %v1442 = vld [vmem:[%s1432 + $0x68] sm:$0xff]
      %v1443 = vld [vmem:[%s1432 + $0x78] sm:$0xff]
      %v1444 = vld [vmem:[%s1432 + $0x80] sm:$0xff]
      %v1445 = vld [vmem:[%s1432 + $0x90] sm:$0xff]
      %v1446 = vld [vmem:[%s1432 + $0x98] sm:$0xff]
      %v1447 = vld [vmem:[%s1432 + $0xa8] sm:$0xff]
      %v1448 = vld [vmem:[%s1432 + $0xb0] sm:$0xff]
      %s1449 = scalar_lea.vmem %s1, 12
      %v1450 = vld [vmem:[%s1449] sm:$0xf]
      %v1452 = vsel %vm342, %v1433, 0
      %v1455 = vsel %vm342, %v1434, 0
      %v1458 = vsel %vm342, %v1435, 0
      %v1461 = vsel %vm342, %v1436, 0
      %v1464 = vsel %vm342, %v1437, 0
      %v1467 = vsel %vm342, %v1438, 0
      %v1470 = vsel %vm342, %v1439, 0
      %v1473 = vsel %vm342, %v1440, 0
      %v1476 = vsel %vm342, %v1441, 0
      %v1479 = vsel %vm342, %v1442, 0
      %v1482 = vsel %vm342, %v1443, 0
      %v1485 = vsel %vm342, %v1444, 0
      %v1488 = vsel %vm342, %v1445, 0
      %v1491 = vsel %vm342, %v1446, 0
      %v1494 = vsel %vm342, %v1447, 0
      %v1497 = vsel %vm342, %v1448, 0
      %v1500 = vsel %vm391, %v1450, 0
      %1502 = vmatprep.subr.mxu0 0.0
      %1503 = vmatpush1.msra.mxu0 0.0
      %1504 = vmatprep.subr.mxu0 0.0
      %1505 = vmatpush1.msra.mxu0 0.0
      %1506 = vmatprep.subr.mxu0 0.0
      %1507 = vmatpush1.msra.mxu0 0.0
      %1508 = vmatprep.subr.mxu0 0.0
      %1509 = vmatpush1.msra.mxu0 0.0
      %1510 = vmatprep.subr.mxu0 0.0
      %1511 = vmatpush1.msra.mxu0 0.0
      %1512 = vmatprep.subr.mxu0 0.0
      %1513 = vmatpush1.msra.mxu0 0.0
      %1514 = vmatprep.subr.mxu0 0.0
      %1515 = vmatpush1.msra.mxu0 0.0
      %1516 = vmatprep.subr.mxu0 0.0
      %1517 = vmatpush1.msra.mxu0 0.0
      %1518 = vmatprep.subr.mxu0 0.0
      %1519 = vmatpush1.msra.mxu0 0.0
      %1520 = vmatprep.subr.mxu0 0.0
      %1521 = vmatpush1.msra.mxu0 0.0
      %1522 = vmatprep.subr.mxu0 0.0
      %1523 = vmatpush1.msra.mxu0 0.0
      %1524 = vmatprep.subr.mxu0 0.0
      %1525 = vmatpush1.msra.mxu0 0.0
      %1526 = vmatprep.subr.mxu0 0.0
      %1527 = vmatpush1.msra.mxu0 0.0
      %1528 = vmatprep.subr.mxu0 0.0
      %1529 = vmatpush1.msra.mxu0 0.0
      %1530 = vmatprep.subr.mxu0 0.0
      %1531 = vmatpush1.msra.mxu0 0.0
      %1532 = vmatprep.subr.mxu0 0.0
      %1533 = vmatpush1.msra.mxu0 %v1500
      %1534 = vmatprep.subr.mxu0 0.0
      %1535 = vmatpush2.msra.mxu0 0.0
      %1536 = vmatprep.subr.mxu0 0.0
      %1537 = vmatpush2.msra.mxu0 0.0
      %1538 = vmatprep.subr.mxu0 0.0
      %1539 = vmatpush2.msra.mxu0 0.0
      %1540 = vmatprep.subr.mxu0 0.0
      %1541 = vmatpush2.msra.mxu0 0.0
      %1542 = vmatprep.subr.mxu0 0.0
      %1543 = vmatpush2.msra.mxu0 0.0
      %1544 = vmatprep.subr.mxu0 0.0
      %1545 = vmatpush2.msra.mxu0 0.0
      %1546 = vmatprep.subr.mxu0 0.0
      %1547 = vmatpush2.msra.mxu0 0.0
      %1548 = vmatprep.subr.mxu0 0.0
      %1549 = vmatpush2.msra.mxu0 0.0
      %1550 = vmatprep.subr.mxu0 0.0
      %1551 = vmatpush2.msra.mxu0 0.0
      %1552 = vmatprep.subr.mxu0 0.0
      %1553 = vmatpush2.msra.mxu0 0.0
      %1554 = vmatprep.subr.mxu0 0.0
      %1555 = vmatpush2.msra.mxu0 0.0
      %1556 = vmatprep.subr.mxu0 0.0
      %1557 = vmatpush2.msra.mxu0 0.0
      %1558 = vmatprep.subr.mxu0 0.0
      %1559 = vmatpush2.msra.mxu0 0.0
      %1560 = vmatprep.subr.mxu0 0.0
      %1561 = vmatpush2.msra.mxu0 0.0
      %1562 = vmatprep.subr.mxu0 0.0
      %1563 = vmatpush2.msra.mxu0 0.0
      %1564 = vmatprep.subr.mxu0 0.0
      %1565 = vmatpush2.msra.mxu0 0.0
      %1566 = vmatprep.mubr.f32.mxu0 0.0
      %1567 = vmatmul.mubr.f32.gmra.mxu0 %v1452
      %v1568 = vpop.f32.mrf.mxu0
      %v1569 = vadd.f32 0.0, %v1568
      %v1570 = vpop.f32.mrf.mxu0
      %1571 = vmatprep.mubr.f32.mxu0 0.0
      %1572 = vmatmul.mubr.f32.gmra.mxu0 %v1455
      %v1573 = vpop.f32.mrf.mxu0
      %v1574 = vadd.f32 0.0, %v1573
      %v1575 = vpop.f32.mrf.mxu0
      %1576 = vmatprep.mubr.f32.mxu0 0.0
      %1577 = vmatmul.mubr.f32.gmra.mxu0 %v1458
      %v1578 = vpop.f32.mrf.mxu0
      %v1579 = vadd.f32 0.0, %v1578
      %v1580 = vpop.f32.mrf.mxu0
      %1581 = vmatprep.mubr.f32.mxu0 0.0
      %1582 = vmatmul.mubr.f32.gmra.mxu0 %v1461
      %v1583 = vpop.f32.mrf.mxu0
      %v1584 = vadd.f32 0.0, %v1583
      %v1585 = vpop.f32.mrf.mxu0
      %1586 = vmatprep.mubr.f32.mxu0 0.0
      %1587 = vmatmul.mubr.f32.gmra.mxu0 %v1464
      %v1588 = vpop.f32.mrf.mxu0
      %v1589 = vadd.f32 0.0, %v1588
      %v1590 = vpop.f32.mrf.mxu0
      %1591 = vmatprep.mubr.f32.mxu0 0.0
      %1592 = vmatmul.mubr.f32.gmra.mxu0 %v1467
      %v1593 = vpop.f32.mrf.mxu0
      %v1594 = vadd.f32 0.0, %v1593
      %v1595 = vpop.f32.mrf.mxu0
      %1596 = vmatprep.mubr.f32.mxu0 0.0
      %1597 = vmatmul.mubr.f32.gmra.mxu0 %v1470
      %v1598 = vpop.f32.mrf.mxu0
      %v1599 = vadd.f32 0.0, %v1598
      %v1600 = vpop.f32.mrf.mxu0
      %1601 = vmatprep.mubr.f32.mxu0 0.0
      %1602 = vmatmul.mubr.f32.gmra.mxu0 %v1473
      %v1603 = vpop.f32.mrf.mxu0
      %v1604 = vadd.f32 0.0, %v1603
      %v1605 = vpop.f32.mrf.mxu0
      %1606 = vmatprep.mubr.f32.mxu0 0.0
      %1607 = vmatmul.mubr.f32.gmra.mxu0 %v1476
      %v1608 = vpop.f32.mrf.mxu0
      %v1609 = vadd.f32 0.0, %v1608
      %v1610 = vpop.f32.mrf.mxu0
      %1611 = vmatprep.mubr.f32.mxu0 0.0
      %1612 = vmatmul.mubr.f32.gmra.mxu0 %v1479
      %v1613 = vpop.f32.mrf.mxu0
      %v1614 = vadd.f32 0.0, %v1613
      %v1615 = vpop.f32.mrf.mxu0
      %1616 = vmatprep.mubr.f32.mxu0 0.0
      %1617 = vmatmul.mubr.f32.gmra.mxu0 %v1482
      %v1618 = vpop.f32.mrf.mxu0
      %v1619 = vadd.f32 0.0, %v1618
      %v1620 = vpop.f32.mrf.mxu0
      %1621 = vmatprep.mubr.f32.mxu0 0.0
      %1622 = vmatmul.mubr.f32.gmra.mxu0 %v1485
      %v1623 = vpop.f32.mrf.mxu0
      %v1624 = vadd.f32 0.0, %v1623
      %v1625 = vpop.f32.mrf.mxu0
      %1626 = vmatprep.mubr.f32.mxu0 0.0
      %1627 = vmatmul.mubr.f32.gmra.mxu0 %v1488
      %v1628 = vpop.f32.mrf.mxu0
      %v1629 = vadd.f32 0.0, %v1628
      %v1630 = vpop.f32.mrf.mxu0
      %1631 = vmatprep.mubr.f32.mxu0 0.0
      %1632 = vmatmul.mubr.f32.gmra.mxu0 %v1491
      %v1633 = vpop.f32.mrf.mxu0
      %v1634 = vadd.f32 0.0, %v1633
      %v1635 = vpop.f32.mrf.mxu0
      %1636 = vmatprep.mubr.f32.mxu0 0.0
      %1637 = vmatmul.mubr.f32.gmra.mxu0 %v1494
      %v1638 = vpop.f32.mrf.mxu0
      %v1639 = vadd.f32 0.0, %v1638
      %v1640 = vpop.f32.mrf.mxu0
      %1641 = vmatprep.mubr.f32.mxu0 0.0
      %1642 = vmatmul.mubr.f32.gmra.mxu0 %v1497
      %v1643 = vpop.f32.mrf.mxu0
      %v1644 = vadd.f32 0.0, %v1643
      %v1645 = vpop.f32.mrf.mxu0
      %1646 = vdwg.mxu0
      %v1647 = vadd.f32 %v1248, %v1569
      %v1648 = vadd.f32 %v1249, %v1574
      %v1649 = vadd.f32 %v1250, %v1579
      %v1650 = vadd.f32 %v1251, %v1584
      %v1651 = vadd.f32 %v1252, %v1589
      %v1652 = vadd.f32 %v1253, %v1594
      %v1653 = vadd.f32 %v1254, %v1599
      %v1654 = vadd.f32 %v1255, %v1604
      %v1655 = vadd.f32 %v1256, %v1609
      %v1656 = vadd.f32 %v1257, %v1614
      %v1657 = vadd.f32 %v1258, %v1619
      %v1658 = vadd.f32 %v1259, %v1624
      %v1659 = vadd.f32 %v1260, %v1629
      %v1660 = vadd.f32 %v1261, %v1634
      %v1661 = vadd.f32 %v1262, %v1639
      %v1662 = vadd.f32 %v1263, %v1644
      %s1663 = scalar_lea.vmem %s3, 12
      %v1664 = vld [vmem:[%s1663] sm:$0xf]
      %v1666 = vsel %vm391, %v1664, 0
      %1668 = vmatprep.subr.mxu0 0.0
      %1669 = vmatpush1.msra.mxu0 0.0
      %1670 = vmatprep.subr.mxu0 0.0
      %1671 = vmatpush1.msra.mxu0 0.0
      %1672 = vmatprep.subr.mxu0 0.0
      %1673 = vmatpush1.msra.mxu0 0.0
      %1674 = vmatprep.subr.mxu0 0.0
      %1675 = vmatpush1.msra.mxu0 0.0
      %1676 = vmatprep.subr.mxu0 0.0
      %1677 = vmatpush1.msra.mxu0 0.0
      %1678 = vmatprep.subr.mxu0 0.0
      %1679 = vmatpush1.msra.mxu0 0.0
      %1680 = vmatprep.subr.mxu0 0.0
      %1681 = vmatpush1.msra.mxu0 0.0
      %1682 = vmatprep.subr.mxu0 0.0
      %1683 = vmatpush1.msra.mxu0 0.0
      %1684 = vmatprep.subr.mxu0 0.0
      %1685 = vmatpush1.msra.mxu0 0.0
      %1686 = vmatprep.subr.mxu0 0.0
      %1687 = vmatpush1.msra.mxu0 0.0
      %1688 = vmatprep.subr.mxu0 0.0
      %1689 = vmatpush1.msra.mxu0 0.0
      %1690 = vmatprep.subr.mxu0 0.0
      %1691 = vmatpush1.msra.mxu0 0.0
      %1692 = vmatprep.subr.mxu0 0.0
      %1693 = vmatpush1.msra.mxu0 0.0
      %1694 = vmatprep.subr.mxu0 0.0
      %1695 = vmatpush1.msra.mxu0 0.0
      %1696 = vmatprep.subr.mxu0 0.0
      %1697 = vmatpush1.msra.mxu0 0.0
      %1698 = vmatprep.subr.mxu0 0.0
      %1699 = vmatpush1.msra.mxu0 %v1666
      %1700 = vmatprep.subr.mxu0 0.0
      %1701 = vmatpush2.msra.mxu0 0.0
      %1702 = vmatprep.subr.mxu0 0.0
      %1703 = vmatpush2.msra.mxu0 0.0
      %1704 = vmatprep.subr.mxu0 0.0
      %1705 = vmatpush2.msra.mxu0 0.0
      %1706 = vmatprep.subr.mxu0 0.0
      %1707 = vmatpush2.msra.mxu0 0.0
      %1708 = vmatprep.subr.mxu0 0.0
      %1709 = vmatpush2.msra.mxu0 0.0
      %1710 = vmatprep.subr.mxu0 0.0
      %1711 = vmatpush2.msra.mxu0 0.0
      %1712 = vmatprep.subr.mxu0 0.0
      %1713 = vmatpush2.msra.mxu0 0.0
      %1714 = vmatprep.subr.mxu0 0.0
      %1715 = vmatpush2.msra.mxu0 0.0
      %1716 = vmatprep.subr.mxu0 0.0
      %1717 = vmatpush2.msra.mxu0 0.0
      %1718 = vmatprep.subr.mxu0 0.0
      %1719 = vmatpush2.msra.mxu0 0.0
      %1720 = vmatprep.subr.mxu0 0.0
      %1721 = vmatpush2.msra.mxu0 0.0
      %1722 = vmatprep.subr.mxu0 0.0
      %1723 = vmatpush2.msra.mxu0 0.0
      %1724 = vmatprep.subr.mxu0 0.0
      %1725 = vmatpush2.msra.mxu0 0.0
      %1726 = vmatprep.subr.mxu0 0.0
      %1727 = vmatpush2.msra.mxu0 0.0
      %1728 = vmatprep.subr.mxu0 0.0
      %1729 = vmatpush2.msra.mxu0 0.0
      %1730 = vmatprep.subr.mxu0 0.0
      %1731 = vmatpush2.msra.mxu0 0.0
      %1732 = vmatprep.mubr.f32.mxu0 0.0
      %1733 = vmatmul.mubr.f32.gmra.mxu0 %v1452
      %v1734 = vpop.f32.mrf.mxu0
      %v1735 = vadd.f32 0.0, %v1734
      %v1736 = vpop.f32.mrf.mxu0
      %1737 = vmatprep.mubr.f32.mxu0 0.0
      %1738 = vmatmul.mubr.f32.gmra.mxu0 %v1455
      %v1739 = vpop.f32.mrf.mxu0
      %v1740 = vadd.f32 0.0, %v1739
      %v1741 = vpop.f32.mrf.mxu0
      %1742 = vmatprep.mubr.f32.mxu0 0.0
      %1743 = vmatmul.mubr.f32.gmra.mxu0 %v1458
      %v1744 = vpop.f32.mrf.mxu0
      %v1745 = vadd.f32 0.0, %v1744
      %v1746 = vpop.f32.mrf.mxu0
      %1747 = vmatprep.mubr.f32.mxu0 0.0
      %1748 = vmatmul.mubr.f32.gmra.mxu0 %v1461
      %v1749 = vpop.f32.mrf.mxu0
      %v1750 = vadd.f32 0.0, %v1749
      %v1751 = vpop.f32.mrf.mxu0
      %1752 = vmatprep.mubr.f32.mxu0 0.0
      %1753 = vmatmul.mubr.f32.gmra.mxu0 %v1464
      %v1754 = vpop.f32.mrf.mxu0
      %v1755 = vadd.f32 0.0, %v1754
      %v1756 = vpop.f32.mrf.mxu0
      %1757 = vmatprep.mubr.f32.mxu0 0.0
      %1758 = vmatmul.mubr.f32.gmra.mxu0 %v1467
      %v1759 = vpop.f32.mrf.mxu0
      %v1760 = vadd.f32 0.0, %v1759
      %v1761 = vpop.f32.mrf.mxu0
      %1762 = vmatprep.mubr.f32.mxu0 0.0
      %1763 = vmatmul.mubr.f32.gmra.mxu0 %v1470
      %v1764 = vpop.f32.mrf.mxu0
      %v1765 = vadd.f32 0.0, %v1764
      %v1766 = vpop.f32.mrf.mxu0
      %1767 = vmatprep.mubr.f32.mxu0 0.0
      %1768 = vmatmul.mubr.f32.gmra.mxu0 %v1473
      %v1769 = vpop.f32.mrf.mxu0
      %v1770 = vadd.f32 0.0, %v1769
      %v1771 = vpop.f32.mrf.mxu0
      %1772 = vmatprep.mubr.f32.mxu0 0.0
      %1773 = vmatmul.mubr.f32.gmra.mxu0 %v1476
      %v1774 = vpop.f32.mrf.mxu0
      %v1775 = vadd.f32 0.0, %v1774
      %v1776 = vpop.f32.mrf.mxu0
      %1777 = vmatprep.mubr.f32.mxu0 0.0
      %1778 = vmatmul.mubr.f32.gmra.mxu0 %v1479
      %v1779 = vpop.f32.mrf.mxu0
      %v1780 = vadd.f32 0.0, %v1779
      %v1781 = vpop.f32.mrf.mxu0
      %1782 = vmatprep.mubr.f32.mxu0 0.0
      %1783 = vmatmul.mubr.f32.gmra.mxu0 %v1482
      %v1784 = vpop.f32.mrf.mxu0
      %v1785 = vadd.f32 0.0, %v1784
      %v1786 = vpop.f32.mrf.mxu0
      %1787 = vmatprep.mubr.f32.mxu0 0.0
      %1788 = vmatmul.mubr.f32.gmra.mxu0 %v1485
      %v1789 = vpop.f32.mrf.mxu0
      %v1790 = vadd.f32 0.0, %v1789
      %v1791 = vpop.f32.mrf.mxu0
      %1792 = vmatprep.mubr.f32.mxu0 0.0
      %1793 = vmatmul.mubr.f32.gmra.mxu0 %v1488
      %v1794 = vpop.f32.mrf.mxu0
      %v1795 = vadd.f32 0.0, %v1794
      %v1796 = vpop.f32.mrf.mxu0
      %1797 = vmatprep.mubr.f32.mxu0 0.0
      %1798 = vmatmul.mubr.f32.gmra.mxu0 %v1491
      %v1799 = vpop.f32.mrf.mxu0
      %v1800 = vadd.f32 0.0, %v1799
      %v1801 = vpop.f32.mrf.mxu0
      %1802 = vmatprep.mubr.f32.mxu0 0.0
      %1803 = vmatmul.mubr.f32.gmra.mxu0 %v1494
      %v1804 = vpop.f32.mrf.mxu0
      %v1805 = vadd.f32 0.0, %v1804
      %v1806 = vpop.f32.mrf.mxu0
      %1807 = vmatprep.mubr.f32.mxu0 0.0
      %1808 = vmatmul.mubr.f32.gmra.mxu0 %v1497
      %v1809 = vpop.f32.mrf.mxu0
      %v1810 = vadd.f32 0.0, %v1809
      %v1811 = vpop.f32.mrf.mxu0
      %1812 = vdwg.mxu0
      %v1813 = vadd.f32 %v1414, %v1735
      %v1814 = vadd.f32 %v1415, %v1740
      %v1815 = vadd.f32 %v1416, %v1745
      %v1816 = vadd.f32 %v1417, %v1750
      %v1817 = vadd.f32 %v1418, %v1755
      %v1818 = vadd.f32 %v1419, %v1760
      %v1819 = vadd.f32 %v1420, %v1765
      %v1820 = vadd.f32 %v1421, %v1770
      %v1821 = vadd.f32 %v1422, %v1775
      %v1822 = vadd.f32 %v1423, %v1780
      %v1823 = vadd.f32 %v1424, %v1785
      %v1824 = vadd.f32 %v1425, %v1790
      %v1825 = vadd.f32 %v1426, %v1795
      %v1826 = vadd.f32 %v1427, %v1800
      %v1827 = vadd.f32 %v1428, %v1805
      %v1828 = vadd.f32 %v1429, %v1810
      %v1829 = vld [vmem:[%s1432 + $0x1] sm:$0xff]
      %v1830 = vld [vmem:[%s1432 + $0x9] sm:$0xff]
      %v1831 = vld [vmem:[%s1432 + $0x19] sm:$0xff]
      %v1832 = vld [vmem:[%s1432 + $0x21] sm:$0xff]
      %v1833 = vld [vmem:[%s1432 + $0x31] sm:$0xff]
      %v1834 = vld [vmem:[%s1432 + $0x39] sm:$0xff]
      %v1835 = vld [vmem:[%s1432 + $0x49] sm:$0xff]
      %v1836 = vld [vmem:[%s1432 + $0x51] sm:$0xff]
      %v1837 = vld [vmem:[%s1432 + $0x61] sm:$0xff]
      %v1838 = vld [vmem:[%s1432 + $0x69] sm:$0xff]
      %v1839 = vld [vmem:[%s1432 + $0x79] sm:$0xff]
      %v1840 = vld [vmem:[%s1432 + $0x81] sm:$0xff]
      %v1841 = vld [vmem:[%s1432 + $0x91] sm:$0xff]
      %v1842 = vld [vmem:[%s1432 + $0x99] sm:$0xff]
      %v1843 = vld [vmem:[%s1432 + $0xa9] sm:$0xff]
      %v1844 = vld [vmem:[%s1432 + $0xb1] sm:$0xff]
      %s1845 = scalar_lea.vmem %s1, 16
      %v1846 = vld [vmem:[%s1845] sm:$0xf]
      %v1848 = vsel %vm342, %v1829, 0
      %v1851 = vsel %vm342, %v1830, 0
      %v1854 = vsel %vm342, %v1831, 0
      %v1857 = vsel %vm342, %v1832, 0
      %v1860 = vsel %vm342, %v1833, 0
      %v1863 = vsel %vm342, %v1834, 0
      %v1866 = vsel %vm342, %v1835, 0
      %v1869 = vsel %vm342, %v1836, 0
      %v1872 = vsel %vm342, %v1837, 0
      %v1875 = vsel %vm342, %v1838, 0
      %v1878 = vsel %vm342, %v1839, 0
      %v1881 = vsel %vm342, %v1840, 0
      %v1884 = vsel %vm342, %v1841, 0
      %v1887 = vsel %vm342, %v1842, 0
      %v1890 = vsel %vm342, %v1843, 0
      %v1893 = vsel %vm342, %v1844, 0
      %v1896 = vsel %vm391, %v1846, 0
      %1898 = vmatprep.subr.mxu0 0.0
      %1899 = vmatpush1.msra.mxu0 0.0
      %1900 = vmatprep.subr.mxu0 0.0
      %1901 = vmatpush1.msra.mxu0 0.0
      %1902 = vmatprep.subr.mxu0 0.0
      %1903 = vmatpush1.msra.mxu0 0.0
      %1904 = vmatprep.subr.mxu0 0.0
      %1905 = vmatpush1.msra.mxu0 0.0
      %1906 = vmatprep.subr.mxu0 0.0
      %1907 = vmatpush1.msra.mxu0 0.0
      %1908 = vmatprep.subr.mxu0 0.0
      %1909 = vmatpush1.msra.mxu0 0.0
      %1910 = vmatprep.subr.mxu0 0.0
      %1911 = vmatpush1.msra.mxu0 0.0
      %1912 = vmatprep.subr.mxu0 0.0
      %1913 = vmatpush1.msra.mxu0 0.0
      %1914 = vmatprep.subr.mxu0 0.0
      %1915 = vmatpush1.msra.mxu0 0.0
      %1916 = vmatprep.subr.mxu0 0.0
      %1917 = vmatpush1.msra.mxu0 0.0
      %1918 = vmatprep.subr.mxu0 0.0
      %1919 = vmatpush1.msra.mxu0 0.0
      %1920 = vmatprep.subr.mxu0 0.0
      %1921 = vmatpush1.msra.mxu0 0.0
      %1922 = vmatprep.subr.mxu0 0.0
      %1923 = vmatpush1.msra.mxu0 0.0
      %1924 = vmatprep.subr.mxu0 0.0
      %1925 = vmatpush1.msra.mxu0 0.0
      %1926 = vmatprep.subr.mxu0 0.0
      %1927 = vmatpush1.msra.mxu0 0.0
      %1928 = vmatprep.subr.mxu0 0.0
      %1929 = vmatpush1.msra.mxu0 %v1896
      %1930 = vmatprep.subr.mxu0 0.0
      %1931 = vmatpush2.msra.mxu0 0.0
      %1932 = vmatprep.subr.mxu0 0.0
      %1933 = vmatpush2.msra.mxu0 0.0
      %1934 = vmatprep.subr.mxu0 0.0
      %1935 = vmatpush2.msra.mxu0 0.0
      %1936 = vmatprep.subr.mxu0 0.0
      %1937 = vmatpush2.msra.mxu0 0.0
      %1938 = vmatprep.subr.mxu0 0.0
      %1939 = vmatpush2.msra.mxu0 0.0
      %1940 = vmatprep.subr.mxu0 0.0
      %1941 = vmatpush2.msra.mxu0 0.0
      %1942 = vmatprep.subr.mxu0 0.0
      %1943 = vmatpush2.msra.mxu0 0.0
      %1944 = vmatprep.subr.mxu0 0.0
      %1945 = vmatpush2.msra.mxu0 0.0
      %1946 = vmatprep.subr.mxu0 0.0
      %1947 = vmatpush2.msra.mxu0 0.0
      %1948 = vmatprep.subr.mxu0 0.0
      %1949 = vmatpush2.msra.mxu0 0.0
      %1950 = vmatprep.subr.mxu0 0.0
      %1951 = vmatpush2.msra.mxu0 0.0
      %1952 = vmatprep.subr.mxu0 0.0
      %1953 = vmatpush2.msra.mxu0 0.0
      %1954 = vmatprep.subr.mxu0 0.0
      %1955 = vmatpush2.msra.mxu0 0.0
      %1956 = vmatprep.subr.mxu0 0.0
      %1957 = vmatpush2.msra.mxu0 0.0
      %1958 = vmatprep.subr.mxu0 0.0
      %1959 = vmatpush2.msra.mxu0 0.0
      %1960 = vmatprep.subr.mxu0 0.0
      %1961 = vmatpush2.msra.mxu0 0.0
      %1962 = vmatprep.mubr.f32.mxu0 0.0
      %1963 = vmatmul.mubr.f32.gmra.mxu0 %v1848
      %v1964 = vpop.f32.mrf.mxu0
      %v1965 = vadd.f32 0.0, %v1964
      %v1966 = vpop.f32.mrf.mxu0
      %1967 = vmatprep.mubr.f32.mxu0 0.0
      %1968 = vmatmul.mubr.f32.gmra.mxu0 %v1851
      %v1969 = vpop.f32.mrf.mxu0
      %v1970 = vadd.f32 0.0, %v1969
      %v1971 = vpop.f32.mrf.mxu0
      %1972 = vmatprep.mubr.f32.mxu0 0.0
      %1973 = vmatmul.mubr.f32.gmra.mxu0 %v1854
      %v1974 = vpop.f32.mrf.mxu0
      %v1975 = vadd.f32 0.0, %v1974
      %v1976 = vpop.f32.mrf.mxu0
      %1977 = vmatprep.mubr.f32.mxu0 0.0
      %1978 = vmatmul.mubr.f32.gmra.mxu0 %v1857
      %v1979 = vpop.f32.mrf.mxu0
      %v1980 = vadd.f32 0.0, %v1979
      %v1981 = vpop.f32.mrf.mxu0
      %1982 = vmatprep.mubr.f32.mxu0 0.0
      %1983 = vmatmul.mubr.f32.gmra.mxu0 %v1860
      %v1984 = vpop.f32.mrf.mxu0
      %v1985 = vadd.f32 0.0, %v1984
      %v1986 = vpop.f32.mrf.mxu0
      %1987 = vmatprep.mubr.f32.mxu0 0.0
      %1988 = vmatmul.mubr.f32.gmra.mxu0 %v1863
      %v1989 = vpop.f32.mrf.mxu0
      %v1990 = vadd.f32 0.0, %v1989
      %v1991 = vpop.f32.mrf.mxu0
      %1992 = vmatprep.mubr.f32.mxu0 0.0
      %1993 = vmatmul.mubr.f32.gmra.mxu0 %v1866
      %v1994 = vpop.f32.mrf.mxu0
      %v1995 = vadd.f32 0.0, %v1994
      %v1996 = vpop.f32.mrf.mxu0
      %1997 = vmatprep.mubr.f32.mxu0 0.0
      %1998 = vmatmul.mubr.f32.gmra.mxu0 %v1869
      %v1999 = vpop.f32.mrf.mxu0
      %v2000 = vadd.f32 0.0, %v1999
      %v2001 = vpop.f32.mrf.mxu0
      %2002 = vmatprep.mubr.f32.mxu0 0.0
      %2003 = vmatmul.mubr.f32.gmra.mxu0 %v1872
      %v2004 = vpop.f32.mrf.mxu0
      %v2005 = vadd.f32 0.0, %v2004
      %v2006 = vpop.f32.mrf.mxu0
      %2007 = vmatprep.mubr.f32.mxu0 0.0
      %2008 = vmatmul.mubr.f32.gmra.mxu0 %v1875
      %v2009 = vpop.f32.mrf.mxu0
      %v2010 = vadd.f32 0.0, %v2009
      %v2011 = vpop.f32.mrf.mxu0
      %2012 = vmatprep.mubr.f32.mxu0 0.0
      %2013 = vmatmul.mubr.f32.gmra.mxu0 %v1878
      %v2014 = vpop.f32.mrf.mxu0
      %v2015 = vadd.f32 0.0, %v2014
      %v2016 = vpop.f32.mrf.mxu0
      %2017 = vmatprep.mubr.f32.mxu0 0.0
      %2018 = vmatmul.mubr.f32.gmra.mxu0 %v1881
      %v2019 = vpop.f32.mrf.mxu0
      %v2020 = vadd.f32 0.0, %v2019
      %v2021 = vpop.f32.mrf.mxu0
      %2022 = vmatprep.mubr.f32.mxu0 0.0
      %2023 = vmatmul.mubr.f32.gmra.mxu0 %v1884
      %v2024 = vpop.f32.mrf.mxu0
      %v2025 = vadd.f32 0.0, %v2024
      %v2026 = vpop.f32.mrf.mxu0
      %2027 = vmatprep.mubr.f32.mxu0 0.0
      %2028 = vmatmul.mubr.f32.gmra.mxu0 %v1887
      %v2029 = vpop.f32.mrf.mxu0
      %v2030 = vadd.f32 0.0, %v2029
      %v2031 = vpop.f32.mrf.mxu0
      %2032 = vmatprep.mubr.f32.mxu0 0.0
      %2033 = vmatmul.mubr.f32.gmra.mxu0 %v1890
      %v2034 = vpop.f32.mrf.mxu0
      %v2035 = vadd.f32 0.0, %v2034
      %v2036 = vpop.f32.mrf.mxu0
      %2037 = vmatprep.mubr.f32.mxu0 0.0
      %2038 = vmatmul.mubr.f32.gmra.mxu0 %v1893
      %v2039 = vpop.f32.mrf.mxu0
      %v2040 = vadd.f32 0.0, %v2039
      %v2041 = vpop.f32.mrf.mxu0
      %2042 = vdwg.mxu0
      %v2043 = vadd.f32 %v1647, %v1965
      %v2044 = vadd.f32 %v1648, %v1970
      %v2045 = vadd.f32 %v1649, %v1975
      %v2046 = vadd.f32 %v1650, %v1980
      %v2047 = vadd.f32 %v1651, %v1985
      %v2048 = vadd.f32 %v1652, %v1990
      %v2049 = vadd.f32 %v1653, %v1995
      %v2050 = vadd.f32 %v1654, %v2000
      %v2051 = vadd.f32 %v1655, %v2005
      %v2052 = vadd.f32 %v1656, %v2010
      %v2053 = vadd.f32 %v1657, %v2015
      %v2054 = vadd.f32 %v1658, %v2020
      %v2055 = vadd.f32 %v1659, %v2025
      %v2056 = vadd.f32 %v1660, %v2030
      %v2057 = vadd.f32 %v1661, %v2035
      %v2058 = vadd.f32 %v1662, %v2040
      %s2059 = scalar_lea.vmem %s3, 16
      %v2060 = vld [vmem:[%s2059] sm:$0xf]
      %v2062 = vsel %vm391, %v2060, 0
      %2064 = vmatprep.subr.mxu0 0.0
      %2065 = vmatpush1.msra.mxu0 0.0
      %2066 = vmatprep.subr.mxu0 0.0
      %2067 = vmatpush1.msra.mxu0 0.0
      %2068 = vmatprep.subr.mxu0 0.0
      %2069 = vmatpush1.msra.mxu0 0.0
      %2070 = vmatprep.subr.mxu0 0.0
      %2071 = vmatpush1.msra.mxu0 0.0
      %2072 = vmatprep.subr.mxu0 0.0
      %2073 = vmatpush1.msra.mxu0 0.0
      %2074 = vmatprep.subr.mxu0 0.0
      %2075 = vmatpush1.msra.mxu0 0.0
      %2076 = vmatprep.subr.mxu0 0.0
      %2077 = vmatpush1.msra.mxu0 0.0
      %2078 = vmatprep.subr.mxu0 0.0
      %2079 = vmatpush1.msra.mxu0 0.0
      %2080 = vmatprep.subr.mxu0 0.0
      %2081 = vmatpush1.msra.mxu0 0.0
      %2082 = vmatprep.subr.mxu0 0.0
      %2083 = vmatpush1.msra.mxu0 0.0
      %2084 = vmatprep.subr.mxu0 0.0
      %2085 = vmatpush1.msra.mxu0 0.0
      %2086 = vmatprep.subr.mxu0 0.0
      %2087 = vmatpush1.msra.mxu0 0.0
      %2088 = vmatprep.subr.mxu0 0.0
      %2089 = vmatpush1.msra.mxu0 0.0
      %2090 = vmatprep.subr.mxu0 0.0
      %2091 = vmatpush1.msra.mxu0 0.0
      %2092 = vmatprep.subr.mxu0 0.0
      %2093 = vmatpush1.msra.mxu0 0.0
      %2094 = vmatprep.subr.mxu0 0.0
      %2095 = vmatpush1.msra.mxu0 %v2062
      %2096 = vmatprep.subr.mxu0 0.0
      %2097 = vmatpush2.msra.mxu0 0.0
      %2098 = vmatprep.subr.mxu0 0.0
      %2099 = vmatpush2.msra.mxu0 0.0
      %2100 = vmatprep.subr.mxu0 0.0
      %2101 = vmatpush2.msra.mxu0 0.0
      %2102 = vmatprep.subr.mxu0 0.0
      %2103 = vmatpush2.msra.mxu0 0.0
      %2104 = vmatprep.subr.mxu0 0.0
      %2105 = vmatpush2.msra.mxu0 0.0
      %2106 = vmatprep.subr.mxu0 0.0
      %2107 = vmatpush2.msra.mxu0 0.0
      %2108 = vmatprep.subr.mxu0 0.0
      %2109 = vmatpush2.msra.mxu0 0.0
      %2110 = vmatprep.subr.mxu0 0.0
      %2111 = vmatpush2.msra.mxu0 0.0
      %2112 = vmatprep.subr.mxu0 0.0
      %2113 = vmatpush2.msra.mxu0 0.0
      %2114 = vmatprep.subr.mxu0 0.0
      %2115 = vmatpush2.msra.mxu0 0.0
      %2116 = vmatprep.subr.mxu0 0.0
      %2117 = vmatpush2.msra.mxu0 0.0
      %2118 = vmatprep.subr.mxu0 0.0
      %2119 = vmatpush2.msra.mxu0 0.0
      %2120 = vmatprep.subr.mxu0 0.0
      %2121 = vmatpush2.msra.mxu0 0.0
      %2122 = vmatprep.subr.mxu0 0.0
      %2123 = vmatpush2.msra.mxu0 0.0
      %2124 = vmatprep.subr.mxu0 0.0
      %2125 = vmatpush2.msra.mxu0 0.0
      %2126 = vmatprep.subr.mxu0 0.0
      %2127 = vmatpush2.msra.mxu0 0.0
      %2128 = vmatprep.mubr.f32.mxu0 0.0
      %2129 = vmatmul.mubr.f32.gmra.mxu0 %v1848
      %v2130 = vpop.f32.mrf.mxu0
      %v2131 = vadd.f32 0.0, %v2130
      %v2132 = vpop.f32.mrf.mxu0
      %2133 = vmatprep.mubr.f32.mxu0 0.0
      %2134 = vmatmul.mubr.f32.gmra.mxu0 %v1851
      %v2135 = vpop.f32.mrf.mxu0
      %v2136 = vadd.f32 0.0, %v2135
      %v2137 = vpop.f32.mrf.mxu0
      %2138 = vmatprep.mubr.f32.mxu0 0.0
      %2139 = vmatmul.mubr.f32.gmra.mxu0 %v1854
      %v2140 = vpop.f32.mrf.mxu0
      %v2141 = vadd.f32 0.0, %v2140
      %v2142 = vpop.f32.mrf.mxu0
      %2143 = vmatprep.mubr.f32.mxu0 0.0
      %2144 = vmatmul.mubr.f32.gmra.mxu0 %v1857
      %v2145 = vpop.f32.mrf.mxu0
      %v2146 = vadd.f32 0.0, %v2145
      %v2147 = vpop.f32.mrf.mxu0
      %2148 = vmatprep.mubr.f32.mxu0 0.0
      %2149 = vmatmul.mubr.f32.gmra.mxu0 %v1860
      %v2150 = vpop.f32.mrf.mxu0
      %v2151 = vadd.f32 0.0, %v2150
      %v2152 = vpop.f32.mrf.mxu0
      %2153 = vmatprep.mubr.f32.mxu0 0.0
      %2154 = vmatmul.mubr.f32.gmra.mxu0 %v1863
      %v2155 = vpop.f32.mrf.mxu0
      %v2156 = vadd.f32 0.0, %v2155
      %v2157 = vpop.f32.mrf.mxu0
      %2158 = vmatprep.mubr.f32.mxu0 0.0
      %2159 = vmatmul.mubr.f32.gmra.mxu0 %v1866
      %v2160 = vpop.f32.mrf.mxu0
      %v2161 = vadd.f32 0.0, %v2160
      %v2162 = vpop.f32.mrf.mxu0
      %2163 = vmatprep.mubr.f32.mxu0 0.0
      %2164 = vmatmul.mubr.f32.gmra.mxu0 %v1869
      %v2165 = vpop.f32.mrf.mxu0
      %v2166 = vadd.f32 0.0, %v2165
      %v2167 = vpop.f32.mrf.mxu0
      %2168 = vmatprep.mubr.f32.mxu0 0.0
      %2169 = vmatmul.mubr.f32.gmra.mxu0 %v1872
      %v2170 = vpop.f32.mrf.mxu0
      %v2171 = vadd.f32 0.0, %v2170
      %v2172 = vpop.f32.mrf.mxu0
      %2173 = vmatprep.mubr.f32.mxu0 0.0
      %2174 = vmatmul.mubr.f32.gmra.mxu0 %v1875
      %v2175 = vpop.f32.mrf.mxu0
      %v2176 = vadd.f32 0.0, %v2175
      %v2177 = vpop.f32.mrf.mxu0
      %2178 = vmatprep.mubr.f32.mxu0 0.0
      %2179 = vmatmul.mubr.f32.gmra.mxu0 %v1878
      %v2180 = vpop.f32.mrf.mxu0
      %v2181 = vadd.f32 0.0, %v2180
      %v2182 = vpop.f32.mrf.mxu0
      %2183 = vmatprep.mubr.f32.mxu0 0.0
      %2184 = vmatmul.mubr.f32.gmra.mxu0 %v1881
      %v2185 = vpop.f32.mrf.mxu0
      %v2186 = vadd.f32 0.0, %v2185
      %v2187 = vpop.f32.mrf.mxu0
      %2188 = vmatprep.mubr.f32.mxu0 0.0
      %2189 = vmatmul.mubr.f32.gmra.mxu0 %v1884
      %v2190 = vpop.f32.mrf.mxu0
      %v2191 = vadd.f32 0.0, %v2190
      %v2192 = vpop.f32.mrf.mxu0
      %2193 = vmatprep.mubr.f32.mxu0 0.0
      %2194 = vmatmul.mubr.f32.gmra.mxu0 %v1887
      %v2195 = vpop.f32.mrf.mxu0
      %v2196 = vadd.f32 0.0, %v2195
      %v2197 = vpop.f32.mrf.mxu0
      %2198 = vmatprep.mubr.f32.mxu0 0.0
      %2199 = vmatmul.mubr.f32.gmra.mxu0 %v1890
      %v2200 = vpop.f32.mrf.mxu0
      %v2201 = vadd.f32 0.0, %v2200
      %v2202 = vpop.f32.mrf.mxu0
      %2203 = vmatprep.mubr.f32.mxu0 0.0
      %2204 = vmatmul.mubr.f32.gmra.mxu0 %v1893
      %v2205 = vpop.f32.mrf.mxu0
      %v2206 = vadd.f32 0.0, %v2205
      %v2207 = vpop.f32.mrf.mxu0
      %2208 = vdwg.mxu0
      %v2209 = vadd.f32 %v1813, %v2131
      %v2210 = vadd.f32 %v1814, %v2136
      %v2211 = vadd.f32 %v1815, %v2141
      %v2212 = vadd.f32 %v1816, %v2146
      %v2213 = vadd.f32 %v1817, %v2151
      %v2214 = vadd.f32 %v1818, %v2156
      %v2215 = vadd.f32 %v1819, %v2161
      %v2216 = vadd.f32 %v1820, %v2166
      %v2217 = vadd.f32 %v1821, %v2171
      %v2218 = vadd.f32 %v1822, %v2176
      %v2219 = vadd.f32 %v1823, %v2181
      %v2220 = vadd.f32 %v1824, %v2186
      %v2221 = vadd.f32 %v1825, %v2191
      %v2222 = vadd.f32 %v1826, %v2196
      %v2223 = vadd.f32 %v1827, %v2201
      %v2224 = vadd.f32 %v1828, %v2206
      %v2225 = vld [vmem:[%s1432 + $0x2] sm:$0xff]
      %v2226 = vld [vmem:[%s1432 + $0xa] sm:$0xff]
      %v2227 = vld [vmem:[%s1432 + $0x1a] sm:$0xff]
      %v2228 = vld [vmem:[%s1432 + $0x22] sm:$0xff]
      %v2229 = vld [vmem:[%s1432 + $0x32] sm:$0xff]
      %v2230 = vld [vmem:[%s1432 + $0x3a] sm:$0xff]
      %v2231 = vld [vmem:[%s1432 + $0x4a] sm:$0xff]
      %v2232 = vld [vmem:[%s1432 + $0x52] sm:$0xff]
      %v2233 = vld [vmem:[%s1432 + $0x62] sm:$0xff]
      %v2234 = vld [vmem:[%s1432 + $0x6a] sm:$0xff]
      %v2235 = vld [vmem:[%s1432 + $0x7a] sm:$0xff]
      %v2236 = vld [vmem:[%s1432 + $0x82] sm:$0xff]
      %v2237 = vld [vmem:[%s1432 + $0x92] sm:$0xff]
      %v2238 = vld [vmem:[%s1432 + $0x9a] sm:$0xff]
      %v2239 = vld [vmem:[%s1432 + $0xaa] sm:$0xff]
      %v2240 = vld [vmem:[%s1432 + $0xb2] sm:$0xff]
      %s2241 = scalar_lea.vmem %s1, 20
      %v2242 = vld [vmem:[%s2241] sm:$0xf]
      %v2244 = vsel %vm342, %v2225, 0
      %v2247 = vsel %vm342, %v2226, 0
      %v2250 = vsel %vm342, %v2227, 0
      %v2253 = vsel %vm342, %v2228, 0
      %v2256 = vsel %vm342, %v2229, 0
      %v2259 = vsel %vm342, %v2230, 0
      %v2262 = vsel %vm342, %v2231, 0
      %v2265 = vsel %vm342, %v2232, 0
      %v2268 = vsel %vm342, %v2233, 0
      %v2271 = vsel %vm342, %v2234, 0
      %v2274 = vsel %vm342, %v2235, 0
      %v2277 = vsel %vm342, %v2236, 0
      %v2280 = vsel %vm342, %v2237, 0
      %v2283 = vsel %vm342, %v2238, 0
      %v2286 = vsel %vm342, %v2239, 0
      %v2289 = vsel %vm342, %v2240, 0
      %v2292 = vsel %vm391, %v2242, 0
      %2294 = vmatprep.subr.mxu0 0.0
      %2295 = vmatpush1.msra.mxu0 0.0
      %2296 = vmatprep.subr.mxu0 0.0
      %2297 = vmatpush1.msra.mxu0 0.0
      %2298 = vmatprep.subr.mxu0 0.0
      %2299 = vmatpush1.msra.mxu0 0.0
      %2300 = vmatprep.subr.mxu0 0.0
      %2301 = vmatpush1.msra.mxu0 0.0
      %2302 = vmatprep.subr.mxu0 0.0
      %2303 = vmatpush1.msra.mxu0 0.0
      %2304 = vmatprep.subr.mxu0 0.0
      %2305 = vmatpush1.msra.mxu0 0.0
      %2306 = vmatprep.subr.mxu0 0.0
      %2307 = vmatpush1.msra.mxu0 0.0
      %2308 = vmatprep.subr.mxu0 0.0
      %2309 = vmatpush1.msra.mxu0 0.0
      %2310 = vmatprep.subr.mxu0 0.0
      %2311 = vmatpush1.msra.mxu0 0.0
      %2312 = vmatprep.subr.mxu0 0.0
      %2313 = vmatpush1.msra.mxu0 0.0
      %2314 = vmatprep.subr.mxu0 0.0
      %2315 = vmatpush1.msra.mxu0 0.0
      %2316 = vmatprep.subr.mxu0 0.0
      %2317 = vmatpush1.msra.mxu0 0.0
      %2318 = vmatprep.subr.mxu0 0.0
      %2319 = vmatpush1.msra.mxu0 0.0
      %2320 = vmatprep.subr.mxu0 0.0
      %2321 = vmatpush1.msra.mxu0 0.0
      %2322 = vmatprep.subr.mxu0 0.0
      %2323 = vmatpush1.msra.mxu0 0.0
      %2324 = vmatprep.subr.mxu0 0.0
      %2325 = vmatpush1.msra.mxu0 %v2292
      %2326 = vmatprep.subr.mxu0 0.0
      %2327 = vmatpush2.msra.mxu0 0.0
      %2328 = vmatprep.subr.mxu0 0.0
      %2329 = vmatpush2.msra.mxu0 0.0
      %2330 = vmatprep.subr.mxu0 0.0
      %2331 = vmatpush2.msra.mxu0 0.0
      %2332 = vmatprep.subr.mxu0 0.0
      %2333 = vmatpush2.msra.mxu0 0.0
      %2334 = vmatprep.subr.mxu0 0.0
      %2335 = vmatpush2.msra.mxu0 0.0
      %2336 = vmatprep.subr.mxu0 0.0
      %2337 = vmatpush2.msra.mxu0 0.0
      %2338 = vmatprep.subr.mxu0 0.0
      %2339 = vmatpush2.msra.mxu0 0.0
      %2340 = vmatprep.subr.mxu0 0.0
      %2341 = vmatpush2.msra.mxu0 0.0
      %2342 = vmatprep.subr.mxu0 0.0
      %2343 = vmatpush2.msra.mxu0 0.0
      %2344 = vmatprep.subr.mxu0 0.0
      %2345 = vmatpush2.msra.mxu0 0.0
      %2346 = vmatprep.subr.mxu0 0.0
      %2347 = vmatpush2.msra.mxu0 0.0
      %2348 = vmatprep.subr.mxu0 0.0
      %2349 = vmatpush2.msra.mxu0 0.0
      %2350 = vmatprep.subr.mxu0 0.0
      %2351 = vmatpush2.msra.mxu0 0.0
      %2352 = vmatprep.subr.mxu0 0.0
      %2353 = vmatpush2.msra.mxu0 0.0
      %2354 = vmatprep.subr.mxu0 0.0
      %2355 = vmatpush2.msra.mxu0 0.0
      %2356 = vmatprep.subr.mxu0 0.0
      %2357 = vmatpush2.msra.mxu0 0.0
      %2358 = vmatprep.mubr.f32.mxu0 0.0
      %2359 = vmatmul.mubr.f32.gmra.mxu0 %v2244
      %v2360 = vpop.f32.mrf.mxu0
      %v2361 = vadd.f32 0.0, %v2360
      %v2362 = vpop.f32.mrf.mxu0
      %2363 = vmatprep.mubr.f32.mxu0 0.0
      %2364 = vmatmul.mubr.f32.gmra.mxu0 %v2247
      %v2365 = vpop.f32.mrf.mxu0
      %v2366 = vadd.f32 0.0, %v2365
      %v2367 = vpop.f32.mrf.mxu0
      %2368 = vmatprep.mubr.f32.mxu0 0.0
      %2369 = vmatmul.mubr.f32.gmra.mxu0 %v2250
      %v2370 = vpop.f32.mrf.mxu0
      %v2371 = vadd.f32 0.0, %v2370
      %v2372 = vpop.f32.mrf.mxu0
      %2373 = vmatprep.mubr.f32.mxu0 0.0
      %2374 = vmatmul.mubr.f32.gmra.mxu0 %v2253
      %v2375 = vpop.f32.mrf.mxu0
      %v2376 = vadd.f32 0.0, %v2375
      %v2377 = vpop.f32.mrf.mxu0
      %2378 = vmatprep.mubr.f32.mxu0 0.0
      %2379 = vmatmul.mubr.f32.gmra.mxu0 %v2256
      %v2380 = vpop.f32.mrf.mxu0
      %v2381 = vadd.f32 0.0, %v2380
      %v2382 = vpop.f32.mrf.mxu0
      %2383 = vmatprep.mubr.f32.mxu0 0.0
      %2384 = vmatmul.mubr.f32.gmra.mxu0 %v2259
      %v2385 = vpop.f32.mrf.mxu0
      %v2386 = vadd.f32 0.0, %v2385
      %v2387 = vpop.f32.mrf.mxu0
      %2388 = vmatprep.mubr.f32.mxu0 0.0
      %2389 = vmatmul.mubr.f32.gmra.mxu0 %v2262
      %v2390 = vpop.f32.mrf.mxu0
      %v2391 = vadd.f32 0.0, %v2390
      %v2392 = vpop.f32.mrf.mxu0
      %2393 = vmatprep.mubr.f32.mxu0 0.0
      %2394 = vmatmul.mubr.f32.gmra.mxu0 %v2265
      %v2395 = vpop.f32.mrf.mxu0
      %v2396 = vadd.f32 0.0, %v2395
      %v2397 = vpop.f32.mrf.mxu0
      %2398 = vmatprep.mubr.f32.mxu0 0.0
      %2399 = vmatmul.mubr.f32.gmra.mxu0 %v2268
      %v2400 = vpop.f32.mrf.mxu0
      %v2401 = vadd.f32 0.0, %v2400
      %v2402 = vpop.f32.mrf.mxu0
      %2403 = vmatprep.mubr.f32.mxu0 0.0
      %2404 = vmatmul.mubr.f32.gmra.mxu0 %v2271
      %v2405 = vpop.f32.mrf.mxu0
      %v2406 = vadd.f32 0.0, %v2405
      %v2407 = vpop.f32.mrf.mxu0
      %2408 = vmatprep.mubr.f32.mxu0 0.0
      %2409 = vmatmul.mubr.f32.gmra.mxu0 %v2274
      %v2410 = vpop.f32.mrf.mxu0
      %v2411 = vadd.f32 0.0, %v2410
      %v2412 = vpop.f32.mrf.mxu0
      %2413 = vmatprep.mubr.f32.mxu0 0.0
      %2414 = vmatmul.mubr.f32.gmra.mxu0 %v2277
      %v2415 = vpop.f32.mrf.mxu0
      %v2416 = vadd.f32 0.0, %v2415
      %v2417 = vpop.f32.mrf.mxu0
      %2418 = vmatprep.mubr.f32.mxu0 0.0
      %2419 = vmatmul.mubr.f32.gmra.mxu0 %v2280
      %v2420 = vpop.f32.mrf.mxu0
      %v2421 = vadd.f32 0.0, %v2420
      %v2422 = vpop.f32.mrf.mxu0
      %2423 = vmatprep.mubr.f32.mxu0 0.0
      %2424 = vmatmul.mubr.f32.gmra.mxu0 %v2283
      %v2425 = vpop.f32.mrf.mxu0
      %v2426 = vadd.f32 0.0, %v2425
      %v2427 = vpop.f32.mrf.mxu0
      %2428 = vmatprep.mubr.f32.mxu0 0.0
      %2429 = vmatmul.mubr.f32.gmra.mxu0 %v2286
      %v2430 = vpop.f32.mrf.mxu0
      %v2431 = vadd.f32 0.0, %v2430
      %v2432 = vpop.f32.mrf.mxu0
      %2433 = vmatprep.mubr.f32.mxu0 0.0
      %2434 = vmatmul.mubr.f32.gmra.mxu0 %v2289
      %v2435 = vpop.f32.mrf.mxu0
      %v2436 = vadd.f32 0.0, %v2435
      %v2437 = vpop.f32.mrf.mxu0
      %2438 = vdwg.mxu0
      %v2439 = vadd.f32 %v2043, %v2361
      %v2440 = vadd.f32 %v2044, %v2366
      %v2441 = vadd.f32 %v2045, %v2371
      %v2442 = vadd.f32 %v2046, %v2376
      %v2443 = vadd.f32 %v2047, %v2381
      %v2444 = vadd.f32 %v2048, %v2386
      %v2445 = vadd.f32 %v2049, %v2391
      %v2446 = vadd.f32 %v2050, %v2396
      %v2447 = vadd.f32 %v2051, %v2401
      %v2448 = vadd.f32 %v2052, %v2406
      %v2449 = vadd.f32 %v2053, %v2411
      %v2450 = vadd.f32 %v2054, %v2416
      %v2451 = vadd.f32 %v2055, %v2421
      %v2452 = vadd.f32 %v2056, %v2426
      %v2453 = vadd.f32 %v2057, %v2431
      %v2454 = vadd.f32 %v2058, %v2436
      %s2455 = scalar_lea.vmem %s3, 20
      %v2456 = vld [vmem:[%s2455] sm:$0xf]
      %v2458 = vsel %vm391, %v2456, 0
      %2460 = vmatprep.subr.mxu0 0.0
      %2461 = vmatpush1.msra.mxu0 0.0
      %2462 = vmatprep.subr.mxu0 0.0
      %2463 = vmatpush1.msra.mxu0 0.0
      %2464 = vmatprep.subr.mxu0 0.0
      %2465 = vmatpush1.msra.mxu0 0.0
      %2466 = vmatprep.subr.mxu0 0.0
      %2467 = vmatpush1.msra.mxu0 0.0
      %2468 = vmatprep.subr.mxu0 0.0
      %2469 = vmatpush1.msra.mxu0 0.0
      %2470 = vmatprep.subr.mxu0 0.0
      %2471 = vmatpush1.msra.mxu0 0.0
      %2472 = vmatprep.subr.mxu0 0.0
      %2473 = vmatpush1.msra.mxu0 0.0
      %2474 = vmatprep.subr.mxu0 0.0
      %2475 = vmatpush1.msra.mxu0 0.0
      %2476 = vmatprep.subr.mxu0 0.0
      %2477 = vmatpush1.msra.mxu0 0.0
      %2478 = vmatprep.subr.mxu0 0.0
      %2479 = vmatpush1.msra.mxu0 0.0
      %2480 = vmatprep.subr.mxu0 0.0
      %2481 = vmatpush1.msra.mxu0 0.0
      %2482 = vmatprep.subr.mxu0 0.0
      %2483 = vmatpush1.msra.mxu0 0.0
      %2484 = vmatprep.subr.mxu0 0.0
      %2485 = vmatpush1.msra.mxu0 0.0
      %2486 = vmatprep.subr.mxu0 0.0
      %2487 = vmatpush1.msra.mxu0 0.0
      %2488 = vmatprep.subr.mxu0 0.0
      %2489 = vmatpush1.msra.mxu0 0.0
      %2490 = vmatprep.subr.mxu0 0.0
      %2491 = vmatpush1.msra.mxu0 %v2458
      %2492 = vmatprep.subr.mxu0 0.0
      %2493 = vmatpush2.msra.mxu0 0.0
      %2494 = vmatprep.subr.mxu0 0.0
      %2495 = vmatpush2.msra.mxu0 0.0
      %2496 = vmatprep.subr.mxu0 0.0
      %2497 = vmatpush2.msra.mxu0 0.0
      %2498 = vmatprep.subr.mxu0 0.0
      %2499 = vmatpush2.msra.mxu0 0.0
      %2500 = vmatprep.subr.mxu0 0.0
      %2501 = vmatpush2.msra.mxu0 0.0
      %2502 = vmatprep.subr.mxu0 0.0
      %2503 = vmatpush2.msra.mxu0 0.0
      %2504 = vmatprep.subr.mxu0 0.0
      %2505 = vmatpush2.msra.mxu0 0.0
      %2506 = vmatprep.subr.mxu0 0.0
      %2507 = vmatpush2.msra.mxu0 0.0
      %2508 = vmatprep.subr.mxu0 0.0
      %2509 = vmatpush2.msra.mxu0 0.0
      %2510 = vmatprep.subr.mxu0 0.0
      %2511 = vmatpush2.msra.mxu0 0.0
      %2512 = vmatprep.subr.mxu0 0.0
      %2513 = vmatpush2.msra.mxu0 0.0
      %2514 = vmatprep.subr.mxu0 0.0
      %2515 = vmatpush2.msra.mxu0 0.0
      %2516 = vmatprep.subr.mxu0 0.0
      %2517 = vmatpush2.msra.mxu0 0.0
      %2518 = vmatprep.subr.mxu0 0.0
      %2519 = vmatpush2.msra.mxu0 0.0
      %2520 = vmatprep.subr.mxu0 0.0
      %2521 = vmatpush2.msra.mxu0 0.0
      %2522 = vmatprep.subr.mxu0 0.0
      %2523 = vmatpush2.msra.mxu0 0.0
      %2524 = vmatprep.mubr.f32.mxu0 0.0
      %2525 = vmatmul.mubr.f32.gmra.mxu0 %v2244
      %v2526 = vpop.f32.mrf.mxu0
      %v2527 = vadd.f32 0.0, %v2526
      %v2528 = vpop.f32.mrf.mxu0
      %2529 = vmatprep.mubr.f32.mxu0 0.0
      %2530 = vmatmul.mubr.f32.gmra.mxu0 %v2247
      %v2531 = vpop.f32.mrf.mxu0
      %v2532 = vadd.f32 0.0, %v2531
      %v2533 = vpop.f32.mrf.mxu0
      %2534 = vmatprep.mubr.f32.mxu0 0.0
      %2535 = vmatmul.mubr.f32.gmra.mxu0 %v2250
      %v2536 = vpop.f32.mrf.mxu0
      %v2537 = vadd.f32 0.0, %v2536
      %v2538 = vpop.f32.mrf.mxu0
      %2539 = vmatprep.mubr.f32.mxu0 0.0
      %2540 = vmatmul.mubr.f32.gmra.mxu0 %v2253
      %v2541 = vpop.f32.mrf.mxu0
      %v2542 = vadd.f32 0.0, %v2541
      %v2543 = vpop.f32.mrf.mxu0
      %2544 = vmatprep.mubr.f32.mxu0 0.0
      %2545 = vmatmul.mubr.f32.gmra.mxu0 %v2256
      %v2546 = vpop.f32.mrf.mxu0
      %v2547 = vadd.f32 0.0, %v2546
      %v2548 = vpop.f32.mrf.mxu0
      %2549 = vmatprep.mubr.f32.mxu0 0.0
      %2550 = vmatmul.mubr.f32.gmra.mxu0 %v2259
      %v2551 = vpop.f32.mrf.mxu0
      %v2552 = vadd.f32 0.0, %v2551
      %v2553 = vpop.f32.mrf.mxu0
      %2554 = vmatprep.mubr.f32.mxu0 0.0
      %2555 = vmatmul.mubr.f32.gmra.mxu0 %v2262
      %v2556 = vpop.f32.mrf.mxu0
      %v2557 = vadd.f32 0.0, %v2556
      %v2558 = vpop.f32.mrf.mxu0
      %2559 = vmatprep.mubr.f32.mxu0 0.0
      %2560 = vmatmul.mubr.f32.gmra.mxu0 %v2265
      %v2561 = vpop.f32.mrf.mxu0
      %v2562 = vadd.f32 0.0, %v2561
      %v2563 = vpop.f32.mrf.mxu0
      %2564 = vmatprep.mubr.f32.mxu0 0.0
      %2565 = vmatmul.mubr.f32.gmra.mxu0 %v2268
      %v2566 = vpop.f32.mrf.mxu0
      %v2567 = vadd.f32 0.0, %v2566
      %v2568 = vpop.f32.mrf.mxu0
      %2569 = vmatprep.mubr.f32.mxu0 0.0
      %2570 = vmatmul.mubr.f32.gmra.mxu0 %v2271
      %v2571 = vpop.f32.mrf.mxu0
      %v2572 = vadd.f32 0.0, %v2571
      %v2573 = vpop.f32.mrf.mxu0
      %2574 = vmatprep.mubr.f32.mxu0 0.0
      %2575 = vmatmul.mubr.f32.gmra.mxu0 %v2274
      %v2576 = vpop.f32.mrf.mxu0
      %v2577 = vadd.f32 0.0, %v2576
      %v2578 = vpop.f32.mrf.mxu0
      %2579 = vmatprep.mubr.f32.mxu0 0.0
      %2580 = vmatmul.mubr.f32.gmra.mxu0 %v2277
      %v2581 = vpop.f32.mrf.mxu0
      %v2582 = vadd.f32 0.0, %v2581
      %v2583 = vpop.f32.mrf.mxu0
      %2584 = vmatprep.mubr.f32.mxu0 0.0
      %2585 = vmatmul.mubr.f32.gmra.mxu0 %v2280
      %v2586 = vpop.f32.mrf.mxu0
      %v2587 = vadd.f32 0.0, %v2586
      %v2588 = vpop.f32.mrf.mxu0
      %2589 = vmatprep.mubr.f32.mxu0 0.0
      %2590 = vmatmul.mubr.f32.gmra.mxu0 %v2283
      %v2591 = vpop.f32.mrf.mxu0
      %v2592 = vadd.f32 0.0, %v2591
      %v2593 = vpop.f32.mrf.mxu0
      %2594 = vmatprep.mubr.f32.mxu0 0.0
      %2595 = vmatmul.mubr.f32.gmra.mxu0 %v2286
      %v2596 = vpop.f32.mrf.mxu0
      %v2597 = vadd.f32 0.0, %v2596
      %v2598 = vpop.f32.mrf.mxu0
      %2599 = vmatprep.mubr.f32.mxu0 0.0
      %2600 = vmatmul.mubr.f32.gmra.mxu0 %v2289
      %v2601 = vpop.f32.mrf.mxu0
      %v2602 = vadd.f32 0.0, %v2601
      %v2603 = vpop.f32.mrf.mxu0
      %2604 = vdwg.mxu0
      %v2605 = vadd.f32 %v2209, %v2527
      %v2606 = vadd.f32 %v2210, %v2532
      %v2607 = vadd.f32 %v2211, %v2537
      %v2608 = vadd.f32 %v2212, %v2542
      %v2609 = vadd.f32 %v2213, %v2547
      %v2610 = vadd.f32 %v2214, %v2552
      %v2611 = vadd.f32 %v2215, %v2557
      %v2612 = vadd.f32 %v2216, %v2562
      %v2613 = vadd.f32 %v2217, %v2567
      %v2614 = vadd.f32 %v2218, %v2572
      %v2615 = vadd.f32 %v2219, %v2577
      %v2616 = vadd.f32 %v2220, %v2582
      %v2617 = vadd.f32 %v2221, %v2587
      %v2618 = vadd.f32 %v2222, %v2592
      %v2619 = vadd.f32 %v2223, %v2597
      %v2620 = vadd.f32 %v2224, %v2602
      %s2621 = sadd.s32 %s303, 2
      %s2622 = smul.u32 %s2621, 24
      %s2623 = scalar_lea.vmem %s280, %s2622
      %v2624 = vld [vmem:[%s2623] sm:$0xff]
      %v2625 = vld [vmem:[%s2623 + $0x8] sm:$0xff]
      %v2626 = vld [vmem:[%s2623 + $0x18] sm:$0xff]
      %v2627 = vld [vmem:[%s2623 + $0x20] sm:$0xff]
      %v2628 = vld [vmem:[%s2623 + $0x30] sm:$0xff]
      %v2629 = vld [vmem:[%s2623 + $0x38] sm:$0xff]
      %v2630 = vld [vmem:[%s2623 + $0x48] sm:$0xff]
      %v2631 = vld [vmem:[%s2623 + $0x50] sm:$0xff]
      %v2632 = vld [vmem:[%s2623 + $0x60] sm:$0xff]
      %v2633 = vld [vmem:[%s2623 + $0x68] sm:$0xff]
      %v2634 = vld [vmem:[%s2623 + $0x78] sm:$0xff]
      %v2635 = vld [vmem:[%s2623 + $0x80] sm:$0xff]
      %v2636 = vld [vmem:[%s2623 + $0x90] sm:$0xff]
      %v2637 = vld [vmem:[%s2623 + $0x98] sm:$0xff]
      %v2638 = vld [vmem:[%s2623 + $0xa8] sm:$0xff]
      %v2639 = vld [vmem:[%s2623 + $0xb0] sm:$0xff]
      %s2640 = scalar_lea.vmem %s1, 24
      %v2641 = vld [vmem:[%s2640] sm:$0xf]
      %v2643 = vsel %vm342, %v2624, 0
      %v2646 = vsel %vm342, %v2625, 0
      %v2649 = vsel %vm342, %v2626, 0
      %v2652 = vsel %vm342, %v2627, 0
      %v2655 = vsel %vm342, %v2628, 0
      %v2658 = vsel %vm342, %v2629, 0
      %v2661 = vsel %vm342, %v2630, 0
      %v2664 = vsel %vm342, %v2631, 0
      %v2667 = vsel %vm342, %v2632, 0
      %v2670 = vsel %vm342, %v2633, 0
      %v2673 = vsel %vm342, %v2634, 0
      %v2676 = vsel %vm342, %v2635, 0
      %v2679 = vsel %vm342, %v2636, 0
      %v2682 = vsel %vm342, %v2637, 0
      %v2685 = vsel %vm342, %v2638, 0
      %v2688 = vsel %vm342, %v2639, 0
      %v2691 = vsel %vm391, %v2641, 0
      %2693 = vmatprep.subr.mxu0 0.0
      %2694 = vmatpush1.msra.mxu0 0.0
      %2695 = vmatprep.subr.mxu0 0.0
      %2696 = vmatpush1.msra.mxu0 0.0
      %2697 = vmatprep.subr.mxu0 0.0
      %2698 = vmatpush1.msra.mxu0 0.0
      %2699 = vmatprep.subr.mxu0 0.0
      %2700 = vmatpush1.msra.mxu0 0.0
      %2701 = vmatprep.subr.mxu0 0.0
      %2702 = vmatpush1.msra.mxu0 0.0
      %2703 = vmatprep.subr.mxu0 0.0
      %2704 = vmatpush1.msra.mxu0 0.0
      %2705 = vmatprep.subr.mxu0 0.0
      %2706 = vmatpush1.msra.mxu0 0.0
      %2707 = vmatprep.subr.mxu0 0.0
      %2708 = vmatpush1.msra.mxu0 0.0
      %2709 = vmatprep.subr.mxu0 0.0
      %2710 = vmatpush1.msra.mxu0 0.0
      %2711 = vmatprep.subr.mxu0 0.0
      %2712 = vmatpush1.msra.mxu0 0.0
      %2713 = vmatprep.subr.mxu0 0.0
      %2714 = vmatpush1.msra.mxu0 0.0
      %2715 = vmatprep.subr.mxu0 0.0
      %2716 = vmatpush1.msra.mxu0 0.0
      %2717 = vmatprep.subr.mxu0 0.0
      %2718 = vmatpush1.msra.mxu0 0.0
      %2719 = vmatprep.subr.mxu0 0.0
      %2720 = vmatpush1.msra.mxu0 0.0
      %2721 = vmatprep.subr.mxu0 0.0
      %2722 = vmatpush1.msra.mxu0 0.0
      %2723 = vmatprep.subr.mxu0 0.0
      %2724 = vmatpush1.msra.mxu0 %v2691
      %2725 = vmatprep.subr.mxu0 0.0
      %2726 = vmatpush2.msra.mxu0 0.0
      %2727 = vmatprep.subr.mxu0 0.0
      %2728 = vmatpush2.msra.mxu0 0.0
      %2729 = vmatprep.subr.mxu0 0.0
      %2730 = vmatpush2.msra.mxu0 0.0
      %2731 = vmatprep.subr.mxu0 0.0
      %2732 = vmatpush2.msra.mxu0 0.0
      %2733 = vmatprep.subr.mxu0 0.0
      %2734 = vmatpush2.msra.mxu0 0.0
      %2735 = vmatprep.subr.mxu0 0.0
      %2736 = vmatpush2.msra.mxu0 0.0
      %2737 = vmatprep.subr.mxu0 0.0
      %2738 = vmatpush2.msra.mxu0 0.0
      %2739 = vmatprep.subr.mxu0 0.0
      %2740 = vmatpush2.msra.mxu0 0.0
      %2741 = vmatprep.subr.mxu0 0.0
      %2742 = vmatpush2.msra.mxu0 0.0
      %2743 = vmatprep.subr.mxu0 0.0
      %2744 = vmatpush2.msra.mxu0 0.0
      %2745 = vmatprep.subr.mxu0 0.0
      %2746 = vmatpush2.msra.mxu0 0.0
      %2747 = vmatprep.subr.mxu0 0.0
      %2748 = vmatpush2.msra.mxu0 0.0
      %2749 = vmatprep.subr.mxu0 0.0
      %2750 = vmatpush2.msra.mxu0 0.0
      %2751 = vmatprep.subr.mxu0 0.0
      %2752 = vmatpush2.msra.mxu0 0.0
      %2753 = vmatprep.subr.mxu0 0.0
      %2754 = vmatpush2.msra.mxu0 0.0
      %2755 = vmatprep.subr.mxu0 0.0
      %2756 = vmatpush2.msra.mxu0 0.0
      %2757 = vmatprep.mubr.f32.mxu0 0.0
      %2758 = vmatmul.mubr.f32.gmra.mxu0 %v2643
      %v2759 = vpop.f32.mrf.mxu0
      %v2760 = vadd.f32 0.0, %v2759
      %v2761 = vpop.f32.mrf.mxu0
      %2762 = vmatprep.mubr.f32.mxu0 0.0
      %2763 = vmatmul.mubr.f32.gmra.mxu0 %v2646
      %v2764 = vpop.f32.mrf.mxu0
      %v2765 = vadd.f32 0.0, %v2764
      %v2766 = vpop.f32.mrf.mxu0
      %2767 = vmatprep.mubr.f32.mxu0 0.0
      %2768 = vmatmul.mubr.f32.gmra.mxu0 %v2649
      %v2769 = vpop.f32.mrf.mxu0
      %v2770 = vadd.f32 0.0, %v2769
      %v2771 = vpop.f32.mrf.mxu0
      %2772 = vmatprep.mubr.f32.mxu0 0.0
      %2773 = vmatmul.mubr.f32.gmra.mxu0 %v2652
      %v2774 = vpop.f32.mrf.mxu0
      %v2775 = vadd.f32 0.0, %v2774
      %v2776 = vpop.f32.mrf.mxu0
      %2777 = vmatprep.mubr.f32.mxu0 0.0
      %2778 = vmatmul.mubr.f32.gmra.mxu0 %v2655
      %v2779 = vpop.f32.mrf.mxu0
      %v2780 = vadd.f32 0.0, %v2779
      %v2781 = vpop.f32.mrf.mxu0
      %2782 = vmatprep.mubr.f32.mxu0 0.0
      %2783 = vmatmul.mubr.f32.gmra.mxu0 %v2658
      %v2784 = vpop.f32.mrf.mxu0
      %v2785 = vadd.f32 0.0, %v2784
      %v2786 = vpop.f32.mrf.mxu0
      %2787 = vmatprep.mubr.f32.mxu0 0.0
      %2788 = vmatmul.mubr.f32.gmra.mxu0 %v2661
      %v2789 = vpop.f32.mrf.mxu0
      %v2790 = vadd.f32 0.0, %v2789
      %v2791 = vpop.f32.mrf.mxu0
      %2792 = vmatprep.mubr.f32.mxu0 0.0
      %2793 = vmatmul.mubr.f32.gmra.mxu0 %v2664
      %v2794 = vpop.f32.mrf.mxu0
      %v2795 = vadd.f32 0.0, %v2794
      %v2796 = vpop.f32.mrf.mxu0
      %2797 = vmatprep.mubr.f32.mxu0 0.0
      %2798 = vmatmul.mubr.f32.gmra.mxu0 %v2667
      %v2799 = vpop.f32.mrf.mxu0
      %v2800 = vadd.f32 0.0, %v2799
      %v2801 = vpop.f32.mrf.mxu0
      %2802 = vmatprep.mubr.f32.mxu0 0.0
      %2803 = vmatmul.mubr.f32.gmra.mxu0 %v2670
      %v2804 = vpop.f32.mrf.mxu0
      %v2805 = vadd.f32 0.0, %v2804
      %v2806 = vpop.f32.mrf.mxu0
      %2807 = vmatprep.mubr.f32.mxu0 0.0
      %2808 = vmatmul.mubr.f32.gmra.mxu0 %v2673
      %v2809 = vpop.f32.mrf.mxu0
      %v2810 = vadd.f32 0.0, %v2809
      %v2811 = vpop.f32.mrf.mxu0
      %2812 = vmatprep.mubr.f32.mxu0 0.0
      %2813 = vmatmul.mubr.f32.gmra.mxu0 %v2676
      %v2814 = vpop.f32.mrf.mxu0
      %v2815 = vadd.f32 0.0, %v2814
      %v2816 = vpop.f32.mrf.mxu0
      %2817 = vmatprep.mubr.f32.mxu0 0.0
      %2818 = vmatmul.mubr.f32.gmra.mxu0 %v2679
      %v2819 = vpop.f32.mrf.mxu0
      %v2820 = vadd.f32 0.0, %v2819
      %v2821 = vpop.f32.mrf.mxu0
      %2822 = vmatprep.mubr.f32.mxu0 0.0
      %2823 = vmatmul.mubr.f32.gmra.mxu0 %v2682
      %v2824 = vpop.f32.mrf.mxu0
      %v2825 = vadd.f32 0.0, %v2824
      %v2826 = vpop.f32.mrf.mxu0
      %2827 = vmatprep.mubr.f32.mxu0 0.0
      %2828 = vmatmul.mubr.f32.gmra.mxu0 %v2685
      %v2829 = vpop.f32.mrf.mxu0
      %v2830 = vadd.f32 0.0, %v2829
      %v2831 = vpop.f32.mrf.mxu0
      %2832 = vmatprep.mubr.f32.mxu0 0.0
      %2833 = vmatmul.mubr.f32.gmra.mxu0 %v2688
      %v2834 = vpop.f32.mrf.mxu0
      %v2835 = vadd.f32 0.0, %v2834
      %v2836 = vpop.f32.mrf.mxu0
      %2837 = vdwg.mxu0
      %v2838 = vadd.f32 %v2439, %v2760
      %v2839 = vadd.f32 %v2440, %v2765
      %v2840 = vadd.f32 %v2441, %v2770
      %v2841 = vadd.f32 %v2442, %v2775
      %v2842 = vadd.f32 %v2443, %v2780
      %v2843 = vadd.f32 %v2444, %v2785
      %v2844 = vadd.f32 %v2445, %v2790
      %v2845 = vadd.f32 %v2446, %v2795
      %v2846 = vadd.f32 %v2447, %v2800
      %v2847 = vadd.f32 %v2448, %v2805
      %v2848 = vadd.f32 %v2449, %v2810
      %v2849 = vadd.f32 %v2450, %v2815
      %v2850 = vadd.f32 %v2451, %v2820
      %v2851 = vadd.f32 %v2452, %v2825
      %v2852 = vadd.f32 %v2453, %v2830
      %v2853 = vadd.f32 %v2454, %v2835
      %s2854 = scalar_lea.vmem %s3, 24
      %v2855 = vld [vmem:[%s2854] sm:$0xf]
      %v2857 = vsel %vm391, %v2855, 0
      %2859 = vmatprep.subr.mxu0 0.0
      %2860 = vmatpush1.msra.mxu0 0.0
      %2861 = vmatprep.subr.mxu0 0.0
      %2862 = vmatpush1.msra.mxu0 0.0
      %2863 = vmatprep.subr.mxu0 0.0
      %2864 = vmatpush1.msra.mxu0 0.0
      %2865 = vmatprep.subr.mxu0 0.0
      %2866 = vmatpush1.msra.mxu0 0.0
      %2867 = vmatprep.subr.mxu0 0.0
      %2868 = vmatpush1.msra.mxu0 0.0
      %2869 = vmatprep.subr.mxu0 0.0
      %2870 = vmatpush1.msra.mxu0 0.0
      %2871 = vmatprep.subr.mxu0 0.0
      %2872 = vmatpush1.msra.mxu0 0.0
      %2873 = vmatprep.subr.mxu0 0.0
      %2874 = vmatpush1.msra.mxu0 0.0
      %2875 = vmatprep.subr.mxu0 0.0
      %2876 = vmatpush1.msra.mxu0 0.0
      %2877 = vmatprep.subr.mxu0 0.0
      %2878 = vmatpush1.msra.mxu0 0.0
      %2879 = vmatprep.subr.mxu0 0.0
      %2880 = vmatpush1.msra.mxu0 0.0
      %2881 = vmatprep.subr.mxu0 0.0
      %2882 = vmatpush1.msra.mxu0 0.0
      %2883 = vmatprep.subr.mxu0 0.0
      %2884 = vmatpush1.msra.mxu0 0.0
      %2885 = vmatprep.subr.mxu0 0.0
      %2886 = vmatpush1.msra.mxu0 0.0
      %2887 = vmatprep.subr.mxu0 0.0
      %2888 = vmatpush1.msra.mxu0 0.0
      %2889 = vmatprep.subr.mxu0 0.0
      %2890 = vmatpush1.msra.mxu0 %v2857
      %2891 = vmatprep.subr.mxu0 0.0
      %2892 = vmatpush2.msra.mxu0 0.0
      %2893 = vmatprep.subr.mxu0 0.0
      %2894 = vmatpush2.msra.mxu0 0.0
      %2895 = vmatprep.subr.mxu0 0.0
      %2896 = vmatpush2.msra.mxu0 0.0
      %2897 = vmatprep.subr.mxu0 0.0
      %2898 = vmatpush2.msra.mxu0 0.0
      %2899 = vmatprep.subr.mxu0 0.0
      %2900 = vmatpush2.msra.mxu0 0.0
      %2901 = vmatprep.subr.mxu0 0.0
      %2902 = vmatpush2.msra.mxu0 0.0
      %2903 = vmatprep.subr.mxu0 0.0
      %2904 = vmatpush2.msra.mxu0 0.0
      %2905 = vmatprep.subr.mxu0 0.0
      %2906 = vmatpush2.msra.mxu0 0.0
      %2907 = vmatprep.subr.mxu0 0.0
      %2908 = vmatpush2.msra.mxu0 0.0
      %2909 = vmatprep.subr.mxu0 0.0
      %2910 = vmatpush2.msra.mxu0 0.0
      %2911 = vmatprep.subr.mxu0 0.0
      %2912 = vmatpush2.msra.mxu0 0.0
      %2913 = vmatprep.subr.mxu0 0.0
      %2914 = vmatpush2.msra.mxu0 0.0
      %2915 = vmatprep.subr.mxu0 0.0
      %2916 = vmatpush2.msra.mxu0 0.0
      %2917 = vmatprep.subr.mxu0 0.0
      %2918 = vmatpush2.msra.mxu0 0.0
      %2919 = vmatprep.subr.mxu0 0.0
      %2920 = vmatpush2.msra.mxu0 0.0
      %2921 = vmatprep.subr.mxu0 0.0
      %2922 = vmatpush2.msra.mxu0 0.0
      %2923 = vmatprep.mubr.f32.mxu0 0.0
      %2924 = vmatmul.mubr.f32.gmra.mxu0 %v2643
      %v2925 = vpop.f32.mrf.mxu0
      %v2926 = vadd.f32 0.0, %v2925
      %v2927 = vpop.f32.mrf.mxu0
      %2928 = vmatprep.mubr.f32.mxu0 0.0
      %2929 = vmatmul.mubr.f32.gmra.mxu0 %v2646
      %v2930 = vpop.f32.mrf.mxu0
      %v2931 = vadd.f32 0.0, %v2930
      %v2932 = vpop.f32.mrf.mxu0
      %2933 = vmatprep.mubr.f32.mxu0 0.0
      %2934 = vmatmul.mubr.f32.gmra.mxu0 %v2649
      %v2935 = vpop.f32.mrf.mxu0
      %v2936 = vadd.f32 0.0, %v2935
      %v2937 = vpop.f32.mrf.mxu0
      %2938 = vmatprep.mubr.f32.mxu0 0.0
      %2939 = vmatmul.mubr.f32.gmra.mxu0 %v2652
      %v2940 = vpop.f32.mrf.mxu0
      %v2941 = vadd.f32 0.0, %v2940
      %v2942 = vpop.f32.mrf.mxu0
      %2943 = vmatprep.mubr.f32.mxu0 0.0
      %2944 = vmatmul.mubr.f32.gmra.mxu0 %v2655
      %v2945 = vpop.f32.mrf.mxu0
      %v2946 = vadd.f32 0.0, %v2945
      %v2947 = vpop.f32.mrf.mxu0
      %2948 = vmatprep.mubr.f32.mxu0 0.0
      %2949 = vmatmul.mubr.f32.gmra.mxu0 %v2658
      %v2950 = vpop.f32.mrf.mxu0
      %v2951 = vadd.f32 0.0, %v2950
      %v2952 = vpop.f32.mrf.mxu0
      %2953 = vmatprep.mubr.f32.mxu0 0.0
      %2954 = vmatmul.mubr.f32.gmra.mxu0 %v2661
      %v2955 = vpop.f32.mrf.mxu0
      %v2956 = vadd.f32 0.0, %v2955
      %v2957 = vpop.f32.mrf.mxu0
      %2958 = vmatprep.mubr.f32.mxu0 0.0
      %2959 = vmatmul.mubr.f32.gmra.mxu0 %v2664
      %v2960 = vpop.f32.mrf.mxu0
      %v2961 = vadd.f32 0.0, %v2960
      %v2962 = vpop.f32.mrf.mxu0
      %2963 = vmatprep.mubr.f32.mxu0 0.0
      %2964 = vmatmul.mubr.f32.gmra.mxu0 %v2667
      %v2965 = vpop.f32.mrf.mxu0
      %v2966 = vadd.f32 0.0, %v2965
      %v2967 = vpop.f32.mrf.mxu0
      %2968 = vmatprep.mubr.f32.mxu0 0.0
      %2969 = vmatmul.mubr.f32.gmra.mxu0 %v2670
      %v2970 = vpop.f32.mrf.mxu0
      %v2971 = vadd.f32 0.0, %v2970
      %v2972 = vpop.f32.mrf.mxu0
      %2973 = vmatprep.mubr.f32.mxu0 0.0
      %2974 = vmatmul.mubr.f32.gmra.mxu0 %v2673
      %v2975 = vpop.f32.mrf.mxu0
      %v2976 = vadd.f32 0.0, %v2975
      %v2977 = vpop.f32.mrf.mxu0
      %2978 = vmatprep.mubr.f32.mxu0 0.0
      %2979 = vmatmul.mubr.f32.gmra.mxu0 %v2676
      %v2980 = vpop.f32.mrf.mxu0
      %v2981 = vadd.f32 0.0, %v2980
      %v2982 = vpop.f32.mrf.mxu0
      %2983 = vmatprep.mubr.f32.mxu0 0.0
      %2984 = vmatmul.mubr.f32.gmra.mxu0 %v2679
      %v2985 = vpop.f32.mrf.mxu0
      %v2986 = vadd.f32 0.0, %v2985
      %v2987 = vpop.f32.mrf.mxu0
      %2988 = vmatprep.mubr.f32.mxu0 0.0
      %2989 = vmatmul.mubr.f32.gmra.mxu0 %v2682
      %v2990 = vpop.f32.mrf.mxu0
      %v2991 = vadd.f32 0.0, %v2990
      %v2992 = vpop.f32.mrf.mxu0
      %2993 = vmatprep.mubr.f32.mxu0 0.0
      %2994 = vmatmul.mubr.f32.gmra.mxu0 %v2685
      %v2995 = vpop.f32.mrf.mxu0
      %v2996 = vadd.f32 0.0, %v2995
      %v2997 = vpop.f32.mrf.mxu0
      %2998 = vmatprep.mubr.f32.mxu0 0.0
      %2999 = vmatmul.mubr.f32.gmra.mxu0 %v2688
      %v3000 = vpop.f32.mrf.mxu0
      %v3001 = vadd.f32 0.0, %v3000
      %v3002 = vpop.f32.mrf.mxu0
      %3003 = vdwg.mxu0
      %v3004 = vadd.f32 %v2605, %v2926
      %v3005 = vadd.f32 %v2606, %v2931
      %v3006 = vadd.f32 %v2607, %v2936
      %v3007 = vadd.f32 %v2608, %v2941
      %v3008 = vadd.f32 %v2609, %v2946
      %v3009 = vadd.f32 %v2610, %v2951
      %v3010 = vadd.f32 %v2611, %v2956
      %v3011 = vadd.f32 %v2612, %v2961
      %v3012 = vadd.f32 %v2613, %v2966
      %v3013 = vadd.f32 %v2614, %v2971
      %v3014 = vadd.f32 %v2615, %v2976
      %v3015 = vadd.f32 %v2616, %v2981
      %v3016 = vadd.f32 %v2617, %v2986
      %v3017 = vadd.f32 %v2618, %v2991
      %v3018 = vadd.f32 %v2619, %v2996
      %v3019 = vadd.f32 %v2620, %v3001
      %v3020 = vld [vmem:[%s2623 + $0x1] sm:$0xff]
      %v3021 = vld [vmem:[%s2623 + $0x9] sm:$0xff]
      %v3022 = vld [vmem:[%s2623 + $0x19] sm:$0xff]
      %v3023 = vld [vmem:[%s2623 + $0x21] sm:$0xff]
      %v3024 = vld [vmem:[%s2623 + $0x31] sm:$0xff]
      %v3025 = vld [vmem:[%s2623 + $0x39] sm:$0xff]
      %v3026 = vld [vmem:[%s2623 + $0x49] sm:$0xff]
      %v3027 = vld [vmem:[%s2623 + $0x51] sm:$0xff]
      %v3028 = vld [vmem:[%s2623 + $0x61] sm:$0xff]
      %v3029 = vld [vmem:[%s2623 + $0x69] sm:$0xff]
      %v3030 = vld [vmem:[%s2623 + $0x79] sm:$0xff]
      %v3031 = vld [vmem:[%s2623 + $0x81] sm:$0xff]
      %v3032 = vld [vmem:[%s2623 + $0x91] sm:$0xff]
      %v3033 = vld [vmem:[%s2623 + $0x99] sm:$0xff]
      %v3034 = vld [vmem:[%s2623 + $0xa9] sm:$0xff]
      %v3035 = vld [vmem:[%s2623 + $0xb1] sm:$0xff]
      %s3036 = scalar_lea.vmem %s1, 28
      %v3037 = vld [vmem:[%s3036] sm:$0xf]
      %v3039 = vsel %vm342, %v3020, 0
      %v3042 = vsel %vm342, %v3021, 0
      %v3045 = vsel %vm342, %v3022, 0
      %v3048 = vsel %vm342, %v3023, 0
      %v3051 = vsel %vm342, %v3024, 0
      %v3054 = vsel %vm342, %v3025, 0
      %v3057 = vsel %vm342, %v3026, 0
      %v3060 = vsel %vm342, %v3027, 0
      %v3063 = vsel %vm342, %v3028, 0
      %v3066 = vsel %vm342, %v3029, 0
      %v3069 = vsel %vm342, %v3030, 0
      %v3072 = vsel %vm342, %v3031, 0
      %v3075 = vsel %vm342, %v3032, 0
      %v3078 = vsel %vm342, %v3033, 0
      %v3081 = vsel %vm342, %v3034, 0
      %v3084 = vsel %vm342, %v3035, 0
      %v3087 = vsel %vm391, %v3037, 0
      %3089 = vmatprep.subr.mxu0 0.0
      %3090 = vmatpush1.msra.mxu0 0.0
      %3091 = vmatprep.subr.mxu0 0.0
      %3092 = vmatpush1.msra.mxu0 0.0
      %3093 = vmatprep.subr.mxu0 0.0
      %3094 = vmatpush1.msra.mxu0 0.0
      %3095 = vmatprep.subr.mxu0 0.0
      %3096 = vmatpush1.msra.mxu0 0.0
      %3097 = vmatprep.subr.mxu0 0.0
      %3098 = vmatpush1.msra.mxu0 0.0
      %3099 = vmatprep.subr.mxu0 0.0
      %3100 = vmatpush1.msra.mxu0 0.0
      %3101 = vmatprep.subr.mxu0 0.0
      %3102 = vmatpush1.msra.mxu0 0.0
      %3103 = vmatprep.subr.mxu0 0.0
      %3104 = vmatpush1.msra.mxu0 0.0
      %3105 = vmatprep.subr.mxu0 0.0
      %3106 = vmatpush1.msra.mxu0 0.0
      %3107 = vmatprep.subr.mxu0 0.0
      %3108 = vmatpush1.msra.mxu0 0.0
      %3109 = vmatprep.subr.mxu0 0.0
      %3110 = vmatpush1.msra.mxu0 0.0
      %3111 = vmatprep.subr.mxu0 0.0
      %3112 = vmatpush1.msra.mxu0 0.0
      %3113 = vmatprep.subr.mxu0 0.0
      %3114 = vmatpush1.msra.mxu0 0.0
      %3115 = vmatprep.subr.mxu0 0.0
      %3116 = vmatpush1.msra.mxu0 0.0
      %3117 = vmatprep.subr.mxu0 0.0
      %3118 = vmatpush1.msra.mxu0 0.0
      %3119 = vmatprep.subr.mxu0 0.0
      %3120 = vmatpush1.msra.mxu0 %v3087
      %3121 = vmatprep.subr.mxu0 0.0
      %3122 = vmatpush2.msra.mxu0 0.0
      %3123 = vmatprep.subr.mxu0 0.0
      %3124 = vmatpush2.msra.mxu0 0.0
      %3125 = vmatprep.subr.mxu0 0.0
      %3126 = vmatpush2.msra.mxu0 0.0
      %3127 = vmatprep.subr.mxu0 0.0
      %3128 = vmatpush2.msra.mxu0 0.0
      %3129 = vmatprep.subr.mxu0 0.0
      %3130 = vmatpush2.msra.mxu0 0.0
      %3131 = vmatprep.subr.mxu0 0.0
      %3132 = vmatpush2.msra.mxu0 0.0
      %3133 = vmatprep.subr.mxu0 0.0
      %3134 = vmatpush2.msra.mxu0 0.0
      %3135 = vmatprep.subr.mxu0 0.0
      %3136 = vmatpush2.msra.mxu0 0.0
      %3137 = vmatprep.subr.mxu0 0.0
      %3138 = vmatpush2.msra.mxu0 0.0
      %3139 = vmatprep.subr.mxu0 0.0
      %3140 = vmatpush2.msra.mxu0 0.0
      %3141 = vmatprep.subr.mxu0 0.0
      %3142 = vmatpush2.msra.mxu0 0.0
      %3143 = vmatprep.subr.mxu0 0.0
      %3144 = vmatpush2.msra.mxu0 0.0
      %3145 = vmatprep.subr.mxu0 0.0
      %3146 = vmatpush2.msra.mxu0 0.0
      %3147 = vmatprep.subr.mxu0 0.0
      %3148 = vmatpush2.msra.mxu0 0.0
      %3149 = vmatprep.subr.mxu0 0.0
      %3150 = vmatpush2.msra.mxu0 0.0
      %3151 = vmatprep.subr.mxu0 0.0
      %3152 = vmatpush2.msra.mxu0 0.0
      %3153 = vmatprep.mubr.f32.mxu0 0.0
      %3154 = vmatmul.mubr.f32.gmra.mxu0 %v3039
      %v3155 = vpop.f32.mrf.mxu0
      %v3156 = vadd.f32 0.0, %v3155
      %v3157 = vpop.f32.mrf.mxu0
      %3158 = vmatprep.mubr.f32.mxu0 0.0
      %3159 = vmatmul.mubr.f32.gmra.mxu0 %v3042
      %v3160 = vpop.f32.mrf.mxu0
      %v3161 = vadd.f32 0.0, %v3160
      %v3162 = vpop.f32.mrf.mxu0
      %3163 = vmatprep.mubr.f32.mxu0 0.0
      %3164 = vmatmul.mubr.f32.gmra.mxu0 %v3045
      %v3165 = vpop.f32.mrf.mxu0
      %v3166 = vadd.f32 0.0, %v3165
      %v3167 = vpop.f32.mrf.mxu0
      %3168 = vmatprep.mubr.f32.mxu0 0.0
      %3169 = vmatmul.mubr.f32.gmra.mxu0 %v3048
      %v3170 = vpop.f32.mrf.mxu0
      %v3171 = vadd.f32 0.0, %v3170
      %v3172 = vpop.f32.mrf.mxu0
      %3173 = vmatprep.mubr.f32.mxu0 0.0
      %3174 = vmatmul.mubr.f32.gmra.mxu0 %v3051
      %v3175 = vpop.f32.mrf.mxu0
      %v3176 = vadd.f32 0.0, %v3175
      %v3177 = vpop.f32.mrf.mxu0
      %3178 = vmatprep.mubr.f32.mxu0 0.0
      %3179 = vmatmul.mubr.f32.gmra.mxu0 %v3054
      %v3180 = vpop.f32.mrf.mxu0
      %v3181 = vadd.f32 0.0, %v3180
      %v3182 = vpop.f32.mrf.mxu0
      %3183 = vmatprep.mubr.f32.mxu0 0.0
      %3184 = vmatmul.mubr.f32.gmra.mxu0 %v3057
      %v3185 = vpop.f32.mrf.mxu0
      %v3186 = vadd.f32 0.0, %v3185
      %v3187 = vpop.f32.mrf.mxu0
      %3188 = vmatprep.mubr.f32.mxu0 0.0
      %3189 = vmatmul.mubr.f32.gmra.mxu0 %v3060
      %v3190 = vpop.f32.mrf.mxu0
      %v3191 = vadd.f32 0.0, %v3190
      %v3192 = vpop.f32.mrf.mxu0
      %3193 = vmatprep.mubr.f32.mxu0 0.0
      %3194 = vmatmul.mubr.f32.gmra.mxu0 %v3063
      %v3195 = vpop.f32.mrf.mxu0
      %v3196 = vadd.f32 0.0, %v3195
      %v3197 = vpop.f32.mrf.mxu0
      %3198 = vmatprep.mubr.f32.mxu0 0.0
      %3199 = vmatmul.mubr.f32.gmra.mxu0 %v3066
      %v3200 = vpop.f32.mrf.mxu0
      %v3201 = vadd.f32 0.0, %v3200
      %v3202 = vpop.f32.mrf.mxu0
      %3203 = vmatprep.mubr.f32.mxu0 0.0
      %3204 = vmatmul.mubr.f32.gmra.mxu0 %v3069
      %v3205 = vpop.f32.mrf.mxu0
      %v3206 = vadd.f32 0.0, %v3205
      %v3207 = vpop.f32.mrf.mxu0
      %3208 = vmatprep.mubr.f32.mxu0 0.0
      %3209 = vmatmul.mubr.f32.gmra.mxu0 %v3072
      %v3210 = vpop.f32.mrf.mxu0
      %v3211 = vadd.f32 0.0, %v3210
      %v3212 = vpop.f32.mrf.mxu0
      %3213 = vmatprep.mubr.f32.mxu0 0.0
      %3214 = vmatmul.mubr.f32.gmra.mxu0 %v3075
      %v3215 = vpop.f32.mrf.mxu0
      %v3216 = vadd.f32 0.0, %v3215
      %v3217 = vpop.f32.mrf.mxu0
      %3218 = vmatprep.mubr.f32.mxu0 0.0
      %3219 = vmatmul.mubr.f32.gmra.mxu0 %v3078
      %v3220 = vpop.f32.mrf.mxu0
      %v3221 = vadd.f32 0.0, %v3220
      %v3222 = vpop.f32.mrf.mxu0
      %3223 = vmatprep.mubr.f32.mxu0 0.0
      %3224 = vmatmul.mubr.f32.gmra.mxu0 %v3081
      %v3225 = vpop.f32.mrf.mxu0
      %v3226 = vadd.f32 0.0, %v3225
      %v3227 = vpop.f32.mrf.mxu0
      %3228 = vmatprep.mubr.f32.mxu0 0.0
      %3229 = vmatmul.mubr.f32.gmra.mxu0 %v3084
      %v3230 = vpop.f32.mrf.mxu0
      %v3231 = vadd.f32 0.0, %v3230
      %v3232 = vpop.f32.mrf.mxu0
      %3233 = vdwg.mxu0
      %v3234 = vadd.f32 %v2838, %v3156
      %v3235 = vadd.f32 %v2839, %v3161
      %v3236 = vadd.f32 %v2840, %v3166
      %v3237 = vadd.f32 %v2841, %v3171
      %v3238 = vadd.f32 %v2842, %v3176
      %v3239 = vadd.f32 %v2843, %v3181
      %v3240 = vadd.f32 %v2844, %v3186
      %v3241 = vadd.f32 %v2845, %v3191
      %v3242 = vadd.f32 %v2846, %v3196
      %v3243 = vadd.f32 %v2847, %v3201
      %v3244 = vadd.f32 %v2848, %v3206
      %v3245 = vadd.f32 %v2849, %v3211
      %v3246 = vadd.f32 %v2850, %v3216
      %v3247 = vadd.f32 %v2851, %v3221
      %v3248 = vadd.f32 %v2852, %v3226
      %v3249 = vadd.f32 %v2853, %v3231
      %s3250 = scalar_lea.vmem %s3, 28
      %v3251 = vld [vmem:[%s3250] sm:$0xf]
      %v3253 = vsel %vm391, %v3251, 0
      %3255 = vmatprep.subr.mxu0 0.0
      %3256 = vmatpush1.msra.mxu0 0.0
      %3257 = vmatprep.subr.mxu0 0.0
      %3258 = vmatpush1.msra.mxu0 0.0
      %3259 = vmatprep.subr.mxu0 0.0
      %3260 = vmatpush1.msra.mxu0 0.0
      %3261 = vmatprep.subr.mxu0 0.0
      %3262 = vmatpush1.msra.mxu0 0.0
      %3263 = vmatprep.subr.mxu0 0.0
      %3264 = vmatpush1.msra.mxu0 0.0
      %3265 = vmatprep.subr.mxu0 0.0
      %3266 = vmatpush1.msra.mxu0 0.0
      %3267 = vmatprep.subr.mxu0 0.0
      %3268 = vmatpush1.msra.mxu0 0.0
      %3269 = vmatprep.subr.mxu0 0.0
      %3270 = vmatpush1.msra.mxu0 0.0
      %3271 = vmatprep.subr.mxu0 0.0
      %3272 = vmatpush1.msra.mxu0 0.0
      %3273 = vmatprep.subr.mxu0 0.0
      %3274 = vmatpush1.msra.mxu0 0.0
      %3275 = vmatprep.subr.mxu0 0.0
      %3276 = vmatpush1.msra.mxu0 0.0
      %3277 = vmatprep.subr.mxu0 0.0
      %3278 = vmatpush1.msra.mxu0 0.0
      %3279 = vmatprep.subr.mxu0 0.0
      %3280 = vmatpush1.msra.mxu0 0.0
      %3281 = vmatprep.subr.mxu0 0.0
      %3282 = vmatpush1.msra.mxu0 0.0
      %3283 = vmatprep.subr.mxu0 0.0
      %3284 = vmatpush1.msra.mxu0 0.0
      %3285 = vmatprep.subr.mxu0 0.0
      %3286 = vmatpush1.msra.mxu0 %v3253
      %3287 = vmatprep.subr.mxu0 0.0
      %3288 = vmatpush2.msra.mxu0 0.0
      %3289 = vmatprep.subr.mxu0 0.0
      %3290 = vmatpush2.msra.mxu0 0.0
      %3291 = vmatprep.subr.mxu0 0.0
      %3292 = vmatpush2.msra.mxu0 0.0
      %3293 = vmatprep.subr.mxu0 0.0
      %3294 = vmatpush2.msra.mxu0 0.0
      %3295 = vmatprep.subr.mxu0 0.0
      %3296 = vmatpush2.msra.mxu0 0.0
      %3297 = vmatprep.subr.mxu0 0.0
      %3298 = vmatpush2.msra.mxu0 0.0
      %3299 = vmatprep.subr.mxu0 0.0
      %3300 = vmatpush2.msra.mxu0 0.0
      %3301 = vmatprep.subr.mxu0 0.0
      %3302 = vmatpush2.msra.mxu0 0.0
      %3303 = vmatprep.subr.mxu0 0.0
      %3304 = vmatpush2.msra.mxu0 0.0
      %3305 = vmatprep.subr.mxu0 0.0
      %3306 = vmatpush2.msra.mxu0 0.0
      %3307 = vmatprep.subr.mxu0 0.0
      %3308 = vmatpush2.msra.mxu0 0.0
      %3309 = vmatprep.subr.mxu0 0.0
      %3310 = vmatpush2.msra.mxu0 0.0
      %3311 = vmatprep.subr.mxu0 0.0
      %3312 = vmatpush2.msra.mxu0 0.0
      %3313 = vmatprep.subr.mxu0 0.0
      %3314 = vmatpush2.msra.mxu0 0.0
      %3315 = vmatprep.subr.mxu0 0.0
      %3316 = vmatpush2.msra.mxu0 0.0
      %3317 = vmatprep.subr.mxu0 0.0
      %3318 = vmatpush2.msra.mxu0 0.0
      %3319 = vmatprep.mubr.f32.mxu0 0.0
      %3320 = vmatmul.mubr.f32.gmra.mxu0 %v3039
      %v3321 = vpop.f32.mrf.mxu0
      %v3322 = vadd.f32 0.0, %v3321
      %v3323 = vpop.f32.mrf.mxu0
      %3324 = vmatprep.mubr.f32.mxu0 0.0
      %3325 = vmatmul.mubr.f32.gmra.mxu0 %v3042
      %v3326 = vpop.f32.mrf.mxu0
      %v3327 = vadd.f32 0.0, %v3326
      %v3328 = vpop.f32.mrf.mxu0
      %3329 = vmatprep.mubr.f32.mxu0 0.0
      %3330 = vmatmul.mubr.f32.gmra.mxu0 %v3045
      %v3331 = vpop.f32.mrf.mxu0
      %v3332 = vadd.f32 0.0, %v3331
      %v3333 = vpop.f32.mrf.mxu0
      %3334 = vmatprep.mubr.f32.mxu0 0.0
      %3335 = vmatmul.mubr.f32.gmra.mxu0 %v3048
      %v3336 = vpop.f32.mrf.mxu0
      %v3337 = vadd.f32 0.0, %v3336
      %v3338 = vpop.f32.mrf.mxu0
      %3339 = vmatprep.mubr.f32.mxu0 0.0
      %3340 = vmatmul.mubr.f32.gmra.mxu0 %v3051
      %v3341 = vpop.f32.mrf.mxu0
      %v3342 = vadd.f32 0.0, %v3341
      %v3343 = vpop.f32.mrf.mxu0
      %3344 = vmatprep.mubr.f32.mxu0 0.0
      %3345 = vmatmul.mubr.f32.gmra.mxu0 %v3054
      %v3346 = vpop.f32.mrf.mxu0
      %v3347 = vadd.f32 0.0, %v3346
      %v3348 = vpop.f32.mrf.mxu0
      %3349 = vmatprep.mubr.f32.mxu0 0.0
      %3350 = vmatmul.mubr.f32.gmra.mxu0 %v3057
      %v3351 = vpop.f32.mrf.mxu0
      %v3352 = vadd.f32 0.0, %v3351
      %v3353 = vpop.f32.mrf.mxu0
      %3354 = vmatprep.mubr.f32.mxu0 0.0
      %3355 = vmatmul.mubr.f32.gmra.mxu0 %v3060
      %v3356 = vpop.f32.mrf.mxu0
      %v3357 = vadd.f32 0.0, %v3356
      %v3358 = vpop.f32.mrf.mxu0
      %3359 = vmatprep.mubr.f32.mxu0 0.0
      %3360 = vmatmul.mubr.f32.gmra.mxu0 %v3063
      %v3361 = vpop.f32.mrf.mxu0
      %v3362 = vadd.f32 0.0, %v3361
      %v3363 = vpop.f32.mrf.mxu0
      %3364 = vmatprep.mubr.f32.mxu0 0.0
      %3365 = vmatmul.mubr.f32.gmra.mxu0 %v3066
      %v3366 = vpop.f32.mrf.mxu0
      %v3367 = vadd.f32 0.0, %v3366
      %v3368 = vpop.f32.mrf.mxu0
      %3369 = vmatprep.mubr.f32.mxu0 0.0
      %3370 = vmatmul.mubr.f32.gmra.mxu0 %v3069
      %v3371 = vpop.f32.mrf.mxu0
      %v3372 = vadd.f32 0.0, %v3371
      %v3373 = vpop.f32.mrf.mxu0
      %3374 = vmatprep.mubr.f32.mxu0 0.0
      %3375 = vmatmul.mubr.f32.gmra.mxu0 %v3072
      %v3376 = vpop.f32.mrf.mxu0
      %v3377 = vadd.f32 0.0, %v3376
      %v3378 = vpop.f32.mrf.mxu0
      %3379 = vmatprep.mubr.f32.mxu0 0.0
      %3380 = vmatmul.mubr.f32.gmra.mxu0 %v3075
      %v3381 = vpop.f32.mrf.mxu0
      %v3382 = vadd.f32 0.0, %v3381
      %v3383 = vpop.f32.mrf.mxu0
      %3384 = vmatprep.mubr.f32.mxu0 0.0
      %3385 = vmatmul.mubr.f32.gmra.mxu0 %v3078
      %v3386 = vpop.f32.mrf.mxu0
      %v3387 = vadd.f32 0.0, %v3386
      %v3388 = vpop.f32.mrf.mxu0
      %3389 = vmatprep.mubr.f32.mxu0 0.0
      %3390 = vmatmul.mubr.f32.gmra.mxu0 %v3081
      %v3391 = vpop.f32.mrf.mxu0
      %v3392 = vadd.f32 0.0, %v3391
      %v3393 = vpop.f32.mrf.mxu0
      %3394 = vmatprep.mubr.f32.mxu0 0.0
      %3395 = vmatmul.mubr.f32.gmra.mxu0 %v3084
      %v3396 = vpop.f32.mrf.mxu0
      %v3397 = vadd.f32 0.0, %v3396
      %v3398 = vpop.f32.mrf.mxu0
      %3399 = vdwg.mxu0
      %v3400 = vadd.f32 %v3004, %v3322
      %v3401 = vadd.f32 %v3005, %v3327
      %v3402 = vadd.f32 %v3006, %v3332
      %v3403 = vadd.f32 %v3007, %v3337
      %v3404 = vadd.f32 %v3008, %v3342
      %v3405 = vadd.f32 %v3009, %v3347
      %v3406 = vadd.f32 %v3010, %v3352
      %v3407 = vadd.f32 %v3011, %v3357
      %v3408 = vadd.f32 %v3012, %v3362
      %v3409 = vadd.f32 %v3013, %v3367
      %v3410 = vadd.f32 %v3014, %v3372
      %v3411 = vadd.f32 %v3015, %v3377
      %v3412 = vadd.f32 %v3016, %v3382
      %v3413 = vadd.f32 %v3017, %v3387
      %v3414 = vadd.f32 %v3018, %v3392
      %v3415 = vadd.f32 %v3019, %v3397
      %v3416 = vld [vmem:[%s2623 + $0x2] sm:$0xff]
      %v3417 = vld [vmem:[%s2623 + $0xa] sm:$0xff]
      %v3418 = vld [vmem:[%s2623 + $0x1a] sm:$0xff]
      %v3419 = vld [vmem:[%s2623 + $0x22] sm:$0xff]
      %v3420 = vld [vmem:[%s2623 + $0x32] sm:$0xff]
      %v3421 = vld [vmem:[%s2623 + $0x3a] sm:$0xff]
      %v3422 = vld [vmem:[%s2623 + $0x4a] sm:$0xff]
      %v3423 = vld [vmem:[%s2623 + $0x52] sm:$0xff]
      %v3424 = vld [vmem:[%s2623 + $0x62] sm:$0xff]
      %v3425 = vld [vmem:[%s2623 + $0x6a] sm:$0xff]
      %v3426 = vld [vmem:[%s2623 + $0x7a] sm:$0xff]
      %v3427 = vld [vmem:[%s2623 + $0x82] sm:$0xff]
      %v3428 = vld [vmem:[%s2623 + $0x92] sm:$0xff]
      %v3429 = vld [vmem:[%s2623 + $0x9a] sm:$0xff]
      %v3430 = vld [vmem:[%s2623 + $0xaa] sm:$0xff]
      %v3431 = vld [vmem:[%s2623 + $0xb2] sm:$0xff]
      %s3432 = scalar_lea.vmem %s1, 32
      %v3433 = vld [vmem:[%s3432] sm:$0xf]
      %v3435 = vsel %vm342, %v3416, 0
      %v3438 = vsel %vm342, %v3417, 0
      %v3441 = vsel %vm342, %v3418, 0
      %v3444 = vsel %vm342, %v3419, 0
      %v3447 = vsel %vm342, %v3420, 0
      %v3450 = vsel %vm342, %v3421, 0
      %v3453 = vsel %vm342, %v3422, 0
      %v3456 = vsel %vm342, %v3423, 0
      %v3459 = vsel %vm342, %v3424, 0
      %v3462 = vsel %vm342, %v3425, 0
      %v3465 = vsel %vm342, %v3426, 0
      %v3468 = vsel %vm342, %v3427, 0
      %v3471 = vsel %vm342, %v3428, 0
      %v3474 = vsel %vm342, %v3429, 0
      %v3477 = vsel %vm342, %v3430, 0
      %v3480 = vsel %vm342, %v3431, 0
      %v3483 = vsel %vm391, %v3433, 0
      %3485 = vmatprep.subr.mxu0 0.0
      %3486 = vmatpush1.msra.mxu0 0.0
      %3487 = vmatprep.subr.mxu0 0.0
      %3488 = vmatpush1.msra.mxu0 0.0
      %3489 = vmatprep.subr.mxu0 0.0
      %3490 = vmatpush1.msra.mxu0 0.0
      %3491 = vmatprep.subr.mxu0 0.0
      %3492 = vmatpush1.msra.mxu0 0.0
      %3493 = vmatprep.subr.mxu0 0.0
      %3494 = vmatpush1.msra.mxu0 0.0
      %3495 = vmatprep.subr.mxu0 0.0
      %3496 = vmatpush1.msra.mxu0 0.0
      %3497 = vmatprep.subr.mxu0 0.0
      %3498 = vmatpush1.msra.mxu0 0.0
      %3499 = vmatprep.subr.mxu0 0.0
      %3500 = vmatpush1.msra.mxu0 0.0
      %3501 = vmatprep.subr.mxu0 0.0
      %3502 = vmatpush1.msra.mxu0 0.0
      %3503 = vmatprep.subr.mxu0 0.0
      %3504 = vmatpush1.msra.mxu0 0.0
      %3505 = vmatprep.subr.mxu0 0.0
      %3506 = vmatpush1.msra.mxu0 0.0
      %3507 = vmatprep.subr.mxu0 0.0
      %3508 = vmatpush1.msra.mxu0 0.0
      %3509 = vmatprep.subr.mxu0 0.0
      %3510 = vmatpush1.msra.mxu0 0.0
      %3511 = vmatprep.subr.mxu0 0.0
      %3512 = vmatpush1.msra.mxu0 0.0
      %3513 = vmatprep.subr.mxu0 0.0
      %3514 = vmatpush1.msra.mxu0 0.0
      %3515 = vmatprep.subr.mxu0 0.0
      %3516 = vmatpush1.msra.mxu0 %v3483
      %3517 = vmatprep.subr.mxu0 0.0
      %3518 = vmatpush2.msra.mxu0 0.0
      %3519 = vmatprep.subr.mxu0 0.0
      %3520 = vmatpush2.msra.mxu0 0.0
      %3521 = vmatprep.subr.mxu0 0.0
      %3522 = vmatpush2.msra.mxu0 0.0
      %3523 = vmatprep.subr.mxu0 0.0
      %3524 = vmatpush2.msra.mxu0 0.0
      %3525 = vmatprep.subr.mxu0 0.0
      %3526 = vmatpush2.msra.mxu0 0.0
      %3527 = vmatprep.subr.mxu0 0.0
      %3528 = vmatpush2.msra.mxu0 0.0
      %3529 = vmatprep.subr.mxu0 0.0
      %3530 = vmatpush2.msra.mxu0 0.0
      %3531 = vmatprep.subr.mxu0 0.0
      %3532 = vmatpush2.msra.mxu0 0.0
      %3533 = vmatprep.subr.mxu0 0.0
      %3534 = vmatpush2.msra.mxu0 0.0
      %3535 = vmatprep.subr.mxu0 0.0
      %3536 = vmatpush2.msra.mxu0 0.0
      %3537 = vmatprep.subr.mxu0 0.0
      %3538 = vmatpush2.msra.mxu0 0.0
      %3539 = vmatprep.subr.mxu0 0.0
      %3540 = vmatpush2.msra.mxu0 0.0
      %3541 = vmatprep.subr.mxu0 0.0
      %3542 = vmatpush2.msra.mxu0 0.0
      %3543 = vmatprep.subr.mxu0 0.0
      %3544 = vmatpush2.msra.mxu0 0.0
      %3545 = vmatprep.subr.mxu0 0.0
      %3546 = vmatpush2.msra.mxu0 0.0
      %3547 = vmatprep.subr.mxu0 0.0
      %3548 = vmatpush2.msra.mxu0 0.0
      %3549 = vmatprep.mubr.f32.mxu0 0.0
      %3550 = vmatmul.mubr.f32.gmra.mxu0 %v3435
      %v3551 = vpop.f32.mrf.mxu0
      %v3552 = vadd.f32 0.0, %v3551
      %v3553 = vpop.f32.mrf.mxu0
      %3554 = vmatprep.mubr.f32.mxu0 0.0
      %3555 = vmatmul.mubr.f32.gmra.mxu0 %v3438
      %v3556 = vpop.f32.mrf.mxu0
      %v3557 = vadd.f32 0.0, %v3556
      %v3558 = vpop.f32.mrf.mxu0
      %3559 = vmatprep.mubr.f32.mxu0 0.0
      %3560 = vmatmul.mubr.f32.gmra.mxu0 %v3441
      %v3561 = vpop.f32.mrf.mxu0
      %v3562 = vadd.f32 0.0, %v3561
      %v3563 = vpop.f32.mrf.mxu0
      %3564 = vmatprep.mubr.f32.mxu0 0.0
      %3565 = vmatmul.mubr.f32.gmra.mxu0 %v3444
      %v3566 = vpop.f32.mrf.mxu0
      %v3567 = vadd.f32 0.0, %v3566
      %v3568 = vpop.f32.mrf.mxu0
      %3569 = vmatprep.mubr.f32.mxu0 0.0
      %3570 = vmatmul.mubr.f32.gmra.mxu0 %v3447
      %v3571 = vpop.f32.mrf.mxu0
      %v3572 = vadd.f32 0.0, %v3571
      %v3573 = vpop.f32.mrf.mxu0
      %3574 = vmatprep.mubr.f32.mxu0 0.0
      %3575 = vmatmul.mubr.f32.gmra.mxu0 %v3450
      %v3576 = vpop.f32.mrf.mxu0
      %v3577 = vadd.f32 0.0, %v3576
      %v3578 = vpop.f32.mrf.mxu0
      %3579 = vmatprep.mubr.f32.mxu0 0.0
      %3580 = vmatmul.mubr.f32.gmra.mxu0 %v3453
      %v3581 = vpop.f32.mrf.mxu0
      %v3582 = vadd.f32 0.0, %v3581
      %v3583 = vpop.f32.mrf.mxu0
      %3584 = vmatprep.mubr.f32.mxu0 0.0
      %3585 = vmatmul.mubr.f32.gmra.mxu0 %v3456
      %v3586 = vpop.f32.mrf.mxu0
      %v3587 = vadd.f32 0.0, %v3586
      %v3588 = vpop.f32.mrf.mxu0
      %3589 = vmatprep.mubr.f32.mxu0 0.0
      %3590 = vmatmul.mubr.f32.gmra.mxu0 %v3459
      %v3591 = vpop.f32.mrf.mxu0
      %v3592 = vadd.f32 0.0, %v3591
      %v3593 = vpop.f32.mrf.mxu0
      %3594 = vmatprep.mubr.f32.mxu0 0.0
      %3595 = vmatmul.mubr.f32.gmra.mxu0 %v3462
      %v3596 = vpop.f32.mrf.mxu0
      %v3597 = vadd.f32 0.0, %v3596
      %v3598 = vpop.f32.mrf.mxu0
      %3599 = vmatprep.mubr.f32.mxu0 0.0
      %3600 = vmatmul.mubr.f32.gmra.mxu0 %v3465
      %v3601 = vpop.f32.mrf.mxu0
      %v3602 = vadd.f32 0.0, %v3601
      %v3603 = vpop.f32.mrf.mxu0
      %3604 = vmatprep.mubr.f32.mxu0 0.0
      %3605 = vmatmul.mubr.f32.gmra.mxu0 %v3468
      %v3606 = vpop.f32.mrf.mxu0
      %v3607 = vadd.f32 0.0, %v3606
      %v3608 = vpop.f32.mrf.mxu0
      %3609 = vmatprep.mubr.f32.mxu0 0.0
      %3610 = vmatmul.mubr.f32.gmra.mxu0 %v3471
      %v3611 = vpop.f32.mrf.mxu0
      %v3612 = vadd.f32 0.0, %v3611
      %v3613 = vpop.f32.mrf.mxu0
      %3614 = vmatprep.mubr.f32.mxu0 0.0
      %3615 = vmatmul.mubr.f32.gmra.mxu0 %v3474
      %v3616 = vpop.f32.mrf.mxu0
      %v3617 = vadd.f32 0.0, %v3616
      %v3618 = vpop.f32.mrf.mxu0
      %3619 = vmatprep.mubr.f32.mxu0 0.0
      %3620 = vmatmul.mubr.f32.gmra.mxu0 %v3477
      %v3621 = vpop.f32.mrf.mxu0
      %v3622 = vadd.f32 0.0, %v3621
      %v3623 = vpop.f32.mrf.mxu0
      %3624 = vmatprep.mubr.f32.mxu0 0.0
      %3625 = vmatmul.mubr.f32.gmra.mxu0 %v3480
      %v3626 = vpop.f32.mrf.mxu0
      %v3627 = vadd.f32 0.0, %v3626
      %v3628 = vpop.f32.mrf.mxu0
      %3629 = vdwg.mxu0
      %v3630 = vadd.f32 %v3234, %v3552
      %v3631 = vadd.f32 %v3235, %v3557
      %v3632 = vadd.f32 %v3236, %v3562
      %v3633 = vadd.f32 %v3237, %v3567
      %v3634 = vadd.f32 %v3238, %v3572
      %v3635 = vadd.f32 %v3239, %v3577
      %v3636 = vadd.f32 %v3240, %v3582
      %v3637 = vadd.f32 %v3241, %v3587
      %v3638 = vadd.f32 %v3242, %v3592
      %v3639 = vadd.f32 %v3243, %v3597
      %v3640 = vadd.f32 %v3244, %v3602
      %v3641 = vadd.f32 %v3245, %v3607
      %v3642 = vadd.f32 %v3246, %v3612
      %v3643 = vadd.f32 %v3247, %v3617
      %v3644 = vadd.f32 %v3248, %v3622
      %v3645 = vadd.f32 %v3249, %v3627
      %s3646 = scalar_lea.vmem %s3, 32
      %v3647 = vld [vmem:[%s3646] sm:$0xf]
      %v3649 = vsel %vm391, %v3647, 0
      %3651 = vmatprep.subr.mxu0 0.0
      %3652 = vmatpush1.msra.mxu0 0.0
      %3653 = vmatprep.subr.mxu0 0.0
      %3654 = vmatpush1.msra.mxu0 0.0
      %3655 = vmatprep.subr.mxu0 0.0
      %3656 = vmatpush1.msra.mxu0 0.0
      %3657 = vmatprep.subr.mxu0 0.0
      %3658 = vmatpush1.msra.mxu0 0.0
      %3659 = vmatprep.subr.mxu0 0.0
      %3660 = vmatpush1.msra.mxu0 0.0
      %3661 = vmatprep.subr.mxu0 0.0
      %3662 = vmatpush1.msra.mxu0 0.0
      %3663 = vmatprep.subr.mxu0 0.0
      %3664 = vmatpush1.msra.mxu0 0.0
      %3665 = vmatprep.subr.mxu0 0.0
      %3666 = vmatpush1.msra.mxu0 0.0
      %3667 = vmatprep.subr.mxu0 0.0
      %3668 = vmatpush1.msra.mxu0 0.0
      %3669 = vmatprep.subr.mxu0 0.0
      %3670 = vmatpush1.msra.mxu0 0.0
      %3671 = vmatprep.subr.mxu0 0.0
      %3672 = vmatpush1.msra.mxu0 0.0
      %3673 = vmatprep.subr.mxu0 0.0
      %3674 = vmatpush1.msra.mxu0 0.0
      %3675 = vmatprep.subr.mxu0 0.0
      %3676 = vmatpush1.msra.mxu0 0.0
      %3677 = vmatprep.subr.mxu0 0.0
      %3678 = vmatpush1.msra.mxu0 0.0
      %3679 = vmatprep.subr.mxu0 0.0
      %3680 = vmatpush1.msra.mxu0 0.0
      %3681 = vmatprep.subr.mxu0 0.0
      %3682 = vmatpush1.msra.mxu0 %v3649
      %3683 = vmatprep.subr.mxu0 0.0
      %3684 = vmatpush2.msra.mxu0 0.0
      %3685 = vmatprep.subr.mxu0 0.0
      %3686 = vmatpush2.msra.mxu0 0.0
      %3687 = vmatprep.subr.mxu0 0.0
      %3688 = vmatpush2.msra.mxu0 0.0
      %3689 = vmatprep.subr.mxu0 0.0
      %3690 = vmatpush2.msra.mxu0 0.0
      %3691 = vmatprep.subr.mxu0 0.0
      %3692 = vmatpush2.msra.mxu0 0.0
      %3693 = vmatprep.subr.mxu0 0.0
      %3694 = vmatpush2.msra.mxu0 0.0
      %3695 = vmatprep.subr.mxu0 0.0
      %3696 = vmatpush2.msra.mxu0 0.0
      %3697 = vmatprep.subr.mxu0 0.0
      %3698 = vmatpush2.msra.mxu0 0.0
      %3699 = vmatprep.subr.mxu0 0.0
      %3700 = vmatpush2.msra.mxu0 0.0
      %3701 = vmatprep.subr.mxu0 0.0
      %3702 = vmatpush2.msra.mxu0 0.0
      %3703 = vmatprep.subr.mxu0 0.0
      %3704 = vmatpush2.msra.mxu0 0.0
      %3705 = vmatprep.subr.mxu0 0.0
      %3706 = vmatpush2.msra.mxu0 0.0
      %3707 = vmatprep.subr.mxu0 0.0
      %3708 = vmatpush2.msra.mxu0 0.0
      %3709 = vmatprep.subr.mxu0 0.0
      %3710 = vmatpush2.msra.mxu0 0.0
      %3711 = vmatprep.subr.mxu0 0.0
      %3712 = vmatpush2.msra.mxu0 0.0
      %3713 = vmatprep.subr.mxu0 0.0
      %3714 = vmatpush2.msra.mxu0 0.0
      %3715 = vmatprep.mubr.f32.mxu0 0.0
      %3716 = vmatmul.mubr.f32.gmra.mxu0 %v3435
      %v3717 = vpop.f32.mrf.mxu0
      %v3718 = vadd.f32 0.0, %v3717
      %v3719 = vpop.f32.mrf.mxu0
      %3720 = vmatprep.mubr.f32.mxu0 0.0
      %3721 = vmatmul.mubr.f32.gmra.mxu0 %v3438
      %v3722 = vpop.f32.mrf.mxu0
      %v3723 = vadd.f32 0.0, %v3722
      %v3724 = vpop.f32.mrf.mxu0
      %3725 = vmatprep.mubr.f32.mxu0 0.0
      %3726 = vmatmul.mubr.f32.gmra.mxu0 %v3441
      %v3727 = vpop.f32.mrf.mxu0
      %v3728 = vadd.f32 0.0, %v3727
      %v3729 = vpop.f32.mrf.mxu0
      %3730 = vmatprep.mubr.f32.mxu0 0.0
      %3731 = vmatmul.mubr.f32.gmra.mxu0 %v3444
      %v3732 = vpop.f32.mrf.mxu0
      %v3733 = vadd.f32 0.0, %v3732
      %v3734 = vpop.f32.mrf.mxu0
      %3735 = vmatprep.mubr.f32.mxu0 0.0
      %3736 = vmatmul.mubr.f32.gmra.mxu0 %v3447
      %v3737 = vpop.f32.mrf.mxu0
      %v3738 = vadd.f32 0.0, %v3737
      %v3739 = vpop.f32.mrf.mxu0
      %3740 = vmatprep.mubr.f32.mxu0 0.0
      %3741 = vmatmul.mubr.f32.gmra.mxu0 %v3450
      %v3742 = vpop.f32.mrf.mxu0
      %v3743 = vadd.f32 0.0, %v3742
      %v3744 = vpop.f32.mrf.mxu0
      %3745 = vmatprep.mubr.f32.mxu0 0.0
      %3746 = vmatmul.mubr.f32.gmra.mxu0 %v3453
      %v3747 = vpop.f32.mrf.mxu0
      %v3748 = vadd.f32 0.0, %v3747
      %v3749 = vpop.f32.mrf.mxu0
      %3750 = vmatprep.mubr.f32.mxu0 0.0
      %3751 = vmatmul.mubr.f32.gmra.mxu0 %v3456
      %v3752 = vpop.f32.mrf.mxu0
      %v3753 = vadd.f32 0.0, %v3752
      %v3754 = vpop.f32.mrf.mxu0
      %3755 = vmatprep.mubr.f32.mxu0 0.0
      %3756 = vmatmul.mubr.f32.gmra.mxu0 %v3459
      %v3757 = vpop.f32.mrf.mxu0
      %v3758 = vadd.f32 0.0, %v3757
      %v3759 = vpop.f32.mrf.mxu0
      %3760 = vmatprep.mubr.f32.mxu0 0.0
      %3761 = vmatmul.mubr.f32.gmra.mxu0 %v3462
      %v3762 = vpop.f32.mrf.mxu0
      %v3763 = vadd.f32 0.0, %v3762
      %v3764 = vpop.f32.mrf.mxu0
      %3765 = vmatprep.mubr.f32.mxu0 0.0
      %3766 = vmatmul.mubr.f32.gmra.mxu0 %v3465
      %v3767 = vpop.f32.mrf.mxu0
      %v3768 = vadd.f32 0.0, %v3767
      %v3769 = vpop.f32.mrf.mxu0
      %3770 = vmatprep.mubr.f32.mxu0 0.0
      %3771 = vmatmul.mubr.f32.gmra.mxu0 %v3468
      %v3772 = vpop.f32.mrf.mxu0
      %v3773 = vadd.f32 0.0, %v3772
      %v3774 = vpop.f32.mrf.mxu0
      %3775 = vmatprep.mubr.f32.mxu0 0.0
      %3776 = vmatmul.mubr.f32.gmra.mxu0 %v3471
      %v3777 = vpop.f32.mrf.mxu0
      %v3778 = vadd.f32 0.0, %v3777
      %v3779 = vpop.f32.mrf.mxu0
      %3780 = vmatprep.mubr.f32.mxu0 0.0
      %3781 = vmatmul.mubr.f32.gmra.mxu0 %v3474
      %v3782 = vpop.f32.mrf.mxu0
      %v3783 = vadd.f32 0.0, %v3782
      %v3784 = vpop.f32.mrf.mxu0
      %3785 = vmatprep.mubr.f32.mxu0 0.0
      %3786 = vmatmul.mubr.f32.gmra.mxu0 %v3477
      %v3787 = vpop.f32.mrf.mxu0
      %v3788 = vadd.f32 0.0, %v3787
      %v3789 = vpop.f32.mrf.mxu0
      %3790 = vmatprep.mubr.f32.mxu0 0.0
      %3791 = vmatmul.mubr.f32.gmra.mxu0 %v3480
      %v3792 = vpop.f32.mrf.mxu0
      %v3793 = vadd.f32 0.0, %v3792
      %v3794 = vpop.f32.mrf.mxu0
      %3795 = vdwg.mxu0
      %v3796 = vadd.f32 %v3400, %v3718
      %v3797 = vadd.f32 %v3401, %v3723
      %v3798 = vadd.f32 %v3402, %v3728
      %v3799 = vadd.f32 %v3403, %v3733
      %v3800 = vadd.f32 %v3404, %v3738
      %v3801 = vadd.f32 %v3405, %v3743
      %v3802 = vadd.f32 %v3406, %v3748
      %v3803 = vadd.f32 %v3407, %v3753
      %v3804 = vadd.f32 %v3408, %v3758
      %v3805 = vadd.f32 %v3409, %v3763
      %v3806 = vadd.f32 %v3410, %v3768
      %v3807 = vadd.f32 %v3411, %v3773
      %v3808 = vadd.f32 %v3412, %v3778
      %v3809 = vadd.f32 %v3413, %v3783
      %v3810 = vadd.f32 %v3414, %v3788
      %v3811 = vadd.f32 %v3415, %v3793
      %v3812 = vld [vmem:[%s2] sm:$0x1]
      %v3814 = vlaneseq
      %v3815 = vshrl.u32 %v3814, 7
      %v3816 = vsub.s32 0, %v3815
      %v3817 = vrot.slane %v3812, %v3816
      %v3819 = vadd.f32 %v3630, %v3817
      %v3820 = vadd.f32 %v3631, %v3817
      %v3821 = vadd.f32 %v3632, %v3817
      %v3822 = vadd.f32 %v3633, %v3817
      %v3823 = vadd.f32 %v3634, %v3817
      %v3824 = vadd.f32 %v3635, %v3817
      %v3825 = vadd.f32 %v3636, %v3817
      %v3826 = vadd.f32 %v3637, %v3817
      %v3827 = vadd.f32 %v3638, %v3817
      %v3828 = vadd.f32 %v3639, %v3817
      %v3829 = vadd.f32 %v3640, %v3817
      %v3830 = vadd.f32 %v3641, %v3817
      %v3831 = vadd.f32 %v3642, %v3817
      %v3832 = vadd.f32 %v3643, %v3817
      %v3833 = vadd.f32 %v3644, %v3817
      %v3834 = vadd.f32 %v3645, %v3817
      %v3835 = vmax.f32 %v3819, 0.0
      %v3836 = vmax.f32 %v3820, 0.0
      %v3837 = vmax.f32 %v3821, 0.0
      %v3838 = vmax.f32 %v3822, 0.0
      %v3839 = vmax.f32 %v3823, 0.0
      %v3840 = vmax.f32 %v3824, 0.0
      %v3841 = vmax.f32 %v3825, 0.0
      %v3842 = vmax.f32 %v3826, 0.0
      %v3843 = vmax.f32 %v3827, 0.0
      %v3844 = vmax.f32 %v3828, 0.0
      %v3845 = vmax.f32 %v3829, 0.0
      %v3846 = vmax.f32 %v3830, 0.0
      %v3847 = vmax.f32 %v3831, 0.0
      %v3848 = vmax.f32 %v3832, 0.0
      %v3849 = vmax.f32 %v3833, 0.0
      %v3850 = vmax.f32 %v3834, 0.0
      %vm3851 = vcmask 64512
      %3852 = vst.msk [vmem:[%s290] sm:$0xff] %vm3851, %v3835
      %3853 = vst.msk [vmem:[%s290 + $0x8] sm:$0xff] %vm3851, %v3836
      %3854 = vst.msk [vmem:[%s290 + $0x10] sm:$0xff] %vm3851, %v3837
      %3855 = vst.msk [vmem:[%s290 + $0x18] sm:$0xff] %vm3851, %v3838
      %3856 = vst.msk [vmem:[%s290 + $0x20] sm:$0xff] %vm3851, %v3839
      %3857 = vst.msk [vmem:[%s290 + $0x28] sm:$0xff] %vm3851, %v3840
      %3858 = vst.msk [vmem:[%s290 + $0x30] sm:$0xff] %vm3851, %v3841
      %3859 = vst.msk [vmem:[%s290 + $0x38] sm:$0xff] %vm3851, %v3842
      %3860 = vst.msk [vmem:[%s290 + $0x40] sm:$0xff] %vm3851, %v3843
      %3861 = vst.msk [vmem:[%s290 + $0x48] sm:$0xff] %vm3851, %v3844
      %3862 = vst.msk [vmem:[%s290 + $0x50] sm:$0xff] %vm3851, %v3845
      %3863 = vst.msk [vmem:[%s290 + $0x58] sm:$0xff] %vm3851, %v3846
      %3864 = vst.msk [vmem:[%s290 + $0x60] sm:$0xff] %vm3851, %v3847
      %3865 = vst.msk [vmem:[%s290 + $0x68] sm:$0xff] %vm3851, %v3848
      %3866 = vst.msk [vmem:[%s290 + $0x70] sm:$0xff] %vm3851, %v3849
      %3867 = vst.msk [vmem:[%s290 + $0x78] sm:$0xff] %vm3851, %v3850
      %v3868 = vld [vmem:[%s4] sm:$0x1]
      %v3870 = vlaneseq
      %v3871 = vshrl.u32 %v3870, 7
      %v3872 = vsub.s32 0, %v3871
      %v3873 = vrot.slane %v3868, %v3872
      %v3875 = vadd.f32 %v3796, %v3873
      %v3876 = vadd.f32 %v3797, %v3873
      %v3877 = vadd.f32 %v3798, %v3873
      %v3878 = vadd.f32 %v3799, %v3873
      %v3879 = vadd.f32 %v3800, %v3873
      %v3880 = vadd.f32 %v3801, %v3873
      %v3881 = vadd.f32 %v3802, %v3873
      %v3882 = vadd.f32 %v3803, %v3873
      %v3883 = vadd.f32 %v3804, %v3873
      %v3884 = vadd.f32 %v3805, %v3873
      %v3885 = vadd.f32 %v3806, %v3873
      %v3886 = vadd.f32 %v3807, %v3873
      %v3887 = vadd.f32 %v3808, %v3873
      %v3888 = vadd.f32 %v3809, %v3873
      %v3889 = vadd.f32 %v3810, %v3873
      %v3890 = vadd.f32 %v3811, %v3873
      %3891 = vst.msk [vmem:[%s301] sm:$0xff] %vm3851, %v3875
      %3892 = vst.msk [vmem:[%s301 + $0x8] sm:$0xff] %vm3851, %v3876
      %3893 = vst.msk [vmem:[%s301 + $0x10] sm:$0xff] %vm3851, %v3877
      %3894 = vst.msk [vmem:[%s301 + $0x18] sm:$0xff] %vm3851, %v3878
      %3895 = vst.msk [vmem:[%s301 + $0x20] sm:$0xff] %vm3851, %v3879
      %3896 = vst.msk [vmem:[%s301 + $0x28] sm:$0xff] %vm3851, %v3880
      %3897 = vst.msk [vmem:[%s301 + $0x30] sm:$0xff] %vm3851, %v3881
      %3898 = vst.msk [vmem:[%s301 + $0x38] sm:$0xff] %vm3851, %v3882
      %3899 = vst.msk [vmem:[%s301 + $0x40] sm:$0xff] %vm3851, %v3883
      %3900 = vst.msk [vmem:[%s301 + $0x48] sm:$0xff] %vm3851, %v3884
      %3901 = vst.msk [vmem:[%s301 + $0x50] sm:$0xff] %vm3851, %v3885
      %3902 = vst.msk [vmem:[%s301 + $0x58] sm:$0xff] %vm3851, %v3886
      %3903 = vst.msk [vmem:[%s301 + $0x60] sm:$0xff] %vm3851, %v3887
      %3904 = vst.msk [vmem:[%s301 + $0x68] sm:$0xff] %vm3851, %v3888
      %3905 = vst.msk [vmem:[%s301 + $0x70] sm:$0xff] %vm3851, %v3889
      %3906 = vst.msk [vmem:[%s301 + $0x78] sm:$0xff] %vm3851, %v3890
      %s3907 = smul.u32 8, %s23
      %p3908 = scmp.lt.s32.totalorder %s22, 1
      %s3909 = scalar_select %p3908, %s22, 1
      %p3910 = scmp.lt.s32.totalorder %s3907, 15
      %s3911 = scalar_select %p3910, %s3907, 15
      %s3912 = smul.addr %s3911, 2
      %s3913 = smul.addr %s3909, 32
      %s3914 = sadd.s32 %s3912, %s3913
      %s3915 = smul.addr %s3914, 8
      %s3916 = scalar_lea.vmem %s5, %s3915
      %s3917 = smul.u32 8, %s23
      %p3918 = scmp.lt.s32.totalorder %s22, 1
      %s3919 = scalar_select %p3918, %s22, 1
      %p3920 = scmp.lt.s32.totalorder %s3917, 15
      %s3921 = scalar_select %p3920, %s3917, 15
      %s3922 = smul.addr %s3921, 2
      %s3923 = smul.addr %s3919, 32
      %s3924 = sadd.s32 %s3922, %s3923
      %s3925 = smul.addr %s3924, 8
      %s3926 = scalar_lea.vmem %s6, %s3925
      // Predicated region
      $region41: #{res_block_forward.2} parent=39 // pred_check
        %p3927 = pneg %p160
      $region42: #{res_block_forward.2} parent=39 // pred_check_branch
        %3929 = sbr.rel (%p3927) target = $region44
      $region43: #{res_block_forward.2} parent=39 // pred_region
        %s3930 = smul.u32 8, %s23
      $region44: #{res_block_forward.2} parent=39 // pred_fallthru
        _
      // Predicated region
      $region45: #{res_block_forward.2} parent=39 // pred_check
        %p3931 = pneg %p188
      $region46: #{res_block_forward.2} parent=39 // pred_check_branch
        %3933 = sbr.rel (%p3931) target = $region48
      $region47: #{res_block_forward.2} parent=39 // pred_region
        %s3934 = smul.u32 8, %s23
      $region48: #{res_block_forward.2} parent=39 // pred_fallthru
        _
    $region40: #{res_block_forward.2} parent=5 // pred_fallthru
      _
    %p3935 = scmp.le.s32.totalorder 2, %s13
    // Predicated region
    $region49: #{res_block_forward.2} parent=5 // pred_check
      %p3936 = pneg %p3935
    $region50: #{res_block_forward.2} parent=5 // pred_check_branch
      %3938 = sbr.rel (%p3936) target = $region52
    $region51: #{res_block_forward.2} parent=5 // pred_region
      %s3939 = ssub.s32 %s13, 2
      // Predicated region
      $region53: #{res_block_forward.2} parent=51 // pred_check
        %p3940 = pneg %p166
      $region54: #{res_block_forward.2} parent=51 // pred_check_branch
        %3942 = sbr.rel (%p3940) target = $region56
      $region55: #{res_block_forward.2} parent=51 // pred_region
        %s3943 = smul.u32 8, %s25
        %p3944 = scmp.lt.s32.totalorder %s24, 1
        %s3945 = scalar_select %p3944, %s24, 1
        %p3946 = scmp.lt.s32.totalorder %s3943, 15
        %s3947 = scalar_select %p3946, %s3943, 15
        %s3948 = smul.addr %s3947, 2
        %s3949 = smul.addr %s3945, 32
        %s3950 = sadd.s32 %s3948, %s3949
        %s3951 = smul.addr %s3950, 8
        %s3952 = scalar_lea.vmem %s5, %s3951
      $region56: #{res_block_forward.2} parent=51 // pred_fallthru
        _
      // Predicated region
      $region57: #{res_block_forward.2} parent=51 // pred_check
        %p3953 = pneg %p194
      $region58: #{res_block_forward.2} parent=51 // pred_check_branch
        %3955 = sbr.rel (%p3953) target = $region60
      $region59: #{res_block_forward.2} parent=51 // pred_region
        %s3956 = smul.u32 8, %s25
        %p3957 = scmp.lt.s32.totalorder %s24, 1
        %s3958 = scalar_select %p3957, %s24, 1
        %p3959 = scmp.lt.s32.totalorder %s3956, 15
        %s3960 = scalar_select %p3959, %s3956, 15
        %s3961 = smul.addr %s3960, 2
        %s3962 = smul.addr %s3958, 32
        %s3963 = sadd.s32 %s3961, %s3962
        %s3964 = smul.addr %s3963, 8
        %s3965 = scalar_lea.vmem %s6, %s3964
      $region60: #{res_block_forward.2} parent=51 // pred_fallthru
        _
    $region52: #{res_block_forward.2} parent=5 // pred_fallthru
      _
  $region6: #{res_block_forward.2} parent=0 // loop_footer
    %s17 = sadd.s32 1, %s13
  $region7: #{res_block_forward.2} parent=0 // loop_footer_branch
    %12 = sbr.rel target = $region3
  $region8: #{res_block_forward.2} parent=0 // loop_exit
    _

</llo_original>
